<compile_context>
chip_gen: v5e
topology: v5e:2x2
jax: 0.10.0
libtpu: 0.0.40
codegen_flags: <defaults>
</compile_context>

<pallas_src>
import math

import jax
import jax.numpy as jnp
from jax import lax
from jax.experimental import pallas as pl
from jax.experimental.pallas import tpu as pltpu

EPS = 1e-5                        # BatchNorm2d default eps
_BN_S = 1.0 / math.sqrt(1.0 + EPS)

ACT_DTYPE = jnp.bfloat16          # inter-stage activation / G storage dtype
MM_DTYPE = jnp.bfloat16           # MXU operand dtype (f32 accumulation)

_M_TARGET = 2048                  # target MXU M (= R * W_out) per grid step
_VMEM_LIMIT = 48 * 1024 * 1024    # safe scoped-VMEM limit on v5e/v6e/v7x


def _pick_row_block(h_out, w_out):
    """Largest divisor R of h_out with R * w_out <= _M_TARGET."""
    best = 1
    for r in range(1, h_out + 1):
        if h_out % r == 0 and r * w_out <= _M_TARGET:
            best = r
    return best


# ---------------------------------------------------------------------------
# Pallas kernels
# ---------------------------------------------------------------------------

def _stage0_kernel(pm_ref, ph0_ref, ph1_ref, dw_ref, pw_ref, f_ref):
    """spp_dw[0]: stride-1 dense 3x3 + ReLU + 1x1 pw + skip, for R output rows.

    pm_ref : (R, W+2, hid) bf16 — padded projected rows [r*R, r*R+R)
    ph0/ph1: (1, W+2, hid) bf16 — the two halo rows below the main block
    f_ref  : (R, W, hid) bf16 output (feat_0; G_0 == feat_0 is NOT materialised)
    """
    R, W, hid = f_ref.shape
    allr = jnp.concatenate([pm_ref[...], ph0_ref[...], ph1_ref[...]], axis=0)

    acc = jnp.zeros((R * W, hid), jnp.float32)
    for kh in range(3):
        rows = allr[kh:kh + R]                                    # (R, W+2, hid)
        for kw in range(3):
            blk = rows[:, kw:kw + W, :].reshape(R * W, hid)       # bf16, no casts
            acc += jnp.dot(blk, dw_ref[kh * 3 + kw],
                           preferred_element_type=jnp.float32)
    h = jnp.maximum(acc, 0.0).astype(MM_DTYPE)
    y = jnp.dot(h, pw_ref[...], preferred_element_type=jnp.float32)

    skip = allr[1:1 + R, 1:1 + W, :].astype(jnp.float32).reshape(R * W, hid)
    f_ref[...] = (y + skip).reshape(R, W, hid).astype(f_ref.dtype)


def _down_body(fEm_ref, fEh_ref, fOm_ref, fOh_ref, gE_ref, gO_ref,
               dw_ref, pw_ref, f_ref, g_ref):
    """Stride-2 dense 3x3 + ReLU + 1x1 pw (no skip) + progressive 2x2 pooling.

    fE*/fO*: padded-even / padded-odd column splits of f_{k-1}: main block of
             2R rows + 1 halo row, each (rows, W_out+1, hid) bf16.
    gE/gO  : even/odd column splits of G_{k-1} (2R rows, W_out, hid) bf16, or
             None for the first down stage (then G_{k-1} == f_{k-1}).
    Outputs: f_ref (R, W_out, hid) bf16 feat_k; g_ref (R, W_out, hid) G_k.
    """
    R, W_out, hid = f_ref.shape
    We = fEm_ref.shape[1]                                         # W_out + 1

    allE = jnp.concatenate([fEm_ref[...], fEh_ref[...]], axis=0)  # (2R+1, We, hid)
    allO = jnp.concatenate([fOm_ref[...], fOh_ref[...]], axis=0)

    def rowsel(allX):
        # rows {2i+kh : i in [0,R)} for kh = 0,1,2 (leading-dim selections only)
        pairs = allX[0:2 * R].reshape(R, 2, We, hid)
        r0, r1 = pairs[:, 0], pairs[:, 1]
        if R > 1:
            r2 = jnp.concatenate([pairs[1:, 0], allX[2 * R:2 * R + 1]], axis=0)
        else:
            r2 = allX[2 * R:2 * R + 1]
        return (r0, r1, r2)

    rE, rO = rowsel(allE), rowsel(allO)

    def flat(a, lo):
        return a[:, lo:lo + W_out, :].reshape(R * W_out, hid)     # bf16, no casts

    acc = jnp.zeros((R * W_out, hid), jnp.float32)
    for kh in range(3):
        acc += jnp.dot(flat(rE[kh], 0), dw_ref[kh * 3 + 0],
                       preferred_element_type=jnp.float32)        # kw = 0
        acc += jnp.dot(flat(rO[kh], 0), dw_ref[kh * 3 + 1],
                       preferred_element_type=jnp.float32)        # kw = 1
        acc += jnp.dot(flat(rE[kh], 1), dw_ref[kh * 3 + 2],
                       preferred_element_type=jnp.float32)        # kw = 2
    h = jnp.maximum(acc, 0.0).astype(MM_DTYPE)
    feat = jnp.dot(h, pw_ref[...], preferred_element_type=jnp.float32)

    # Progressive adaptive_avg_pool2d: G_k = avgpool_2x2(G_{k-1}) + feat_k.
    if gE_ref is None:
        # First down stage: G_0 == feat_0 == the rows already loaded (bf16).
        pE = allE[1:2 * R + 1].reshape(R, 2, We, hid)
        pO = allO[1:2 * R + 1].reshape(R, 2, We, hid)
        pool = 0.25 * (pE[:, 0, 1:1 + W_out, :].astype(jnp.float32)
                       + pE[:, 1, 1:1 + W_out, :].astype(jnp.float32)
                       + pO[:, 0, 0:W_out, :].astype(jnp.float32)
                       + pO[:, 1, 0:W_out, :].astype(jnp.float32))
    else:
        gE = gE_ref[...].astype(jnp.float32).reshape(R, 2, W_out, hid)
        gO = gO_ref[...].astype(jnp.float32).reshape(R, 2, W_out, hid)
        pool = 0.25 * (gE[:, 0] + gE[:, 1] + gO[:, 0] + gO[:, 1])

    g = pool.reshape(R * W_out, hid) + feat
    f_ref[...] = feat.reshape(R, W_out, hid).astype(f_ref.dtype)
    g_ref[...] = g.reshape(R, W_out, hid).astype(g_ref.dtype)


def _make_down_kernel(pool_from_f):
    if pool_from_f:
        def kernel(fEm, fEh, fOm, fOh, dw, pw, f_out, g_out):
            _down_body(fEm, fEh, fOm, fOh, None, None, dw, pw, f_out, g_out)
    else:
        def kernel(fEm, fEh, fOm, fOh, gE, gO, dw, pw, f_out, g_out):
            _down_body(fEm, fEh, fOm, fOh, gE, gO, dw, pw, f_out, g_out)
    return kernel


# ---------------------------------------------------------------------------
# pallas_call wrappers
# ---------------------------------------------------------------------------

def _stage0_call(p0, dw, pw, R):
    B, Hp, Wp, hid = p0.shape
    H, W = Hp - 2, Wp - 2

    main = pl.BlockSpec((None, R, Wp, hid), lambda b, r: (b, r, 0, 0))
    halo0 = pl.BlockSpec((None, 1, Wp, hid), lambda b, r: (b, (r + 1) * R, 0, 0))
    halo1 = pl.BlockSpec((None, 1, Wp, hid), lambda b, r: (b, (r + 1) * R + 1, 0, 0))
    wdw = pl.BlockSpec((9, hid, hid), lambda b, r: (0, 0, 0))     # VMEM-resident
    wpw = pl.BlockSpec((hid, hid), lambda b, r: (0, 0))
    out = pl.BlockSpec((None, R, W, hid), lambda b, r: (b, r, 0, 0))

    return pl.pallas_call(
        _stage0_kernel,
        grid=(B, H // R),
        in_specs=[main, halo0, halo1, wdw, wpw],
        out_specs=out,
        out_shape=jax.ShapeDtypeStruct((B, H, W, hid), ACT_DTYPE),
        compiler_params=pltpu.CompilerParams(
            dimension_semantics=("parallel", "parallel"),
            vmem_limit_bytes=_VMEM_LIMIT),
    )(p0, p0, p0, dw, pw)


def _down_call(fE, fO, gEO, dw, pw, R, g_dtype):
    B, Hpad, We, hid = fE.shape                    # Hpad = H_prev + 2
    H_prev = Hpad - 2
    H_out, W_out = H_prev // 2, We - 1

    m_spec = pl.BlockSpec((None, 2 * R, We, hid), lambda b, r: (b, r, 0, 0))
    h_spec = pl.BlockSpec((None, 1, We, hid),
                          lambda b, r: (b, 2 * R * (r + 1), 0, 0))
    wdw = pl.BlockSpec((9, hid, hid), lambda b, r: (0, 0, 0))
    wpw = pl.BlockSpec((hid, hid), lambda b, r: (0, 0))
    out = pl.BlockSpec((None, R, W_out, hid), lambda b, r: (b, r, 0, 0))

    in_specs = [m_spec, h_spec, m_spec, h_spec]
    args = [fE, fE, fO, fO]
    if gEO is not None:
        g_spec = pl.BlockSpec((None, 2 * R, W_out, hid), lambda b, r: (b, r, 0, 0))
        in_specs += [g_spec, g_spec]
        args += [gEO[0], gEO[1]]
    in_specs += [wdw, wpw]
    args += [dw, pw]

    return pl.pallas_call(
        _make_down_kernel(pool_from_f=(gEO is None)),
        grid=(B, H_out // R),
        in_specs=in_specs,
        out_specs=(out, out),
        out_shape=(jax.ShapeDtypeStruct((B, H_out, W_out, hid), ACT_DTYPE),
                   jax.ShapeDtypeStruct((B, H_out, W_out, hid), g_dtype)),
        compiler_params=pltpu.CompilerParams(
            dimension_semantics=("parallel", "parallel"),
            vmem_limit_bytes=_VMEM_LIMIT),
    )(*args)


# ---------------------------------------------------------------------------
# Parameters, XLA-side prep & forward
# ---------------------------------------------------------------------------

def init_params(key, in_ch, hidden, depth):
    """Deterministic parameters matching _init_weight_goog shapes/statistics."""
    keys = jax.random.split(key, 2 + 2 * (depth + 1))
    dw_w = jax.random.normal(keys[0], (in_ch,), jnp.float32) * math.sqrt(2.0)
    pw_w = jax.random.normal(keys[1], (hidden, in_ch), jnp.float32) * math.sqrt(2.0 / hidden)
    params = {"proj": {"dw_w": dw_w, "pw_w": pw_w}, "spp": []}
    ki = 2
    for _ in range(depth + 1):
        dw = jax.random.normal(keys[ki], (hidden, hidden, 3, 3), jnp.float32) * math.sqrt(
            2.0 / (9 * hidden))
        ki += 1
        pw = jax.random.normal(keys[ki], (hidden, hidden), jnp.float32) * math.sqrt(2.0 / hidden)
        ki += 1
        params["spp"].append({"dw_w": dw, "pw_w": pw})
    return params


def _project_input(x_nchw, params):
    """proj_1x1 (per-channel scale + BN + ReLU + 1x1 pw + BN) in XLA (Cin tiny)."""
    Cin = x_nchw.shape[1]
    pdw = (params["proj"]["dw_w"] * _BN_S).reshape(1, 1, 1, Cin)
    ppw = params["proj"]["pw_w"].T * _BN_S                      # (Cin, hid) f32
    x = jnp.transpose(x_nchw, (0, 2, 3, 1)).astype(jnp.float32)
    h = jnp.maximum(x * pdw, 0.0)
    return jnp.einsum("bhwc,co->bhwo", h, ppw)                  # f32


def _fold_spp_weights(pk, hid):
    """Fold eval-mode BN scales; layout (kh*3+kw, in, out) / (in, out), bf16."""
    dw = (jnp.transpose(pk["dw_w"], (2, 3, 1, 0)).reshape(9, hid, hid)
          * _BN_S).astype(MM_DTYPE)
    pw = (pk["pw_w"].T * _BN_S).astype(MM_DTYPE)
    return dw, pw


def _split_cols_padded(f):
    """Padded even/odd column splits of f with zero row padding (single fused
    XLA pass; no separate jnp.pad of the full map)."""
    B, Hc, Wc, hid = f.shape
    zc = jnp.zeros((B, Hc, 1, hid), f.dtype)
    fE = jnp.concatenate([zc, f[:, :, 1::2, :]], axis=2)        # padded-even cols
    fO = jnp.concatenate([f[:, :, 0::2, :], zc], axis=2)        # padded-odd cols
    pad = ((0, 0), (1, 1), (0, 0), (0, 0))
    return jnp.pad(fE, pad), jnp.pad(fO, pad)


def pmaa_conv_block_forward(x_nchw, params):
    depth = len(params["spp"]) - 1
    B, Cin, H, W = x_nchw.shape
    hid = params["spp"][0]["pw_w"].shape[0]

    # proj_1x1 in XLA, fused with the pad; store projected rows in bf16.
    out1 = _project_input(x_nchw, params)
    p0 = jnp.pad(out1.astype(ACT_DTYPE), ((0, 0), (1, 1), (1, 1), (0, 0)))

    dw0, pw0 = _fold_spp_weights(params["spp"][0], hid)
    f = _stage0_call(p0, dw0, pw0, _pick_row_block(H, W))       # feat_0, bf16

    g = None
    for k in range(1, depth + 1):
        dwk, pwk = _fold_spp_weights(params["spp"][k], hid)
        H_prev, W_prev = f.shape[1], f.shape[2]
        H_out, W_out = H_prev // 2, W_prev // 2
        R = _pick_row_block(H_out, W_out)
        fE, fO = _split_cols_padded(f)
        g_dtype = jnp.float32 if k == depth else ACT_DTYPE      # final G stays f32
        if k == 1:
            f, g = _down_call(fE, fO, None, dwk, pwk, R, g_dtype)
        else:
            gEO = (g[:, :, 0::2, :], g[:, :, 1::2, :])
            f, g = _down_call(fE, fO, gEO, dwk, pwk, R, g_dtype)

    if g is None:                                               # depth == 0
        g = f.astype(jnp.float32)
    return jnp.transpose(g, (0, 3, 1, 2))                       # NCHW, f32


# ---------------------------------------------------------------------------
# References for validation
# ---------------------------------------------------------------------------

def reference_forward_matched(x_nchw, params):
    """Pure-JAX reference with the SAME bf16 quantization points as the kernels
    (differences vs the kernels are f32 accumulation order only)."""
    depth = len(params["spp"]) - 1
    hid = params["spp"][0]["pw_w"].shape[0]
    f32 = jnp.float32

    out1 = _project_input(x_nchw, params)
    cur = out1.astype(ACT_DTYPE).astype(f32)                    # bf16 storage of proj
    gf = None
    for k, pk in enumerate(params["spp"]):
        dwk, pwk = _fold_spp_weights(pk, hid)
        wdw = dwk.reshape(3, 3, hid, hid)                       # HWIO
        stride = 1 if k == 0 else 2
        z = lax.conv_general_dilated(cur.astype(MM_DTYPE), wdw, (stride, stride),
                                     ((1, 1), (1, 1)),
                                     dimension_numbers=("NHWC", "HWIO", "NHWC"),
                                     preferred_element_type=f32)
        z = jnp.maximum(z, 0.0)
        z = jnp.einsum("bhwc,co->bhwo", z.astype(MM_DTYPE), pwk,
                       preferred_element_type=f32)
        if k == 0:
            z = z + cur                                         # skip
        else:
            base = cur if k == 1 else gf                        # G_0 == feat_0 (bf16)
            b, hh, ww, c = base.shape
            p = base.reshape(b, hh // 2, 2, ww // 2, 2, c)
            pool = 0.25 * (p[:, :, 0, :, 0] + p[:, :, 0, :, 1]
                           + p[:, :, 1, :, 0] + p[:, :, 1, :, 1])
            gf = pool + z
            if k < depth:
                gf = gf.astype(ACT_DTYPE).astype(f32)           # bf16 G storage
        cur = z.astype(ACT_DTYPE).astype(f32)                   # bf16 feature storage
    out = gf if gf is not None else cur
    return jnp.transpose(out, (0, 3, 1, 2))


def reference_forward_f32(x_nchw, params):
    """Full-precision (f32, HIGHEST) reference of the module in eval mode."""
    s = _BN_S
    hp = lax.Precision.HIGHEST
    p = params["proj"]
    y = jnp.maximum(x_nchw * p["dw_w"].reshape(1, -1, 1, 1) * s, 0.0)
    out1 = jnp.einsum("bchw,oc->bohw", y, p["pw_w"], precision=hp) * s
    feats = []
    cur = out1
    for k, pk in enumerate(params["spp"]):
        stride = 1 if k == 0 else 2
        z = lax.conv_general_dilated(cur, pk["dw_w"], (stride, stride), ((1, 1), (1, 1)),
                                     dimension_numbers=("NCHW", "OIHW", "NCHW"),
                                     precision=hp)
        z = jnp.maximum(z * s, 0.0)
        z = jnp.einsum("bchw,oc->bohw", z, pk["pw_w"], precision=hp) * s
        if k == 0:
            z = z + cur
        feats.append(z)
        cur = z
    Hf, Wf = feats[-1].shape[-2:]
    gf = jnp.zeros_like(feats[-1])
    for f in feats:
        b, c, h, w = f.shape
        r = h // Hf
        gf = gf + f.reshape(b, c, Hf, r, Wf, r).mean(axis=(3, 5))
    return gf


# ---------------------------------------------------------------------------
# Test
# ---------------------------------------------------------------------------

if __name__ == "__main__":
    B, Cin, H, W = 2, 4, 16, 16
    hidden, depth = 32, 4

    key = jax.random.PRNGKey(0)
    kx, kp = jax.random.split(key)
    x = jax.random.normal(kx, (B, Cin, H, W), jnp.float32)
    params = init_params(kp, Cin, hidden, depth)

    fwd = jax.jit(pmaa_conv_block_forward)
    out = jax.block_until_ready(fwd(x, params))
    assert out.shape == (B, hidden, H >> depth, W >> depth), out.shape

    # Tight check vs a reference with identical bf16 quantization points; the
    # only differences are f32 accumulation order (and the rare 1-ulp bf16
    # re-rounding they induce), so 2e-2 absolute is generous yet ~0.3% of |out|.
    ref_m = reference_forward_matched(x, params)
    err_m = float(jnp.max(jnp.abs(out - ref_m)))
    assert err_m < 2e-2, f"mismatch vs precision-matched reference: {err_m}"

    # Gross-error guard vs the full-f32 reference (bf16 storage/operands over
    # 5 stages give a few-percent worst-case element error; logic errors give
    # O(max|ref|) errors).
    ref_f = reference_forward_f32(x, params)
    err_f = float(jnp.max(jnp.abs(out - ref_f)))
    scale = float(jnp.max(jnp.abs(ref_f)))
    assert err_f < 0.1 * max(1.0, scale), (
        f"gross mismatch vs f32 reference: {err_f} (scale {scale})")

    print("KERNEL_OK")
</pallas_src>

<mosaic_0001>
module attributes {stable_mosaic.version = 11 : i64} {
  func.func @_stage0_kernel(%arg0: i32, %arg1: i32, %arg2: memref<1x16x18x32xbf16, #tpu.memory_space<vmem>>, %arg3: memref<1x1x18x32xbf16, #tpu.memory_space<vmem>>, %arg4: memref<1x1x18x32xbf16, #tpu.memory_space<vmem>>, %arg5: memref<9x32x32xbf16, #tpu.memory_space<vmem>>, %arg6: memref<32x32xbf16, #tpu.memory_space<vmem>>, %arg7: memref<1x16x16x32xbf16, #tpu.memory_space<vmem>>) attributes {dimension_semantics = [#tpu.dimension_semantics<parallel>, #tpu.dimension_semantics<parallel>], iteration_bounds = array<i64: 2, 1>, scalar_prefetch = 0 : i64, scratch_operands = 0 : i64, tpu.core_type = #tpu.core_type<tc>, window_params = [{transform_indices = @transform_0, window_bounds = array<i64: 1, 16, 18, 32>}, {transform_indices = @transform_1, window_bounds = array<i64: 1, 1, 18, 32>}, {transform_indices = @transform_2, window_bounds = array<i64: 1, 1, 18, 32>}, {pipeline_mode = #tpu.pipeline_mode<synchronous>, transform_indices = @transform_3, window_bounds = array<i64: 9, 32, 32>}, {pipeline_mode = #tpu.pipeline_mode<synchronous>, transform_indices = @transform_4, window_bounds = array<i64: 32, 32>}, {transform_indices = @transform_5, window_bounds = array<i64: 1, 16, 16, 32>}]} {
    %c0 = arith.constant 0 : index
    %c0_0 = arith.constant 0 : index
    %c0_1 = arith.constant 0 : index
    %c0_2 = arith.constant 0 : index
    %0 = vector.load %arg2[%c0, %c0_0, %c0_1, %c0_2] : memref<1x16x18x32xbf16, #tpu.memory_space<vmem>>, vector<1x16x18x32xbf16>
    %1 = vector.shape_cast %0 : vector<1x16x18x32xbf16> to vector<16x18x32xbf16>
    %c0_3 = arith.constant 0 : index
    %c0_4 = arith.constant 0 : index
    %c0_5 = arith.constant 0 : index
    %c0_6 = arith.constant 0 : index
    %2 = vector.load %arg3[%c0_3, %c0_4, %c0_5, %c0_6] : memref<1x1x18x32xbf16, #tpu.memory_space<vmem>>, vector<1x1x18x32xbf16>
    %3 = vector.shape_cast %2 : vector<1x1x18x32xbf16> to vector<1x18x32xbf16>
    %c0_7 = arith.constant 0 : index
    %c0_8 = arith.constant 0 : index
    %c0_9 = arith.constant 0 : index
    %c0_10 = arith.constant 0 : index
    %4 = vector.load %arg4[%c0_7, %c0_8, %c0_9, %c0_10] : memref<1x1x18x32xbf16, #tpu.memory_space<vmem>>, vector<1x1x18x32xbf16>
    %5 = vector.shape_cast %4 : vector<1x1x18x32xbf16> to vector<1x18x32xbf16>
    %6 = tpu.concatenate %1, %3, %5 in 0 : vector<16x18x32xbf16>, vector<1x18x32xbf16>, vector<1x18x32xbf16> -> vector<18x18x32xbf16>
    %cst = arith.constant 0.000000e+00 : f32
    %7 = vector.broadcast %cst : f32 to vector<256x32xf32>
    %8 = vector.extract_strided_slice %6 {offsets = [0, 0, 0], sizes = [16, 18, 32], strides = [1, 1, 1]} : vector<18x18x32xbf16> to vector<16x18x32xbf16>
    %9 = vector.extract_strided_slice %8 {offsets = [0, 0, 0], sizes = [16, 16, 32], strides = [1, 1, 1]} : vector<16x18x32xbf16> to vector<16x16x32xbf16>
    %10 = vector.shape_cast %9 : vector<16x16x32xbf16> to vector<256x32xbf16>
    %c0_11 = arith.constant 0 : index
    %c0_12 = arith.constant 0 : index
    %c0_13 = arith.constant 0 : index
    %11 = vector.load %arg5[%c0_11, %c0_12, %c0_13] : memref<9x32x32xbf16, #tpu.memory_space<vmem>>, vector<1x32x32xbf16>
    %12 = vector.shape_cast %11 : vector<1x32x32xbf16> to vector<32x32xbf16>
    %cst_14 = arith.constant dense<0.000000e+00> : vector<256x32xf32>
    %13 = tpu.matmul %10, %12, %cst_14 {dimension_numbers = #tpu.dot_dimension_numbers<[1], [0], [0], [1], [0, 0, 1, 1], [], []>} : vector<256x32xbf16>, vector<32x32xbf16>, vector<256x32xf32> -> vector<256x32xf32>
    %14 = arith.addf %7, %13 : vector<256x32xf32>
    %15 = vector.extract_strided_slice %8 {offsets = [0, 1, 0], sizes = [16, 16, 32], strides = [1, 1, 1]} : vector<16x18x32xbf16> to vector<16x16x32xbf16>
    %16 = vector.shape_cast %15 : vector<16x16x32xbf16> to vector<256x32xbf16>
    %c1 = arith.constant 1 : index
    %c0_15 = arith.constant 0 : index
    %c0_16 = arith.constant 0 : index
    %17 = vector.load %arg5[%c1, %c0_15, %c0_16] : memref<9x32x32xbf16, #tpu.memory_space<vmem>>, vector<1x32x32xbf16>
    %18 = vector.shape_cast %17 : vector<1x32x32xbf16> to vector<32x32xbf16>
    %cst_17 = arith.constant dense<0.000000e+00> : vector<256x32xf32>
    %19 = tpu.matmul %16, %18, %cst_17 {dimension_numbers = #tpu.dot_dimension_numbers<[1], [0], [0], [1], [0, 0, 1, 1], [], []>} : vector<256x32xbf16>, vector<32x32xbf16>, vector<256x32xf32> -> vector<256x32xf32>
    %20 = arith.addf %14, %19 : vector<256x32xf32>
    %21 = vector.extract_strided_slice %8 {offsets = [0, 2, 0], sizes = [16, 16, 32], strides = [1, 1, 1]} : vector<16x18x32xbf16> to vector<16x16x32xbf16>
    %22 = vector.shape_cast %21 : vector<16x16x32xbf16> to vector<256x32xbf16>
    %c2 = arith.constant 2 : index
    %c0_18 = arith.constant 0 : index
    %c0_19 = arith.constant 0 : index
    %23 = vector.load %arg5[%c2, %c0_18, %c0_19] : memref<9x32x32xbf16, #tpu.memory_space<vmem>>, vector<1x32x32xbf16>
    %24 = vector.shape_cast %23 : vector<1x32x32xbf16> to vector<32x32xbf16>
    %cst_20 = arith.constant dense<0.000000e+00> : vector<256x32xf32>
    %25 = tpu.matmul %22, %24, %cst_20 {dimension_numbers = #tpu.dot_dimension_numbers<[1], [0], [0], [1], [0, 0, 1, 1], [], []>} : vector<256x32xbf16>, vector<32x32xbf16>, vector<256x32xf32> -> vector<256x32xf32>
    %26 = arith.addf %20, %25 : vector<256x32xf32>
    %27 = vector.extract_strided_slice %6 {offsets = [1, 0, 0], sizes = [16, 18, 32], strides = [1, 1, 1]} : vector<18x18x32xbf16> to vector<16x18x32xbf16>
    %28 = vector.extract_strided_slice %27 {offsets = [0, 0, 0], sizes = [16, 16, 32], strides = [1, 1, 1]} : vector<16x18x32xbf16> to vector<16x16x32xbf16>
    %29 = vector.shape_cast %28 : vector<16x16x32xbf16> to vector<256x32xbf16>
    %c3 = arith.constant 3 : index
    %c0_21 = arith.constant 0 : index
    %c0_22 = arith.constant 0 : index
    %30 = vector.load %arg5[%c3, %c0_21, %c0_22] : memref<9x32x32xbf16, #tpu.memory_space<vmem>>, vector<1x32x32xbf16>
    %31 = vector.shape_cast %30 : vector<1x32x32xbf16> to vector<32x32xbf16>
    %cst_23 = arith.constant dense<0.000000e+00> : vector<256x32xf32>
    %32 = tpu.matmul %29, %31, %cst_23 {dimension_numbers = #tpu.dot_dimension_numbers<[1], [0], [0], [1], [0, 0, 1, 1], [], []>} : vector<256x32xbf16>, vector<32x32xbf16>, vector<256x32xf32> -> vector<256x32xf32>
    %33 = arith.addf %26, %32 : vector<256x32xf32>
    %34 = vector.extract_strided_slice %27 {offsets = [0, 1, 0], sizes = [16, 16, 32], strides = [1, 1, 1]} : vector<16x18x32xbf16> to vector<16x16x32xbf16>
    %35 = vector.shape_cast %34 : vector<16x16x32xbf16> to vector<256x32xbf16>
    %c4 = arith.constant 4 : index
    %c0_24 = arith.constant 0 : index
    %c0_25 = arith.constant 0 : index
    %36 = vector.load %arg5[%c4, %c0_24, %c0_25] : memref<9x32x32xbf16, #tpu.memory_space<vmem>>, vector<1x32x32xbf16>
    %37 = vector.shape_cast %36 : vector<1x32x32xbf16> to vector<32x32xbf16>
    %cst_26 = arith.constant dense<0.000000e+00> : vector<256x32xf32>
    %38 = tpu.matmul %35, %37, %cst_26 {dimension_numbers = #tpu.dot_dimension_numbers<[1], [0], [0], [1], [0, 0, 1, 1], [], []>} : vector<256x32xbf16>, vector<32x32xbf16>, vector<256x32xf32> -> vector<256x32xf32>
    %39 = arith.addf %33, %38 : vector<256x32xf32>
    %40 = vector.extract_strided_slice %27 {offsets = [0, 2, 0], sizes = [16, 16, 32], strides = [1, 1, 1]} : vector<16x18x32xbf16> to vector<16x16x32xbf16>
    %41 = vector.shape_cast %40 : vector<16x16x32xbf16> to vector<256x32xbf16>
    %c5 = arith.constant 5 : index
    %c0_27 = arith.constant 0 : index
    %c0_28 = arith.constant 0 : index
    %42 = vector.load %arg5[%c5, %c0_27, %c0_28] : memref<9x32x32xbf16, #tpu.memory_space<vmem>>, vector<1x32x32xbf16>
    %43 = vector.shape_cast %42 : vector<1x32x32xbf16> to vector<32x32xbf16>
    %cst_29 = arith.constant dense<0.000000e+00> : vector<256x32xf32>
    %44 = tpu.matmul %41, %43, %cst_29 {dimension_numbers = #tpu.dot_dimension_numbers<[1], [0], [0], [1], [0, 0, 1, 1], [], []>} : vector<256x32xbf16>, vector<32x32xbf16>, vector<256x32xf32> -> vector<256x32xf32>
    %45 = arith.addf %39, %44 : vector<256x32xf32>
    %46 = vector.extract_strided_slice %6 {offsets = [2, 0, 0], sizes = [16, 18, 32], strides = [1, 1, 1]} : vector<18x18x32xbf16> to vector<16x18x32xbf16>
    %47 = vector.extract_strided_slice %46 {offsets = [0, 0, 0], sizes = [16, 16, 32], strides = [1, 1, 1]} : vector<16x18x32xbf16> to vector<16x16x32xbf16>
    %48 = vector.shape_cast %47 : vector<16x16x32xbf16> to vector<256x32xbf16>
    %c6 = arith.constant 6 : index
    %c0_30 = arith.constant 0 : index
    %c0_31 = arith.constant 0 : index
    %49 = vector.load %arg5[%c6, %c0_30, %c0_31] : memref<9x32x32xbf16, #tpu.memory_space<vmem>>, vector<1x32x32xbf16>
    %50 = vector.shape_cast %49 : vector<1x32x32xbf16> to vector<32x32xbf16>
    %cst_32 = arith.constant dense<0.000000e+00> : vector<256x32xf32>
    %51 = tpu.matmul %48, %50, %cst_32 {dimension_numbers = #tpu.dot_dimension_numbers<[1], [0], [0], [1], [0, 0, 1, 1], [], []>} : vector<256x32xbf16>, vector<32x32xbf16>, vector<256x32xf32> -> vector<256x32xf32>
    %52 = arith.addf %45, %51 : vector<256x32xf32>
    %53 = vector.extract_strided_slice %46 {offsets = [0, 1, 0], sizes = [16, 16, 32], strides = [1, 1, 1]} : vector<16x18x32xbf16> to vector<16x16x32xbf16>
    %54 = vector.shape_cast %53 : vector<16x16x32xbf16> to vector<256x32xbf16>
    %c7 = arith.constant 7 : index
    %c0_33 = arith.constant 0 : index
    %c0_34 = arith.constant 0 : index
    %55 = vector.load %arg5[%c7, %c0_33, %c0_34] : memref<9x32x32xbf16, #tpu.memory_space<vmem>>, vector<1x32x32xbf16>
    %56 = vector.shape_cast %55 : vector<1x32x32xbf16> to vector<32x32xbf16>
    %cst_35 = arith.constant dense<0.000000e+00> : vector<256x32xf32>
    %57 = tpu.matmul %54, %56, %cst_35 {dimension_numbers = #tpu.dot_dimension_numbers<[1], [0], [0], [1], [0, 0, 1, 1], [], []>} : vector<256x32xbf16>, vector<32x32xbf16>, vector<256x32xf32> -> vector<256x32xf32>
    %58 = arith.addf %52, %57 : vector<256x32xf32>
    %59 = vector.extract_strided_slice %46 {offsets = [0, 2, 0], sizes = [16, 16, 32], strides = [1, 1, 1]} : vector<16x18x32xbf16> to vector<16x16x32xbf16>
    %60 = vector.shape_cast %59 : vector<16x16x32xbf16> to vector<256x32xbf16>
    %c8 = arith.constant 8 : index
    %c0_36 = arith.constant 0 : index
    %c0_37 = arith.constant 0 : index
    %61 = vector.load %arg5[%c8, %c0_36, %c0_37] : memref<9x32x32xbf16, #tpu.memory_space<vmem>>, vector<1x32x32xbf16>
    %62 = vector.shape_cast %61 : vector<1x32x32xbf16> to vector<32x32xbf16>
    %cst_38 = arith.constant dense<0.000000e+00> : vector<256x32xf32>
    %63 = tpu.matmul %60, %62, %cst_38 {dimension_numbers = #tpu.dot_dimension_numbers<[1], [0], [0], [1], [0, 0, 1, 1], [], []>} : vector<256x32xbf16>, vector<32x32xbf16>, vector<256x32xf32> -> vector<256x32xf32>
    %64 = arith.addf %58, %63 : vector<256x32xf32>
    %cst_39 = arith.constant 0.000000e+00 : f32
    %65 = vector.broadcast %cst_39 : f32 to vector<256x32xf32>
    %66 = arith.maximumf %64, %65 : vector<256x32xf32>
    %67 = arith.truncf %66 : vector<256x32xf32> to vector<256x32xbf16>
    %c0_40 = arith.constant 0 : index
    %c0_41 = arith.constant 0 : index
    %68 = vector.load %arg6[%c0_40, %c0_41] : memref<32x32xbf16, #tpu.memory_space<vmem>>, vector<32x32xbf16>
    %cst_42 = arith.constant dense<0.000000e+00> : vector<256x32xf32>
    %69 = tpu.matmul %67, %68, %cst_42 {dimension_numbers = #tpu.dot_dimension_numbers<[1], [0], [0], [1], [0, 0, 1, 1], [], []>} : vector<256x32xbf16>, vector<32x32xbf16>, vector<256x32xf32> -> vector<256x32xf32>
    %70 = vector.extract_strided_slice %6 {offsets = [1, 1, 0], sizes = [16, 16, 32], strides = [1, 1, 1]} : vector<18x18x32xbf16> to vector<16x16x32xbf16>
    %71 = arith.extf %70 : vector<16x16x32xbf16> to vector<16x16x32xf32>
    %72 = vector.shape_cast %71 : vector<16x16x32xf32> to vector<256x32xf32>
    %73 = arith.addf %69, %72 : vector<256x32xf32>
    %74 = vector.shape_cast %73 : vector<256x32xf32> to vector<16x16x32xf32>
    %75 = arith.truncf %74 : vector<16x16x32xf32> to vector<16x16x32xbf16>
    %c0_43 = arith.constant 0 : index
    %c0_44 = arith.constant 0 : index
    %c0_45 = arith.constant 0 : index
    %c0_46 = arith.constant 0 : index
    %76 = vector.load %arg7[%c0_43, %c0_44, %c0_45, %c0_46] : memref<1x16x16x32xbf16, #tpu.memory_space<vmem>>, vector<1x16x16x32xbf16>
    %77 = vector.shape_cast %76 : vector<1x16x16x32xbf16> to vector<16x16x32xbf16>
    %78 = vector.shape_cast %75 : vector<16x16x32xbf16> to vector<1x16x16x32xbf16>
    tpu.vector_store %arg7[%c0_43, %c0_44, %c0_45, %c0_46], %78 {strides = array<i32>} : memref<1x16x16x32xbf16, #tpu.memory_space<vmem>>, vector<1x16x16x32xbf16>,
    return
  }
  func.func @transform_0(%arg0: i32, %arg1: i32) -> (i32, i32, i32, i32) {
    %c0_i32 = arith.constant 0 : i32
    %c0_i32_0 = arith.constant 0 : i32
    %c0_i32_1 = arith.constant 0 : i32
    return %arg0, %arg1, %c0_i32, %c0_i32_0 : i32, i32, i32, i32
  }
  func.func @transform_1(%arg0: i32, %arg1: i32) -> (i32, i32, i32, i32) {
    %c1_i32 = arith.constant 1 : i32
    %0 = arith.addi %arg1, %c1_i32 : i32
    %c16_i32 = arith.constant 16 : i32
    %1 = arith.muli %0, %c16_i32 : i32
    %c0_i32 = arith.constant 0 : i32
    %c0_i32_0 = arith.constant 0 : i32
    %c0_i32_1 = arith.constant 0 : i32
    return %arg0, %1, %c0_i32, %c0_i32_0 : i32, i32, i32, i32
  }
  func.func @transform_2(%arg0: i32, %arg1: i32) -> (i32, i32, i32, i32) {
    %c1_i32 = arith.constant 1 : i32
    %0 = arith.addi %arg1, %c1_i32 : i32
    %c16_i32 = arith.constant 16 : i32
    %1 = arith.muli %0, %c16_i32 : i32
    %c1_i32_0 = arith.constant 1 : i32
    %2 = arith.addi %1, %c1_i32_0 : i32
    %c0_i32 = arith.constant 0 : i32
    %c0_i32_1 = arith.constant 0 : i32
    %c0_i32_2 = arith.constant 0 : i32
    return %arg0, %2, %c0_i32, %c0_i32_1 : i32, i32, i32, i32
  }
  func.func @transform_3(%arg0: i32, %arg1: i32) -> (i32, i32, i32) {
    %c0_i32 = arith.constant 0 : i32
    %c0_i32_0 = arith.constant 0 : i32
    %c0_i32_1 = arith.constant 0 : i32
    %c0_i32_2 = arith.constant 0 : i32
    return %c0_i32, %c0_i32_0, %c0_i32_1 : i32, i32, i32
  }
  func.func @transform_4(%arg0: i32, %arg1: i32) -> (i32, i32) {
    %c0_i32 = arith.constant 0 : i32
    %c0_i32_0 = arith.constant 0 : i32
    %c0_i32_1 = arith.constant 0 : i32
    return %c0_i32, %c0_i32_0 : i32, i32
  }
  func.func @transform_5(%arg0: i32, %arg1: i32) -> (i32, i32, i32, i32) {
    %c0_i32 = arith.constant 0 : i32
    %c0_i32_0 = arith.constant 0 : i32
    %c0_i32_1 = arith.constant 0 : i32
    return %arg0, %arg1, %c0_i32, %c0_i32_0 : i32, i32, i32, i32
  }
}

module attributes {stable_mosaic.version = 11 : i64} {
  func.func @kernel(%arg0: i32, %arg1: i32, %arg2: memref<1x16x9x32xbf16, #tpu.memory_space<vmem>>, %arg3: memref<1x1x9x32xbf16, #tpu.memory_space<vmem>>, %arg4: memref<1x16x9x32xbf16, #tpu.memory_space<vmem>>, %arg5: memref<1x1x9x32xbf16, #tpu.memory_space<vmem>>, %arg6: memref<9x32x32xbf16, #tpu.memory_space<vmem>>, %arg7: memref<32x32xbf16, #tpu.memory_space<vmem>>, %arg8: memref<1x8x8x32xbf16, #tpu.memory_space<vmem>>, %arg9: memref<1x8x8x32xbf16, #tpu.memory_space<vmem>>) attributes {dimension_semantics = [#tpu.dimension_semantics<parallel>, #tpu.dimension_semantics<parallel>], iteration_bounds = array<i64: 2, 1>, scalar_prefetch = 0 : i64, scratch_operands = 0 : i64, tpu.core_type = #tpu.core_type<tc>, window_params = [{transform_indices = @transform_0, window_bounds = array<i64: 1, 16, 9, 32>}, {transform_indices = @transform_1, window_bounds = array<i64: 1, 1, 9, 32>}, {transform_indices = @transform_2, window_bounds = array<i64: 1, 16, 9, 32>}, {transform_indices = @transform_3, window_bounds = array<i64: 1, 1, 9, 32>}, {pipeline_mode = #tpu.pipeline_mode<synchronous>, transform_indices = @transform_4, window_bounds = array<i64: 9, 32, 32>}, {pipeline_mode = #tpu.pipeline_mode<synchronous>, transform_indices = @transform_5, window_bounds = array<i64: 32, 32>}, {transform_indices = @transform_6, window_bounds = array<i64: 1, 8, 8, 32>}, {transform_indices = @transform_7, window_bounds = array<i64: 1, 8, 8, 32>}]} {
    %c0 = arith.constant 0 : index
    %c0_0 = arith.constant 0 : index
    %c0_1 = arith.constant 0 : index
    %c0_2 = arith.constant 0 : index
    %0 = vector.load %arg2[%c0, %c0_0, %c0_1, %c0_2] : memref<1x16x9x32xbf16, #tpu.memory_space<vmem>>, vector<1x16x9x32xbf16>
    %1 = vector.shape_cast %0 : vector<1x16x9x32xbf16> to vector<16x9x32xbf16>
    %c0_3 = arith.constant 0 : index
    %c0_4 = arith.constant 0 : index
    %c0_5 = arith.constant 0 : index
    %c0_6 = arith.constant 0 : index
    %2 = vector.load %arg3[%c0_3, %c0_4, %c0_5, %c0_6] : memref<1x1x9x32xbf16, #tpu.memory_space<vmem>>, vector<1x1x9x32xbf16>
    %3 = vector.shape_cast %2 : vector<1x1x9x32xbf16> to vector<1x9x32xbf16>
    %4 = tpu.concatenate %1, %3 in 0 : vector<16x9x32xbf16>, vector<1x9x32xbf16> -> vector<17x9x32xbf16>
    %c0_7 = arith.constant 0 : index
    %c0_8 = arith.constant 0 : index
    %c0_9 = arith.constant 0 : index
    %c0_10 = arith.constant 0 : index
    %5 = vector.load %arg4[%c0_7, %c0_8, %c0_9, %c0_10] : memref<1x16x9x32xbf16, #tpu.memory_space<vmem>>, vector<1x16x9x32xbf16>
    %6 = vector.shape_cast %5 : vector<1x16x9x32xbf16> to vector<16x9x32xbf16>
    %c0_11 = arith.constant 0 : index
    %c0_12 = arith.constant 0 : index
    %c0_13 = arith.constant 0 : index
    %c0_14 = arith.constant 0 : index
    %7 = vector.load %arg5[%c0_11, %c0_12, %c0_13, %c0_14] : memref<1x1x9x32xbf16, #tpu.memory_space<vmem>>, vector<1x1x9x32xbf16>
    %8 = vector.shape_cast %7 : vector<1x1x9x32xbf16> to vector<1x9x32xbf16>
    %9 = tpu.concatenate %6, %8 in 0 : vector<16x9x32xbf16>, vector<1x9x32xbf16> -> vector<17x9x32xbf16>
    %10 = vector.extract_strided_slice %4 {offsets = [0, 0, 0], sizes = [16, 9, 32], strides = [1, 1, 1]} : vector<17x9x32xbf16> to vector<16x9x32xbf16>
    %11 = vector.shape_cast %10 : vector<16x9x32xbf16> to vector<8x2x9x32xbf16>
    %12 = vector.extract_strided_slice %11 {offsets = [0, 0, 0, 0], sizes = [8, 1, 9, 32], strides = [1, 1, 1, 1]} : vector<8x2x9x32xbf16> to vector<8x1x9x32xbf16>
    %13 = vector.shape_cast %12 : vector<8x1x9x32xbf16> to vector<8x9x32xbf16>
    %14 = vector.extract_strided_slice %11 {offsets = [0, 1, 0, 0], sizes = [8, 1, 9, 32], strides = [1, 1, 1, 1]} : vector<8x2x9x32xbf16> to vector<8x1x9x32xbf16>
    %15 = vector.shape_cast %14 : vector<8x1x9x32xbf16> to vector<8x9x32xbf16>
    %16 = vector.extract_strided_slice %11 {offsets = [1, 0, 0, 0], sizes = [7, 1, 9, 32], strides = [1, 1, 1, 1]} : vector<8x2x9x32xbf16> to vector<7x1x9x32xbf16>
    %17 = vector.shape_cast %16 : vector<7x1x9x32xbf16> to vector<7x9x32xbf16>
    %18 = vector.extract_strided_slice %4 {offsets = [16, 0, 0], sizes = [1, 9, 32], strides = [1, 1, 1]} : vector<17x9x32xbf16> to vector<1x9x32xbf16>
    %19 = tpu.concatenate %17, %18 in 0 : vector<7x9x32xbf16>, vector<1x9x32xbf16> -> vector<8x9x32xbf16>
    %20 = vector.extract_strided_slice %9 {offsets = [0, 0, 0], sizes = [16, 9, 32], strides = [1, 1, 1]} : vector<17x9x32xbf16> to vector<16x9x32xbf16>
    %21 = vector.shape_cast %20 : vector<16x9x32xbf16> to vector<8x2x9x32xbf16>
    %22 = vector.extract_strided_slice %21 {offsets = [0, 0, 0, 0], sizes = [8, 1, 9, 32], strides = [1, 1, 1, 1]} : vector<8x2x9x32xbf16> to vector<8x1x9x32xbf16>
    %23 = vector.shape_cast %22 : vector<8x1x9x32xbf16> to vector<8x9x32xbf16>
    %24 = vector.extract_strided_slice %21 {offsets = [0, 1, 0, 0], sizes = [8, 1, 9, 32], strides = [1, 1, 1, 1]} : vector<8x2x9x32xbf16> to vector<8x1x9x32xbf16>
    %25 = vector.shape_cast %24 : vector<8x1x9x32xbf16> to vector<8x9x32xbf16>
    %26 = vector.extract_strided_slice %21 {offsets = [1, 0, 0, 0], sizes = [7, 1, 9, 32], strides = [1, 1, 1, 1]} : vector<8x2x9x32xbf16> to vector<7x1x9x32xbf16>
    %27 = vector.shape_cast %26 : vector<7x1x9x32xbf16> to vector<7x9x32xbf16>
    %28 = vector.extract_strided_slice %9 {offsets = [16, 0, 0], sizes = [1, 9, 32], strides = [1, 1, 1]} : vector<17x9x32xbf16> to vector<1x9x32xbf16>
    %29 = tpu.concatenate %27, %28 in 0 : vector<7x9x32xbf16>, vector<1x9x32xbf16> -> vector<8x9x32xbf16>
    %cst = arith.constant 0.000000e+00 : f32
    %30 = vector.broadcast %cst : f32 to vector<64x32xf32>
    %31 = vector.extract_strided_slice %13 {offsets = [0, 0, 0], sizes = [8, 8, 32], strides = [1, 1, 1]} : vector<8x9x32xbf16> to vector<8x8x32xbf16>
    %32 = vector.shape_cast %31 : vector<8x8x32xbf16> to vector<64x32xbf16>
    %c0_15 = arith.constant 0 : index
    %c0_16 = arith.constant 0 : index
    %c0_17 = arith.constant 0 : index
    %33 = vector.load %arg6[%c0_15, %c0_16, %c0_17] : memref<9x32x32xbf16, #tpu.memory_space<vmem>>, vector<1x32x32xbf16>
    %34 = vector.shape_cast %33 : vector<1x32x32xbf16> to vector<32x32xbf16>
    %cst_18 = arith.constant dense<0.000000e+00> : vector<64x32xf32>
    %35 = tpu.matmul %32, %34, %cst_18 {dimension_numbers = #tpu.dot_dimension_numbers<[1], [0], [0], [1], [0, 0, 1, 1], [], []>} : vector<64x32xbf16>, vector<32x32xbf16>, vector<64x32xf32> -> vector<64x32xf32>
    %36 = arith.addf %30, %35 : vector<64x32xf32>
    %37 = vector.extract_strided_slice %23 {offsets = [0, 0, 0], sizes = [8, 8, 32], strides = [1, 1, 1]} : vector<8x9x32xbf16> to vector<8x8x32xbf16>
    %38 = vector.shape_cast %37 : vector<8x8x32xbf16> to vector<64x32xbf16>
    %c1 = arith.constant 1 : index
    %c0_19 = arith.constant 0 : index
    %c0_20 = arith.constant 0 : index
    %39 = vector.load %arg6[%c1, %c0_19, %c0_20] : memref<9x32x32xbf16, #tpu.memory_space<vmem>>, vector<1x32x32xbf16>
    %40 = vector.shape_cast %39 : vector<1x32x32xbf16> to vector<32x32xbf16>
    %cst_21 = arith.constant dense<0.000000e+00> : vector<64x32xf32>
    %41 = tpu.matmul %38, %40, %cst_21 {dimension_numbers = #tpu.dot_dimension_numbers<[1], [0], [0], [1], [0, 0, 1, 1], [], []>} : vector<64x32xbf16>, vector<32x32xbf16>, vector<64x32xf32> -> vector<64x32xf32>
    %42 = arith.addf %36, %41 : vector<64x32xf32>
    %43 = vector.extract_strided_slice %13 {offsets = [0, 1, 0], sizes = [8, 8, 32], strides = [1, 1, 1]} : vector<8x9x32xbf16> to vector<8x8x32xbf16>
    %44 = vector.shape_cast %43 : vector<8x8x32xbf16> to vector<64x32xbf16>
    %c2 = arith.constant 2 : index
    %c0_22 = arith.constant 0 : index
    %c0_23 = arith.constant 0 : index
    %45 = vector.load %arg6[%c2, %c0_22, %c0_23] : memref<9x32x32xbf16, #tpu.memory_space<vmem>>, vector<1x32x32xbf16>
    %46 = vector.shape_cast %45 : vector<1x32x32xbf16> to vector<32x32xbf16>
    %cst_24 = arith.constant dense<0.000000e+00> : vector<64x32xf32>
    %47 = tpu.matmul %44, %46, %cst_24 {dimension_numbers = #tpu.dot_dimension_numbers<[1], [0], [0], [1], [0, 0, 1, 1], [], []>} : vector<64x32xbf16>, vector<32x32xbf16>, vector<64x32xf32> -> vector<64x32xf32>
    %48 = arith.addf %42, %47 : vector<64x32xf32>
    %49 = vector.extract_strided_slice %15 {offsets = [0, 0, 0], sizes = [8, 8, 32], strides = [1, 1, 1]} : vector<8x9x32xbf16> to vector<8x8x32xbf16>
    %50 = vector.shape_cast %49 : vector<8x8x32xbf16> to vector<64x32xbf16>
    %c3 = arith.constant 3 : index
    %c0_25 = arith.constant 0 : index
    %c0_26 = arith.constant 0 : index
    %51 = vector.load %arg6[%c3, %c0_25, %c0_26] : memref<9x32x32xbf16, #tpu.memory_space<vmem>>, vector<1x32x32xbf16>
    %52 = vector.shape_cast %51 : vector<1x32x32xbf16> to vector<32x32xbf16>
    %cst_27 = arith.constant dense<0.000000e+00> : vector<64x32xf32>
    %53 = tpu.matmul %50, %52, %cst_27 {dimension_numbers = #tpu.dot_dimension_numbers<[1], [0], [0], [1], [0, 0, 1, 1], [], []>} : vector<64x32xbf16>, vector<32x32xbf16>, vector<64x32xf32> -> vector<64x32xf32>
    %54 = arith.addf %48, %53 : vector<64x32xf32>
    %55 = vector.extract_strided_slice %25 {offsets = [0, 0, 0], sizes = [8, 8, 32], strides = [1, 1, 1]} : vector<8x9x32xbf16> to vector<8x8x32xbf16>
    %56 = vector.shape_cast %55 : vector<8x8x32xbf16> to vector<64x32xbf16>
    %c4 = arith.constant 4 : index
    %c0_28 = arith.constant 0 : index
    %c0_29 = arith.constant 0 : index
    %57 = vector.load %arg6[%c4, %c0_28, %c0_29] : memref<9x32x32xbf16, #tpu.memory_space<vmem>>, vector<1x32x32xbf16>
    %58 = vector.shape_cast %57 : vector<1x32x32xbf16> to vector<32x32xbf16>
    %cst_30 = arith.constant dense<0.000000e+00> : vector<64x32xf32>
    %59 = tpu.matmul %56, %58, %cst_30 {dimension_numbers = #tpu.dot_dimension_numbers<[1], [0], [0], [1], [0, 0, 1, 1], [], []>} : vector<64x32xbf16>, vector<32x32xbf16>, vector<64x32xf32> -> vector<64x32xf32>
    %60 = arith.addf %54, %59 : vector<64x32xf32>
    %61 = vector.extract_strided_slice %15 {offsets = [0, 1, 0], sizes = [8, 8, 32], strides = [1, 1, 1]} : vector<8x9x32xbf16> to vector<8x8x32xbf16>
    %62 = vector.shape_cast %61 : vector<8x8x32xbf16> to vector<64x32xbf16>
    %c5 = arith.constant 5 : index
    %c0_31 = arith.constant 0 : index
    %c0_32 = arith.constant 0 : index
    %63 = vector.load %arg6[%c5, %c0_31, %c0_32] : memref<9x32x32xbf16, #tpu.memory_space<vmem>>, vector<1x32x32xbf16>
    %64 = vector.shape_cast %63 : vector<1x32x32xbf16> to vector<32x32xbf16>
    %cst_33 = arith.constant dense<0.000000e+00> : vector<64x32xf32>
    %65 = tpu.matmul %62, %64, %cst_33 {dimension_numbers = #tpu.dot_dimension_numbers<[1], [0], [0], [1], [0, 0, 1, 1], [], []>} : vector<64x32xbf16>, vector<32x32xbf16>, vector<64x32xf32> -> vector<64x32xf32>
    %66 = arith.addf %60, %65 : vector<64x32xf32>
    %67 = vector.extract_strided_slice %19 {offsets = [0, 0, 0], sizes = [8, 8, 32], strides = [1, 1, 1]} : vector<8x9x32xbf16> to vector<8x8x32xbf16>
    %68 = vector.shape_cast %67 : vector<8x8x32xbf16> to vector<64x32xbf16>
    %c6 = arith.constant 6 : index
    %c0_34 = arith.constant 0 : index
    %c0_35 = arith.constant 0 : index
    %69 = vector.load %arg6[%c6, %c0_34, %c0_35] : memref<9x32x32xbf16, #tpu.memory_space<vmem>>, vector<1x32x32xbf16>
    %70 = vector.shape_cast %69 : vector<1x32x32xbf16> to vector<32x32xbf16>
    %cst_36 = arith.constant dense<0.000000e+00> : vector<64x32xf32>
    %71 = tpu.matmul %68, %70, %cst_36 {dimension_numbers = #tpu.dot_dimension_numbers<[1], [0], [0], [1], [0, 0, 1, 1], [], []>} : vector<64x32xbf16>, vector<32x32xbf16>, vector<64x32xf32> -> vector<64x32xf32>
    %72 = arith.addf %66, %71 : vector<64x32xf32>
    %73 = vector.extract_strided_slice %29 {offsets = [0, 0, 0], sizes = [8, 8, 32], strides = [1, 1, 1]} : vector<8x9x32xbf16> to vector<8x8x32xbf16>
    %74 = vector.shape_cast %73 : vector<8x8x32xbf16> to vector<64x32xbf16>
    %c7 = arith.constant 7 : index
    %c0_37 = arith.constant 0 : index
    %c0_38 = arith.constant 0 : index
    %75 = vector.load %arg6[%c7, %c0_37, %c0_38] : memref<9x32x32xbf16, #tpu.memory_space<vmem>>, vector<1x32x32xbf16>
    %76 = vector.shape_cast %75 : vector<1x32x32xbf16> to vector<32x32xbf16>
    %cst_39 = arith.constant dense<0.000000e+00> : vector<64x32xf32>
    %77 = tpu.matmul %74, %76, %cst_39 {dimension_numbers = #tpu.dot_dimension_numbers<[1], [0], [0], [1], [0, 0, 1, 1], [], []>} : vector<64x32xbf16>, vector<32x32xbf16>, vector<64x32xf32> -> vector<64x32xf32>
    %78 = arith.addf %72, %77 : vector<64x32xf32>
    %79 = vector.extract_strided_slice %19 {offsets = [0, 1, 0], sizes = [8, 8, 32], strides = [1, 1, 1]} : vector<8x9x32xbf16> to vector<8x8x32xbf16>
    %80 = vector.shape_cast %79 : vector<8x8x32xbf16> to vector<64x32xbf16>
    %c8 = arith.constant 8 : index
    %c0_40 = arith.constant 0 : index
    %c0_41 = arith.constant 0 : index
    %81 = vector.load %arg6[%c8, %c0_40, %c0_41] : memref<9x32x32xbf16, #tpu.memory_space<vmem>>, vector<1x32x32xbf16>
    %82 = vector.shape_cast %81 : vector<1x32x32xbf16> to vector<32x32xbf16>
    %cst_42 = arith.constant dense<0.000000e+00> : vector<64x32xf32>
    %83 = tpu.matmul %80, %82, %cst_42 {dimension_numbers = #tpu.dot_dimension_numbers<[1], [0], [0], [1], [0, 0, 1, 1], [], []>} : vector<64x32xbf16>, vector<32x32xbf16>, vector<64x32xf32> -> vector<64x32xf32>
    %84 = arith.addf %78, %83 : vector<64x32xf32>
    %cst_43 = arith.constant 0.000000e+00 : f32
    %85 = vector.broadcast %cst_43 : f32 to vector<64x32xf32>
    %86 = arith.maximumf %84, %85 : vector<64x32xf32>
    %87 = arith.truncf %86 : vector<64x32xf32> to vector<64x32xbf16>
    %c0_44 = arith.constant 0 : index
    %c0_45 = arith.constant 0 : index
    %88 = vector.load %arg7[%c0_44, %c0_45] : memref<32x32xbf16, #tpu.memory_space<vmem>>, vector<32x32xbf16>
    %cst_46 = arith.constant dense<0.000000e+00> : vector<64x32xf32>
    %89 = tpu.matmul %87, %88, %cst_46 {dimension_numbers = #tpu.dot_dimension_numbers<[1], [0], [0], [1], [0, 0, 1, 1], [], []>} : vector<64x32xbf16>, vector<32x32xbf16>, vector<64x32xf32> -> vector<64x32xf32>
    %90 = vector.extract_strided_slice %4 {offsets = [1, 0, 0], sizes = [16, 9, 32], strides = [1, 1, 1]} : vector<17x9x32xbf16> to vector<16x9x32xbf16>
    %91 = vector.shape_cast %90 : vector<16x9x32xbf16> to vector<8x2x9x32xbf16>
    %92 = vector.extract_strided_slice %9 {offsets = [1, 0, 0], sizes = [16, 9, 32], strides = [1, 1, 1]} : vector<17x9x32xbf16> to vector<16x9x32xbf16>
    %93 = vector.shape_cast %92 : vector<16x9x32xbf16> to vector<8x2x9x32xbf16>
    %94 = vector.extract_strided_slice %91 {offsets = [0, 0, 1, 0], sizes = [8, 1, 8, 32], strides = [1, 1, 1, 1]} : vector<8x2x9x32xbf16> to vector<8x1x8x32xbf16>
    %95 = vector.shape_cast %94 : vector<8x1x8x32xbf16> to vector<8x8x32xbf16>
    %96 = arith.extf %95 : vector<8x8x32xbf16> to vector<8x8x32xf32>
    %97 = vector.extract_strided_slice %91 {offsets = [0, 1, 1, 0], sizes = [8, 1, 8, 32], strides = [1, 1, 1, 1]} : vector<8x2x9x32xbf16> to vector<8x1x8x32xbf16>
    %98 = vector.shape_cast %97 : vector<8x1x8x32xbf16> to vector<8x8x32xbf16>
    %99 = arith.extf %98 : vector<8x8x32xbf16> to vector<8x8x32xf32>
    %100 = arith.addf %96, %99 : vector<8x8x32xf32>
    %101 = vector.extract_strided_slice %93 {offsets = [0, 0, 0, 0], sizes = [8, 1, 8, 32], strides = [1, 1, 1, 1]} : vector<8x2x9x32xbf16> to vector<8x1x8x32xbf16>
    %102 = vector.shape_cast %101 : vector<8x1x8x32xbf16> to vector<8x8x32xbf16>
    %103 = arith.extf %102 : vector<8x8x32xbf16> to vector<8x8x32xf32>
    %104 = arith.addf %100, %103 : vector<8x8x32xf32>
    %105 = vector.extract_strided_slice %93 {offsets = [0, 1, 0, 0], sizes = [8, 1, 8, 32], strides = [1, 1, 1, 1]} : vector<8x2x9x32xbf16> to vector<8x1x8x32xbf16>
    %106 = vector.shape_cast %105 : vector<8x1x8x32xbf16> to vector<8x8x32xbf16>
    %107 = arith.extf %106 : vector<8x8x32xbf16> to vector<8x8x32xf32>
    %108 = arith.addf %104, %107 : vector<8x8x32xf32>
    %cst_47 = arith.constant 2.500000e-01 : f32
    %109 = vector.broadcast %cst_47 : f32 to vector<8x8x32xf32>
    %110 = arith.mulf %109, %108 : vector<8x8x32xf32>
    %111 = vector.shape_cast %110 : vector<8x8x32xf32> to vector<64x32xf32>
    %112 = arith.addf %111, %89 : vector<64x32xf32>
    %113 = vector.shape_cast %89 : vector<64x32xf32> to vector<8x8x32xf32>
    %114 = arith.truncf %113 : vector<8x8x32xf32> to vector<8x8x32xbf16>
    %c0_48 = arith.constant 0 : index
    %c0_49 = arith.constant 0 : index
    %c0_50 = arith.constant 0 : index
    %c0_51 = arith.constant 0 : index
    %115 = vector.load %arg8[%c0_48, %c0_49, %c0_50, %c0_51] : memref<1x8x8x32xbf16, #tpu.memory_space<vmem>>, vector<1x8x8x32xbf16>
    %116 = vector.shape_cast %115 : vector<1x8x8x32xbf16> to vector<8x8x32xbf16>
    %117 = vector.shape_cast %114 : vector<8x8x32xbf16> to vector<1x8x8x32xbf16>
    tpu.vector_store %arg8[%c0_48, %c0_49, %c0_50, %c0_51], %117 {strides = array<i32>} : memref<1x8x8x32xbf16, #tpu.memory_space<vmem>>, vector<1x8x8x32xbf16>,
    %118 = vector.shape_cast %112 : vector<64x32xf32> to vector<8x8x32xf32>
    %119 = arith.truncf %118 : vector<8x8x32xf32> to vector<8x8x32xbf16>
    %c0_52 = arith.constant 0 : index
    %c0_53 = arith.constant 0 : index
    %c0_54 = arith.constant 0 : index
    %c0_55 = arith.constant 0 : index
    %120 = vector.load %arg9[%c0_52, %c0_53, %c0_54, %c0_55] : memref<1x8x8x32xbf16, #tpu.memory_space<vmem>>, vector<1x8x8x32xbf16>
    %121 = vector.shape_cast %120 : vector<1x8x8x32xbf16> to vector<8x8x32xbf16>
    %122 = vector.shape_cast %119 : vector<8x8x32xbf16> to vector<1x8x8x32xbf16>
    tpu.vector_store %arg9[%c0_52, %c0_53, %c0_54, %c0_55], %122 {strides = array<i32>} : memref<1x8x8x32xbf16, #tpu.memory_space<vmem>>, vector<1x8x8x32xbf16>,
    return
  }
  func.func @transform_0(%arg0: i32, %arg1: i32) -> (i32, i32, i32, i32) {
    %c0_i32 = arith.constant 0 : i32
    %c0_i32_0 = arith.constant 0 : i32
    %c0_i32_1 = arith.constant 0 : i32
    return %arg0, %arg1, %c0_i32, %c0_i32_0 : i32, i32, i32, i32
  }
  func.func @transform_1(%arg0: i32, %arg1: i32) -> (i32, i32, i32, i32) {
    %c1_i32 = arith.constant 1 : i32
    %0 = arith.addi %arg1, %c1_i32 : i32
    %c16_i32 = arith.constant 16 : i32
    %1 = arith.muli %c16_i32, %0 : i32
    %c0_i32 = arith.constant 0 : i32
    %c0_i32_0 = arith.constant 0 : i32
    %c0_i32_1 = arith.constant 0 : i32
    return %arg0, %1, %c0_i32, %c0_i32_0 : i32, i32, i32, i32
  }
  func.func @transform_2(%arg0: i32, %arg1: i32) -> (i32, i32, i32, i32) {
    %c0_i32 = arith.constant 0 : i32
    %c0_i32_0 = arith.constant 0 : i32
    %c0_i32_1 = arith.constant 0 : i32
    return %arg0, %arg1, %c0_i32, %c0_i32_0 : i32, i32, i32, i32
  }
  func.func @transform_3(%arg0: i32, %arg1: i32) -> (i32, i32, i32, i32) {
    %c1_i32 = arith.constant 1 : i32
    %0 = arith.addi %arg1, %c1_i32 : i32
    %c16_i32 = arith.constant 16 : i32
    %1 = arith.muli %c16_i32, %0 : i32
    %c0_i32 = arith.constant 0 : i32
    %c0_i32_0 = arith.constant 0 : i32
    %c0_i32_1 = arith.constant 0 : i32
    return %arg0, %1, %c0_i32, %c0_i32_0 : i32, i32, i32, i32
  }
  func.func @transform_4(%arg0: i32, %arg1: i32) -> (i32, i32, i32) {
    %c0_i32 = arith.constant 0 : i32
    %c0_i32_0 = arith.constant 0 : i32
    %c0_i32_1 = arith.constant 0 : i32
    %c0_i32_2 = arith.constant 0 : i32
    return %c0_i32, %c0_i32_0, %c0_i32_1 : i32, i32, i32
  }
  func.func @transform_5(%arg0: i32, %arg1: i32) -> (i32, i32) {
    %c0_i32 = arith.constant 0 : i32
    %c0_i32_0 = arith.constant 0 : i32
    %c0_i32_1 = arith.constant 0 : i32
    return %c0_i32, %c0_i32_0 : i32, i32
  }
  func.func @transform_6(%arg0: i32, %arg1: i32) -> (i32, i32, i32, i32) {
    %c0_i32 = arith.constant 0 : i32
    %c0_i32_0 = arith.constant 0 : i32
    %c0_i32_1 = arith.constant 0 : i32
    return %arg0, %arg1, %c0_i32, %c0_i32_0 : i32, i32, i32, i32
  }
  func.func @transform_7(%arg0: i32, %arg1: i32) -> (i32, i32, i32, i32) {
    %c0_i32 = arith.constant 0 : i32
    %c0_i32_0 = arith.constant 0 : i32
    %c0_i32_1 = arith.constant 0 : i32
    return %arg0, %arg1, %c0_i32, %c0_i32_0 : i32, i32, i32, i32
  }
}

module attributes {stable_mosaic.version = 11 : i64} {
  func.func @kernel(%arg0: i32, %arg1: i32, %arg2: memref<1x8x5x32xbf16, #tpu.memory_space<vmem>>, %arg3: memref<1x1x5x32xbf16, #tpu.memory_space<vmem>>, %arg4: memref<1x8x5x32xbf16, #tpu.memory_space<vmem>>, %arg5: memref<1x1x5x32xbf16, #tpu.memory_space<vmem>>, %arg6: memref<1x8x4x32xbf16, #tpu.memory_space<vmem>>, %arg7: memref<1x8x4x32xbf16, #tpu.memory_space<vmem>>, %arg8: memref<9x32x32xbf16, #tpu.memory_space<vmem>>, %arg9: memref<32x32xbf16, #tpu.memory_space<vmem>>, %arg10: memref<1x4x4x32xbf16, #tpu.memory_space<vmem>>, %arg11: memref<1x4x4x32xbf16, #tpu.memory_space<vmem>>) attributes {dimension_semantics = [#tpu.dimension_semantics<parallel>, #tpu.dimension_semantics<parallel>], iteration_bounds = array<i64: 2, 1>, scalar_prefetch = 0 : i64, scratch_operands = 0 : i64, tpu.core_type = #tpu.core_type<tc>, window_params = [{transform_indices = @transform_0, window_bounds = array<i64: 1, 8, 5, 32>}, {transform_indices = @transform_1, window_bounds = array<i64: 1, 1, 5, 32>}, {transform_indices = @transform_2, window_bounds = array<i64: 1, 8, 5, 32>}, {transform_indices = @transform_3, window_bounds = array<i64: 1, 1, 5, 32>}, {transform_indices = @transform_4, window_bounds = array<i64: 1, 8, 4, 32>}, {transform_indices = @transform_5, window_bounds = array<i64: 1, 8, 4, 32>}, {pipeline_mode = #tpu.pipeline_mode<synchronous>, transform_indices = @transform_6, window_bounds = array<i64: 9, 32, 32>}, {pipeline_mode = #tpu.pipeline_mode<synchronous>, transform_indices = @transform_7, window_bounds = array<i64: 32, 32>}, {transform_indices = @transform_8, window_bounds = array<i64: 1, 4, 4, 32>}, {transform_indices = @transform_9, window_bounds = array<i64: 1, 4, 4, 32>}]} {
    %c0 = arith.constant 0 : index
    %c0_0 = arith.constant 0 : index
    %c0_1 = arith.constant 0 : index
    %c0_2 = arith.constant 0 : index
    %0 = vector.load %arg2[%c0, %c0_0, %c0_1, %c0_2] : memref<1x8x5x32xbf16, #tpu.memory_space<vmem>>, vector<1x8x5x32xbf16>
    %1 = vector.shape_cast %0 : vector<1x8x5x32xbf16> to vector<8x5x32xbf16>
    %c0_3 = arith.constant 0 : index
    %c0_4 = arith.constant 0 : index
    %c0_5 = arith.constant 0 : index
    %c0_6 = arith.constant 0 : index
    %2 = vector.load %arg3[%c0_3, %c0_4, %c0_5, %c0_6] : memref<1x1x5x32xbf16, #tpu.memory_space<vmem>>, vector<1x1x5x32xbf16>
    %3 = vector.shape_cast %2 : vector<1x1x5x32xbf16> to vector<1x5x32xbf16>
    %4 = tpu.concatenate %1, %3 in 0 : vector<8x5x32xbf16>, vector<1x5x32xbf16> -> vector<9x5x32xbf16>
    %c0_7 = arith.constant 0 : index
    %c0_8 = arith.constant 0 : index
    %c0_9 = arith.constant 0 : index
    %c0_10 = arith.constant 0 : index
    %5 = vector.load %arg4[%c0_7, %c0_8, %c0_9, %c0_10] : memref<1x8x5x32xbf16, #tpu.memory_space<vmem>>, vector<1x8x5x32xbf16>
    %6 = vector.shape_cast %5 : vector<1x8x5x32xbf16> to vector<8x5x32xbf16>
    %c0_11 = arith.constant 0 : index
    %c0_12 = arith.constant 0 : index
    %c0_13 = arith.constant 0 : index
    %c0_14 = arith.constant 0 : index
    %7 = vector.load %arg5[%c0_11, %c0_12, %c0_13, %c0_14] : memref<1x1x5x32xbf16, #tpu.memory_space<vmem>>, vector<1x1x5x32xbf16>
    %8 = vector.shape_cast %7 : vector<1x1x5x32xbf16> to vector<1x5x32xbf16>
    %9 = tpu.concatenate %6, %8 in 0 : vector<8x5x32xbf16>, vector<1x5x32xbf16> -> vector<9x5x32xbf16>
    %10 = vector.extract_strided_slice %4 {offsets = [0, 0, 0], sizes = [8, 5, 32], strides = [1, 1, 1]} : vector<9x5x32xbf16> to vector<8x5x32xbf16>
    %11 = vector.shape_cast %10 : vector<8x5x32xbf16> to vector<4x2x5x32xbf16>
    %12 = vector.extract_strided_slice %11 {offsets = [0, 0, 0, 0], sizes = [4, 1, 5, 32], strides = [1, 1, 1, 1]} : vector<4x2x5x32xbf16> to vector<4x1x5x32xbf16>
    %13 = vector.shape_cast %12 : vector<4x1x5x32xbf16> to vector<4x5x32xbf16>
    %14 = vector.extract_strided_slice %11 {offsets = [0, 1, 0, 0], sizes = [4, 1, 5, 32], strides = [1, 1, 1, 1]} : vector<4x2x5x32xbf16> to vector<4x1x5x32xbf16>
    %15 = vector.shape_cast %14 : vector<4x1x5x32xbf16> to vector<4x5x32xbf16>
    %16 = vector.extract_strided_slice %11 {offsets = [1, 0, 0, 0], sizes = [3, 1, 5, 32], strides = [1, 1, 1, 1]} : vector<4x2x5x32xbf16> to vector<3x1x5x32xbf16>
    %17 = vector.shape_cast %16 : vector<3x1x5x32xbf16> to vector<3x5x32xbf16>
    %18 = vector.extract_strided_slice %4 {offsets = [8, 0, 0], sizes = [1, 5, 32], strides = [1, 1, 1]} : vector<9x5x32xbf16> to vector<1x5x32xbf16>
    %19 = tpu.concatenate %17, %18 in 0 : vector<3x5x32xbf16>, vector<1x5x32xbf16> -> vector<4x5x32xbf16>
    %20 = vector.extract_strided_slice %9 {offsets = [0, 0, 0], sizes = [8, 5, 32], strides = [1, 1, 1]} : vector<9x5x32xbf16> to vector<8x5x32xbf16>
    %21 = vector.shape_cast %20 : vector<8x5x32xbf16> to vector<4x2x5x32xbf16>
    %22 = vector.extract_strided_slice %21 {offsets = [0, 0, 0, 0], sizes = [4, 1, 5, 32], strides = [1, 1, 1, 1]} : vector<4x2x5x32xbf16> to vector<4x1x5x32xbf16>
    %23 = vector.shape_cast %22 : vector<4x1x5x32xbf16> to vector<4x5x32xbf16>
    %24 = vector.extract_strided_slice %21 {offsets = [0, 1, 0, 0], sizes = [4, 1, 5, 32], strides = [1, 1, 1, 1]} : vector<4x2x5x32xbf16> to vector<4x1x5x32xbf16>
    %25 = vector.shape_cast %24 : vector<4x1x5x32xbf16> to vector<4x5x32xbf16>
    %26 = vector.extract_strided_slice %21 {offsets = [1, 0, 0, 0], sizes = [3, 1, 5, 32], strides = [1, 1, 1, 1]} : vector<4x2x5x32xbf16> to vector<3x1x5x32xbf16>
    %27 = vector.shape_cast %26 : vector<3x1x5x32xbf16> to vector<3x5x32xbf16>
    %28 = vector.extract_strided_slice %9 {offsets = [8, 0, 0], sizes = [1, 5, 32], strides = [1, 1, 1]} : vector<9x5x32xbf16> to vector<1x5x32xbf16>
    %29 = tpu.concatenate %27, %28 in 0 : vector<3x5x32xbf16>, vector<1x5x32xbf16> -> vector<4x5x32xbf16>
    %cst = arith.constant 0.000000e+00 : f32
    %30 = vector.broadcast %cst : f32 to vector<16x32xf32>
    %31 = vector.extract_strided_slice %13 {offsets = [0, 0, 0], sizes = [4, 4, 32], strides = [1, 1, 1]} : vector<4x5x32xbf16> to vector<4x4x32xbf16>
    %32 = vector.shape_cast %31 : vector<4x4x32xbf16> to vector<16x32xbf16>
    %c0_15 = arith.constant 0 : index
    %c0_16 = arith.constant 0 : index
    %c0_17 = arith.constant 0 : index
    %33 = vector.load %arg8[%c0_15, %c0_16, %c0_17] : memref<9x32x32xbf16, #tpu.memory_space<vmem>>, vector<1x32x32xbf16>
    %34 = vector.shape_cast %33 : vector<1x32x32xbf16> to vector<32x32xbf16>
    %cst_18 = arith.constant dense<0.000000e+00> : vector<16x32xf32>
    %35 = tpu.matmul %32, %34, %cst_18 {dimension_numbers = #tpu.dot_dimension_numbers<[1], [0], [0], [1], [0, 0, 1, 1], [], []>} : vector<16x32xbf16>, vector<32x32xbf16>, vector<16x32xf32> -> vector<16x32xf32>
    %36 = arith.addf %30, %35 : vector<16x32xf32>
    %37 = vector.extract_strided_slice %23 {offsets = [0, 0, 0], sizes = [4, 4, 32], strides = [1, 1, 1]} : vector<4x5x32xbf16> to vector<4x4x32xbf16>
    %38 = vector.shape_cast %37 : vector<4x4x32xbf16> to vector<16x32xbf16>
    %c1 = arith.constant 1 : index
    %c0_19 = arith.constant 0 : index
    %c0_20 = arith.constant 0 : index
    %39 = vector.load %arg8[%c1, %c0_19, %c0_20] : memref<9x32x32xbf16, #tpu.memory_space<vmem>>, vector<1x32x32xbf16>
    %40 = vector.shape_cast %39 : vector<1x32x32xbf16> to vector<32x32xbf16>
    %cst_21 = arith.constant dense<0.000000e+00> : vector<16x32xf32>
    %41 = tpu.matmul %38, %40, %cst_21 {dimension_numbers = #tpu.dot_dimension_numbers<[1], [0], [0], [1], [0, 0, 1, 1], [], []>} : vector<16x32xbf16>, vector<32x32xbf16>, vector<16x32xf32> -> vector<16x32xf32>
    %42 = arith.addf %36, %41 : vector<16x32xf32>
    %43 = vector.extract_strided_slice %13 {offsets = [0, 1, 0], sizes = [4, 4, 32], strides = [1, 1, 1]} : vector<4x5x32xbf16> to vector<4x4x32xbf16>
    %44 = vector.shape_cast %43 : vector<4x4x32xbf16> to vector<16x32xbf16>
    %c2 = arith.constant 2 : index
    %c0_22 = arith.constant 0 : index
    %c0_23 = arith.constant 0 : index
    %45 = vector.load %arg8[%c2, %c0_22, %c0_23] : memref<9x32x32xbf16, #tpu.memory_space<vmem>>, vector<1x32x32xbf16>
    %46 = vector.shape_cast %45 : vector<1x32x32xbf16> to vector<32x32xbf16>
    %cst_24 = arith.constant dense<0.000000e+00> : vector<16x32xf32>
    %47 = tpu.matmul %44, %46, %cst_24 {dimension_numbers = #tpu.dot_dimension_numbers<[1], [0], [0], [1], [0, 0, 1, 1], [], []>} : vector<16x32xbf16>, vector<32x32xbf16>, vector<16x32xf32> -> vector<16x32xf32>
    %48 = arith.addf %42, %47 : vector<16x32xf32>
    %49 = vector.extract_strided_slice %15 {offsets = [0, 0, 0], sizes = [4, 4, 32], strides = [1, 1, 1]} : vector<4x5x32xbf16> to vector<4x4x32xbf16>
    %50 = vector.shape_cast %49 : vector<4x4x32xbf16> to vector<16x32xbf16>
    %c3 = arith.constant 3 : index
    %c0_25 = arith.constant 0 : index
    %c0_26 = arith.constant 0 : index
    %51 = vector.load %arg8[%c3, %c0_25, %c0_26] : memref<9x32x32xbf16, #tpu.memory_space<vmem>>, vector<1x32x32xbf16>
    %52 = vector.shape_cast %51 : vector<1x32x32xbf16> to vector<32x32xbf16>
    %cst_27 = arith.constant dense<0.000000e+00> : vector<16x32xf32>
    %53 = tpu.matmul %50, %52, %cst_27 {dimension_numbers = #tpu.dot_dimension_numbers<[1], [0], [0], [1], [0, 0, 1, 1], [], []>} : vector<16x32xbf16>, vector<32x32xbf16>, vector<16x32xf32> -> vector<16x32xf32>
    %54 = arith.addf %48, %53 : vector<16x32xf32>
    %55 = vector.extract_strided_slice %25 {offsets = [0, 0, 0], sizes = [4, 4, 32], strides = [1, 1, 1]} : vector<4x5x32xbf16> to vector<4x4x32xbf16>
    %56 = vector.shape_cast %55 : vector<4x4x32xbf16> to vector<16x32xbf16>
    %c4 = arith.constant 4 : index
    %c0_28 = arith.constant 0 : index
    %c0_29 = arith.constant 0 : index
    %57 = vector.load %arg8[%c4, %c0_28, %c0_29] : memref<9x32x32xbf16, #tpu.memory_space<vmem>>, vector<1x32x32xbf16>
    %58 = vector.shape_cast %57 : vector<1x32x32xbf16> to vector<32x32xbf16>
    %cst_30 = arith.constant dense<0.000000e+00> : vector<16x32xf32>
    %59 = tpu.matmul %56, %58, %cst_30 {dimension_numbers = #tpu.dot_dimension_numbers<[1], [0], [0], [1], [0, 0, 1, 1], [], []>} : vector<16x32xbf16>, vector<32x32xbf16>, vector<16x32xf32> -> vector<16x32xf32>
    %60 = arith.addf %54, %59 : vector<16x32xf32>
    %61 = vector.extract_strided_slice %15 {offsets = [0, 1, 0], sizes = [4, 4, 32], strides = [1, 1, 1]} : vector<4x5x32xbf16> to vector<4x4x32xbf16>
    %62 = vector.shape_cast %61 : vector<4x4x32xbf16> to vector<16x32xbf16>
    %c5 = arith.constant 5 : index
    %c0_31 = arith.constant 0 : index
    %c0_32 = arith.constant 0 : index
    %63 = vector.load %arg8[%c5, %c0_31, %c0_32] : memref<9x32x32xbf16, #tpu.memory_space<vmem>>, vector<1x32x32xbf16>
    %64 = vector.shape_cast %63 : vector<1x32x32xbf16> to vector<32x32xbf16>
    %cst_33 = arith.constant dense<0.000000e+00> : vector<16x32xf32>
    %65 = tpu.matmul %62, %64, %cst_33 {dimension_numbers = #tpu.dot_dimension_numbers<[1], [0], [0], [1], [0, 0, 1, 1], [], []>} : vector<16x32xbf16>, vector<32x32xbf16>, vector<16x32xf32> -> vector<16x32xf32>
    %66 = arith.addf %60, %65 : vector<16x32xf32>
    %67 = vector.extract_strided_slice %19 {offsets = [0, 0, 0], sizes = [4, 4, 32], strides = [1, 1, 1]} : vector<4x5x32xbf16> to vector<4x4x32xbf16>
    %68 = vector.shape_cast %67 : vector<4x4x32xbf16> to vector<16x32xbf16>
    %c6 = arith.constant 6 : index
    %c0_34 = arith.constant 0 : index
    %c0_35 = arith.constant 0 : index
    %69 = vector.load %arg8[%c6, %c0_34, %c0_35] : memref<9x32x32xbf16, #tpu.memory_space<vmem>>, vector<1x32x32xbf16>
    %70 = vector.shape_cast %69 : vector<1x32x32xbf16> to vector<32x32xbf16>
    %cst_36 = arith.constant dense<0.000000e+00> : vector<16x32xf32>
    %71 = tpu.matmul %68, %70, %cst_36 {dimension_numbers = #tpu.dot_dimension_numbers<[1], [0], [0], [1], [0, 0, 1, 1], [], []>} : vector<16x32xbf16>, vector<32x32xbf16>, vector<16x32xf32> -> vector<16x32xf32>
    %72 = arith.addf %66, %71 : vector<16x32xf32>
    %73 = vector.extract_strided_slice %29 {offsets = [0, 0, 0], sizes = [4, 4, 32], strides = [1, 1, 1]} : vector<4x5x32xbf16> to vector<4x4x32xbf16>
    %74 = vector.shape_cast %73 : vector<4x4x32xbf16> to vector<16x32xbf16>
    %c7 = arith.constant 7 : index
    %c0_37 = arith.constant 0 : index
    %c0_38 = arith.constant 0 : index
    %75 = vector.load %arg8[%c7, %c0_37, %c0_38] : memref<9x32x32xbf16, #tpu.memory_space<vmem>>, vector<1x32x32xbf16>
    %76 = vector.shape_cast %75 : vector<1x32x32xbf16> to vector<32x32xbf16>
    %cst_39 = arith.constant dense<0.000000e+00> : vector<16x32xf32>
    %77 = tpu.matmul %74, %76, %cst_39 {dimension_numbers = #tpu.dot_dimension_numbers<[1], [0], [0], [1], [0, 0, 1, 1], [], []>} : vector<16x32xbf16>, vector<32x32xbf16>, vector<16x32xf32> -> vector<16x32xf32>
    %78 = arith.addf %72, %77 : vector<16x32xf32>
    %79 = vector.extract_strided_slice %19 {offsets = [0, 1, 0], sizes = [4, 4, 32], strides = [1, 1, 1]} : vector<4x5x32xbf16> to vector<4x4x32xbf16>
    %80 = vector.shape_cast %79 : vector<4x4x32xbf16> to vector<16x32xbf16>
    %c8 = arith.constant 8 : index
    %c0_40 = arith.constant 0 : index
    %c0_41 = arith.constant 0 : index
    %81 = vector.load %arg8[%c8, %c0_40, %c0_41] : memref<9x32x32xbf16, #tpu.memory_space<vmem>>, vector<1x32x32xbf16>
    %82 = vector.shape_cast %81 : vector<1x32x32xbf16> to vector<32x32xbf16>
    %cst_42 = arith.constant dense<0.000000e+00> : vector<16x32xf32>
    %83 = tpu.matmul %80, %82, %cst_42 {dimension_numbers = #tpu.dot_dimension_numbers<[1], [0], [0], [1], [0, 0, 1, 1], [], []>} : vector<16x32xbf16>, vector<32x32xbf16>, vector<16x32xf32> -> vector<16x32xf32>
    %84 = arith.addf %78, %83 : vector<16x32xf32>
    %cst_43 = arith.constant 0.000000e+00 : f32
    %85 = vector.broadcast %cst_43 : f32 to vector<16x32xf32>
    %86 = arith.maximumf %84, %85 : vector<16x32xf32>
    %87 = arith.truncf %86 : vector<16x32xf32> to vector<16x32xbf16>
    %c0_44 = arith.constant 0 : index
    %c0_45 = arith.constant 0 : index
    %88 = vector.load %arg9[%c0_44, %c0_45] : memref<32x32xbf16, #tpu.memory_space<vmem>>, vector<32x32xbf16>
    %cst_46 = arith.constant dense<0.000000e+00> : vector<16x32xf32>
    %89 = tpu.matmul %87, %88, %cst_46 {dimension_numbers = #tpu.dot_dimension_numbers<[1], [0], [0], [1], [0, 0, 1, 1], [], []>} : vector<16x32xbf16>, vector<32x32xbf16>, vector<16x32xf32> -> vector<16x32xf32>
    %c0_47 = arith.constant 0 : index
    %c0_48 = arith.constant 0 : index
    %c0_49 = arith.constant 0 : index
    %c0_50 = arith.constant 0 : index
    %90 = vector.load %arg6[%c0_47, %c0_48, %c0_49, %c0_50] : memref<1x8x4x32xbf16, #tpu.memory_space<vmem>>, vector<1x8x4x32xbf16>
    %91 = vector.shape_cast %90 : vector<1x8x4x32xbf16> to vector<8x4x32xbf16>
    %92 = arith.extf %91 : vector<8x4x32xbf16> to vector<8x4x32xf32>
    %93 = vector.shape_cast %92 : vector<8x4x32xf32> to vector<4x2x4x32xf32>
    %c0_51 = arith.constant 0 : index
    %c0_52 = arith.constant 0 : index
    %c0_53 = arith.constant 0 : index
    %c0_54 = arith.constant 0 : index
    %94 = vector.load %arg7[%c0_51, %c0_52, %c0_53, %c0_54] : memref<1x8x4x32xbf16, #tpu.memory_space<vmem>>, vector<1x8x4x32xbf16>
    %95 = vector.shape_cast %94 : vector<1x8x4x32xbf16> to vector<8x4x32xbf16>
    %96 = arith.extf %95 : vector<8x4x32xbf16> to vector<8x4x32xf32>
    %97 = vector.shape_cast %96 : vector<8x4x32xf32> to vector<4x2x4x32xf32>
    %98 = vector.extract_strided_slice %93 {offsets = [0, 0, 0, 0], sizes = [4, 1, 4, 32], strides = [1, 1, 1, 1]} : vector<4x2x4x32xf32> to vector<4x1x4x32xf32>
    %99 = vector.shape_cast %98 : vector<4x1x4x32xf32> to vector<4x4x32xf32>
    %100 = vector.extract_strided_slice %93 {offsets = [0, 1, 0, 0], sizes = [4, 1, 4, 32], strides = [1, 1, 1, 1]} : vector<4x2x4x32xf32> to vector<4x1x4x32xf32>
    %101 = vector.shape_cast %100 : vector<4x1x4x32xf32> to vector<4x4x32xf32>
    %102 = arith.addf %99, %101 : vector<4x4x32xf32>
    %103 = vector.extract_strided_slice %97 {offsets = [0, 0, 0, 0], sizes = [4, 1, 4, 32], strides = [1, 1, 1, 1]} : vector<4x2x4x32xf32> to vector<4x1x4x32xf32>
    %104 = vector.shape_cast %103 : vector<4x1x4x32xf32> to vector<4x4x32xf32>
    %105 = arith.addf %102, %104 : vector<4x4x32xf32>
    %106 = vector.extract_strided_slice %97 {offsets = [0, 1, 0, 0], sizes = [4, 1, 4, 32], strides = [1, 1, 1, 1]} : vector<4x2x4x32xf32> to vector<4x1x4x32xf32>
    %107 = vector.shape_cast %106 : vector<4x1x4x32xf32> to vector<4x4x32xf32>
    %108 = arith.addf %105, %107 : vector<4x4x32xf32>
    %cst_55 = arith.constant 2.500000e-01 : f32
    %109 = vector.broadcast %cst_55 : f32 to vector<4x4x32xf32>
    %110 = arith.mulf %109, %108 : vector<4x4x32xf32>
    %111 = vector.shape_cast %110 : vector<4x4x32xf32> to vector<16x32xf32>
    %112 = arith.addf %111, %89 : vector<16x32xf32>
    %113 = vector.shape_cast %89 : vector<16x32xf32> to vector<4x4x32xf32>
    %114 = arith.truncf %113 : vector<4x4x32xf32> to vector<4x4x32xbf16>
    %c0_56 = arith.constant 0 : index
    %c0_57 = arith.constant 0 : index
    %c0_58 = arith.constant 0 : index
    %c0_59 = arith.constant 0 : index
    %115 = vector.load %arg10[%c0_56, %c0_57, %c0_58, %c0_59] : memref<1x4x4x32xbf16, #tpu.memory_space<vmem>>, vector<1x4x4x32xbf16>
    %116 = vector.shape_cast %115 : vector<1x4x4x32xbf16> to vector<4x4x32xbf16>
    %117 = vector.shape_cast %114 : vector<4x4x32xbf16> to vector<1x4x4x32xbf16>
    tpu.vector_store %arg10[%c0_56, %c0_57, %c0_58, %c0_59], %117 {strides = array<i32>} : memref<1x4x4x32xbf16, #tpu.memory_space<vmem>>, vector<1x4x4x32xbf16>,
    %118 = vector.shape_cast %112 : vector<16x32xf32> to vector<4x4x32xf32>
    %119 = arith.truncf %118 : vector<4x4x32xf32> to vector<4x4x32xbf16>
    %c0_60 = arith.constant 0 : index
    %c0_61 = arith.constant 0 : index
    %c0_62 = arith.constant 0 : index
    %c0_63 = arith.constant 0 : index
    %120 = vector.load %arg11[%c0_60, %c0_61, %c0_62, %c0_63] : memref<1x4x4x32xbf16, #tpu.memory_space<vmem>>, vector<1x4x4x32xbf16>
    %121 = vector.shape_cast %120 : vector<1x4x4x32xbf16> to vector<4x4x32xbf16>
    %122 = vector.shape_cast %119 : vector<4x4x32xbf16> to vector<1x4x4x32xbf16>
    tpu.vector_store %arg11[%c0_60, %c0_61, %c0_62, %c0_63], %122 {strides = array<i32>} : memref<1x4x4x32xbf16, #tpu.memory_space<vmem>>, vector<1x4x4x32xbf16>,
    return
  }
  func.func @transform_0(%arg0: i32, %arg1: i32) -> (i32, i32, i32, i32) {
    %c0_i32 = arith.constant 0 : i32
    %c0_i32_0 = arith.constant 0 : i32
    %c0_i32_1 = arith.constant 0 : i32
    return %arg0, %arg1, %c0_i32, %c0_i32_0 : i32, i32, i32, i32
  }
  func.func @transform_1(%arg0: i32, %arg1: i32) -> (i32, i32, i32, i32) {
    %c1_i32 = arith.constant 1 : i32
    %0 = arith.addi %arg1, %c1_i32 : i32
    %c8_i32 = arith.constant 8 : i32
    %1 = arith.muli %c8_i32, %0 : i32
    %c0_i32 = arith.constant 0 : i32
    %c0_i32_0 = arith.constant 0 : i32
    %c0_i32_1 = arith.constant 0 : i32
    return %arg0, %1, %c0_i32, %c0_i32_0 : i32, i32, i32, i32
  }
  func.func @transform_2(%arg0: i32, %arg1: i32) -> (i32, i32, i32, i32) {
    %c0_i32 = arith.constant 0 : i32
    %c0_i32_0 = arith.constant 0 : i32
    %c0_i32_1 = arith.constant 0 : i32
    return %arg0, %arg1, %c0_i32, %c0_i32_0 : i32, i32, i32, i32
  }
  func.func @transform_3(%arg0: i32, %arg1: i32) -> (i32, i32, i32, i32) {
    %c1_i32 = arith.constant 1 : i32
    %0 = arith.addi %arg1, %c1_i32 : i32
    %c8_i32 = arith.constant 8 : i32
    %1 = arith.muli %c8_i32, %0 : i32
    %c0_i32 = arith.constant 0 : i32
    %c0_i32_0 = arith.constant 0 : i32
    %c0_i32_1 = arith.constant 0 : i32
    return %arg0, %1, %c0_i32, %c0_i32_0 : i32, i32, i32, i32
  }
  func.func @transform_4(%arg0: i32, %arg1: i32) -> (i32, i32, i32, i32) {
    %c0_i32 = arith.constant 0 : i32
    %c0_i32_0 = arith.constant 0 : i32
    %c0_i32_1 = arith.constant 0 : i32
    return %arg0, %arg1, %c0_i32, %c0_i32_0 : i32, i32, i32, i32
  }
  func.func @transform_5(%arg0: i32, %arg1: i32) -> (i32, i32, i32, i32) {
    %c0_i32 = arith.constant 0 : i32
    %c0_i32_0 = arith.constant 0 : i32
    %c0_i32_1 = arith.constant 0 : i32
    return %arg0, %arg1, %c0_i32, %c0_i32_0 : i32, i32, i32, i32
  }
  func.func @transform_6(%arg0: i32, %arg1: i32) -> (i32, i32, i32) {
    %c0_i32 = arith.constant 0 : i32
    %c0_i32_0 = arith.constant 0 : i32
    %c0_i32_1 = arith.constant 0 : i32
    %c0_i32_2 = arith.constant 0 : i32
    return %c0_i32, %c0_i32_0, %c0_i32_1 : i32, i32, i32
  }
  func.func @transform_7(%arg0: i32, %arg1: i32) -> (i32, i32) {
    %c0_i32 = arith.constant 0 : i32
    %c0_i32_0 = arith.constant 0 : i32
    %c0_i32_1 = arith.constant 0 : i32
    return %c0_i32, %c0_i32_0 : i32, i32
  }
  func.func @transform_8(%arg0: i32, %arg1: i32) -> (i32, i32, i32, i32) {
    %c0_i32 = arith.constant 0 : i32
    %c0_i32_0 = arith.constant 0 : i32
    %c0_i32_1 = arith.constant 0 : i32
    return %arg0, %arg1, %c0_i32, %c0_i32_0 : i32, i32, i32, i32
  }
  func.func @transform_9(%arg0: i32, %arg1: i32) -> (i32, i32, i32, i32) {
    %c0_i32 = arith.constant 0 : i32
    %c0_i32_0 = arith.constant 0 : i32
    %c0_i32_1 = arith.constant 0 : i32
    return %arg0, %arg1, %c0_i32, %c0_i32_0 : i32, i32, i32, i32
  }
}

module attributes {stable_mosaic.version = 11 : i64} {
  func.func @kernel(%arg0: i32, %arg1: i32, %arg2: memref<1x4x3x32xbf16, #tpu.memory_space<vmem>>, %arg3: memref<1x1x3x32xbf16, #tpu.memory_space<vmem>>, %arg4: memref<1x4x3x32xbf16, #tpu.memory_space<vmem>>, %arg5: memref<1x1x3x32xbf16, #tpu.memory_space<vmem>>, %arg6: memref<1x4x2x32xbf16, #tpu.memory_space<vmem>>, %arg7: memref<1x4x2x32xbf16, #tpu.memory_space<vmem>>, %arg8: memref<9x32x32xbf16, #tpu.memory_space<vmem>>, %arg9: memref<32x32xbf16, #tpu.memory_space<vmem>>, %arg10: memref<1x2x2x32xbf16, #tpu.memory_space<vmem>>, %arg11: memref<1x2x2x32xbf16, #tpu.memory_space<vmem>>) attributes {dimension_semantics = [#tpu.dimension_semantics<parallel>, #tpu.dimension_semantics<parallel>], iteration_bounds = array<i64: 2, 1>, scalar_prefetch = 0 : i64, scratch_operands = 0 : i64, tpu.core_type = #tpu.core_type<tc>, window_params = [{transform_indices = @transform_0, window_bounds = array<i64: 1, 4, 3, 32>}, {transform_indices = @transform_1, window_bounds = array<i64: 1, 1, 3, 32>}, {transform_indices = @transform_2, window_bounds = array<i64: 1, 4, 3, 32>}, {transform_indices = @transform_3, window_bounds = array<i64: 1, 1, 3, 32>}, {transform_indices = @transform_4, window_bounds = array<i64: 1, 4, 2, 32>}, {transform_indices = @transform_5, window_bounds = array<i64: 1, 4, 2, 32>}, {pipeline_mode = #tpu.pipeline_mode<synchronous>, transform_indices = @transform_6, window_bounds = array<i64: 9, 32, 32>}, {pipeline_mode = #tpu.pipeline_mode<synchronous>, transform_indices = @transform_7, window_bounds = array<i64: 32, 32>}, {transform_indices = @transform_8, window_bounds = array<i64: 1, 2, 2, 32>}, {transform_indices = @transform_9, window_bounds = array<i64: 1, 2, 2, 32>}]} {
    %c0 = arith.constant 0 : index
    %c0_0 = arith.constant 0 : index
    %c0_1 = arith.constant 0 : index
    %c0_2 = arith.constant 0 : index
    %0 = vector.load %arg2[%c0, %c0_0, %c0_1, %c0_2] : memref<1x4x3x32xbf16, #tpu.memory_space<vmem>>, vector<1x4x3x32xbf16>
    %1 = vector.shape_cast %0 : vector<1x4x3x32xbf16> to vector<4x3x32xbf16>
    %c0_3 = arith.constant 0 : index
    %c0_4 = arith.constant 0 : index
    %c0_5 = arith.constant 0 : index
    %c0_6 = arith.constant 0 : index
    %2 = vector.load %arg3[%c0_3, %c0_4, %c0_5, %c0_6] : memref<1x1x3x32xbf16, #tpu.memory_space<vmem>>, vector<1x1x3x32xbf16>
    %3 = vector.shape_cast %2 : vector<1x1x3x32xbf16> to vector<1x3x32xbf16>
    %4 = tpu.concatenate %1, %3 in 0 : vector<4x3x32xbf16>, vector<1x3x32xbf16> -> vector<5x3x32xbf16>
    %c0_7 = arith.constant 0 : index
    %c0_8 = arith.constant 0 : index
    %c0_9 = arith.constant 0 : index
    %c0_10 = arith.constant 0 : index
    %5 = vector.load %arg4[%c0_7, %c0_8, %c0_9, %c0_10] : memref<1x4x3x32xbf16, #tpu.memory_space<vmem>>, vector<1x4x3x32xbf16>
    %6 = vector.shape_cast %5 : vector<1x4x3x32xbf16> to vector<4x3x32xbf16>
    %c0_11 = arith.constant 0 : index
    %c0_12 = arith.constant 0 : index
    %c0_13 = arith.constant 0 : index
    %c0_14 = arith.constant 0 : index
    %7 = vector.load %arg5[%c0_11, %c0_12, %c0_13, %c0_14] : memref<1x1x3x32xbf16, #tpu.memory_space<vmem>>, vector<1x1x3x32xbf16>
    %8 = vector.shape_cast %7 : vector<1x1x3x32xbf16> to vector<1x3x32xbf16>
    %9 = tpu.concatenate %6, %8 in 0 : vector<4x3x32xbf16>, vector<1x3x32xbf16> -> vector<5x3x32xbf16>
    %10 = vector.extract_strided_slice %4 {offsets = [0, 0, 0], sizes = [4, 3, 32], strides = [1, 1, 1]} : vector<5x3x32xbf16> to vector<4x3x32xbf16>
    %11 = vector.shape_cast %10 : vector<4x3x32xbf16> to vector<2x2x3x32xbf16>
    %12 = vector.extract_strided_slice %11 {offsets = [0, 0, 0, 0], sizes = [2, 1, 3, 32], strides = [1, 1, 1, 1]} : vector<2x2x3x32xbf16> to vector<2x1x3x32xbf16>
    %13 = vector.shape_cast %12 : vector<2x1x3x32xbf16> to vector<2x3x32xbf16>
    %14 = vector.extract_strided_slice %11 {offsets = [0, 1, 0, 0], sizes = [2, 1, 3, 32], strides = [1, 1, 1, 1]} : vector<2x2x3x32xbf16> to vector<2x1x3x32xbf16>
    %15 = vector.shape_cast %14 : vector<2x1x3x32xbf16> to vector<2x3x32xbf16>
    %16 = vector.extract_strided_slice %11 {offsets = [1, 0, 0, 0], sizes = [1, 1, 3, 32], strides = [1, 1, 1, 1]} : vector<2x2x3x32xbf16> to vector<1x1x3x32xbf16>
    %17 = vector.shape_cast %16 : vector<1x1x3x32xbf16> to vector<1x3x32xbf16>
    %18 = vector.extract_strided_slice %4 {offsets = [4, 0, 0], sizes = [1, 3, 32], strides = [1, 1, 1]} : vector<5x3x32xbf16> to vector<1x3x32xbf16>
    %19 = tpu.concatenate %17, %18 in 0 : vector<1x3x32xbf16>, vector<1x3x32xbf16> -> vector<2x3x32xbf16>
    %20 = vector.extract_strided_slice %9 {offsets = [0, 0, 0], sizes = [4, 3, 32], strides = [1, 1, 1]} : vector<5x3x32xbf16> to vector<4x3x32xbf16>
    %21 = vector.shape_cast %20 : vector<4x3x32xbf16> to vector<2x2x3x32xbf16>
    %22 = vector.extract_strided_slice %21 {offsets = [0, 0, 0, 0], sizes = [2, 1, 3, 32], strides = [1, 1, 1, 1]} : vector<2x2x3x32xbf16> to vector<2x1x3x32xbf16>
    %23 = vector.shape_cast %22 : vector<2x1x3x32xbf16> to vector<2x3x32xbf16>
    %24 = vector.extract_strided_slice %21 {offsets = [0, 1, 0, 0], sizes = [2, 1, 3, 32], strides = [1, 1, 1, 1]} : vector<2x2x3x32xbf16> to vector<2x1x3x32xbf16>
    %25 = vector.shape_cast %24 : vector<2x1x3x32xbf16> to vector<2x3x32xbf16>
    %26 = vector.extract_strided_slice %21 {offsets = [1, 0, 0, 0], sizes = [1, 1, 3, 32], strides = [1, 1, 1, 1]} : vector<2x2x3x32xbf16> to vector<1x1x3x32xbf16>
    %27 = vector.shape_cast %26 : vector<1x1x3x32xbf16> to vector<1x3x32xbf16>
    %28 = vector.extract_strided_slice %9 {offsets = [4, 0, 0], sizes = [1, 3, 32], strides = [1, 1, 1]} : vector<5x3x32xbf16> to vector<1x3x32xbf16>
    %29 = tpu.concatenate %27, %28 in 0 : vector<1x3x32xbf16>, vector<1x3x32xbf16> -> vector<2x3x32xbf16>
    %cst = arith.constant 0.000000e+00 : f32
    %30 = vector.broadcast %cst : f32 to vector<4x32xf32>
    %31 = vector.extract_strided_slice %13 {offsets = [0, 0, 0], sizes = [2, 2, 32], strides = [1, 1, 1]} : vector<2x3x32xbf16> to vector<2x2x32xbf16>
    %32 = vector.shape_cast %31 : vector<2x2x32xbf16> to vector<4x32xbf16>
    %c0_15 = arith.constant 0 : index
    %c0_16 = arith.constant 0 : index
    %c0_17 = arith.constant 0 : index
    %33 = vector.load %arg8[%c0_15, %c0_16, %c0_17] : memref<9x32x32xbf16, #tpu.memory_space<vmem>>, vector<1x32x32xbf16>
    %34 = vector.shape_cast %33 : vector<1x32x32xbf16> to vector<32x32xbf16>
    %cst_18 = arith.constant dense<0.000000e+00> : vector<4x32xf32>
    %35 = tpu.matmul %32, %34, %cst_18 {dimension_numbers = #tpu.dot_dimension_numbers<[1], [0], [0], [1], [0, 0, 1, 1], [], []>} : vector<4x32xbf16>, vector<32x32xbf16>, vector<4x32xf32> -> vector<4x32xf32>
    %36 = arith.addf %30, %35 : vector<4x32xf32>
    %37 = vector.extract_strided_slice %23 {offsets = [0, 0, 0], sizes = [2, 2, 32], strides = [1, 1, 1]} : vector<2x3x32xbf16> to vector<2x2x32xbf16>
    %38 = vector.shape_cast %37 : vector<2x2x32xbf16> to vector<4x32xbf16>
    %c1 = arith.constant 1 : index
    %c0_19 = arith.constant 0 : index
    %c0_20 = arith.constant 0 : index
    %39 = vector.load %arg8[%c1, %c0_19, %c0_20] : memref<9x32x32xbf16, #tpu.memory_space<vmem>>, vector<1x32x32xbf16>
    %40 = vector.shape_cast %39 : vector<1x32x32xbf16> to vector<32x32xbf16>
    %cst_21 = arith.constant dense<0.000000e+00> : vector<4x32xf32>
    %41 = tpu.matmul %38, %40, %cst_21 {dimension_numbers = #tpu.dot_dimension_numbers<[1], [0], [0], [1], [0, 0, 1, 1], [], []>} : vector<4x32xbf16>, vector<32x32xbf16>, vector<4x32xf32> -> vector<4x32xf32>
    %42 = arith.addf %36, %41 : vector<4x32xf32>
    %43 = vector.extract_strided_slice %13 {offsets = [0, 1, 0], sizes = [2, 2, 32], strides = [1, 1, 1]} : vector<2x3x32xbf16> to vector<2x2x32xbf16>
    %44 = vector.shape_cast %43 : vector<2x2x32xbf16> to vector<4x32xbf16>
    %c2 = arith.constant 2 : index
    %c0_22 = arith.constant 0 : index
    %c0_23 = arith.constant 0 : index
    %45 = vector.load %arg8[%c2, %c0_22, %c0_23] : memref<9x32x32xbf16, #tpu.memory_space<vmem>>, vector<1x32x32xbf16>
    %46 = vector.shape_cast %45 : vector<1x32x32xbf16> to vector<32x32xbf16>
    %cst_24 = arith.constant dense<0.000000e+00> : vector<4x32xf32>
    %47 = tpu.matmul %44, %46, %cst_24 {dimension_numbers = #tpu.dot_dimension_numbers<[1], [0], [0], [1], [0, 0, 1, 1], [], []>} : vector<4x32xbf16>, vector<32x32xbf16>, vector<4x32xf32> -> vector<4x32xf32>
    %48 = arith.addf %42, %47 : vector<4x32xf32>
    %49 = vector.extract_strided_slice %15 {offsets = [0, 0, 0], sizes = [2, 2, 32], strides = [1, 1, 1]} : vector<2x3x32xbf16> to vector<2x2x32xbf16>
    %50 = vector.shape_cast %49 : vector<2x2x32xbf16> to vector<4x32xbf16>
    %c3 = arith.constant 3 : index
    %c0_25 = arith.constant 0 : index
    %c0_26 = arith.constant 0 : index
    %51 = vector.load %arg8[%c3, %c0_25, %c0_26] : memref<9x32x32xbf16, #tpu.memory_space<vmem>>, vector<1x32x32xbf16>
    %52 = vector.shape_cast %51 : vector<1x32x32xbf16> to vector<32x32xbf16>
    %cst_27 = arith.constant dense<0.000000e+00> : vector<4x32xf32>
    %53 = tpu.matmul %50, %52, %cst_27 {dimension_numbers = #tpu.dot_dimension_numbers<[1], [0], [0], [1], [0, 0, 1, 1], [], []>} : vector<4x32xbf16>, vector<32x32xbf16>, vector<4x32xf32> -> vector<4x32xf32>
    %54 = arith.addf %48, %53 : vector<4x32xf32>
    %55 = vector.extract_strided_slice %25 {offsets = [0, 0, 0], sizes = [2, 2, 32], strides = [1, 1, 1]} : vector<2x3x32xbf16> to vector<2x2x32xbf16>
    %56 = vector.shape_cast %55 : vector<2x2x32xbf16> to vector<4x32xbf16>
    %c4 = arith.constant 4 : index
    %c0_28 = arith.constant 0 : index
    %c0_29 = arith.constant 0 : index
    %57 = vector.load %arg8[%c4, %c0_28, %c0_29] : memref<9x32x32xbf16, #tpu.memory_space<vmem>>, vector<1x32x32xbf16>
    %58 = vector.shape_cast %57 : vector<1x32x32xbf16> to vector<32x32xbf16>
    %cst_30 = arith.constant dense<0.000000e+00> : vector<4x32xf32>
    %59 = tpu.matmul %56, %58, %cst_30 {dimension_numbers = #tpu.dot_dimension_numbers<[1], [0], [0], [1], [0, 0, 1, 1], [], []>} : vector<4x32xbf16>, vector<32x32xbf16>, vector<4x32xf32> -> vector<4x32xf32>
    %60 = arith.addf %54, %59 : vector<4x32xf32>
    %61 = vector.extract_strided_slice %15 {offsets = [0, 1, 0], sizes = [2, 2, 32], strides = [1, 1, 1]} : vector<2x3x32xbf16> to vector<2x2x32xbf16>
    %62 = vector.shape_cast %61 : vector<2x2x32xbf16> to vector<4x32xbf16>
    %c5 = arith.constant 5 : index
    %c0_31 = arith.constant 0 : index
    %c0_32 = arith.constant 0 : index
    %63 = vector.load %arg8[%c5, %c0_31, %c0_32] : memref<9x32x32xbf16, #tpu.memory_space<vmem>>, vector<1x32x32xbf16>
    %64 = vector.shape_cast %63 : vector<1x32x32xbf16> to vector<32x32xbf16>
    %cst_33 = arith.constant dense<0.000000e+00> : vector<4x32xf32>
    %65 = tpu.matmul %62, %64, %cst_33 {dimension_numbers = #tpu.dot_dimension_numbers<[1], [0], [0], [1], [0, 0, 1, 1], [], []>} : vector<4x32xbf16>, vector<32x32xbf16>, vector<4x32xf32> -> vector<4x32xf32>
    %66 = arith.addf %60, %65 : vector<4x32xf32>
    %67 = vector.extract_strided_slice %19 {offsets = [0, 0, 0], sizes = [2, 2, 32], strides = [1, 1, 1]} : vector<2x3x32xbf16> to vector<2x2x32xbf16>
    %68 = vector.shape_cast %67 : vector<2x2x32xbf16> to vector<4x32xbf16>
    %c6 = arith.constant 6 : index
    %c0_34 = arith.constant 0 : index
    %c0_35 = arith.constant 0 : index
    %69 = vector.load %arg8[%c6, %c0_34, %c0_35] : memref<9x32x32xbf16, #tpu.memory_space<vmem>>, vector<1x32x32xbf16>
    %70 = vector.shape_cast %69 : vector<1x32x32xbf16> to vector<32x32xbf16>
    %cst_36 = arith.constant dense<0.000000e+00> : vector<4x32xf32>
    %71 = tpu.matmul %68, %70, %cst_36 {dimension_numbers = #tpu.dot_dimension_numbers<[1], [0], [0], [1], [0, 0, 1, 1], [], []>} : vector<4x32xbf16>, vector<32x32xbf16>, vector<4x32xf32> -> vector<4x32xf32>
    %72 = arith.addf %66, %71 : vector<4x32xf32>
    %73 = vector.extract_strided_slice %29 {offsets = [0, 0, 0], sizes = [2, 2, 32], strides = [1, 1, 1]} : vector<2x3x32xbf16> to vector<2x2x32xbf16>
    %74 = vector.shape_cast %73 : vector<2x2x32xbf16> to vector<4x32xbf16>
    %c7 = arith.constant 7 : index
    %c0_37 = arith.constant 0 : index
    %c0_38 = arith.constant 0 : index
    %75 = vector.load %arg8[%c7, %c0_37, %c0_38] : memref<9x32x32xbf16, #tpu.memory_space<vmem>>, vector<1x32x32xbf16>
    %76 = vector.shape_cast %75 : vector<1x32x32xbf16> to vector<32x32xbf16>
    %cst_39 = arith.constant dense<0.000000e+00> : vector<4x32xf32>
    %77 = tpu.matmul %74, %76, %cst_39 {dimension_numbers = #tpu.dot_dimension_numbers<[1], [0], [0], [1], [0, 0, 1, 1], [], []>} : vector<4x32xbf16>, vector<32x32xbf16>, vector<4x32xf32> -> vector<4x32xf32>
    %78 = arith.addf %72, %77 : vector<4x32xf32>
    %79 = vector.extract_strided_slice %19 {offsets = [0, 1, 0], sizes = [2, 2, 32], strides = [1, 1, 1]} : vector<2x3x32xbf16> to vector<2x2x32xbf16>
    %80 = vector.shape_cast %79 : vector<2x2x32xbf16> to vector<4x32xbf16>
    %c8 = arith.constant 8 : index
    %c0_40 = arith.constant 0 : index
    %c0_41 = arith.constant 0 : index
    %81 = vector.load %arg8[%c8, %c0_40, %c0_41] : memref<9x32x32xbf16, #tpu.memory_space<vmem>>, vector<1x32x32xbf16>
    %82 = vector.shape_cast %81 : vector<1x32x32xbf16> to vector<32x32xbf16>
    %cst_42 = arith.constant dense<0.000000e+00> : vector<4x32xf32>
    %83 = tpu.matmul %80, %82, %cst_42 {dimension_numbers = #tpu.dot_dimension_numbers<[1], [0], [0], [1], [0, 0, 1, 1], [], []>} : vector<4x32xbf16>, vector<32x32xbf16>, vector<4x32xf32> -> vector<4x32xf32>
    %84 = arith.addf %78, %83 : vector<4x32xf32>
    %cst_43 = arith.constant 0.000000e+00 : f32
    %85 = vector.broadcast %cst_43 : f32 to vector<4x32xf32>
    %86 = arith.maximumf %84, %85 : vector<4x32xf32>
    %87 = arith.truncf %86 : vector<4x32xf32> to vector<4x32xbf16>
    %c0_44 = arith.constant 0 : index
    %c0_45 = arith.constant 0 : index
    %88 = vector.load %arg9[%c0_44, %c0_45] : memref<32x32xbf16, #tpu.memory_space<vmem>>, vector<32x32xbf16>
    %cst_46 = arith.constant dense<0.000000e+00> : vector<4x32xf32>
    %89 = tpu.matmul %87, %88, %cst_46 {dimension_numbers = #tpu.dot_dimension_numbers<[1], [0], [0], [1], [0, 0, 1, 1], [], []>} : vector<4x32xbf16>, vector<32x32xbf16>, vector<4x32xf32> -> vector<4x32xf32>
    %c0_47 = arith.constant 0 : index
    %c0_48 = arith.constant 0 : index
    %c0_49 = arith.constant 0 : index
    %c0_50 = arith.constant 0 : index
    %90 = vector.load %arg6[%c0_47, %c0_48, %c0_49, %c0_50] : memref<1x4x2x32xbf16, #tpu.memory_space<vmem>>, vector<1x4x2x32xbf16>
    %91 = vector.shape_cast %90 : vector<1x4x2x32xbf16> to vector<4x2x32xbf16>
    %92 = arith.extf %91 : vector<4x2x32xbf16> to vector<4x2x32xf32>
    %93 = vector.shape_cast %92 : vector<4x2x32xf32> to vector<2x2x2x32xf32>
    %c0_51 = arith.constant 0 : index
    %c0_52 = arith.constant 0 : index
    %c0_53 = arith.constant 0 : index
    %c0_54 = arith.constant 0 : index
    %94 = vector.load %arg7[%c0_51, %c0_52, %c0_53, %c0_54] : memref<1x4x2x32xbf16, #tpu.memory_space<vmem>>, vector<1x4x2x32xbf16>
    %95 = vector.shape_cast %94 : vector<1x4x2x32xbf16> to vector<4x2x32xbf16>
    %96 = arith.extf %95 : vector<4x2x32xbf16> to vector<4x2x32xf32>
    %97 = vector.shape_cast %96 : vector<4x2x32xf32> to vector<2x2x2x32xf32>
    %98 = vector.extract_strided_slice %93 {offsets = [0, 0, 0, 0], sizes = [2, 1, 2, 32], strides = [1, 1, 1, 1]} : vector<2x2x2x32xf32> to vector<2x1x2x32xf32>
    %99 = vector.shape_cast %98 : vector<2x1x2x32xf32> to vector<2x2x32xf32>
    %100 = vector.extract_strided_slice %93 {offsets = [0, 1, 0, 0], sizes = [2, 1, 2, 32], strides = [1, 1, 1, 1]} : vector<2x2x2x32xf32> to vector<2x1x2x32xf32>
    %101 = vector.shape_cast %100 : vector<2x1x2x32xf32> to vector<2x2x32xf32>
    %102 = arith.addf %99, %101 : vector<2x2x32xf32>
    %103 = vector.extract_strided_slice %97 {offsets = [0, 0, 0, 0], sizes = [2, 1, 2, 32], strides = [1, 1, 1, 1]} : vector<2x2x2x32xf32> to vector<2x1x2x32xf32>
    %104 = vector.shape_cast %103 : vector<2x1x2x32xf32> to vector<2x2x32xf32>
    %105 = arith.addf %102, %104 : vector<2x2x32xf32>
    %106 = vector.extract_strided_slice %97 {offsets = [0, 1, 0, 0], sizes = [2, 1, 2, 32], strides = [1, 1, 1, 1]} : vector<2x2x2x32xf32> to vector<2x1x2x32xf32>
    %107 = vector.shape_cast %106 : vector<2x1x2x32xf32> to vector<2x2x32xf32>
    %108 = arith.addf %105, %107 : vector<2x2x32xf32>
    %cst_55 = arith.constant 2.500000e-01 : f32
    %109 = vector.broadcast %cst_55 : f32 to vector<2x2x32xf32>
    %110 = arith.mulf %109, %108 : vector<2x2x32xf32>
    %111 = vector.shape_cast %110 : vector<2x2x32xf32> to vector<4x32xf32>
    %112 = arith.addf %111, %89 : vector<4x32xf32>
    %113 = vector.shape_cast %89 : vector<4x32xf32> to vector<2x2x32xf32>
    %114 = arith.truncf %113 : vector<2x2x32xf32> to vector<2x2x32xbf16>
    %c0_56 = arith.constant 0 : index
    %c0_57 = arith.constant 0 : index
    %c0_58 = arith.constant 0 : index
    %c0_59 = arith.constant 0 : index
    %115 = vector.load %arg10[%c0_56, %c0_57, %c0_58, %c0_59] : memref<1x2x2x32xbf16, #tpu.memory_space<vmem>>, vector<1x2x2x32xbf16>
    %116 = vector.shape_cast %115 : vector<1x2x2x32xbf16> to vector<2x2x32xbf16>
    %117 = vector.shape_cast %114 : vector<2x2x32xbf16> to vector<1x2x2x32xbf16>
    tpu.vector_store %arg10[%c0_56, %c0_57, %c0_58, %c0_59], %117 {strides = array<i32>} : memref<1x2x2x32xbf16, #tpu.memory_space<vmem>>, vector<1x2x2x32xbf16>,
    %118 = vector.shape_cast %112 : vector<4x32xf32> to vector<2x2x32xf32>
    %119 = arith.truncf %118 : vector<2x2x32xf32> to vector<2x2x32xbf16>
    %c0_60 = arith.constant 0 : index
    %c0_61 = arith.constant 0 : index
    %c0_62 = arith.constant 0 : index
    %c0_63 = arith.constant 0 : index
    %120 = vector.load %arg11[%c0_60, %c0_61, %c0_62, %c0_63] : memref<1x2x2x32xbf16, #tpu.memory_space<vmem>>, vector<1x2x2x32xbf16>
    %121 = vector.shape_cast %120 : vector<1x2x2x32xbf16> to vector<2x2x32xbf16>
    %122 = vector.shape_cast %119 : vector<2x2x32xbf16> to vector<1x2x2x32xbf16>
    tpu.vector_store %arg11[%c0_60, %c0_61, %c0_62, %c0_63], %122 {strides = array<i32>} : memref<1x2x2x32xbf16, #tpu.memory_space<vmem>>, vector<1x2x2x32xbf16>,
    return
  }
  func.func @transform_0(%arg0: i32, %arg1: i32) -> (i32, i32, i32, i32) {
    %c0_i32 = arith.constant 0 : i32
    %c0_i32_0 = arith.constant 0 : i32
    %c0_i32_1 = arith.constant 0 : i32
    return %arg0, %arg1, %c0_i32, %c0_i32_0 : i32, i32, i32, i32
  }
  func.func @transform_1(%arg0: i32, %arg1: i32) -> (i32, i32, i32, i32) {
    %c1_i32 = arith.constant 1 : i32
    %0 = arith.addi %arg1, %c1_i32 : i32
    %c4_i32 = arith.constant 4 : i32
    %1 = arith.muli %c4_i32, %0 : i32
    %c0_i32 = arith.constant 0 : i32
    %c0_i32_0 = arith.constant 0 : i32
    %c0_i32_1 = arith.constant 0 : i32
    return %arg0, %1, %c0_i32, %c0_i32_0 : i32, i32, i32, i32
  }
  func.func @transform_2(%arg0: i32, %arg1: i32) -> (i32, i32, i32, i32) {
    %c0_i32 = arith.constant 0 : i32
    %c0_i32_0 = arith.constant 0 : i32
    %c0_i32_1 = arith.constant 0 : i32
    return %arg0, %arg1, %c0_i32, %c0_i32_0 : i32, i32, i32, i32
  }
  func.func @transform_3(%arg0: i32, %arg1: i32) -> (i32, i32, i32, i32) {
    %c1_i32 = arith.constant 1 : i32
    %0 = arith.addi %arg1, %c1_i32 : i32
    %c4_i32 = arith.constant 4 : i32
    %1 = arith.muli %c4_i32, %0 : i32
    %c0_i32 = arith.constant 0 : i32
    %c0_i32_0 = arith.constant 0 : i32
    %c0_i32_1 = arith.constant 0 : i32
    return %arg0, %1, %c0_i32, %c0_i32_0 : i32, i32, i32, i32
  }
  func.func @transform_4(%arg0: i32, %arg1: i32) -> (i32, i32, i32, i32) {
    %c0_i32 = arith.constant 0 : i32
    %c0_i32_0 = arith.constant 0 : i32
    %c0_i32_1 = arith.constant 0 : i32
    return %arg0, %arg1, %c0_i32, %c0_i32_0 : i32, i32, i32, i32
  }
  func.func @transform_5(%arg0: i32, %arg1: i32) -> (i32, i32, i32, i32) {
    %c0_i32 = arith.constant 0 : i32
    %c0_i32_0 = arith.constant 0 : i32
    %c0_i32_1 = arith.constant 0 : i32
    return %arg0, %arg1, %c0_i32, %c0_i32_0 : i32, i32, i32, i32
  }
  func.func @transform_6(%arg0: i32, %arg1: i32) -> (i32, i32, i32) {
    %c0_i32 = arith.constant 0 : i32
    %c0_i32_0 = arith.constant 0 : i32
    %c0_i32_1 = arith.constant 0 : i32
    %c0_i32_2 = arith.constant 0 : i32
    return %c0_i32, %c0_i32_0, %c0_i32_1 : i32, i32, i32
  }
  func.func @transform_7(%arg0: i32, %arg1: i32) -> (i32, i32) {
    %c0_i32 = arith.constant 0 : i32
    %c0_i32_0 = arith.constant 0 : i32
    %c0_i32_1 = arith.constant 0 : i32
    return %c0_i32, %c0_i32_0 : i32, i32
  }
  func.func @transform_8(%arg0: i32, %arg1: i32) -> (i32, i32, i32, i32) {
    %c0_i32 = arith.constant 0 : i32
    %c0_i32_0 = arith.constant 0 : i32
    %c0_i32_1 = arith.constant 0 : i32
    return %arg0, %arg1, %c0_i32, %c0_i32_0 : i32, i32, i32, i32
  }
  func.func @transform_9(%arg0: i32, %arg1: i32) -> (i32, i32, i32, i32) {
    %c0_i32 = arith.constant 0 : i32
    %c0_i32_0 = arith.constant 0 : i32
    %c0_i32_1 = arith.constant 0 : i32
    return %arg0, %arg1, %c0_i32, %c0_i32_0 : i32, i32, i32, i32
  }
}

module attributes {stable_mosaic.version = 11 : i64} {
  func.func @kernel(%arg0: i32, %arg1: i32, %arg2: memref<1x2x2x32xbf16, #tpu.memory_space<vmem>>, %arg3: memref<1x1x2x32xbf16, #tpu.memory_space<vmem>>, %arg4: memref<1x2x2x32xbf16, #tpu.memory_space<vmem>>, %arg5: memref<1x1x2x32xbf16, #tpu.memory_space<vmem>>, %arg6: memref<1x2x1x32xbf16, #tpu.memory_space<vmem>>, %arg7: memref<1x2x1x32xbf16, #tpu.memory_space<vmem>>, %arg8: memref<9x32x32xbf16, #tpu.memory_space<vmem>>, %arg9: memref<32x32xbf16, #tpu.memory_space<vmem>>, %arg10: memref<1x1x1x32xbf16, #tpu.memory_space<vmem>>, %arg11: memref<1x1x1x32xf32, #tpu.memory_space<vmem>>) attributes {dimension_semantics = [#tpu.dimension_semantics<parallel>, #tpu.dimension_semantics<parallel>], iteration_bounds = array<i64: 2, 1>, scalar_prefetch = 0 : i64, scratch_operands = 0 : i64, tpu.core_type = #tpu.core_type<tc>, window_params = [{transform_indices = @transform_0, window_bounds = array<i64: 1, 2, 2, 32>}, {transform_indices = @transform_1, window_bounds = array<i64: 1, 1, 2, 32>}, {transform_indices = @transform_2, window_bounds = array<i64: 1, 2, 2, 32>}, {transform_indices = @transform_3, window_bounds = array<i64: 1, 1, 2, 32>}, {transform_indices = @transform_4, window_bounds = array<i64: 1, 2, 1, 32>}, {transform_indices = @transform_5, window_bounds = array<i64: 1, 2, 1, 32>}, {pipeline_mode = #tpu.pipeline_mode<synchronous>, transform_indices = @transform_6, window_bounds = array<i64: 9, 32, 32>}, {pipeline_mode = #tpu.pipeline_mode<synchronous>, transform_indices = @transform_7, window_bounds = array<i64: 32, 32>}, {transform_indices = @transform_8, window_bounds = array<i64: 1, 1, 1, 32>}, {transform_indices = @transform_9, window_bounds = array<i64: 1, 1, 1, 32>}]} {
    %c0 = arith.constant 0 : index
    %c0_0 = arith.constant 0 : index
    %c0_1 = arith.constant 0 : index
    %c0_2 = arith.constant 0 : index
    %0 = vector.load %arg2[%c0, %c0_0, %c0_1, %c0_2] : memref<1x2x2x32xbf16, #tpu.memory_space<vmem>>, vector<1x2x2x32xbf16>
    %1 = vector.shape_cast %0 : vector<1x2x2x32xbf16> to vector<2x2x32xbf16>
    %c0_3 = arith.constant 0 : index
    %c0_4 = arith.constant 0 : index
    %c0_5 = arith.constant 0 : index
    %c0_6 = arith.constant 0 : index
    %2 = vector.load %arg3[%c0_3, %c0_4, %c0_5, %c0_6] : memref<1x1x2x32xbf16, #tpu.memory_space<vmem>>, vector<1x1x2x32xbf16>
    %3 = vector.shape_cast %2 : vector<1x1x2x32xbf16> to vector<1x2x32xbf16>
    %4 = tpu.concatenate %1, %3 in 0 : vector<2x2x32xbf16>, vector<1x2x32xbf16> -> vector<3x2x32xbf16>
    %c0_7 = arith.constant 0 : index
    %c0_8 = arith.constant 0 : index
    %c0_9 = arith.constant 0 : index
    %c0_10 = arith.constant 0 : index
    %5 = vector.load %arg4[%c0_7, %c0_8, %c0_9, %c0_10] : memref<1x2x2x32xbf16, #tpu.memory_space<vmem>>, vector<1x2x2x32xbf16>
    %6 = vector.shape_cast %5 : vector<1x2x2x32xbf16> to vector<2x2x32xbf16>
    %c0_11 = arith.constant 0 : index
    %c0_12 = arith.constant 0 : index
    %c0_13 = arith.constant 0 : index
    %c0_14 = arith.constant 0 : index
    %7 = vector.load %arg5[%c0_11, %c0_12, %c0_13, %c0_14] : memref<1x1x2x32xbf16, #tpu.memory_space<vmem>>, vector<1x1x2x32xbf16>
    %8 = vector.shape_cast %7 : vector<1x1x2x32xbf16> to vector<1x2x32xbf16>
    %9 = tpu.concatenate %6, %8 in 0 : vector<2x2x32xbf16>, vector<1x2x32xbf16> -> vector<3x2x32xbf16>
    %10 = vector.extract_strided_slice %4 {offsets = [0, 0, 0], sizes = [2, 2, 32], strides = [1, 1, 1]} : vector<3x2x32xbf16> to vector<2x2x32xbf16>
    %11 = vector.shape_cast %10 : vector<2x2x32xbf16> to vector<1x2x2x32xbf16>
    %12 = vector.extract_strided_slice %11 {offsets = [0, 0, 0, 0], sizes = [1, 1, 2, 32], strides = [1, 1, 1, 1]} : vector<1x2x2x32xbf16> to vector<1x1x2x32xbf16>
    %13 = vector.shape_cast %12 : vector<1x1x2x32xbf16> to vector<1x2x32xbf16>
    %14 = vector.extract_strided_slice %11 {offsets = [0, 1, 0, 0], sizes = [1, 1, 2, 32], strides = [1, 1, 1, 1]} : vector<1x2x2x32xbf16> to vector<1x1x2x32xbf16>
    %15 = vector.shape_cast %14 : vector<1x1x2x32xbf16> to vector<1x2x32xbf16>
    %16 = vector.extract_strided_slice %4 {offsets = [2, 0, 0], sizes = [1, 2, 32], strides = [1, 1, 1]} : vector<3x2x32xbf16> to vector<1x2x32xbf16>
    %17 = vector.extract_strided_slice %9 {offsets = [0, 0, 0], sizes = [2, 2, 32], strides = [1, 1, 1]} : vector<3x2x32xbf16> to vector<2x2x32xbf16>
    %18 = vector.shape_cast %17 : vector<2x2x32xbf16> to vector<1x2x2x32xbf16>
    %19 = vector.extract_strided_slice %18 {offsets = [0, 0, 0, 0], sizes = [1, 1, 2, 32], strides = [1, 1, 1, 1]} : vector<1x2x2x32xbf16> to vector<1x1x2x32xbf16>
    %20 = vector.shape_cast %19 : vector<1x1x2x32xbf16> to vector<1x2x32xbf16>
    %21 = vector.extract_strided_slice %18 {offsets = [0, 1, 0, 0], sizes = [1, 1, 2, 32], strides = [1, 1, 1, 1]} : vector<1x2x2x32xbf16> to vector<1x1x2x32xbf16>
    %22 = vector.shape_cast %21 : vector<1x1x2x32xbf16> to vector<1x2x32xbf16>
    %23 = vector.extract_strided_slice %9 {offsets = [2, 0, 0], sizes = [1, 2, 32], strides = [1, 1, 1]} : vector<3x2x32xbf16> to vector<1x2x32xbf16>
    %cst = arith.constant 0.000000e+00 : f32
    %24 = vector.broadcast %cst : f32 to vector<1x32xf32>
    %25 = vector.extract_strided_slice %13 {offsets = [0, 0, 0], sizes = [1, 1, 32], strides = [1, 1, 1]} : vector<1x2x32xbf16> to vector<1x1x32xbf16>
    %26 = vector.shape_cast %25 : vector<1x1x32xbf16> to vector<1x32xbf16>
    %c0_15 = arith.constant 0 : index
    %c0_16 = arith.constant 0 : index
    %c0_17 = arith.constant 0 : index
    %27 = vector.load %arg8[%c0_15, %c0_16, %c0_17] : memref<9x32x32xbf16, #tpu.memory_space<vmem>>, vector<1x32x32xbf16>
    %28 = vector.shape_cast %27 : vector<1x32x32xbf16> to vector<32x32xbf16>
    %cst_18 = arith.constant dense<0.000000e+00> : vector<1x32xf32>
    %29 = tpu.matmul %26, %28, %cst_18 {dimension_numbers = #tpu.dot_dimension_numbers<[1], [0], [0], [1], [0, 0, 1, 1], [], []>} : vector<1x32xbf16>, vector<32x32xbf16>, vector<1x32xf32> -> vector<1x32xf32>
    %30 = arith.addf %24, %29 : vector<1x32xf32>
    %31 = vector.extract_strided_slice %20 {offsets = [0, 0, 0], sizes = [1, 1, 32], strides = [1, 1, 1]} : vector<1x2x32xbf16> to vector<1x1x32xbf16>
    %32 = vector.shape_cast %31 : vector<1x1x32xbf16> to vector<1x32xbf16>
    %c1 = arith.constant 1 : index
    %c0_19 = arith.constant 0 : index
    %c0_20 = arith.constant 0 : index
    %33 = vector.load %arg8[%c1, %c0_19, %c0_20] : memref<9x32x32xbf16, #tpu.memory_space<vmem>>, vector<1x32x32xbf16>
    %34 = vector.shape_cast %33 : vector<1x32x32xbf16> to vector<32x32xbf16>
    %cst_21 = arith.constant dense<0.000000e+00> : vector<1x32xf32>
    %35 = tpu.matmul %32, %34, %cst_21 {dimension_numbers = #tpu.dot_dimension_numbers<[1], [0], [0], [1], [0, 0, 1, 1], [], []>} : vector<1x32xbf16>, vector<32x32xbf16>, vector<1x32xf32> -> vector<1x32xf32>
    %36 = arith.addf %30, %35 : vector<1x32xf32>
    %37 = vector.extract_strided_slice %13 {offsets = [0, 1, 0], sizes = [1, 1, 32], strides = [1, 1, 1]} : vector<1x2x32xbf16> to vector<1x1x32xbf16>
    %38 = vector.shape_cast %37 : vector<1x1x32xbf16> to vector<1x32xbf16>
    %c2 = arith.constant 2 : index
    %c0_22 = arith.constant 0 : index
    %c0_23 = arith.constant 0 : index
    %39 = vector.load %arg8[%c2, %c0_22, %c0_23] : memref<9x32x32xbf16, #tpu.memory_space<vmem>>, vector<1x32x32xbf16>
    %40 = vector.shape_cast %39 : vector<1x32x32xbf16> to vector<32x32xbf16>
    %cst_24 = arith.constant dense<0.000000e+00> : vector<1x32xf32>
    %41 = tpu.matmul %38, %40, %cst_24 {dimension_numbers = #tpu.dot_dimension_numbers<[1], [0], [0], [1], [0, 0, 1, 1], [], []>} : vector<1x32xbf16>, vector<32x32xbf16>, vector<1x32xf32> -> vector<1x32xf32>
    %42 = arith.addf %36, %41 : vector<1x32xf32>
    %43 = vector.extract_strided_slice %15 {offsets = [0, 0, 0], sizes = [1, 1, 32], strides = [1, 1, 1]} : vector<1x2x32xbf16> to vector<1x1x32xbf16>
    %44 = vector.shape_cast %43 : vector<1x1x32xbf16> to vector<1x32xbf16>
    %c3 = arith.constant 3 : index
    %c0_25 = arith.constant 0 : index
    %c0_26 = arith.constant 0 : index
    %45 = vector.load %arg8[%c3, %c0_25, %c0_26] : memref<9x32x32xbf16, #tpu.memory_space<vmem>>, vector<1x32x32xbf16>
    %46 = vector.shape_cast %45 : vector<1x32x32xbf16> to vector<32x32xbf16>
    %cst_27 = arith.constant dense<0.000000e+00> : vector<1x32xf32>
    %47 = tpu.matmul %44, %46, %cst_27 {dimension_numbers = #tpu.dot_dimension_numbers<[1], [0], [0], [1], [0, 0, 1, 1], [], []>} : vector<1x32xbf16>, vector<32x32xbf16>, vector<1x32xf32> -> vector<1x32xf32>
    %48 = arith.addf %42, %47 : vector<1x32xf32>
    %49 = vector.extract_strided_slice %22 {offsets = [0, 0, 0], sizes = [1, 1, 32], strides = [1, 1, 1]} : vector<1x2x32xbf16> to vector<1x1x32xbf16>
    %50 = vector.shape_cast %49 : vector<1x1x32xbf16> to vector<1x32xbf16>
    %c4 = arith.constant 4 : index
    %c0_28 = arith.constant 0 : index
    %c0_29 = arith.constant 0 : index
    %51 = vector.load %arg8[%c4, %c0_28, %c0_29] : memref<9x32x32xbf16, #tpu.memory_space<vmem>>, vector<1x32x32xbf16>
    %52 = vector.shape_cast %51 : vector<1x32x32xbf16> to vector<32x32xbf16>
    %cst_30 = arith.constant dense<0.000000e+00> : vector<1x32xf32>
    %53 = tpu.matmul %50, %52, %cst_30 {dimension_numbers = #tpu.dot_dimension_numbers<[1], [0], [0], [1], [0, 0, 1, 1], [], []>} : vector<1x32xbf16>, vector<32x32xbf16>, vector<1x32xf32> -> vector<1x32xf32>
    %54 = arith.addf %48, %53 : vector<1x32xf32>
    %55 = vector.extract_strided_slice %15 {offsets = [0, 1, 0], sizes = [1, 1, 32], strides = [1, 1, 1]} : vector<1x2x32xbf16> to vector<1x1x32xbf16>
    %56 = vector.shape_cast %55 : vector<1x1x32xbf16> to vector<1x32xbf16>
    %c5 = arith.constant 5 : index
    %c0_31 = arith.constant 0 : index
    %c0_32 = arith.constant 0 : index
    %57 = vector.load %arg8[%c5, %c0_31, %c0_32] : memref<9x32x32xbf16, #tpu.memory_space<vmem>>, vector<1x32x32xbf16>
    %58 = vector.shape_cast %57 : vector<1x32x32xbf16> to vector<32x32xbf16>
    %cst_33 = arith.constant dense<0.000000e+00> : vector<1x32xf32>
    %59 = tpu.matmul %56, %58, %cst_33 {dimension_numbers = #tpu.dot_dimension_numbers<[1], [0], [0], [1], [0, 0, 1, 1], [], []>} : vector<1x32xbf16>, vector<32x32xbf16>, vector<1x32xf32> -> vector<1x32xf32>
    %60 = arith.addf %54, %59 : vector<1x32xf32>
    %61 = vector.extract_strided_slice %16 {offsets = [0, 0, 0], sizes = [1, 1, 32], strides = [1, 1, 1]} : vector<1x2x32xbf16> to vector<1x1x32xbf16>
    %62 = vector.shape_cast %61 : vector<1x1x32xbf16> to vector<1x32xbf16>
    %c6 = arith.constant 6 : index
    %c0_34 = arith.constant 0 : index
    %c0_35 = arith.constant 0 : index
    %63 = vector.load %arg8[%c6, %c0_34, %c0_35] : memref<9x32x32xbf16, #tpu.memory_space<vmem>>, vector<1x32x32xbf16>
    %64 = vector.shape_cast %63 : vector<1x32x32xbf16> to vector<32x32xbf16>
    %cst_36 = arith.constant dense<0.000000e+00> : vector<1x32xf32>
    %65 = tpu.matmul %62, %64, %cst_36 {dimension_numbers = #tpu.dot_dimension_numbers<[1], [0], [0], [1], [0, 0, 1, 1], [], []>} : vector<1x32xbf16>, vector<32x32xbf16>, vector<1x32xf32> -> vector<1x32xf32>
    %66 = arith.addf %60, %65 : vector<1x32xf32>
    %67 = vector.extract_strided_slice %23 {offsets = [0, 0, 0], sizes = [1, 1, 32], strides = [1, 1, 1]} : vector<1x2x32xbf16> to vector<1x1x32xbf16>
    %68 = vector.shape_cast %67 : vector<1x1x32xbf16> to vector<1x32xbf16>
    %c7 = arith.constant 7 : index
    %c0_37 = arith.constant 0 : index
    %c0_38 = arith.constant 0 : index
    %69 = vector.load %arg8[%c7, %c0_37, %c0_38] : memref<9x32x32xbf16, #tpu.memory_space<vmem>>, vector<1x32x32xbf16>
    %70 = vector.shape_cast %69 : vector<1x32x32xbf16> to vector<32x32xbf16>
    %cst_39 = arith.constant dense<0.000000e+00> : vector<1x32xf32>
    %71 = tpu.matmul %68, %70, %cst_39 {dimension_numbers = #tpu.dot_dimension_numbers<[1], [0], [0], [1], [0, 0, 1, 1], [], []>} : vector<1x32xbf16>, vector<32x32xbf16>, vector<1x32xf32> -> vector<1x32xf32>
    %72 = arith.addf %66, %71 : vector<1x32xf32>
    %73 = vector.extract_strided_slice %16 {offsets = [0, 1, 0], sizes = [1, 1, 32], strides = [1, 1, 1]} : vector<1x2x32xbf16> to vector<1x1x32xbf16>
    %74 = vector.shape_cast %73 : vector<1x1x32xbf16> to vector<1x32xbf16>
    %c8 = arith.constant 8 : index
    %c0_40 = arith.constant 0 : index
    %c0_41 = arith.constant 0 : index
    %75 = vector.load %arg8[%c8, %c0_40, %c0_41] : memref<9x32x32xbf16, #tpu.memory_space<vmem>>, vector<1x32x32xbf16>
    %76 = vector.shape_cast %75 : vector<1x32x32xbf16> to vector<32x32xbf16>
    %cst_42 = arith.constant dense<0.000000e+00> : vector<1x32xf32>
    %77 = tpu.matmul %74, %76, %cst_42 {dimension_numbers = #tpu.dot_dimension_numbers<[1], [0], [0], [1], [0, 0, 1, 1], [], []>} : vector<1x32xbf16>, vector<32x32xbf16>, vector<1x32xf32> -> vector<1x32xf32>
    %78 = arith.addf %72, %77 : vector<1x32xf32>
    %cst_43 = arith.constant 0.000000e+00 : f32
    %79 = vector.broadcast %cst_43 : f32 to vector<1x32xf32>
    %80 = arith.maximumf %78, %79 : vector<1x32xf32>
    %81 = arith.truncf %80 : vector<1x32xf32> to vector<1x32xbf16>
    %c0_44 = arith.constant 0 : index
    %c0_45 = arith.constant 0 : index
    %82 = vector.load %arg9[%c0_44, %c0_45] : memref<32x32xbf16, #tpu.memory_space<vmem>>, vector<32x32xbf16>
    %cst_46 = arith.constant dense<0.000000e+00> : vector<1x32xf32>
    %83 = tpu.matmul %81, %82, %cst_46 {dimension_numbers = #tpu.dot_dimension_numbers<[1], [0], [0], [1], [0, 0, 1, 1], [], []>} : vector<1x32xbf16>, vector<32x32xbf16>, vector<1x32xf32> -> vector<1x32xf32>
    %c0_47 = arith.constant 0 : index
    %c0_48 = arith.constant 0 : index
    %c0_49 = arith.constant 0 : index
    %c0_50 = arith.constant 0 : index
    %84 = vector.load %arg6[%c0_47, %c0_48, %c0_49, %c0_50] : memref<1x2x1x32xbf16, #tpu.memory_space<vmem>>, vector<1x2x1x32xbf16>
    %85 = vector.shape_cast %84 : vector<1x2x1x32xbf16> to vector<2x1x32xbf16>
    %86 = arith.extf %85 : vector<2x1x32xbf16> to vector<2x1x32xf32>
    %87 = vector.shape_cast %86 : vector<2x1x32xf32> to vector<1x2x1x32xf32>
    %c0_51 = arith.constant 0 : index
    %c0_52 = arith.constant 0 : index
    %c0_53 = arith.constant 0 : index
    %c0_54 = arith.constant 0 : index
    %88 = vector.load %arg7[%c0_51, %c0_52, %c0_53, %c0_54] : memref<1x2x1x32xbf16, #tpu.memory_space<vmem>>, vector<1x2x1x32xbf16>
    %89 = vector.shape_cast %88 : vector<1x2x1x32xbf16> to vector<2x1x32xbf16>
    %90 = arith.extf %89 : vector<2x1x32xbf16> to vector<2x1x32xf32>
    %91 = vector.shape_cast %90 : vector<2x1x32xf32> to vector<1x2x1x32xf32>
    %92 = vector.extract_strided_slice %87 {offsets = [0, 0, 0, 0], sizes = [1, 1, 1, 32], strides = [1, 1, 1, 1]} : vector<1x2x1x32xf32> to vector<1x1x1x32xf32>
    %93 = vector.shape_cast %92 : vector<1x1x1x32xf32> to vector<1x1x32xf32>
    %94 = vector.extract_strided_slice %87 {offsets = [0, 1, 0, 0], sizes = [1, 1, 1, 32], strides = [1, 1, 1, 1]} : vector<1x2x1x32xf32> to vector<1x1x1x32xf32>
    %95 = vector.shape_cast %94 : vector<1x1x1x32xf32> to vector<1x1x32xf32>
    %96 = arith.addf %93, %95 : vector<1x1x32xf32>
    %97 = vector.extract_strided_slice %91 {offsets = [0, 0, 0, 0], sizes = [1, 1, 1, 32], strides = [1, 1, 1, 1]} : vector<1x2x1x32xf32> to vector<1x1x1x32xf32>
    %98 = vector.shape_cast %97 : vector<1x1x1x32xf32> to vector<1x1x32xf32>
    %99 = arith.addf %96, %98 : vector<1x1x32xf32>
    %100 = vector.extract_strided_slice %91 {offsets = [0, 1, 0, 0], sizes = [1, 1, 1, 32], strides = [1, 1, 1, 1]} : vector<1x2x1x32xf32> to vector<1x1x1x32xf32>
    %101 = vector.shape_cast %100 : vector<1x1x1x32xf32> to vector<1x1x32xf32>
    %102 = arith.addf %99, %101 : vector<1x1x32xf32>
    %cst_55 = arith.constant 2.500000e-01 : f32
    %103 = vector.broadcast %cst_55 : f32 to vector<1x1x32xf32>
    %104 = arith.mulf %103, %102 : vector<1x1x32xf32>
    %105 = vector.shape_cast %104 : vector<1x1x32xf32> to vector<1x32xf32>
    %106 = arith.addf %105, %83 : vector<1x32xf32>
    %107 = vector.shape_cast %83 : vector<1x32xf32> to vector<1x1x32xf32>
    %108 = arith.truncf %107 : vector<1x1x32xf32> to vector<1x1x32xbf16>
    %c0_56 = arith.constant 0 : index
    %c0_57 = arith.constant 0 : index
    %c0_58 = arith.constant 0 : index
    %c0_59 = arith.constant 0 : index
    %109 = vector.load %arg10[%c0_56, %c0_57, %c0_58, %c0_59] : memref<1x1x1x32xbf16, #tpu.memory_space<vmem>>, vector<1x1x1x32xbf16>
    %110 = vector.shape_cast %109 : vector<1x1x1x32xbf16> to vector<1x1x32xbf16>
    %111 = vector.shape_cast %108 : vector<1x1x32xbf16> to vector<1x1x1x32xbf16>
    tpu.vector_store %arg10[%c0_56, %c0_57, %c0_58, %c0_59], %111 {strides = array<i32>} : memref<1x1x1x32xbf16, #tpu.memory_space<vmem>>, vector<1x1x1x32xbf16>,
    %112 = vector.shape_cast %106 : vector<1x32xf32> to vector<1x1x32xf32>
    %c0_60 = arith.constant 0 : index
    %c0_61 = arith.constant 0 : index
    %c0_62 = arith.constant 0 : index
    %c0_63 = arith.constant 0 : index
    %113 = vector.load %arg11[%c0_60, %c0_61, %c0_62, %c0_63] : memref<1x1x1x32xf32, #tpu.memory_space<vmem>>, vector<1x1x1x32xf32>
    %114 = vector.shape_cast %113 : vector<1x1x1x32xf32> to vector<1x1x32xf32>
    %115 = vector.shape_cast %112 : vector<1x1x32xf32> to vector<1x1x1x32xf32>
    tpu.vector_store %arg11[%c0_60, %c0_61, %c0_62, %c0_63], %115 {strides = array<i32>} : memref<1x1x1x32xf32, #tpu.memory_space<vmem>>, vector<1x1x1x32xf32>,
    return
  }
  func.func @transform_0(%arg0: i32, %arg1: i32) -> (i32, i32, i32, i32) {
    %c0_i32 = arith.constant 0 : i32
    %c0_i32_0 = arith.constant 0 : i32
    %c0_i32_1 = arith.constant 0 : i32
    return %arg0, %arg1, %c0_i32, %c0_i32_0 : i32, i32, i32, i32
  }
  func.func @transform_1(%arg0: i32, %arg1: i32) -> (i32, i32, i32, i32) {
    %c1_i32 = arith.constant 1 : i32
    %0 = arith.addi %arg1, %c1_i32 : i32
    %c2_i32 = arith.constant 2 : i32
    %1 = arith.muli %c2_i32, %0 : i32
    %c0_i32 = arith.constant 0 : i32
    %c0_i32_0 = arith.constant 0 : i32
    %c0_i32_1 = arith.constant 0 : i32
    return %arg0, %1, %c0_i32, %c0_i32_0 : i32, i32, i32, i32
  }
  func.func @transform_2(%arg0: i32, %arg1: i32) -> (i32, i32, i32, i32) {
    %c0_i32 = arith.constant 0 : i32
    %c0_i32_0 = arith.constant 0 : i32
    %c0_i32_1 = arith.constant 0 : i32
    return %arg0, %arg1, %c0_i32, %c0_i32_0 : i32, i32, i32, i32
  }
  func.func @transform_3(%arg0: i32, %arg1: i32) -> (i32, i32, i32, i32) {
    %c1_i32 = arith.constant 1 : i32
    %0 = arith.addi %arg1, %c1_i32 : i32
    %c2_i32 = arith.constant 2 : i32
    %1 = arith.muli %c2_i32, %0 : i32
    %c0_i32 = arith.constant 0 : i32
    %c0_i32_0 = arith.constant 0 : i32
    %c0_i32_1 = arith.constant 0 : i32
    return %arg0, %1, %c0_i32, %c0_i32_0 : i32, i32, i32, i32
  }
  func.func @transform_4(%arg0: i32, %arg1: i32) -> (i32, i32, i32, i32) {
    %c0_i32 = arith.constant 0 : i32
    %c0_i32_0 = arith.constant 0 : i32
    %c0_i32_1 = arith.constant 0 : i32
    return %arg0, %arg1, %c0_i32, %c0_i32_0 : i32, i32, i32, i32
  }
  func.func @transform_5(%arg0: i32, %arg1: i32) -> (i32, i32, i32, i32) {
    %c0_i32 = arith.constant 0 : i32
    %c0_i32_0 = arith.constant 0 : i32
    %c0_i32_1 = arith.constant 0 : i32
    return %arg0, %arg1, %c0_i32, %c0_i32_0 : i32, i32, i32, i32
  }
  func.func @transform_6(%arg0: i32, %arg1: i32) -> (i32, i32, i32) {
    %c0_i32 = arith.constant 0 : i32
    %c0_i32_0 = arith.constant 0 : i32
    %c0_i32_1 = arith.constant 0 : i32
    %c0_i32_2 = arith.constant 0 : i32
    return %c0_i32, %c0_i32_0, %c0_i32_1 : i32, i32, i32
  }
  func.func @transform_7(%arg0: i32, %arg1: i32) -> (i32, i32) {
    %c0_i32 = arith.constant 0 : i32
    %c0_i32_0 = arith.constant 0 : i32
    %c0_i32_1 = arith.constant 0 : i32
    return %c0_i32, %c0_i32_0 : i32, i32
  }
  func.func @transform_8(%arg0: i32, %arg1: i32) -> (i32, i32, i32, i32) {
    %c0_i32 = arith.constant 0 : i32
    %c0_i32_0 = arith.constant 0 : i32
    %c0_i32_1 = arith.constant 0 : i32
    return %arg0, %arg1, %c0_i32, %c0_i32_0 : i32, i32, i32, i32
  }
  func.func @transform_9(%arg0: i32, %arg1: i32) -> (i32, i32, i32, i32) {
    %c0_i32 = arith.constant 0 : i32
    %c0_i32_0 = arith.constant 0 : i32
    %c0_i32_1 = arith.constant 0 : i32
    return %arg0, %arg1, %c0_i32, %c0_i32_0 : i32, i32, i32, i32
  }
}

</mosaic_0001>

<llo_original>
// kernel: pmaa_conv_block_forward.6
$region0: #{pmaa_conv_block_forward.6}
  #allocation0 [shape = 'u32[]', space=smem, size = 0x4, offset = 0x4, fixed_abs, tag = 'smem constant byte address 0x4 - core index']
  #allocation1 [shape = 'u32[72,128]{1,0:T(1,128)}', space=vmem, size = 0x9000, scoped, tag = 'internal scratch']
  %s0 = inlined_call_operand.vmem [shape: bf16[2,18,9,32], index: 0, kind: input, shape index: {}, may-alias: {0,1}]
  %s1 = inlined_call_operand.vmem [shape: bf16[2,18,9,32], index: 1, kind: input, shape index: {}, may-alias: {0,1}]
  %s2 = inlined_call_operand.vmem [shape: bf16[2,18,9,32], index: 2, kind: input, shape index: {}, may-alias: {2,3}]
  %s3 = inlined_call_operand.vmem [shape: bf16[2,18,9,32], index: 3, kind: input, shape index: {}, may-alias: {2,3}]
  %s4 = inlined_call_operand.vmem [shape: bf16[9,32,32], index: 4, kind: input, shape index: {}]
  %s5 = inlined_call_operand.vmem [shape: bf16[32,32], index: 5, kind: input, shape index: {}]
  %s6 = inlined_call_operand.vmem [shape: bf16[2,8,8,32], index: 6, kind: output, shape index: {0}]
  %s7 = inlined_call_operand.vmem [shape: bf16[2,8,8,32], index: 7, kind: output, shape index: {1}]
  %8 = xla_tuple %s6, %s7
  %s9 = sld [smem:[#allocation0]]
  $region65: #{pmaa_conv_block_forward.6} parent=0
    _
  %s11 = ssub.s32 1, %s9
  %s12 = scalar_select 0, %s11, %s9
  loop: start=0, step=1, limit=4
  $region2: #{pmaa_conv_block_forward.6} parent=0 // loop_pre_header
    _
  $region3: #{pmaa_conv_block_forward.6} parent=0 // loop_header
    %s14 = sphi 0, %s18
    %p15 = scmp.ge.s32.totalorder %s14, 4
    %s21 = sphi 0, %s33
    %s22 = sphi 0, %s29
    %s23 = sphi 0, %s21
    %s24 = sphi 0, %s22
    %s25 = sphi 0, %s23
    %s26 = sphi 0, %s24
    %s38 = sphi 0, %s40
    %s41 = sphi 0, %s38
    %s42 = sphi 0, %s41
    %s58 = sphi 0, %s42
    %s70 = sphi 0, %s72
    %s73 = sphi 0, %s70
    %s74 = sphi 0, %s73
    %s90 = sphi 0, %s74
    %s98 = sphi 0, %s100
    %s101 = sphi 0, %s98
    %s102 = sphi 0, %s101
    %s118 = sphi 0, %s102
    %s130 = sphi 0, %s132
    %s133 = sphi 0, %s130
    %s134 = sphi 0, %s133
    %s150 = sphi 0, %s134
    %s154 = sphi 0, %s154
    %s156 = sphi 0, %s154
    %s157 = sphi 0, %s156
    %s171 = sphi 0, %s157
    %s175 = sphi 0, %s175
    %s177 = sphi 0, %s175
    %s178 = sphi 0, %s177
    %s192 = sphi 0, %s178
    %s200 = sphi 0, %s202
    %s203 = sphi 0, %s200
    %s204 = sphi 0, %s203
    %s220 = sphi 0, %s204
    %s228 = sphi 0, %s230
    %s231 = sphi 0, %s228
    %s232 = sphi 0, %s231
    %s248 = sphi 0, %s232
  $region4: #{pmaa_conv_block_forward.6} parent=0 // loop_header_branch
    %17 = sbr.rel (%p15) target = $region8
  $region5: #{pmaa_conv_block_forward.6} parent=0 // loop_body
    %s19 = ssub.s32 %s14, 1
    %s20 = ssub.s32 %s14, 2
    %s27 = sadd.s32 1, %s22
    %p28 = scmp.ge.s32.totalorder %s27, 1
    %s29 = scalar_select %p28, 0, %s27
    %s30 = sadd.s32 1, %s21
    %s31 = scalar_select %p28, %s30, %s21
    %p32 = scmp.ge.s32.totalorder %s31, 2
    %s33 = scalar_select %p32, 0, %s31
    %s34 = ssub.s32 %s21, %s33
    %s35 = ssub.s32 %s22, %s29
    %s36 = sor.u32 %s34, %s35
    %p37 = scmp.eq.s32.totalorder %s36, 0
    %s39 = sadd.s32 %s38, 1
    %s40 = scalar_select %p37, %s38, %s39
    %p43 = pneg %p37
    %p44 = scmp.eq.s32.totalorder %s14, 1
    %p45 = por %p43, %p44
    %p46 = scmp.ne.s32.totalorder %s38, %s41
    %p47 = scmp.eq.s32.totalorder %s14, 0
    %p48 = por %p46, %p47
    %p49 = scmp.ne.s32.totalorder %s38, %s41
    %p50 = scmp.eq.s32.totalorder %s19, 1
    %p51 = por %p49, %p50
    %p52 = scmp.ne.s32.totalorder %s41, %s42
    %p53 = scmp.eq.s32.totalorder %s19, 0
    %p54 = por %p52, %p53
    %p55 = scmp.ne.s32.totalorder %s41, %s42
    %p56 = scmp.eq.s32.totalorder %s20, 1
    %p57 = por %p55, %p56
    %p59 = scmp.ne.s32.totalorder %s42, %s58
    %p60 = scmp.eq.s32.totalorder %s20, 0
    %p61 = por %p59, %p60
    %s62 = sadd.s32 %s22, 1
    %s63 = smul.u32 %s62, 16
    %s64 = sadd.s32 %s29, 1
    %s65 = smul.u32 %s64, 16
    %s66 = ssub.s32 %s21, %s33
    %s67 = ssub.s32 %s63, %s65
    %s68 = sor.u32 %s66, %s67
    %p69 = scmp.eq.s32.totalorder %s68, 0
    %s71 = sadd.s32 %s70, 1
    %s72 = scalar_select %p69, %s70, %s71
    %p75 = pneg %p69
    %p76 = scmp.eq.s32.totalorder %s14, 1
    %p77 = por %p75, %p76
    %p78 = scmp.ne.s32.totalorder %s70, %s73
    %p79 = scmp.eq.s32.totalorder %s14, 0
    %p80 = por %p78, %p79
    %p81 = scmp.ne.s32.totalorder %s70, %s73
    %p82 = scmp.eq.s32.totalorder %s19, 1
    %p83 = por %p81, %p82
    %p84 = scmp.ne.s32.totalorder %s73, %s74
    %p85 = scmp.eq.s32.totalorder %s19, 0
    %p86 = por %p84, %p85
    %p87 = scmp.ne.s32.totalorder %s73, %s74
    %p88 = scmp.eq.s32.totalorder %s20, 1
    %p89 = por %p87, %p88
    %p91 = scmp.ne.s32.totalorder %s74, %s90
    %p92 = scmp.eq.s32.totalorder %s20, 0
    %p93 = por %p91, %p92
    %s94 = ssub.s32 %s21, %s33
    %s95 = ssub.s32 %s22, %s29
    %s96 = sor.u32 %s94, %s95
    %p97 = scmp.eq.s32.totalorder %s96, 0
    %s99 = sadd.s32 %s98, 1
    %s100 = scalar_select %p97, %s98, %s99
    %p103 = pneg %p97
    %p104 = scmp.eq.s32.totalorder %s14, 1
    %p105 = por %p103, %p104
    %p106 = scmp.ne.s32.totalorder %s98, %s101
    %p107 = scmp.eq.s32.totalorder %s14, 0
    %p108 = por %p106, %p107
    %p109 = scmp.ne.s32.totalorder %s98, %s101
    %p110 = scmp.eq.s32.totalorder %s19, 1
    %p111 = por %p109, %p110
    %p112 = scmp.ne.s32.totalorder %s101, %s102
    %p113 = scmp.eq.s32.totalorder %s19, 0
    %p114 = por %p112, %p113
    %p115 = scmp.ne.s32.totalorder %s101, %s102
    %p116 = scmp.eq.s32.totalorder %s20, 1
    %p117 = por %p115, %p116
    %p119 = scmp.ne.s32.totalorder %s102, %s118
    %p120 = scmp.eq.s32.totalorder %s20, 0
    %p121 = por %p119, %p120
    %s122 = sadd.s32 %s22, 1
    %s123 = smul.u32 %s122, 16
    %s124 = sadd.s32 %s29, 1
    %s125 = smul.u32 %s124, 16
    %s126 = ssub.s32 %s21, %s33
    %s127 = ssub.s32 %s123, %s125
    %s128 = sor.u32 %s126, %s127
    %p129 = scmp.eq.s32.totalorder %s128, 0
    %s131 = sadd.s32 %s130, 1
    %s132 = scalar_select %p129, %s130, %s131
    %p135 = pneg %p129
    %p136 = scmp.eq.s32.totalorder %s14, 1
    %p137 = por %p135, %p136
    %p138 = scmp.ne.s32.totalorder %s130, %s133
    %p139 = scmp.eq.s32.totalorder %s14, 0
    %p140 = por %p138, %p139
    %p141 = scmp.ne.s32.totalorder %s130, %s133
    %p142 = scmp.eq.s32.totalorder %s19, 1
    %p143 = por %p141, %p142
    %p144 = scmp.ne.s32.totalorder %s133, %s134
    %p145 = scmp.eq.s32.totalorder %s19, 0
    %p146 = por %p144, %p145
    %p147 = scmp.ne.s32.totalorder %s133, %s134
    %p148 = scmp.eq.s32.totalorder %s20, 1
    %p149 = por %p147, %p148
    %p151 = scmp.ne.s32.totalorder %s134, %s150
    %p152 = scmp.eq.s32.totalorder %s20, 0
    %p153 = por %p151, %p152
    %s155 = sadd.s32 %s154, 1
    %p158 = scmp.eq.s32.totalorder %s14, 1
    %p159 = scmp.ne.s32.totalorder %s154, %s156
    %p160 = scmp.eq.s32.totalorder %s14, 0
    %p161 = por %p159, %p160
    %p162 = scmp.ne.s32.totalorder %s154, %s156
    %p163 = scmp.eq.s32.totalorder %s19, 1
    %p164 = por %p162, %p163
    %p165 = scmp.ne.s32.totalorder %s156, %s157
    %p166 = scmp.eq.s32.totalorder %s19, 0
    %p167 = por %p165, %p166
    %p168 = scmp.ne.s32.totalorder %s156, %s157
    %p169 = scmp.eq.s32.totalorder %s20, 1
    %p170 = por %p168, %p169
    %p172 = scmp.ne.s32.totalorder %s157, %s171
    %p173 = scmp.eq.s32.totalorder %s20, 0
    %p174 = por %p172, %p173
    %s176 = sadd.s32 %s175, 1
    %p179 = scmp.eq.s32.totalorder %s14, 1
    %p180 = scmp.ne.s32.totalorder %s175, %s177
    %p181 = scmp.eq.s32.totalorder %s14, 0
    %p182 = por %p180, %p181
    %p183 = scmp.ne.s32.totalorder %s175, %s177
    %p184 = scmp.eq.s32.totalorder %s19, 1
    %p185 = por %p183, %p184
    %p186 = scmp.ne.s32.totalorder %s177, %s178
    %p187 = scmp.eq.s32.totalorder %s19, 0
    %p188 = por %p186, %p187
    %p189 = scmp.ne.s32.totalorder %s177, %s178
    %p190 = scmp.eq.s32.totalorder %s20, 1
    %p191 = por %p189, %p190
    %p193 = scmp.ne.s32.totalorder %s178, %s192
    %p194 = scmp.eq.s32.totalorder %s20, 0
    %p195 = por %p193, %p194
    %s196 = ssub.s32 %s21, %s33
    %s197 = ssub.s32 %s22, %s29
    %s198 = sor.u32 %s196, %s197
    %p199 = scmp.eq.s32.totalorder %s198, 0
    %s201 = sadd.s32 %s200, 1
    %s202 = scalar_select %p199, %s200, %s201
    %p205 = pneg %p199
    %p206 = scmp.eq.s32.totalorder %s14, 1
    %p207 = por %p205, %p206
    %p208 = scmp.ne.s32.totalorder %s200, %s203
    %p209 = scmp.eq.s32.totalorder %s14, 0
    %p210 = por %p208, %p209
    %p211 = scmp.ne.s32.totalorder %s200, %s203
    %p212 = scmp.eq.s32.totalorder %s19, 1
    %p213 = por %p211, %p212
    %p214 = scmp.ne.s32.totalorder %s203, %s204
    %p215 = scmp.eq.s32.totalorder %s19, 0
    %p216 = por %p214, %p215
    %p217 = scmp.ne.s32.totalorder %s203, %s204
    %p218 = scmp.eq.s32.totalorder %s20, 1
    %p219 = por %p217, %p218
    %p221 = scmp.ne.s32.totalorder %s204, %s220
    %p222 = scmp.eq.s32.totalorder %s20, 0
    %p223 = por %p221, %p222
    %s224 = ssub.s32 %s21, %s33
    %s225 = ssub.s32 %s22, %s29
    %s226 = sor.u32 %s224, %s225
    %p227 = scmp.eq.s32.totalorder %s226, 0
    %s229 = sadd.s32 %s228, 1
    %s230 = scalar_select %p227, %s228, %s229
    %p233 = pneg %p227
    %p234 = scmp.eq.s32.totalorder %s14, 1
    %p235 = por %p233, %p234
    %p236 = scmp.ne.s32.totalorder %s228, %s231
    %p237 = scmp.eq.s32.totalorder %s14, 0
    %p238 = por %p236, %p237
    %p239 = scmp.ne.s32.totalorder %s228, %s231
    %p240 = scmp.eq.s32.totalorder %s19, 1
    %p241 = por %p239, %p240
    %p242 = scmp.ne.s32.totalorder %s231, %s232
    %p243 = scmp.eq.s32.totalorder %s19, 0
    %p244 = por %p242, %p243
    %p245 = scmp.ne.s32.totalorder %s231, %s232
    %p246 = scmp.eq.s32.totalorder %s20, 1
    %p247 = por %p245, %p246
    %p249 = scmp.ne.s32.totalorder %s232, %s248
    %p250 = scmp.eq.s32.totalorder %s20, 0
    %p251 = por %p249, %p250
    %p252 = scmp.le.s32.totalorder 1, %s14
    %p253 = scmp.lt.s32.totalorder %s14, 3
    %p254 = pnand %p252, %p253
    %p255 = pneg %p254
    // Predicated region
    $region9: #{pmaa_conv_block_forward.6} parent=5 // pred_check
      _
    $region10: #{pmaa_conv_block_forward.6} parent=5 // pred_check_branch
      %257 = sbr.rel (%p254) target = $region12
    $region11: #{pmaa_conv_block_forward.6} parent=5 // pred_region
      %s258 = ssub.s32 %s14, 1
      // Predicated region
      $region13: #{pmaa_conv_block_forward.6} parent=11 // pred_check
        %p259 = pneg %p167
      $region14: #{pmaa_conv_block_forward.6} parent=11 // pred_check_branch
        %261 = sbr.rel (%p259) target = $region16
      $region15: #{pmaa_conv_block_forward.6} parent=11 // pred_region
        _
      $region16: #{pmaa_conv_block_forward.6} parent=11 // pred_fallthru
        _
      // Predicated region
      $region17: #{pmaa_conv_block_forward.6} parent=11 // pred_check
        %p262 = pneg %p188
      $region18: #{pmaa_conv_block_forward.6} parent=11 // pred_check_branch
        %264 = sbr.rel (%p262) target = $region20
      $region19: #{pmaa_conv_block_forward.6} parent=11 // pred_region
        _
      $region20: #{pmaa_conv_block_forward.6} parent=11 // pred_fallthru
        _
    $region12: #{pmaa_conv_block_forward.6} parent=5 // pred_fallthru
      _
    %p265 = scmp.lt.s32.totalorder %s14, 2
    // Predicated region
    $region21: #{pmaa_conv_block_forward.6} parent=5 // pred_check
      %p266 = pneg %p265
    $region22: #{pmaa_conv_block_forward.6} parent=5 // pred_check_branch
      %268 = sbr.rel (%p266) target = $region24
    $region23: #{pmaa_conv_block_forward.6} parent=5 // pred_region
      // Predicated region
      $region25: #{pmaa_conv_block_forward.6} parent=23 // pred_check
        %p269 = pneg %p48
      $region26: #{pmaa_conv_block_forward.6} parent=23 // pred_check_branch
        %271 = sbr.rel (%p269) target = $region28
      $region27: #{pmaa_conv_block_forward.6} parent=23 // pred_region
        %s272 = smul.u32 16, %s22
        %s273 = ssub.s32 18, %s272
        %p274 = scmp.lt.s32.totalorder %s273, 16
        %s275 = scalar_select %p274, %s273, 16
        %s276 = smul.u32 4, %s275
        %s277 = smul.u32 %s276, 2
        %p278 = scmp.lt.s32.totalorder %s21, 1
        %s279 = scalar_select %p278, %s21, 1
        %p280 = scmp.lt.s32.totalorder %s272, 17
        %s281 = scalar_select %p280, %s272, 17
        %s282 = smul.addr %s281, 2
        %s283 = smul.addr %s279, 36
        %s284 = sadd.s32 %s282, %s283
        %s285 = smul.addr %s284, 4
        %s286 = scalar_lea.vmem %s0, %s285
        %s287 = smul.u32 16, %s22
        %s288 = ssub.s32 18, %s287
        %p289 = scmp.lt.s32.totalorder %s288, 16
        %s290 = scalar_select %p289, %s288, 16
        %s291 = smul.u32 4, %s290
        %s292 = smul.u32 %s291, 2
      $region28: #{pmaa_conv_block_forward.6} parent=23 // pred_fallthru
        _
      // Predicated region
      $region29: #{pmaa_conv_block_forward.6} parent=23 // pred_check
        %p293 = pneg %p80
      $region30: #{pmaa_conv_block_forward.6} parent=23 // pred_check_branch
        %295 = sbr.rel (%p293) target = $region32
      $region31: #{pmaa_conv_block_forward.6} parent=23 // pred_region
        %s296 = sadd.s32 %s22, 1
        %s297 = smul.u32 %s296, 16
        %p298 = scmp.lt.s32.totalorder %s21, 1
        %s299 = scalar_select %p298, %s21, 1
        %p300 = scmp.lt.s32.totalorder %s297, 17
        %s301 = scalar_select %p300, %s297, 17
        %s302 = smul.addr %s301, 2
        %s303 = smul.addr %s299, 36
        %s304 = sadd.s32 %s302, %s303
        %s305 = smul.addr %s304, 4
        %s306 = scalar_lea.vmem %s1, %s305
        %s307 = sadd.s32 %s22, 1
        %s308 = smul.u32 %s307, 16
      $region32: #{pmaa_conv_block_forward.6} parent=23 // pred_fallthru
        _
      // Predicated region
      $region33: #{pmaa_conv_block_forward.6} parent=23 // pred_check
        %p309 = pneg %p108
      $region34: #{pmaa_conv_block_forward.6} parent=23 // pred_check_branch
        %311 = sbr.rel (%p309) target = $region36
      $region35: #{pmaa_conv_block_forward.6} parent=23 // pred_region
        %s312 = smul.u32 16, %s22
        %s313 = ssub.s32 18, %s312
        %p314 = scmp.lt.s32.totalorder %s313, 16
        %s315 = scalar_select %p314, %s313, 16
        %s316 = smul.u32 4, %s315
        %s317 = smul.u32 %s316, 2
        %p318 = scmp.lt.s32.totalorder %s21, 1
        %s319 = scalar_select %p318, %s21, 1
        %p320 = scmp.lt.s32.totalorder %s312, 17
        %s321 = scalar_select %p320, %s312, 17
        %s322 = smul.addr %s321, 2
        %s323 = smul.addr %s319, 36
        %s324 = sadd.s32 %s322, %s323
        %s325 = smul.addr %s324, 4
        %s326 = scalar_lea.vmem %s2, %s325
        %s327 = smul.u32 16, %s22
        %s328 = ssub.s32 18, %s327
        %p329 = scmp.lt.s32.totalorder %s328, 16
        %s330 = scalar_select %p329, %s328, 16
        %s331 = smul.u32 4, %s330
        %s332 = smul.u32 %s331, 2
      $region36: #{pmaa_conv_block_forward.6} parent=23 // pred_fallthru
        _
      // Predicated region
      $region37: #{pmaa_conv_block_forward.6} parent=23 // pred_check
        %p333 = pneg %p140
      $region38: #{pmaa_conv_block_forward.6} parent=23 // pred_check_branch
        %335 = sbr.rel (%p333) target = $region40
      $region39: #{pmaa_conv_block_forward.6} parent=23 // pred_region
        %s336 = sadd.s32 %s22, 1
        %s337 = smul.u32 %s336, 16
        %p338 = scmp.lt.s32.totalorder %s21, 1
        %s339 = scalar_select %p338, %s21, 1
        %p340 = scmp.lt.s32.totalorder %s337, 17
        %s341 = scalar_select %p340, %s337, 17
        %s342 = smul.addr %s341, 2
        %s343 = smul.addr %s339, 36
        %s344 = sadd.s32 %s342, %s343
        %s345 = smul.addr %s344, 4
        %s346 = scalar_lea.vmem %s3, %s345
        %s347 = sadd.s32 %s22, 1
        %s348 = smul.u32 %s347, 16
      $region40: #{pmaa_conv_block_forward.6} parent=23 // pred_fallthru
        _
    $region24: #{pmaa_conv_block_forward.6} parent=5 // pred_fallthru
      _
    %p349 = scmp.le.s32.totalorder 1, %s14
    %p350 = scmp.lt.s32.totalorder %s14, 3
    %p351 = pnand %p349, %p350
    %p352 = pneg %p351
    // Predicated region
    $region41: #{pmaa_conv_block_forward.6} parent=5 // pred_check
      _
    $region42: #{pmaa_conv_block_forward.6} parent=5 // pred_check_branch
      %354 = sbr.rel (%p351) target = $region44
    $region43: #{pmaa_conv_block_forward.6} parent=5 // pred_region
      %s355 = ssub.s32 %s14, 1
      %s356 = smul.u32 16, %s24
      %s357 = ssub.s32 18, %s356
      %p358 = scmp.lt.s32.totalorder %s357, 16
      %s359 = scalar_select %p358, %s357, 16
      %s360 = smul.u32 4, %s359
      %s361 = smul.u32 %s360, 2
      %p362 = scmp.lt.s32.totalorder %s23, 1
      %s363 = scalar_select %p362, %s23, 1
      %p364 = scmp.lt.s32.totalorder %s356, 17
      %s365 = scalar_select %p364, %s356, 17
      %s366 = smul.addr %s365, 2
      %s367 = smul.addr %s363, 36
      %s368 = sadd.s32 %s366, %s367
      %s369 = smul.addr %s368, 4
      %s370 = scalar_lea.vmem %s0, %s369
      %p371 = pneg %p54
      %p372 = pneg %p51
      %s373 = sadd.s32 %s24, 1
      %s374 = smul.u32 %s373, 16
      %p375 = scmp.lt.s32.totalorder %s23, 1
      %s376 = scalar_select %p375, %s23, 1
      %p377 = scmp.lt.s32.totalorder %s374, 17
      %s378 = scalar_select %p377, %s374, 17
      %s379 = smul.addr %s378, 2
      %s380 = smul.addr %s376, 36
      %s381 = sadd.s32 %s379, %s380
      %s382 = smul.addr %s381, 4
      %s383 = scalar_lea.vmem %s1, %s382
      %p384 = pneg %p86
      %p385 = pneg %p83
      %s386 = smul.u32 16, %s24
      %s387 = ssub.s32 18, %s386
      %p388 = scmp.lt.s32.totalorder %s387, 16
      %s389 = scalar_select %p388, %s387, 16
      %s390 = smul.u32 4, %s389
      %s391 = smul.u32 %s390, 2
      %p392 = scmp.lt.s32.totalorder %s23, 1
      %s393 = scalar_select %p392, %s23, 1
      %p394 = scmp.lt.s32.totalorder %s386, 17
      %s395 = scalar_select %p394, %s386, 17
      %s396 = smul.addr %s395, 2
      %s397 = smul.addr %s393, 36
      %s398 = sadd.s32 %s396, %s397
      %s399 = smul.addr %s398, 4
      %s400 = scalar_lea.vmem %s2, %s399
      %p401 = pneg %p114
      %p402 = pneg %p111
      %s403 = sadd.s32 %s24, 1
      %s404 = smul.u32 %s403, 16
      %p405 = scmp.lt.s32.totalorder %s23, 1
      %s406 = scalar_select %p405, %s23, 1
      %p407 = scmp.lt.s32.totalorder %s404, 17
      %s408 = scalar_select %p407, %s404, 17
      %s409 = smul.addr %s408, 2
      %s410 = smul.addr %s406, 36
      %s411 = sadd.s32 %s409, %s410
      %s412 = smul.addr %s411, 4
      %s413 = scalar_lea.vmem %s3, %s412
      %p414 = pneg %p146
      %p415 = pneg %p143
      %p416 = pneg %p167
      %p417 = pneg %p164
      %p418 = pneg %p188
      %p419 = pneg %p185
      %p420 = pneg %p216
      %p421 = pneg %p213
      %s422 = smul.u32 8, %s24
      %p423 = scmp.lt.s32.totalorder %s23, 1
      %s424 = scalar_select %p423, %s23, 1
      %p425 = scmp.lt.s32.totalorder %s422, 7
      %s426 = scalar_select %p425, %s422, 7
      %s427 = smul.addr %s424, 8
      %s428 = sadd.s32 %s426, %s427
      %s429 = smul.addr %s428, 4
      %s430 = scalar_lea.vmem %s6, %s429
      %p431 = pneg %p244
      %p432 = pneg %p241
      %s433 = smul.u32 8, %s24
      %p434 = scmp.lt.s32.totalorder %s23, 1
      %s435 = scalar_select %p434, %s23, 1
      %p436 = scmp.lt.s32.totalorder %s433, 7
      %s437 = scalar_select %p436, %s433, 7
      %s438 = smul.addr %s435, 8
      %s439 = sadd.s32 %s437, %s438
      %s440 = smul.addr %s439, 4
      %s441 = scalar_lea.vmem %s7, %s440
      %s442 = smul.u32 16, %s24
      %s443 = ssub.s32 18, %s442
      %p444 = scmp.lt.s32.totalorder %s443, 16
      %s445 = scalar_select %p444, %s443, 16
      %s446 = smul.u32 4, %s445
      %s447 = smul.u32 %s446, 2
      %p448 = scmp.lt.s32.totalorder %s23, 1
      %s449 = scalar_select %p448, %s23, 1
      %p450 = scmp.lt.s32.totalorder %s442, 17
      %s451 = scalar_select %p450, %s442, 17
      %s452 = smul.addr %s451, 2
      %s453 = smul.addr %s449, 36
      %s454 = sadd.s32 %s452, %s453
      %s455 = smul.addr %s454, 4
      %s456 = scalar_lea.vmem %s0, %s455
      %s457 = smul.u32 16, %s24
      %s458 = ssub.s32 18, %s457
      %p459 = scmp.lt.s32.totalorder %s458, 16
      %s460 = scalar_select %p459, %s458, 16
      %s461 = smul.u32 4, %s460
      %s462 = smul.u32 %s461, 2
      %s463 = sadd.s32 %s24, 1
      %s464 = smul.u32 %s463, 16
      %p465 = scmp.lt.s32.totalorder %s23, 1
      %s466 = scalar_select %p465, %s23, 1
      %p467 = scmp.lt.s32.totalorder %s464, 17
      %s468 = scalar_select %p467, %s464, 17
      %s469 = smul.addr %s468, 2
      %s470 = smul.addr %s466, 36
      %s471 = sadd.s32 %s469, %s470
      %s472 = smul.addr %s471, 4
      %s473 = scalar_lea.vmem %s1, %s472
      %s474 = sadd.s32 %s24, 1
      %s475 = smul.u32 %s474, 16
      %s476 = smul.u32 16, %s24
      %s477 = ssub.s32 18, %s476
      %p478 = scmp.lt.s32.totalorder %s477, 16
      %s479 = scalar_select %p478, %s477, 16
      %s480 = smul.u32 4, %s479
      %s481 = smul.u32 %s480, 2
      %p482 = scmp.lt.s32.totalorder %s23, 1
      %s483 = scalar_select %p482, %s23, 1
      %p484 = scmp.lt.s32.totalorder %s476, 17
      %s485 = scalar_select %p484, %s476, 17
      %s486 = smul.addr %s485, 2
      %s487 = smul.addr %s483, 36
      %s488 = sadd.s32 %s486, %s487
      %s489 = smul.addr %s488, 4
      %s490 = scalar_lea.vmem %s2, %s489
      %s491 = smul.u32 16, %s24
      %s492 = ssub.s32 18, %s491
      %p493 = scmp.lt.s32.totalorder %s492, 16
      %s494 = scalar_select %p493, %s492, 16
      %s495 = smul.u32 4, %s494
      %s496 = smul.u32 %s495, 2
      %s497 = sadd.s32 %s24, 1
      %s498 = smul.u32 %s497, 16
      %p499 = scmp.lt.s32.totalorder %s23, 1
      %s500 = scalar_select %p499, %s23, 1
      %p501 = scmp.lt.s32.totalorder %s498, 17
      %s502 = scalar_select %p501, %s498, 17
      %s503 = smul.addr %s502, 2
      %s504 = smul.addr %s500, 36
      %s505 = sadd.s32 %s503, %s504
      %s506 = smul.addr %s505, 4
      %s507 = scalar_lea.vmem %s3, %s506
      %s508 = sadd.s32 %s24, 1
      %s509 = smul.u32 %s508, 16
      %s510 = smul.u32 8, %s24
      %p511 = scmp.lt.s32.totalorder %s23, 1
      %s512 = scalar_select %p511, %s23, 1
      %p513 = scmp.lt.s32.totalorder %s510, 7
      %s514 = scalar_select %p513, %s510, 7
      %s515 = smul.addr %s512, 8
      %s516 = sadd.s32 %s514, %s515
      %s517 = smul.addr %s516, 4
      %s518 = scalar_lea.vmem %s6, %s517
      %s519 = smul.u32 8, %s24
      %s520 = smul.u32 8, %s24
      %p521 = scmp.lt.s32.totalorder %s23, 1
      %s522 = scalar_select %p521, %s23, 1
      %p523 = scmp.lt.s32.totalorder %s520, 7
      %s524 = scalar_select %p523, %s520, 7
      %s525 = smul.addr %s522, 8
      %s526 = sadd.s32 %s524, %s525
      %s527 = smul.addr %s526, 4
      %s528 = scalar_lea.vmem %s7, %s527
      %s529 = smul.u32 8, %s24
      %v531 = vld [vmem:[%s456] sm:$0xf]
      %v532 = vld [vmem:[%s456 + $0x4] sm:$0x1]
      %v533 = vld [vmem:[%s456 + $0x8] sm:$0xf]
      %v534 = vld [vmem:[%s456 + $0xc] sm:$0x1]
      %v535 = vld [vmem:[%s456 + $0x10] sm:$0xf]
      %v536 = vld [vmem:[%s456 + $0x14] sm:$0x1]
      %v537 = vld [vmem:[%s456 + $0x18] sm:$0xf]
      %v538 = vld [vmem:[%s456 + $0x1c] sm:$0x1]
      %v539 = vld [vmem:[%s456 + $0x20] sm:$0xf]
      %v540 = vld [vmem:[%s456 + $0x24] sm:$0x1]
      %v541 = vld [vmem:[%s456 + $0x28] sm:$0xf]
      %v542 = vld [vmem:[%s456 + $0x2c] sm:$0x1]
      %v543 = vld [vmem:[%s456 + $0x30] sm:$0xf]
      %v544 = vld [vmem:[%s456 + $0x34] sm:$0x1]
      %v545 = vld [vmem:[%s456 + $0x38] sm:$0xf]
      %v546 = vld [vmem:[%s456 + $0x3c] sm:$0x1]
      %v547 = vld [vmem:[%s456 + $0x40] sm:$0xf]
      %v548 = vld [vmem:[%s456 + $0x44] sm:$0x1]
      %v549 = vld [vmem:[%s456 + $0x48] sm:$0xf]
      %v550 = vld [vmem:[%s456 + $0x4c] sm:$0x1]
      %v551 = vld [vmem:[%s456 + $0x50] sm:$0xf]
      %v552 = vld [vmem:[%s456 + $0x54] sm:$0x1]
      %v553 = vld [vmem:[%s456 + $0x58] sm:$0xf]
      %v554 = vld [vmem:[%s456 + $0x5c] sm:$0x1]
      %v555 = vld [vmem:[%s456 + $0x60] sm:$0xf]
      %v556 = vld [vmem:[%s456 + $0x64] sm:$0x1]
      %v557 = vld [vmem:[%s456 + $0x68] sm:$0xf]
      %v558 = vld [vmem:[%s456 + $0x6c] sm:$0x1]
      %v559 = vld [vmem:[%s456 + $0x70] sm:$0xf]
      %v560 = vld [vmem:[%s456 + $0x74] sm:$0x1]
      %v561 = vld [vmem:[%s456 + $0x78] sm:$0xf]
      %v562 = vld [vmem:[%s456 + $0x7c] sm:$0x1]
      %v563 = vld [vmem:[%s473] sm:$0xf]
      %v564 = vld [vmem:[%s473 + $0x4] sm:$0x1]
      %v565 = vld [vmem:[%s490] sm:$0xf]
      %v566 = vld [vmem:[%s490 + $0x8] sm:$0xf]
      %v567 = vld [vmem:[%s490 + $0x10] sm:$0xf]
      %v568 = vld [vmem:[%s490 + $0x18] sm:$0xf]
      %v569 = vld [vmem:[%s490 + $0x20] sm:$0xf]
      %v570 = vld [vmem:[%s490 + $0x28] sm:$0xf]
      %v571 = vld [vmem:[%s490 + $0x30] sm:$0xf]
      %v572 = vld [vmem:[%s490 + $0x38] sm:$0xf]
      %v573 = vld [vmem:[%s490 + $0x40] sm:$0xf]
      %v574 = vld [vmem:[%s490 + $0x48] sm:$0xf]
      %v575 = vld [vmem:[%s490 + $0x50] sm:$0xf]
      %v576 = vld [vmem:[%s490 + $0x58] sm:$0xf]
      %v577 = vld [vmem:[%s490 + $0x60] sm:$0xf]
      %v578 = vld [vmem:[%s490 + $0x68] sm:$0xf]
      %v579 = vld [vmem:[%s490 + $0x70] sm:$0xf]
      %v580 = vld [vmem:[%s490 + $0x78] sm:$0xf]
      %v581 = vld [vmem:[%s507] sm:$0xf]
      %v582 = vld [vmem:[%s4] sm:$0xf]
      %v583 = vld [vmem:[%s4 + $0x4] sm:$0xf]
      %v584 = vld [vmem:[%s4 + $0x8] sm:$0xf]
      %v585 = vld [vmem:[%s4 + $0xc] sm:$0xf]
      %s586 = scalar_lea.vmem %s4, 16
      %v587 = vld [vmem:[%s586] sm:$0xf]
      %v588 = vld [vmem:[%s586 + $0x4] sm:$0xf]
      %v589 = vld [vmem:[%s586 + $0x8] sm:$0xf]
      %v590 = vld [vmem:[%s586 + $0xc] sm:$0xf]
      %v599 = vunpack.c.l.b16 %v565
      %v600 = vunpack.c.l.b16 %v567
      %v601 = vunpack.c.l.b16 %v569
      %v602 = vunpack.c.l.b16 %v571
      %v603 = vunpack.c.l.b16 %v573
      %v604 = vunpack.c.l.b16 %v575
      %v605 = vunpack.c.l.b16 %v577
      %v606 = vunpack.c.l.b16 %v579
      %v607 = vpack.c.b16 %v600, %v599
      %v608 = vpack.c.b16 %v602, %v601
      %v609 = vpack.c.b16 %v604, %v603
      %v610 = vpack.c.b16 %v606, %v605
      %v615 = vunpack.c.l.b16 %v587
      %v616 = vunpack.c.l.b16 %v588
      %v617 = vunpack.c.l.b16 %v589
      %v618 = vunpack.c.l.b16 %v590
      %v619 = vpack.c.b16 %v616, %v615
      %v620 = vpack.c.b16 %v618, %v617
      %vm623 = vcmask 261120
      %v625 = vsel %vm623, %v607, 0
      %v628 = vsel %vm623, %v608, 0
      %v631 = vsel %vm623, %v609, 0
      %v634 = vsel %vm623, %v610, 0
      %636 = vmatpush.bf16.msra.mxu0 0
      %637 = vmatpush.bf16.msra.mxu0 0
      %638 = vmatpush.bf16.msra.mxu0 0
      %639 = vmatpush.bf16.msra.mxu0 0
      %640 = vmatpush.bf16.msra.mxu0 0
      %641 = vmatpush.bf16.msra.mxu0 0
      %642 = vmatpush.bf16.msra.mxu0 %v620
      %643 = vmatpush.bf16.msra.mxu0 %v619
      %644 = vmatmul.bf16.gmra.mxu0 %v625
      %v645 = vpop.f32.mrf.mxu0
      %v646 = vadd.f32 0.0, %v645
      %v647 = vpop.f32.mrf.mxu0
      %v648 = vadd.f32 0.0, %v647
      %649 = vmatmul.bf16.gmra.mxu0 %v628
      %v650 = vpop.f32.mrf.mxu0
      %v651 = vadd.f32 0.0, %v650
      %v652 = vpop.f32.mrf.mxu0
      %v653 = vadd.f32 0.0, %v652
      %654 = vmatmul.bf16.gmra.mxu0 %v631
      %v655 = vpop.f32.mrf.mxu0
      %v656 = vadd.f32 0.0, %v655
      %v657 = vpop.f32.mrf.mxu0
      %v658 = vadd.f32 0.0, %v657
      %659 = vmatmul.bf16.gmra.mxu0 %v634
      %v660 = vpop.f32.mrf.mxu0
      %v661 = vadd.f32 0.0, %v660
      %v662 = vpop.f32.mrf.mxu0
      %v663 = vadd.f32 0.0, %v662
      %664 = vdwg.mxu0
      %v673 = vunpack.c.l.b16 %v531
      %v674 = vunpack.c.l.b16 %v535
      %v675 = vunpack.c.l.b16 %v539
      %v676 = vunpack.c.l.b16 %v543
      %v677 = vunpack.c.l.b16 %v547
      %v678 = vunpack.c.l.b16 %v551
      %v679 = vunpack.c.l.b16 %v555
      %v680 = vunpack.c.l.b16 %v559
      %v681 = vpack.c.b16 %v674, %v673
      %v682 = vpack.c.b16 %v676, %v675
      %v683 = vpack.c.b16 %v678, %v677
      %v684 = vpack.c.b16 %v680, %v679
      %v689 = vunpack.c.l.b16 %v582
      %v690 = vunpack.c.l.b16 %v583
      %v691 = vunpack.c.l.b16 %v584
      %v692 = vunpack.c.l.b16 %v585
      %v693 = vpack.c.b16 %v690, %v689
      %v694 = vpack.c.b16 %v692, %v691
      %v698 = vsel %vm623, %v681, 0
      %v701 = vsel %vm623, %v682, 0
      %v704 = vsel %vm623, %v683, 0
      %v707 = vsel %vm623, %v684, 0
      %709 = vmatpush.bf16.msra.mxu0 0
      %710 = vmatpush.bf16.msra.mxu0 0
      %711 = vmatpush.bf16.msra.mxu0 0
      %712 = vmatpush.bf16.msra.mxu0 0
      %713 = vmatpush.bf16.msra.mxu0 0
      %714 = vmatpush.bf16.msra.mxu0 0
      %715 = vmatpush.bf16.msra.mxu0 %v694
      %716 = vmatpush.bf16.msra.mxu0 %v693
      %717 = vmatmul.bf16.gmra.mxu0 %v698
      %v718 = vpop.f32.mrf.mxu0
      %v719 = vadd.f32 %v646, %v718
      %v720 = vpop.f32.mrf.mxu0
      %v721 = vadd.f32 %v648, %v720
      %722 = vmatmul.bf16.gmra.mxu0 %v701
      %v723 = vpop.f32.mrf.mxu0
      %v724 = vadd.f32 %v651, %v723
      %v725 = vpop.f32.mrf.mxu0
      %v726 = vadd.f32 %v653, %v725
      %727 = vmatmul.bf16.gmra.mxu0 %v704
      %v728 = vpop.f32.mrf.mxu0
      %v729 = vadd.f32 %v656, %v728
      %v730 = vpop.f32.mrf.mxu0
      %v731 = vadd.f32 %v658, %v730
      %732 = vmatmul.bf16.gmra.mxu0 %v707
      %v733 = vpop.f32.mrf.mxu0
      %v734 = vadd.f32 %v661, %v733
      %v735 = vpop.f32.mrf.mxu0
      %v736 = vadd.f32 %v663, %v735
      %737 = vdwg.mxu0
      %vm738 = vsmask.f32 3328
      %vm739 = vsmask.f32 7440
      %vm740 = vmor %vm738, %vm739
      %v742 = vshrl.u32 %v531, 16
      %v744 = vrot.slane %v742, 4
      %v745 = vshll.u32 %v531, 16
      %v747 = vrot.slane %v745, 5
      %v748 = vor.u32 %v744, %v747
      %v749 = vrot.slane %v748, 4
      %v751 = vshll.u32 %v532, 16
      %v753 = vrot.slane %v751, 5
      %v754 = vsel %vm740, %v749, %v753
      %v756 = vshrl.u32 %v535, 16
      %v758 = vrot.slane %v756, 4
      %v759 = vshll.u32 %v535, 16
      %v761 = vrot.slane %v759, 5
      %v762 = vor.u32 %v758, %v761
      %v763 = vrot.slane %v762, 4
      %v765 = vshll.u32 %v536, 16
      %v767 = vrot.slane %v765, 5
      %v768 = vsel %vm740, %v763, %v767
      %v770 = vshrl.u32 %v539, 16
      %v772 = vrot.slane %v770, 4
      %v773 = vshll.u32 %v539, 16
      %v775 = vrot.slane %v773, 5
      %v776 = vor.u32 %v772, %v775
      %v777 = vrot.slane %v776, 4
      %v779 = vshll.u32 %v540, 16
      %v781 = vrot.slane %v779, 5
      %v782 = vsel %vm740, %v777, %v781
      %v784 = vshrl.u32 %v543, 16
      %v786 = vrot.slane %v784, 4
      %v787 = vshll.u32 %v543, 16
      %v789 = vrot.slane %v787, 5
      %v790 = vor.u32 %v786, %v789
      %v791 = vrot.slane %v790, 4
      %v793 = vshll.u32 %v544, 16
      %v795 = vrot.slane %v793, 5
      %v796 = vsel %vm740, %v791, %v795
      %v798 = vshrl.u32 %v547, 16
      %v800 = vrot.slane %v798, 4
      %v801 = vshll.u32 %v547, 16
      %v803 = vrot.slane %v801, 5
      %v804 = vor.u32 %v800, %v803
      %v805 = vrot.slane %v804, 4
      %v807 = vshll.u32 %v548, 16
      %v809 = vrot.slane %v807, 5
      %v810 = vsel %vm740, %v805, %v809
      %v812 = vshrl.u32 %v551, 16
      %v814 = vrot.slane %v812, 4
      %v815 = vshll.u32 %v551, 16
      %v817 = vrot.slane %v815, 5
      %v818 = vor.u32 %v814, %v817
      %v819 = vrot.slane %v818, 4
      %v821 = vshll.u32 %v552, 16
      %v823 = vrot.slane %v821, 5
      %v824 = vsel %vm740, %v819, %v823
      %v826 = vshrl.u32 %v555, 16
      %v828 = vrot.slane %v826, 4
      %v829 = vshll.u32 %v555, 16
      %v831 = vrot.slane %v829, 5
      %v832 = vor.u32 %v828, %v831
      %v833 = vrot.slane %v832, 4
      %v835 = vshll.u32 %v556, 16
      %v837 = vrot.slane %v835, 5
      %v838 = vsel %vm740, %v833, %v837
      %v840 = vshrl.u32 %v559, 16
      %v842 = vrot.slane %v840, 4
      %v843 = vshll.u32 %v559, 16
      %v845 = vrot.slane %v843, 5
      %v846 = vor.u32 %v842, %v845
      %v847 = vrot.slane %v846, 4
      %v849 = vshll.u32 %v560, 16
      %v851 = vrot.slane %v849, 5
      %v852 = vsel %vm740, %v847, %v851
      %s853 = scalar_lea.vmem %s4, 32
      %v854 = vld [vmem:[%s853] sm:$0xf]
      %v855 = vld [vmem:[%s853 + $0x4] sm:$0xf]
      %v856 = vld [vmem:[%s853 + $0x8] sm:$0xf]
      %v857 = vld [vmem:[%s853 + $0xc] sm:$0xf]
      %v858 = vunpack.c.l.b16 %v754
      %v859 = vunpack.c.l.b16 %v768
      %v860 = vunpack.c.l.b16 %v782
      %v861 = vunpack.c.l.b16 %v796
      %v862 = vunpack.c.l.b16 %v810
      %v863 = vunpack.c.l.b16 %v824
      %v864 = vunpack.c.l.b16 %v838
      %v865 = vunpack.c.l.b16 %v852
      %v866 = vpack.c.b16 %v859, %v858
      %v867 = vpack.c.b16 %v861, %v860
      %v868 = vpack.c.b16 %v863, %v862
      %v869 = vpack.c.b16 %v865, %v864
      %v874 = vunpack.c.l.b16 %v854
      %v875 = vunpack.c.l.b16 %v855
      %v876 = vunpack.c.l.b16 %v856
      %v877 = vunpack.c.l.b16 %v857
      %v878 = vpack.c.b16 %v875, %v874
      %v879 = vpack.c.b16 %v877, %v876
      %v883 = vsel %vm623, %v866, 0
      %v886 = vsel %vm623, %v867, 0
      %v889 = vsel %vm623, %v868, 0
      %v892 = vsel %vm623, %v869, 0
      %894 = vmatpush.bf16.msra.mxu0 0
      %895 = vmatpush.bf16.msra.mxu0 0
      %896 = vmatpush.bf16.msra.mxu0 0
      %897 = vmatpush.bf16.msra.mxu0 0
      %898 = vmatpush.bf16.msra.mxu0 0
      %899 = vmatpush.bf16.msra.mxu0 0
      %900 = vmatpush.bf16.msra.mxu0 %v879
      %901 = vmatpush.bf16.msra.mxu0 %v878
      %902 = vmatmul.bf16.gmra.mxu0 %v883
      %v903 = vpop.f32.mrf.mxu0
      %v904 = vadd.f32 0.0, %v903
      %v905 = vpop.f32.mrf.mxu0
      %v906 = vadd.f32 0.0, %v905
      %907 = vmatmul.bf16.gmra.mxu0 %v886
      %v908 = vpop.f32.mrf.mxu0
      %v909 = vadd.f32 0.0, %v908
      %v910 = vpop.f32.mrf.mxu0
      %v911 = vadd.f32 0.0, %v910
      %912 = vmatmul.bf16.gmra.mxu0 %v889
      %v913 = vpop.f32.mrf.mxu0
      %v914 = vadd.f32 0.0, %v913
      %v915 = vpop.f32.mrf.mxu0
      %v916 = vadd.f32 0.0, %v915
      %917 = vmatmul.bf16.gmra.mxu0 %v892
      %v918 = vpop.f32.mrf.mxu0
      %v919 = vadd.f32 0.0, %v918
      %v920 = vpop.f32.mrf.mxu0
      %v921 = vadd.f32 0.0, %v920
      %922 = vdwg.mxu0
      %v923 = vadd.f32 %v719, %v904
      %v924 = vadd.f32 %v721, %v906
      %v925 = vadd.f32 %v724, %v909
      %v926 = vadd.f32 %v726, %v911
      %v927 = vadd.f32 %v729, %v914
      %v928 = vadd.f32 %v731, %v916
      %v929 = vadd.f32 %v734, %v919
      %v930 = vadd.f32 %v736, %v921
      %s931 = scalar_lea.vmem %s4, 48
      %v932 = vld [vmem:[%s931] sm:$0xf]
      %v933 = vld [vmem:[%s931 + $0x4] sm:$0xf]
      %v934 = vld [vmem:[%s931 + $0x8] sm:$0xf]
      %v935 = vld [vmem:[%s931 + $0xc] sm:$0xf]
      %v944 = vunpack.c.l.b16 %v533
      %v945 = vunpack.c.l.b16 %v537
      %v946 = vunpack.c.l.b16 %v541
      %v947 = vunpack.c.l.b16 %v545
      %v948 = vunpack.c.l.b16 %v549
      %v949 = vunpack.c.l.b16 %v553
      %v950 = vunpack.c.l.b16 %v557
      %v951 = vunpack.c.l.b16 %v561
      %v952 = vpack.c.b16 %v945, %v944
      %v953 = vpack.c.b16 %v947, %v946
      %v954 = vpack.c.b16 %v949, %v948
      %v955 = vpack.c.b16 %v951, %v950
      %v960 = vunpack.c.l.b16 %v932
      %v961 = vunpack.c.l.b16 %v933
      %v962 = vunpack.c.l.b16 %v934
      %v963 = vunpack.c.l.b16 %v935
      %v964 = vpack.c.b16 %v961, %v960
      %v965 = vpack.c.b16 %v963, %v962
      %v969 = vsel %vm623, %v952, 0
      %v972 = vsel %vm623, %v953, 0
      %v975 = vsel %vm623, %v954, 0
      %v978 = vsel %vm623, %v955, 0
      %980 = vmatpush.bf16.msra.mxu0 0
      %981 = vmatpush.bf16.msra.mxu0 0
      %982 = vmatpush.bf16.msra.mxu0 0
      %983 = vmatpush.bf16.msra.mxu0 0
      %984 = vmatpush.bf16.msra.mxu0 0
      %985 = vmatpush.bf16.msra.mxu0 0
      %986 = vmatpush.bf16.msra.mxu0 %v965
      %987 = vmatpush.bf16.msra.mxu0 %v964
      %988 = vmatmul.bf16.gmra.mxu0 %v969
      %v989 = vpop.f32.mrf.mxu0
      %v990 = vadd.f32 0.0, %v989
      %v991 = vpop.f32.mrf.mxu0
      %v992 = vadd.f32 0.0, %v991
      %993 = vmatmul.bf16.gmra.mxu0 %v972
      %v994 = vpop.f32.mrf.mxu0
      %v995 = vadd.f32 0.0, %v994
      %v996 = vpop.f32.mrf.mxu0
      %v997 = vadd.f32 0.0, %v996
      %998 = vmatmul.bf16.gmra.mxu0 %v975
      %v999 = vpop.f32.mrf.mxu0
      %v1000 = vadd.f32 0.0, %v999
      %v1001 = vpop.f32.mrf.mxu0
      %v1002 = vadd.f32 0.0, %v1001
      %1003 = vmatmul.bf16.gmra.mxu0 %v978
      %v1004 = vpop.f32.mrf.mxu0
      %v1005 = vadd.f32 0.0, %v1004
      %v1006 = vpop.f32.mrf.mxu0
      %v1007 = vadd.f32 0.0, %v1006
      %1008 = vdwg.mxu0
      %v1009 = vadd.f32 %v923, %v990
      %v1010 = vadd.f32 %v924, %v992
      %v1011 = vadd.f32 %v925, %v995
      %v1012 = vadd.f32 %v926, %v997
      %v1013 = vadd.f32 %v927, %v1000
      %v1014 = vadd.f32 %v928, %v1002
      %v1015 = vadd.f32 %v929, %v1005
      %v1016 = vadd.f32 %v930, %v1007
      %s1017 = scalar_lea.vmem %s4, 64
      %v1018 = vld [vmem:[%s1017] sm:$0xf]
      %v1019 = vld [vmem:[%s1017 + $0x4] sm:$0xf]
      %v1020 = vld [vmem:[%s1017 + $0x8] sm:$0xf]
      %v1021 = vld [vmem:[%s1017 + $0xc] sm:$0xf]
      %v1030 = vunpack.c.l.b16 %v566
      %v1031 = vunpack.c.l.b16 %v568
      %v1032 = vunpack.c.l.b16 %v570
      %v1033 = vunpack.c.l.b16 %v572
      %v1034 = vunpack.c.l.b16 %v574
      %v1035 = vunpack.c.l.b16 %v576
      %v1036 = vunpack.c.l.b16 %v578
      %v1037 = vunpack.c.l.b16 %v580
      %v1038 = vpack.c.b16 %v1031, %v1030
      %v1039 = vpack.c.b16 %v1033, %v1032
      %v1040 = vpack.c.b16 %v1035, %v1034
      %v1041 = vpack.c.b16 %v1037, %v1036
      %v1046 = vunpack.c.l.b16 %v1018
      %v1047 = vunpack.c.l.b16 %v1019
      %v1048 = vunpack.c.l.b16 %v1020
      %v1049 = vunpack.c.l.b16 %v1021
      %v1050 = vpack.c.b16 %v1047, %v1046
      %v1051 = vpack.c.b16 %v1049, %v1048
      %v1055 = vsel %vm623, %v1038, 0
      %v1058 = vsel %vm623, %v1039, 0
      %v1061 = vsel %vm623, %v1040, 0
      %v1064 = vsel %vm623, %v1041, 0
      %1066 = vmatpush.bf16.msra.mxu0 0
      %1067 = vmatpush.bf16.msra.mxu0 0
      %1068 = vmatpush.bf16.msra.mxu0 0
      %1069 = vmatpush.bf16.msra.mxu0 0
      %1070 = vmatpush.bf16.msra.mxu0 0
      %1071 = vmatpush.bf16.msra.mxu0 0
      %1072 = vmatpush.bf16.msra.mxu0 %v1051
      %1073 = vmatpush.bf16.msra.mxu0 %v1050
      %1074 = vmatmul.bf16.gmra.mxu0 %v1055
      %v1075 = vpop.f32.mrf.mxu0
      %v1076 = vadd.f32 0.0, %v1075
      %v1077 = vpop.f32.mrf.mxu0
      %v1078 = vadd.f32 0.0, %v1077
      %1079 = vmatmul.bf16.gmra.mxu0 %v1058
      %v1080 = vpop.f32.mrf.mxu0
      %v1081 = vadd.f32 0.0, %v1080
      %v1082 = vpop.f32.mrf.mxu0
      %v1083 = vadd.f32 0.0, %v1082
      %1084 = vmatmul.bf16.gmra.mxu0 %v1061
      %v1085 = vpop.f32.mrf.mxu0
      %v1086 = vadd.f32 0.0, %v1085
      %v1087 = vpop.f32.mrf.mxu0
      %v1088 = vadd.f32 0.0, %v1087
      %1089 = vmatmul.bf16.gmra.mxu0 %v1064
      %v1090 = vpop.f32.mrf.mxu0
      %v1091 = vadd.f32 0.0, %v1090
      %v1092 = vpop.f32.mrf.mxu0
      %v1093 = vadd.f32 0.0, %v1092
      %1094 = vdwg.mxu0
      %v1095 = vadd.f32 %v1009, %v1076
      %v1096 = vadd.f32 %v1010, %v1078
      %v1097 = vadd.f32 %v1011, %v1081
      %v1098 = vadd.f32 %v1012, %v1083
      %v1099 = vadd.f32 %v1013, %v1086
      %v1100 = vadd.f32 %v1014, %v1088
      %v1101 = vadd.f32 %v1015, %v1091
      %v1102 = vadd.f32 %v1016, %v1093
      %v1104 = vshrl.u32 %v533, 16
      %v1106 = vrot.slane %v1104, 4
      %v1107 = vshll.u32 %v533, 16
      %v1109 = vrot.slane %v1107, 5
      %v1110 = vor.u32 %v1106, %v1109
      %v1111 = vrot.slane %v1110, 4
      %v1113 = vshll.u32 %v534, 16
      %v1115 = vrot.slane %v1113, 5
      %v1116 = vsel %vm740, %v1111, %v1115
      %v1118 = vshrl.u32 %v537, 16
      %v1120 = vrot.slane %v1118, 4
      %v1121 = vshll.u32 %v537, 16
      %v1123 = vrot.slane %v1121, 5
      %v1124 = vor.u32 %v1120, %v1123
      %v1125 = vrot.slane %v1124, 4
      %v1127 = vshll.u32 %v538, 16
      %v1129 = vrot.slane %v1127, 5
      %v1130 = vsel %vm740, %v1125, %v1129
      %v1132 = vshrl.u32 %v541, 16
      %v1134 = vrot.slane %v1132, 4
      %v1135 = vshll.u32 %v541, 16
      %v1137 = vrot.slane %v1135, 5
      %v1138 = vor.u32 %v1134, %v1137
      %v1139 = vrot.slane %v1138, 4
      %v1141 = vshll.u32 %v542, 16
      %v1143 = vrot.slane %v1141, 5
      %v1144 = vsel %vm740, %v1139, %v1143
      %v1146 = vshrl.u32 %v545, 16
      %v1148 = vrot.slane %v1146, 4
      %v1149 = vshll.u32 %v545, 16
      %v1151 = vrot.slane %v1149, 5
      %v1152 = vor.u32 %v1148, %v1151
      %v1153 = vrot.slane %v1152, 4
      %v1155 = vshll.u32 %v546, 16
      %v1157 = vrot.slane %v1155, 5
      %v1158 = vsel %vm740, %v1153, %v1157
      %v1160 = vshrl.u32 %v549, 16
      %v1162 = vrot.slane %v1160, 4
      %v1163 = vshll.u32 %v549, 16
      %v1165 = vrot.slane %v1163, 5
      %v1166 = vor.u32 %v1162, %v1165
      %v1167 = vrot.slane %v1166, 4
      %v1169 = vshll.u32 %v550, 16
      %v1171 = vrot.slane %v1169, 5
      %v1172 = vsel %vm740, %v1167, %v1171
      %v1174 = vshrl.u32 %v553, 16
      %v1176 = vrot.slane %v1174, 4
      %v1177 = vshll.u32 %v553, 16
      %v1179 = vrot.slane %v1177, 5
      %v1180 = vor.u32 %v1176, %v1179
      %v1181 = vrot.slane %v1180, 4
      %v1183 = vshll.u32 %v554, 16
      %v1185 = vrot.slane %v1183, 5
      %v1186 = vsel %vm740, %v1181, %v1185
      %v1188 = vshrl.u32 %v557, 16
      %v1190 = vrot.slane %v1188, 4
      %v1191 = vshll.u32 %v557, 16
      %v1193 = vrot.slane %v1191, 5
      %v1194 = vor.u32 %v1190, %v1193
      %v1195 = vrot.slane %v1194, 4
      %v1197 = vshll.u32 %v558, 16
      %v1199 = vrot.slane %v1197, 5
      %v1200 = vsel %vm740, %v1195, %v1199
      %v1202 = vshrl.u32 %v561, 16
      %v1204 = vrot.slane %v1202, 4
      %v1205 = vshll.u32 %v561, 16
      %v1207 = vrot.slane %v1205, 5
      %v1208 = vor.u32 %v1204, %v1207
      %v1209 = vrot.slane %v1208, 4
      %v1211 = vshll.u32 %v562, 16
      %v1213 = vrot.slane %v1211, 5
      %v1214 = vsel %vm740, %v1209, %v1213
      %s1215 = scalar_lea.vmem %s4, 80
      %v1216 = vld [vmem:[%s1215] sm:$0xf]
      %v1217 = vld [vmem:[%s1215 + $0x4] sm:$0xf]
      %v1218 = vld [vmem:[%s1215 + $0x8] sm:$0xf]
      %v1219 = vld [vmem:[%s1215 + $0xc] sm:$0xf]
      %v1220 = vunpack.c.l.b16 %v1116
      %v1221 = vunpack.c.l.b16 %v1130
      %v1222 = vunpack.c.l.b16 %v1144
      %v1223 = vunpack.c.l.b16 %v1158
      %v1224 = vunpack.c.l.b16 %v1172
      %v1225 = vunpack.c.l.b16 %v1186
      %v1226 = vunpack.c.l.b16 %v1200
      %v1227 = vunpack.c.l.b16 %v1214
      %v1228 = vpack.c.b16 %v1221, %v1220
      %v1229 = vpack.c.b16 %v1223, %v1222
      %v1230 = vpack.c.b16 %v1225, %v1224
      %v1231 = vpack.c.b16 %v1227, %v1226
      %v1236 = vunpack.c.l.b16 %v1216
      %v1237 = vunpack.c.l.b16 %v1217
      %v1238 = vunpack.c.l.b16 %v1218
      %v1239 = vunpack.c.l.b16 %v1219
      %v1240 = vpack.c.b16 %v1237, %v1236
      %v1241 = vpack.c.b16 %v1239, %v1238
      %v1245 = vsel %vm623, %v1228, 0
      %v1248 = vsel %vm623, %v1229, 0
      %v1251 = vsel %vm623, %v1230, 0
      %v1254 = vsel %vm623, %v1231, 0
      %1256 = vmatpush.bf16.msra.mxu0 0
      %1257 = vmatpush.bf16.msra.mxu0 0
      %1258 = vmatpush.bf16.msra.mxu0 0
      %1259 = vmatpush.bf16.msra.mxu0 0
      %1260 = vmatpush.bf16.msra.mxu0 0
      %1261 = vmatpush.bf16.msra.mxu0 0
      %1262 = vmatpush.bf16.msra.mxu0 %v1241
      %1263 = vmatpush.bf16.msra.mxu0 %v1240
      %1264 = vmatmul.bf16.gmra.mxu0 %v1245
      %v1265 = vpop.f32.mrf.mxu0
      %v1266 = vadd.f32 0.0, %v1265
      %v1267 = vpop.f32.mrf.mxu0
      %v1268 = vadd.f32 0.0, %v1267
      %1269 = vmatmul.bf16.gmra.mxu0 %v1248
      %v1270 = vpop.f32.mrf.mxu0
      %v1271 = vadd.f32 0.0, %v1270
      %v1272 = vpop.f32.mrf.mxu0
      %v1273 = vadd.f32 0.0, %v1272
      %1274 = vmatmul.bf16.gmra.mxu0 %v1251
      %v1275 = vpop.f32.mrf.mxu0
      %v1276 = vadd.f32 0.0, %v1275
      %v1277 = vpop.f32.mrf.mxu0
      %v1278 = vadd.f32 0.0, %v1277
      %1279 = vmatmul.bf16.gmra.mxu0 %v1254
      %v1280 = vpop.f32.mrf.mxu0
      %v1281 = vadd.f32 0.0, %v1280
      %v1282 = vpop.f32.mrf.mxu0
      %v1283 = vadd.f32 0.0, %v1282
      %1284 = vdwg.mxu0
      %v1285 = vadd.f32 %v1095, %v1266
      %v1286 = vadd.f32 %v1096, %v1268
      %v1287 = vadd.f32 %v1097, %v1271
      %v1288 = vadd.f32 %v1098, %v1273
      %v1289 = vadd.f32 %v1099, %v1276
      %v1290 = vadd.f32 %v1100, %v1278
      %v1291 = vadd.f32 %v1101, %v1281
      %v1292 = vadd.f32 %v1102, %v1283
      %s1293 = scalar_lea.vmem %s4, 96
      %v1294 = vld [vmem:[%s1293] sm:$0xf]
      %v1295 = vld [vmem:[%s1293 + $0x4] sm:$0xf]
      %v1296 = vld [vmem:[%s1293 + $0x8] sm:$0xf]
      %v1297 = vld [vmem:[%s1293 + $0xc] sm:$0xf]
      %v1299 = vunpack.c.l.b16 %v563
      %v1300 = vpack.c.b16 %v675, %v674
      %v1301 = vpack.c.b16 %v677, %v676
      %v1302 = vpack.c.b16 %v679, %v678
      %v1303 = vpack.c.b16 %v1299, %v680
      %v1308 = vunpack.c.l.b16 %v1294
      %v1309 = vunpack.c.l.b16 %v1295
      %v1310 = vunpack.c.l.b16 %v1296
      %v1311 = vunpack.c.l.b16 %v1297
      %v1312 = vpack.c.b16 %v1309, %v1308
      %v1313 = vpack.c.b16 %v1311, %v1310
      %v1317 = vsel %vm623, %v1300, 0
      %v1320 = vsel %vm623, %v1301, 0
      %v1323 = vsel %vm623, %v1302, 0
      %v1326 = vsel %vm623, %v1303, 0
      %1328 = vmatpush.bf16.msra.mxu0 0
      %1329 = vmatpush.bf16.msra.mxu0 0
      %1330 = vmatpush.bf16.msra.mxu0 0
      %1331 = vmatpush.bf16.msra.mxu0 0
      %1332 = vmatpush.bf16.msra.mxu0 0
      %1333 = vmatpush.bf16.msra.mxu0 0
      %1334 = vmatpush.bf16.msra.mxu0 %v1313
      %1335 = vmatpush.bf16.msra.mxu0 %v1312
      %1336 = vmatmul.bf16.gmra.mxu0 %v1317
      %v1337 = vpop.f32.mrf.mxu0
      %v1338 = vadd.f32 0.0, %v1337
      %v1339 = vpop.f32.mrf.mxu0
      %v1340 = vadd.f32 0.0, %v1339
      %1341 = vmatmul.bf16.gmra.mxu0 %v1320
      %v1342 = vpop.f32.mrf.mxu0
      %v1343 = vadd.f32 0.0, %v1342
      %v1344 = vpop.f32.mrf.mxu0
      %v1345 = vadd.f32 0.0, %v1344
      %1346 = vmatmul.bf16.gmra.mxu0 %v1323
      %v1347 = vpop.f32.mrf.mxu0
      %v1348 = vadd.f32 0.0, %v1347
      %v1349 = vpop.f32.mrf.mxu0
      %v1350 = vadd.f32 0.0, %v1349
      %1351 = vmatmul.bf16.gmra.mxu0 %v1326
      %v1352 = vpop.f32.mrf.mxu0
      %v1353 = vadd.f32 0.0, %v1352
      %v1354 = vpop.f32.mrf.mxu0
      %v1355 = vadd.f32 0.0, %v1354
      %1356 = vdwg.mxu0
      %v1357 = vadd.f32 %v1285, %v1338
      %v1358 = vadd.f32 %v1286, %v1340
      %v1359 = vadd.f32 %v1287, %v1343
      %v1360 = vadd.f32 %v1288, %v1345
      %v1361 = vadd.f32 %v1289, %v1348
      %v1362 = vadd.f32 %v1290, %v1350
      %v1363 = vadd.f32 %v1291, %v1353
      %v1364 = vadd.f32 %v1292, %v1355
      %s1365 = scalar_lea.vmem %s4, 112
      %v1366 = vld [vmem:[%s1365] sm:$0xf]
      %v1367 = vld [vmem:[%s1365 + $0x4] sm:$0xf]
      %v1368 = vld [vmem:[%s1365 + $0x8] sm:$0xf]
      %v1369 = vld [vmem:[%s1365 + $0xc] sm:$0xf]
      %v1371 = vunpack.c.l.b16 %v581
      %v1372 = vpack.c.b16 %v601, %v600
      %v1373 = vpack.c.b16 %v603, %v602
      %v1374 = vpack.c.b16 %v605, %v604
      %v1375 = vpack.c.b16 %v1371, %v606
      %v1380 = vunpack.c.l.b16 %v1366
      %v1381 = vunpack.c.l.b16 %v1367
      %v1382 = vunpack.c.l.b16 %v1368
      %v1383 = vunpack.c.l.b16 %v1369
      %v1384 = vpack.c.b16 %v1381, %v1380
      %v1385 = vpack.c.b16 %v1383, %v1382
      %v1389 = vsel %vm623, %v1372, 0
      %v1392 = vsel %vm623, %v1373, 0
      %v1395 = vsel %vm623, %v1374, 0
      %v1398 = vsel %vm623, %v1375, 0
      %1400 = vmatpush.bf16.msra.mxu0 0
      %1401 = vmatpush.bf16.msra.mxu0 0
      %1402 = vmatpush.bf16.msra.mxu0 0
      %1403 = vmatpush.bf16.msra.mxu0 0
      %1404 = vmatpush.bf16.msra.mxu0 0
      %1405 = vmatpush.bf16.msra.mxu0 0
      %1406 = vmatpush.bf16.msra.mxu0 %v1385
      %1407 = vmatpush.bf16.msra.mxu0 %v1384
      %1408 = vmatmul.bf16.gmra.mxu0 %v1389
      %v1409 = vpop.f32.mrf.mxu0
      %v1410 = vadd.f32 0.0, %v1409
      %v1411 = vpop.f32.mrf.mxu0
      %v1412 = vadd.f32 0.0, %v1411
      %1413 = vmatmul.bf16.gmra.mxu0 %v1392
      %v1414 = vpop.f32.mrf.mxu0
      %v1415 = vadd.f32 0.0, %v1414
      %v1416 = vpop.f32.mrf.mxu0
      %v1417 = vadd.f32 0.0, %v1416
      %1418 = vmatmul.bf16.gmra.mxu0 %v1395
      %v1419 = vpop.f32.mrf.mxu0
      %v1420 = vadd.f32 0.0, %v1419
      %v1421 = vpop.f32.mrf.mxu0
      %v1422 = vadd.f32 0.0, %v1421
      %1423 = vmatmul.bf16.gmra.mxu0 %v1398
      %v1424 = vpop.f32.mrf.mxu0
      %v1425 = vadd.f32 0.0, %v1424
      %v1426 = vpop.f32.mrf.mxu0
      %v1427 = vadd.f32 0.0, %v1426
      %1428 = vdwg.mxu0
      %v1429 = vadd.f32 %v1357, %v1410
      %v1430 = vadd.f32 %v1358, %v1412
      %v1431 = vadd.f32 %v1359, %v1415
      %v1432 = vadd.f32 %v1360, %v1417
      %v1433 = vadd.f32 %v1361, %v1420
      %v1434 = vadd.f32 %v1362, %v1422
      %v1435 = vadd.f32 %v1363, %v1425
      %v1436 = vadd.f32 %v1364, %v1427
      %v1438 = vshrl.u32 %v563, 16
      %v1440 = vrot.slane %v1438, 4
      %v1441 = vshll.u32 %v563, 16
      %v1443 = vrot.slane %v1441, 5
      %v1444 = vor.u32 %v1440, %v1443
      %v1445 = vrot.slane %v1444, 4
      %v1447 = vshll.u32 %v564, 16
      %v1449 = vrot.slane %v1447, 5
      %v1450 = vsel %vm740, %v1445, %v1449
      %s1451 = scalar_lea.vmem %s4, 128
      %v1452 = vld [vmem:[%s1451] sm:$0xf]
      %v1453 = vld [vmem:[%s1451 + $0x4] sm:$0xf]
      %v1454 = vld [vmem:[%s1451 + $0x8] sm:$0xf]
      %v1455 = vld [vmem:[%s1451 + $0xc] sm:$0xf]
      %v1456 = vunpack.c.l.b16 %v1450
      %v1457 = vpack.c.b16 %v860, %v859
      %v1458 = vpack.c.b16 %v862, %v861
      %v1459 = vpack.c.b16 %v864, %v863
      %v1460 = vpack.c.b16 %v1456, %v865
      %v1465 = vunpack.c.l.b16 %v1452
      %v1466 = vunpack.c.l.b16 %v1453
      %v1467 = vunpack.c.l.b16 %v1454
      %v1468 = vunpack.c.l.b16 %v1455
      %v1469 = vpack.c.b16 %v1466, %v1465
      %v1470 = vpack.c.b16 %v1468, %v1467
      %v1474 = vsel %vm623, %v1457, 0
      %v1477 = vsel %vm623, %v1458, 0
      %v1480 = vsel %vm623, %v1459, 0
      %v1483 = vsel %vm623, %v1460, 0
      %1485 = vmatpush.bf16.msra.mxu0 0
      %1486 = vmatpush.bf16.msra.mxu0 0
      %1487 = vmatpush.bf16.msra.mxu0 0
      %1488 = vmatpush.bf16.msra.mxu0 0
      %1489 = vmatpush.bf16.msra.mxu0 0
      %1490 = vmatpush.bf16.msra.mxu0 0
      %1491 = vmatpush.bf16.msra.mxu0 %v1470
      %1492 = vmatpush.bf16.msra.mxu0 %v1469
      %1493 = vmatmul.bf16.gmra.mxu0 %v1474
      %v1494 = vpop.f32.mrf.mxu0
      %v1495 = vadd.f32 0.0, %v1494
      %v1496 = vpop.f32.mrf.mxu0
      %v1497 = vadd.f32 0.0, %v1496
      %1498 = vmatmul.bf16.gmra.mxu0 %v1477
      %v1499 = vpop.f32.mrf.mxu0
      %v1500 = vadd.f32 0.0, %v1499
      %v1501 = vpop.f32.mrf.mxu0
      %v1502 = vadd.f32 0.0, %v1501
      %1503 = vmatmul.bf16.gmra.mxu0 %v1480
      %v1504 = vpop.f32.mrf.mxu0
      %v1505 = vadd.f32 0.0, %v1504
      %v1506 = vpop.f32.mrf.mxu0
      %v1507 = vadd.f32 0.0, %v1506
      %1508 = vmatmul.bf16.gmra.mxu0 %v1483
      %v1509 = vpop.f32.mrf.mxu0
      %v1510 = vadd.f32 0.0, %v1509
      %v1511 = vpop.f32.mrf.mxu0
      %v1512 = vadd.f32 0.0, %v1511
      %1513 = vdwg.mxu0
      %v1514 = vadd.f32 %v1429, %v1495
      %v1515 = vadd.f32 %v1430, %v1497
      %v1516 = vadd.f32 %v1431, %v1500
      %v1517 = vadd.f32 %v1432, %v1502
      %v1518 = vadd.f32 %v1433, %v1505
      %v1519 = vadd.f32 %v1434, %v1507
      %v1520 = vadd.f32 %v1435, %v1510
      %v1521 = vadd.f32 %v1436, %v1512
      %v1522 = vmax.f32 %v1514, 0.0
      %v1523 = vmax.f32 %v1515, 0.0
      %v1524 = vmax.f32 %v1516, 0.0
      %v1525 = vmax.f32 %v1517, 0.0
      %v1526 = vmax.f32 %v1518, 0.0
      %v1527 = vmax.f32 %v1519, 0.0
      %v1528 = vmax.f32 %v1520, 0.0
      %v1529 = vmax.f32 %v1521, 0.0
      %v1530 = vpack.c.bf16 %v1523, %v1522
      %v1531 = vpack.c.bf16 %v1525, %v1524
      %v1532 = vpack.c.bf16 %v1527, %v1526
      %v1533 = vpack.c.bf16 %v1529, %v1528
      %v1534 = vld [vmem:[%s5] sm:$0xf]
      %v1535 = vld [vmem:[%s5 + $0x4] sm:$0xf]
      %v1536 = vld [vmem:[%s5 + $0x8] sm:$0xf]
      %v1537 = vld [vmem:[%s5 + $0xc] sm:$0xf]
      %v1542 = vunpack.c.l.b16 %v1534
      %v1543 = vunpack.c.l.b16 %v1535
      %v1544 = vunpack.c.l.b16 %v1536
      %v1545 = vunpack.c.l.b16 %v1537
      %v1546 = vpack.c.b16 %v1543, %v1542
      %v1547 = vpack.c.b16 %v1545, %v1544
      %v1551 = vsel %vm623, %v1530, 0
      %v1554 = vsel %vm623, %v1531, 0
      %v1557 = vsel %vm623, %v1532, 0
      %v1560 = vsel %vm623, %v1533, 0
      %1562 = vmatpush.bf16.msra.mxu0 0
      %1563 = vmatpush.bf16.msra.mxu0 0
      %1564 = vmatpush.bf16.msra.mxu0 0
      %1565 = vmatpush.bf16.msra.mxu0 0
      %1566 = vmatpush.bf16.msra.mxu0 0
      %1567 = vmatpush.bf16.msra.mxu0 0
      %1568 = vmatpush.bf16.msra.mxu0 %v1547
      %1569 = vmatpush.bf16.msra.mxu0 %v1546
      %1570 = vmatmul.bf16.gmra.mxu0 %v1551
      %v1571 = vpop.f32.mrf.mxu0
      %v1572 = vadd.f32 0.0, %v1571
      %v1573 = vpop.f32.mrf.mxu0
      %v1574 = vadd.f32 0.0, %v1573
      %1575 = vmatmul.bf16.gmra.mxu0 %v1554
      %v1576 = vpop.f32.mrf.mxu0
      %v1577 = vadd.f32 0.0, %v1576
      %v1578 = vpop.f32.mrf.mxu0
      %v1579 = vadd.f32 0.0, %v1578
      %1580 = vmatmul.bf16.gmra.mxu0 %v1557
      %v1581 = vpop.f32.mrf.mxu0
      %v1582 = vadd.f32 0.0, %v1581
      %v1583 = vpop.f32.mrf.mxu0
      %v1584 = vadd.f32 0.0, %v1583
      %1585 = vmatmul.bf16.gmra.mxu0 %v1560
      %v1586 = vpop.f32.mrf.mxu0
      %v1587 = vadd.f32 0.0, %v1586
      %v1588 = vpop.f32.mrf.mxu0
      %v1589 = vadd.f32 0.0, %v1588
      %1590 = vdwg.mxu0
      %v1591 = vunpack.c.l.bf16 %v533
      %v1592 = vunpack.c.l.bf16 %v534
      %v1593 = vunpack.c.l.bf16 %v537
      %v1594 = vunpack.c.l.bf16 %v538
      %v1595 = vunpack.c.l.bf16 %v541
      %v1596 = vunpack.c.l.bf16 %v542
      %v1597 = vunpack.c.l.bf16 %v545
      %v1598 = vunpack.c.l.bf16 %v546
      %v1599 = vunpack.c.l.bf16 %v549
      %v1600 = vunpack.c.l.bf16 %v550
      %v1601 = vunpack.c.l.bf16 %v553
      %v1602 = vunpack.c.l.bf16 %v554
      %v1603 = vunpack.c.l.bf16 %v557
      %v1604 = vunpack.c.l.bf16 %v558
      %v1605 = vunpack.c.l.bf16 %v561
      %v1606 = vunpack.c.l.bf16 %v562
      %v1607 = vunpack.c.l.bf16 %v535
      %v1608 = vunpack.c.l.bf16 %v536
      %v1609 = vunpack.c.l.bf16 %v539
      %v1610 = vunpack.c.l.bf16 %v540
      %v1611 = vunpack.c.l.bf16 %v543
      %v1612 = vunpack.c.l.bf16 %v544
      %v1613 = vunpack.c.l.bf16 %v547
      %v1614 = vunpack.c.l.bf16 %v548
      %v1615 = vunpack.c.l.bf16 %v551
      %v1616 = vunpack.c.l.bf16 %v552
      %v1617 = vunpack.c.l.bf16 %v555
      %v1618 = vunpack.c.l.bf16 %v556
      %v1619 = vunpack.c.l.bf16 %v559
      %v1620 = vunpack.c.l.bf16 %v560
      %v1621 = vunpack.c.l.bf16 %v563
      %v1622 = vunpack.c.l.bf16 %v564
      %v1623 = vadd.f32 %v1591, %v1607
      %v1624 = vadd.f32 %v1592, %v1608
      %v1625 = vadd.f32 %v1593, %v1609
      %v1626 = vadd.f32 %v1594, %v1610
      %v1627 = vadd.f32 %v1595, %v1611
      %v1628 = vadd.f32 %v1596, %v1612
      %v1629 = vadd.f32 %v1597, %v1613
      %v1630 = vadd.f32 %v1598, %v1614
      %v1631 = vadd.f32 %v1599, %v1615
      %v1632 = vadd.f32 %v1600, %v1616
      %v1633 = vadd.f32 %v1601, %v1617
      %v1634 = vadd.f32 %v1602, %v1618
      %v1635 = vadd.f32 %v1603, %v1619
      %v1636 = vadd.f32 %v1604, %v1620
      %v1637 = vadd.f32 %v1605, %v1621
      %v1638 = vadd.f32 %v1606, %v1622
      %v1639 = vunpack.c.l.bf16 %v566
      %v1640 = vunpack.c.l.bf16 %v568
      %v1641 = vunpack.c.l.bf16 %v570
      %v1642 = vunpack.c.l.bf16 %v572
      %v1643 = vunpack.c.l.bf16 %v574
      %v1644 = vunpack.c.l.bf16 %v576
      %v1645 = vunpack.c.l.bf16 %v578
      %v1646 = vunpack.c.l.bf16 %v580
      %v1655 = vrot.slane %v1639, 7
      %v1656 = vrot.slane %v1640, 7
      %v1657 = vrot.slane %v1641, 7
      %v1658 = vrot.slane %v1642, 7
      %v1659 = vrot.slane %v1643, 7
      %v1660 = vrot.slane %v1644, 7
      %v1661 = vrot.slane %v1645, 7
      %v1662 = vrot.slane %v1646, 7
      %v1671 = vadd.f32 %v1623, %v1655
      %v1672 = vadd.f32 %v1624, %v1655
      %v1673 = vadd.f32 %v1625, %v1656
      %v1674 = vadd.f32 %v1626, %v1656
      %v1675 = vadd.f32 %v1627, %v1657
      %v1676 = vadd.f32 %v1628, %v1657
      %v1677 = vadd.f32 %v1629, %v1658
      %v1678 = vadd.f32 %v1630, %v1658
      %v1679 = vadd.f32 %v1631, %v1659
      %v1680 = vadd.f32 %v1632, %v1659
      %v1681 = vadd.f32 %v1633, %v1660
      %v1682 = vadd.f32 %v1634, %v1660
      %v1683 = vadd.f32 %v1635, %v1661
      %v1684 = vadd.f32 %v1636, %v1661
      %v1685 = vadd.f32 %v1637, %v1662
      %v1686 = vadd.f32 %v1638, %v1662
      %v1687 = vunpack.c.l.bf16 %v567
      %v1688 = vunpack.c.l.bf16 %v569
      %v1689 = vunpack.c.l.bf16 %v571
      %v1690 = vunpack.c.l.bf16 %v573
      %v1691 = vunpack.c.l.bf16 %v575
      %v1692 = vunpack.c.l.bf16 %v577
      %v1693 = vunpack.c.l.bf16 %v579
      %v1694 = vunpack.c.l.bf16 %v581
      %v1703 = vrot.slane %v1687, 7
      %v1704 = vrot.slane %v1688, 7
      %v1705 = vrot.slane %v1689, 7
      %v1706 = vrot.slane %v1690, 7
      %v1707 = vrot.slane %v1691, 7
      %v1708 = vrot.slane %v1692, 7
      %v1709 = vrot.slane %v1693, 7
      %v1710 = vrot.slane %v1694, 7
      %v1719 = vadd.f32 %v1671, %v1703
      %v1720 = vadd.f32 %v1672, %v1703
      %v1721 = vadd.f32 %v1673, %v1704
      %v1722 = vadd.f32 %v1674, %v1704
      %v1723 = vadd.f32 %v1675, %v1705
      %v1724 = vadd.f32 %v1676, %v1705
      %v1725 = vadd.f32 %v1677, %v1706
      %v1726 = vadd.f32 %v1678, %v1706
      %v1727 = vadd.f32 %v1679, %v1707
      %v1728 = vadd.f32 %v1680, %v1707
      %v1729 = vadd.f32 %v1681, %v1708
      %v1730 = vadd.f32 %v1682, %v1708
      %v1731 = vadd.f32 %v1683, %v1709
      %v1732 = vadd.f32 %v1684, %v1709
      %v1733 = vadd.f32 %v1685, %v1710
      %v1734 = vadd.f32 %v1686, %v1710
      %v1735 = vmul.f32 %v1719, 0.25
      %v1736 = vmul.f32 %v1720, 0.25
      %v1737 = vmul.f32 %v1721, 0.25
      %v1738 = vmul.f32 %v1722, 0.25
      %v1739 = vmul.f32 %v1723, 0.25
      %v1740 = vmul.f32 %v1724, 0.25
      %v1741 = vmul.f32 %v1725, 0.25
      %v1742 = vmul.f32 %v1726, 0.25
      %v1743 = vmul.f32 %v1727, 0.25
      %v1744 = vmul.f32 %v1728, 0.25
      %v1745 = vmul.f32 %v1729, 0.25
      %v1746 = vmul.f32 %v1730, 0.25
      %v1747 = vmul.f32 %v1731, 0.25
      %v1748 = vmul.f32 %v1732, 0.25
      %v1749 = vmul.f32 %v1733, 0.25
      %v1750 = vmul.f32 %v1734, 0.25
      %vm1767 = vcmask 1046528
      %v1768 = vrot.slane %v1735, 1
      %v1769 = vrot.slane %v1736, 1
      %v1770 = vsel %vm1767, %v1768, %v1769
      %v1771 = vrot.slane %v1737, 1
      %v1772 = vrot.slane %v1738, 1
      %v1773 = vsel %vm1767, %v1771, %v1772
      %v1774 = vrot.slane %v1739, 1
      %v1775 = vrot.slane %v1740, 1
      %v1776 = vsel %vm1767, %v1774, %v1775
      %v1777 = vrot.slane %v1741, 1
      %v1778 = vrot.slane %v1742, 1
      %v1779 = vsel %vm1767, %v1777, %v1778
      %v1780 = vrot.slane %v1743, 1
      %v1781 = vrot.slane %v1744, 1
      %v1782 = vsel %vm1767, %v1780, %v1781
      %v1783 = vrot.slane %v1745, 1
      %v1784 = vrot.slane %v1746, 1
      %v1785 = vsel %vm1767, %v1783, %v1784
      %v1786 = vrot.slane %v1747, 1
      %v1787 = vrot.slane %v1748, 1
      %v1788 = vsel %vm1767, %v1786, %v1787
      %v1789 = vrot.slane %v1749, 1
      %v1790 = vrot.slane %v1750, 1
      %v1791 = vsel %vm1767, %v1789, %v1790
      %v1800 = vadd.f32 %v1770, %v1572
      %v1801 = vadd.f32 %v1773, %v1574
      %v1802 = vadd.f32 %v1776, %v1577
      %v1803 = vadd.f32 %v1779, %v1579
      %v1804 = vadd.f32 %v1782, %v1582
      %v1805 = vadd.f32 %v1785, %v1584
      %v1806 = vadd.f32 %v1788, %v1587
      %v1807 = vadd.f32 %v1791, %v1589
      %v1808 = vpack.c.bf16 %v1572, %v1572
      %v1809 = vpack.c.bf16 %v1574, %v1574
      %v1810 = vpack.c.bf16 %v1577, %v1577
      %v1811 = vpack.c.bf16 %v1579, %v1579
      %v1812 = vpack.c.bf16 %v1582, %v1582
      %v1813 = vpack.c.bf16 %v1584, %v1584
      %v1814 = vpack.c.bf16 %v1587, %v1587
      %v1815 = vpack.c.bf16 %v1589, %v1589
      %vm1816 = vcmask 257024
      %1817 = vst.msk [vmem:[%s518] sm:$0xf] %vm1816, %v1808
      %1818 = vst.msk [vmem:[%s518 + $0x4] sm:$0xf] %vm1816, %v1809
      %1819 = vst.msk [vmem:[%s518 + $0x8] sm:$0xf] %vm1816, %v1810
      %1820 = vst.msk [vmem:[%s518 + $0xc] sm:$0xf] %vm1816, %v1811
      %1821 = vst.msk [vmem:[%s518 + $0x10] sm:$0xf] %vm1816, %v1812
      %1822 = vst.msk [vmem:[%s518 + $0x14] sm:$0xf] %vm1816, %v1813
      %1823 = vst.msk [vmem:[%s518 + $0x18] sm:$0xf] %vm1816, %v1814
      %1824 = vst.msk [vmem:[%s518 + $0x1c] sm:$0xf] %vm1816, %v1815
      %v1825 = vpack.c.bf16 %v1800, %v1800
      %v1826 = vpack.c.bf16 %v1801, %v1801
      %v1827 = vpack.c.bf16 %v1802, %v1802
      %v1828 = vpack.c.bf16 %v1803, %v1803
      %v1829 = vpack.c.bf16 %v1804, %v1804
      %v1830 = vpack.c.bf16 %v1805, %v1805
      %v1831 = vpack.c.bf16 %v1806, %v1806
      %v1832 = vpack.c.bf16 %v1807, %v1807
      %1833 = vst.msk [vmem:[%s528] sm:$0xf] %vm1816, %v1825
      %1834 = vst.msk [vmem:[%s528 + $0x4] sm:$0xf] %vm1816, %v1826
      %1835 = vst.msk [vmem:[%s528 + $0x8] sm:$0xf] %vm1816, %v1827
      %1836 = vst.msk [vmem:[%s528 + $0xc] sm:$0xf] %vm1816, %v1828
      %1837 = vst.msk [vmem:[%s528 + $0x10] sm:$0xf] %vm1816, %v1829
      %1838 = vst.msk [vmem:[%s528 + $0x14] sm:$0xf] %vm1816, %v1830
      %1839 = vst.msk [vmem:[%s528 + $0x18] sm:$0xf] %vm1816, %v1831
      %1840 = vst.msk [vmem:[%s528 + $0x1c] sm:$0xf] %vm1816, %v1832
      %s1841 = smul.u32 8, %s24
      %p1842 = scmp.lt.s32.totalorder %s23, 1
      %s1843 = scalar_select %p1842, %s23, 1
      %p1844 = scmp.lt.s32.totalorder %s1841, 7
      %s1845 = scalar_select %p1844, %s1841, 7
      %s1846 = smul.addr %s1843, 8
      %s1847 = sadd.s32 %s1845, %s1846
      %s1848 = smul.addr %s1847, 4
      %s1849 = scalar_lea.vmem %s6, %s1848
      %s1850 = smul.u32 8, %s24
      %p1851 = scmp.lt.s32.totalorder %s23, 1
      %s1852 = scalar_select %p1851, %s23, 1
      %p1853 = scmp.lt.s32.totalorder %s1850, 7
      %s1854 = scalar_select %p1853, %s1850, 7
      %s1855 = smul.addr %s1852, 8
      %s1856 = sadd.s32 %s1854, %s1855
      %s1857 = smul.addr %s1856, 4
      %s1858 = scalar_lea.vmem %s7, %s1857
      // Predicated region
      $region45: #{pmaa_conv_block_forward.6} parent=43 // pred_check
        %p1859 = pneg %p213
      $region46: #{pmaa_conv_block_forward.6} parent=43 // pred_check_branch
        %1861 = sbr.rel (%p1859) target = $region48
      $region47: #{pmaa_conv_block_forward.6} parent=43 // pred_region
        %s1862 = smul.u32 8, %s24
      $region48: #{pmaa_conv_block_forward.6} parent=43 // pred_fallthru
        _
      // Predicated region
      $region49: #{pmaa_conv_block_forward.6} parent=43 // pred_check
        %p1863 = pneg %p241
      $region50: #{pmaa_conv_block_forward.6} parent=43 // pred_check_branch
        %1865 = sbr.rel (%p1863) target = $region52
      $region51: #{pmaa_conv_block_forward.6} parent=43 // pred_region
        %s1866 = smul.u32 8, %s24
      $region52: #{pmaa_conv_block_forward.6} parent=43 // pred_fallthru
        _
    $region44: #{pmaa_conv_block_forward.6} parent=5 // pred_fallthru
      _
    %p1867 = scmp.le.s32.totalorder 2, %s14
    // Predicated region
    $region53: #{pmaa_conv_block_forward.6} parent=5 // pred_check
      %p1868 = pneg %p1867
    $region54: #{pmaa_conv_block_forward.6} parent=5 // pred_check_branch
      %1870 = sbr.rel (%p1868) target = $region56
    $region55: #{pmaa_conv_block_forward.6} parent=5 // pred_region
      %s1871 = ssub.s32 %s14, 2
      // Predicated region
      $region57: #{pmaa_conv_block_forward.6} parent=55 // pred_check
        %p1872 = pneg %p219
      $region58: #{pmaa_conv_block_forward.6} parent=55 // pred_check_branch
        %1874 = sbr.rel (%p1872) target = $region60
      $region59: #{pmaa_conv_block_forward.6} parent=55 // pred_region
        %s1875 = smul.u32 8, %s26
        %p1876 = scmp.lt.s32.totalorder %s25, 1
        %s1877 = scalar_select %p1876, %s25, 1
        %p1878 = scmp.lt.s32.totalorder %s1875, 7
        %s1879 = scalar_select %p1878, %s1875, 7
        %s1880 = smul.addr %s1877, 8
        %s1881 = sadd.s32 %s1879, %s1880
        %s1882 = smul.addr %s1881, 4
        %s1883 = scalar_lea.vmem %s6, %s1882
      $region60: #{pmaa_conv_block_forward.6} parent=55 // pred_fallthru
        _
      // Predicated region
      $region61: #{pmaa_conv_block_forward.6} parent=55 // pred_check
        %p1884 = pneg %p247
      $region62: #{pmaa_conv_block_forward.6} parent=55 // pred_check_branch
        %1886 = sbr.rel (%p1884) target = $region64
      $region63: #{pmaa_conv_block_forward.6} parent=55 // pred_region
        %s1887 = smul.u32 8, %s26
        %p1888 = scmp.lt.s32.totalorder %s25, 1
        %s1889 = scalar_select %p1888, %s25, 1
        %p1890 = scmp.lt.s32.totalorder %s1887, 7
        %s1891 = scalar_select %p1890, %s1887, 7
        %s1892 = smul.addr %s1889, 8
        %s1893 = sadd.s32 %s1891, %s1892
        %s1894 = smul.addr %s1893, 4
        %s1895 = scalar_lea.vmem %s7, %s1894
      $region64: #{pmaa_conv_block_forward.6} parent=55 // pred_fallthru
        _
    $region56: #{pmaa_conv_block_forward.6} parent=5 // pred_fallthru
      _
  $region6: #{pmaa_conv_block_forward.6} parent=0 // loop_footer
    %s18 = sadd.s32 1, %s14
  $region7: #{pmaa_conv_block_forward.6} parent=0 // loop_footer_branch
    %13 = sbr.rel target = $region3
  $region8: #{pmaa_conv_block_forward.6} parent=0 // loop_exit
    _

// kernel: pmaa_conv_block_forward.7
$region0: #{pmaa_conv_block_forward.7}
  #allocation0 [shape = 'u32[]', space=smem, size = 0x4, offset = 0x4, fixed_abs, tag = 'smem constant byte address 0x4 - core index']
  #allocation1 [shape = 'u32[72,128]{1,0:T(1,128)}', space=vmem, size = 0x9000, scoped, tag = 'internal scratch']
  %s0 = inlined_call_operand.vmem [shape: bf16[2,10,5,32], index: 0, kind: input, shape index: {}, may-alias: {0,1}]
  %s1 = inlined_call_operand.vmem [shape: bf16[2,10,5,32], index: 1, kind: input, shape index: {}, may-alias: {0,1}]
  %s2 = inlined_call_operand.vmem [shape: bf16[2,10,5,32], index: 2, kind: input, shape index: {}, may-alias: {2,3}]
  %s3 = inlined_call_operand.vmem [shape: bf16[2,10,5,32], index: 3, kind: input, shape index: {}, may-alias: {2,3}]
  %s4 = inlined_call_operand.vmem [shape: bf16[2,8,4,32], index: 4, kind: input, shape index: {}]
  %s5 = inlined_call_operand.vmem [shape: bf16[2,8,4,32], index: 5, kind: input, shape index: {}]
  %s6 = inlined_call_operand.vmem [shape: bf16[9,32,32], index: 6, kind: input, shape index: {}]
  %s7 = inlined_call_operand.vmem [shape: bf16[32,32], index: 7, kind: input, shape index: {}]
  %s8 = inlined_call_operand.vmem [shape: bf16[2,4,4,32], index: 8, kind: output, shape index: {0}]
  %s9 = inlined_call_operand.vmem [shape: bf16[2,4,4,32], index: 9, kind: output, shape index: {1}]
  %10 = xla_tuple %s8, %s9
  %s11 = sld [smem:[#allocation0]]
  $region73: #{pmaa_conv_block_forward.7} parent=0
    _
  %s13 = ssub.s32 1, %s11
  %s14 = scalar_select 0, %s13, %s11
  loop: start=0, step=1, limit=4
  $region2: #{pmaa_conv_block_forward.7} parent=0 // loop_pre_header
    _
  $region3: #{pmaa_conv_block_forward.7} parent=0 // loop_header
    %s16 = sphi 0, %s20
    %p17 = scmp.ge.s32.totalorder %s16, 4
    %s23 = sphi 0, %s35
    %s24 = sphi 0, %s31
    %s25 = sphi 0, %s23
    %s26 = sphi 0, %s24
    %s27 = sphi 0, %s25
    %s28 = sphi 0, %s26
    %s40 = sphi 0, %s42
    %s43 = sphi 0, %s40
    %s44 = sphi 0, %s43
    %s60 = sphi 0, %s44
    %s72 = sphi 0, %s74
    %s75 = sphi 0, %s72
    %s76 = sphi 0, %s75
    %s92 = sphi 0, %s76
    %s100 = sphi 0, %s102
    %s103 = sphi 0, %s100
    %s104 = sphi 0, %s103
    %s120 = sphi 0, %s104
    %s132 = sphi 0, %s134
    %s135 = sphi 0, %s132
    %s136 = sphi 0, %s135
    %s152 = sphi 0, %s136
    %s160 = sphi 0, %s162
    %s163 = sphi 0, %s160
    %s164 = sphi 0, %s163
    %s180 = sphi 0, %s164
    %s188 = sphi 0, %s190
    %s191 = sphi 0, %s188
    %s192 = sphi 0, %s191
    %s208 = sphi 0, %s192
    %s212 = sphi 0, %s212
    %s214 = sphi 0, %s212
    %s215 = sphi 0, %s214
    %s229 = sphi 0, %s215
    %s233 = sphi 0, %s233
    %s235 = sphi 0, %s233
    %s236 = sphi 0, %s235
    %s250 = sphi 0, %s236
    %s258 = sphi 0, %s260
    %s261 = sphi 0, %s258
    %s262 = sphi 0, %s261
    %s278 = sphi 0, %s262
    %s286 = sphi 0, %s288
    %s289 = sphi 0, %s286
    %s290 = sphi 0, %s289
    %s306 = sphi 0, %s290
  $region4: #{pmaa_conv_block_forward.7} parent=0 // loop_header_branch
    %19 = sbr.rel (%p17) target = $region8
  $region5: #{pmaa_conv_block_forward.7} parent=0 // loop_body
    %s21 = ssub.s32 %s16, 1
    %s22 = ssub.s32 %s16, 2
    %s29 = sadd.s32 1, %s24
    %p30 = scmp.ge.s32.totalorder %s29, 1
    %s31 = scalar_select %p30, 0, %s29
    %s32 = sadd.s32 1, %s23
    %s33 = scalar_select %p30, %s32, %s23
    %p34 = scmp.ge.s32.totalorder %s33, 2
    %s35 = scalar_select %p34, 0, %s33
    %s36 = ssub.s32 %s23, %s35
    %s37 = ssub.s32 %s24, %s31
    %s38 = sor.u32 %s36, %s37
    %p39 = scmp.eq.s32.totalorder %s38, 0
    %s41 = sadd.s32 %s40, 1
    %s42 = scalar_select %p39, %s40, %s41
    %p45 = pneg %p39
    %p46 = scmp.eq.s32.totalorder %s16, 1
    %p47 = por %p45, %p46
    %p48 = scmp.ne.s32.totalorder %s40, %s43
    %p49 = scmp.eq.s32.totalorder %s16, 0
    %p50 = por %p48, %p49
    %p51 = scmp.ne.s32.totalorder %s40, %s43
    %p52 = scmp.eq.s32.totalorder %s21, 1
    %p53 = por %p51, %p52
    %p54 = scmp.ne.s32.totalorder %s43, %s44
    %p55 = scmp.eq.s32.totalorder %s21, 0
    %p56 = por %p54, %p55
    %p57 = scmp.ne.s32.totalorder %s43, %s44
    %p58 = scmp.eq.s32.totalorder %s22, 1
    %p59 = por %p57, %p58
    %p61 = scmp.ne.s32.totalorder %s44, %s60
    %p62 = scmp.eq.s32.totalorder %s22, 0
    %p63 = por %p61, %p62
    %s64 = sadd.s32 %s24, 1
    %s65 = smul.u32 %s64, 8
    %s66 = sadd.s32 %s31, 1
    %s67 = smul.u32 %s66, 8
    %s68 = ssub.s32 %s23, %s35
    %s69 = ssub.s32 %s65, %s67
    %s70 = sor.u32 %s68, %s69
    %p71 = scmp.eq.s32.totalorder %s70, 0
    %s73 = sadd.s32 %s72, 1
    %s74 = scalar_select %p71, %s72, %s73
    %p77 = pneg %p71
    %p78 = scmp.eq.s32.totalorder %s16, 1
    %p79 = por %p77, %p78
    %p80 = scmp.ne.s32.totalorder %s72, %s75
    %p81 = scmp.eq.s32.totalorder %s16, 0
    %p82 = por %p80, %p81
    %p83 = scmp.ne.s32.totalorder %s72, %s75
    %p84 = scmp.eq.s32.totalorder %s21, 1
    %p85 = por %p83, %p84
    %p86 = scmp.ne.s32.totalorder %s75, %s76
    %p87 = scmp.eq.s32.totalorder %s21, 0
    %p88 = por %p86, %p87
    %p89 = scmp.ne.s32.totalorder %s75, %s76
    %p90 = scmp.eq.s32.totalorder %s22, 1
    %p91 = por %p89, %p90
    %p93 = scmp.ne.s32.totalorder %s76, %s92
    %p94 = scmp.eq.s32.totalorder %s22, 0
    %p95 = por %p93, %p94
    %s96 = ssub.s32 %s23, %s35
    %s97 = ssub.s32 %s24, %s31
    %s98 = sor.u32 %s96, %s97
    %p99 = scmp.eq.s32.totalorder %s98, 0
    %s101 = sadd.s32 %s100, 1
    %s102 = scalar_select %p99, %s100, %s101
    %p105 = pneg %p99
    %p106 = scmp.eq.s32.totalorder %s16, 1
    %p107 = por %p105, %p106
    %p108 = scmp.ne.s32.totalorder %s100, %s103
    %p109 = scmp.eq.s32.totalorder %s16, 0
    %p110 = por %p108, %p109
    %p111 = scmp.ne.s32.totalorder %s100, %s103
    %p112 = scmp.eq.s32.totalorder %s21, 1
    %p113 = por %p111, %p112
    %p114 = scmp.ne.s32.totalorder %s103, %s104
    %p115 = scmp.eq.s32.totalorder %s21, 0
    %p116 = por %p114, %p115
    %p117 = scmp.ne.s32.totalorder %s103, %s104
    %p118 = scmp.eq.s32.totalorder %s22, 1
    %p119 = por %p117, %p118
    %p121 = scmp.ne.s32.totalorder %s104, %s120
    %p122 = scmp.eq.s32.totalorder %s22, 0
    %p123 = por %p121, %p122
    %s124 = sadd.s32 %s24, 1
    %s125 = smul.u32 %s124, 8
    %s126 = sadd.s32 %s31, 1
    %s127 = smul.u32 %s126, 8
    %s128 = ssub.s32 %s23, %s35
    %s129 = ssub.s32 %s125, %s127
    %s130 = sor.u32 %s128, %s129
    %p131 = scmp.eq.s32.totalorder %s130, 0
    %s133 = sadd.s32 %s132, 1
    %s134 = scalar_select %p131, %s132, %s133
    %p137 = pneg %p131
    %p138 = scmp.eq.s32.totalorder %s16, 1
    %p139 = por %p137, %p138
    %p140 = scmp.ne.s32.totalorder %s132, %s135
    %p141 = scmp.eq.s32.totalorder %s16, 0
    %p142 = por %p140, %p141
    %p143 = scmp.ne.s32.totalorder %s132, %s135
    %p144 = scmp.eq.s32.totalorder %s21, 1
    %p145 = por %p143, %p144
    %p146 = scmp.ne.s32.totalorder %s135, %s136
    %p147 = scmp.eq.s32.totalorder %s21, 0
    %p148 = por %p146, %p147
    %p149 = scmp.ne.s32.totalorder %s135, %s136
    %p150 = scmp.eq.s32.totalorder %s22, 1
    %p151 = por %p149, %p150
    %p153 = scmp.ne.s32.totalorder %s136, %s152
    %p154 = scmp.eq.s32.totalorder %s22, 0
    %p155 = por %p153, %p154
    %s156 = ssub.s32 %s23, %s35
    %s157 = ssub.s32 %s24, %s31
    %s158 = sor.u32 %s156, %s157
    %p159 = scmp.eq.s32.totalorder %s158, 0
    %s161 = sadd.s32 %s160, 1
    %s162 = scalar_select %p159, %s160, %s161
    %p165 = pneg %p159
    %p166 = scmp.eq.s32.totalorder %s16, 1
    %p167 = por %p165, %p166
    %p168 = scmp.ne.s32.totalorder %s160, %s163
    %p169 = scmp.eq.s32.totalorder %s16, 0
    %p170 = por %p168, %p169
    %p171 = scmp.ne.s32.totalorder %s160, %s163
    %p172 = scmp.eq.s32.totalorder %s21, 1
    %p173 = por %p171, %p172
    %p174 = scmp.ne.s32.totalorder %s163, %s164
    %p175 = scmp.eq.s32.totalorder %s21, 0
    %p176 = por %p174, %p175
    %p177 = scmp.ne.s32.totalorder %s163, %s164
    %p178 = scmp.eq.s32.totalorder %s22, 1
    %p179 = por %p177, %p178
    %p181 = scmp.ne.s32.totalorder %s164, %s180
    %p182 = scmp.eq.s32.totalorder %s22, 0
    %p183 = por %p181, %p182
    %s184 = ssub.s32 %s23, %s35
    %s185 = ssub.s32 %s24, %s31
    %s186 = sor.u32 %s184, %s185
    %p187 = scmp.eq.s32.totalorder %s186, 0
    %s189 = sadd.s32 %s188, 1
    %s190 = scalar_select %p187, %s188, %s189
    %p193 = pneg %p187
    %p194 = scmp.eq.s32.totalorder %s16, 1
    %p195 = por %p193, %p194
    %p196 = scmp.ne.s32.totalorder %s188, %s191
    %p197 = scmp.eq.s32.totalorder %s16, 0
    %p198 = por %p196, %p197
    %p199 = scmp.ne.s32.totalorder %s188, %s191
    %p200 = scmp.eq.s32.totalorder %s21, 1
    %p201 = por %p199, %p200
    %p202 = scmp.ne.s32.totalorder %s191, %s192
    %p203 = scmp.eq.s32.totalorder %s21, 0
    %p204 = por %p202, %p203
    %p205 = scmp.ne.s32.totalorder %s191, %s192
    %p206 = scmp.eq.s32.totalorder %s22, 1
    %p207 = por %p205, %p206
    %p209 = scmp.ne.s32.totalorder %s192, %s208
    %p210 = scmp.eq.s32.totalorder %s22, 0
    %p211 = por %p209, %p210
    %s213 = sadd.s32 %s212, 1
    %p216 = scmp.eq.s32.totalorder %s16, 1
    %p217 = scmp.ne.s32.totalorder %s212, %s214
    %p218 = scmp.eq.s32.totalorder %s16, 0
    %p219 = por %p217, %p218
    %p220 = scmp.ne.s32.totalorder %s212, %s214
    %p221 = scmp.eq.s32.totalorder %s21, 1
    %p222 = por %p220, %p221
    %p223 = scmp.ne.s32.totalorder %s214, %s215
    %p224 = scmp.eq.s32.totalorder %s21, 0
    %p225 = por %p223, %p224
    %p226 = scmp.ne.s32.totalorder %s214, %s215
    %p227 = scmp.eq.s32.totalorder %s22, 1
    %p228 = por %p226, %p227
    %p230 = scmp.ne.s32.totalorder %s215, %s229
    %p231 = scmp.eq.s32.totalorder %s22, 0
    %p232 = por %p230, %p231
    %s234 = sadd.s32 %s233, 1
    %p237 = scmp.eq.s32.totalorder %s16, 1
    %p238 = scmp.ne.s32.totalorder %s233, %s235
    %p239 = scmp.eq.s32.totalorder %s16, 0
    %p240 = por %p238, %p239
    %p241 = scmp.ne.s32.totalorder %s233, %s235
    %p242 = scmp.eq.s32.totalorder %s21, 1
    %p243 = por %p241, %p242
    %p244 = scmp.ne.s32.totalorder %s235, %s236
    %p245 = scmp.eq.s32.totalorder %s21, 0
    %p246 = por %p244, %p245
    %p247 = scmp.ne.s32.totalorder %s235, %s236
    %p248 = scmp.eq.s32.totalorder %s22, 1
    %p249 = por %p247, %p248
    %p251 = scmp.ne.s32.totalorder %s236, %s250
    %p252 = scmp.eq.s32.totalorder %s22, 0
    %p253 = por %p251, %p252
    %s254 = ssub.s32 %s23, %s35
    %s255 = ssub.s32 %s24, %s31
    %s256 = sor.u32 %s254, %s255
    %p257 = scmp.eq.s32.totalorder %s256, 0
    %s259 = sadd.s32 %s258, 1
    %s260 = scalar_select %p257, %s258, %s259
    %p263 = pneg %p257
    %p264 = scmp.eq.s32.totalorder %s16, 1
    %p265 = por %p263, %p264
    %p266 = scmp.ne.s32.totalorder %s258, %s261
    %p267 = scmp.eq.s32.totalorder %s16, 0
    %p268 = por %p266, %p267
    %p269 = scmp.ne.s32.totalorder %s258, %s261
    %p270 = scmp.eq.s32.totalorder %s21, 1
    %p271 = por %p269, %p270
    %p272 = scmp.ne.s32.totalorder %s261, %s262
    %p273 = scmp.eq.s32.totalorder %s21, 0
    %p274 = por %p272, %p273
    %p275 = scmp.ne.s32.totalorder %s261, %s262
    %p276 = scmp.eq.s32.totalorder %s22, 1
    %p277 = por %p275, %p276
    %p279 = scmp.ne.s32.totalorder %s262, %s278
    %p280 = scmp.eq.s32.totalorder %s22, 0
    %p281 = por %p279, %p280
    %s282 = ssub.s32 %s23, %s35
    %s283 = ssub.s32 %s24, %s31
    %s284 = sor.u32 %s282, %s283
    %p285 = scmp.eq.s32.totalorder %s284, 0
    %s287 = sadd.s32 %s286, 1
    %s288 = scalar_select %p285, %s286, %s287
    %p291 = pneg %p285
    %p292 = scmp.eq.s32.totalorder %s16, 1
    %p293 = por %p291, %p292
    %p294 = scmp.ne.s32.totalorder %s286, %s289
    %p295 = scmp.eq.s32.totalorder %s16, 0
    %p296 = por %p294, %p295
    %p297 = scmp.ne.s32.totalorder %s286, %s289
    %p298 = scmp.eq.s32.totalorder %s21, 1
    %p299 = por %p297, %p298
    %p300 = scmp.ne.s32.totalorder %s289, %s290
    %p301 = scmp.eq.s32.totalorder %s21, 0
    %p302 = por %p300, %p301
    %p303 = scmp.ne.s32.totalorder %s289, %s290
    %p304 = scmp.eq.s32.totalorder %s22, 1
    %p305 = por %p303, %p304
    %p307 = scmp.ne.s32.totalorder %s290, %s306
    %p308 = scmp.eq.s32.totalorder %s22, 0
    %p309 = por %p307, %p308
    %p310 = scmp.le.s32.totalorder 1, %s16
    %p311 = scmp.lt.s32.totalorder %s16, 3
    %p312 = pnand %p310, %p311
    %p313 = pneg %p312
    // Predicated region
    $region9: #{pmaa_conv_block_forward.7} parent=5 // pred_check
      _
    $region10: #{pmaa_conv_block_forward.7} parent=5 // pred_check_branch
      %315 = sbr.rel (%p312) target = $region12
    $region11: #{pmaa_conv_block_forward.7} parent=5 // pred_region
      %s316 = ssub.s32 %s16, 1
      // Predicated region
      $region13: #{pmaa_conv_block_forward.7} parent=11 // pred_check
        %p317 = pneg %p225
      $region14: #{pmaa_conv_block_forward.7} parent=11 // pred_check_branch
        %319 = sbr.rel (%p317) target = $region16
      $region15: #{pmaa_conv_block_forward.7} parent=11 // pred_region
        _
      $region16: #{pmaa_conv_block_forward.7} parent=11 // pred_fallthru
        _
      // Predicated region
      $region17: #{pmaa_conv_block_forward.7} parent=11 // pred_check
        %p320 = pneg %p246
      $region18: #{pmaa_conv_block_forward.7} parent=11 // pred_check_branch
        %322 = sbr.rel (%p320) target = $region20
      $region19: #{pmaa_conv_block_forward.7} parent=11 // pred_region
        _
      $region20: #{pmaa_conv_block_forward.7} parent=11 // pred_fallthru
        _
    $region12: #{pmaa_conv_block_forward.7} parent=5 // pred_fallthru
      _
    %p323 = scmp.lt.s32.totalorder %s16, 2
    // Predicated region
    $region21: #{pmaa_conv_block_forward.7} parent=5 // pred_check
      %p324 = pneg %p323
    $region22: #{pmaa_conv_block_forward.7} parent=5 // pred_check_branch
      %326 = sbr.rel (%p324) target = $region24
    $region23: #{pmaa_conv_block_forward.7} parent=5 // pred_region
      // Predicated region
      $region25: #{pmaa_conv_block_forward.7} parent=23 // pred_check
        %p327 = pneg %p50
      $region26: #{pmaa_conv_block_forward.7} parent=23 // pred_check_branch
        %329 = sbr.rel (%p327) target = $region28
      $region27: #{pmaa_conv_block_forward.7} parent=23 // pred_region
        %s330 = smul.u32 8, %s24
        %s331 = ssub.s32 10, %s330
        %p332 = scmp.lt.s32.totalorder %s331, 8
        %s333 = scalar_select %p332, %s331, 8
        %s334 = smul.u32 4, %s333
        %p335 = scmp.lt.s32.totalorder %s23, 1
        %s336 = scalar_select %p335, %s23, 1
        %p337 = scmp.lt.s32.totalorder %s330, 9
        %s338 = scalar_select %p337, %s330, 9
        %s339 = smul.addr %s336, 10
        %s340 = sadd.s32 %s338, %s339
        %s341 = smul.addr %s340, 4
        %s342 = scalar_lea.vmem %s0, %s341
        %s343 = smul.u32 8, %s24
        %s344 = ssub.s32 10, %s343
        %p345 = scmp.lt.s32.totalorder %s344, 8
        %s346 = scalar_select %p345, %s344, 8
        %s347 = smul.u32 4, %s346
      $region28: #{pmaa_conv_block_forward.7} parent=23 // pred_fallthru
        _
      // Predicated region
      $region29: #{pmaa_conv_block_forward.7} parent=23 // pred_check
        %p348 = pneg %p82
      $region30: #{pmaa_conv_block_forward.7} parent=23 // pred_check_branch
        %350 = sbr.rel (%p348) target = $region32
      $region31: #{pmaa_conv_block_forward.7} parent=23 // pred_region
        %s351 = sadd.s32 %s24, 1
        %s352 = smul.u32 %s351, 8
        %p353 = scmp.lt.s32.totalorder %s23, 1
        %s354 = scalar_select %p353, %s23, 1
        %p355 = scmp.lt.s32.totalorder %s352, 9
        %s356 = scalar_select %p355, %s352, 9
        %s357 = smul.addr %s354, 10
        %s358 = sadd.s32 %s356, %s357
        %s359 = smul.addr %s358, 4
        %s360 = scalar_lea.vmem %s1, %s359
        %s361 = sadd.s32 %s24, 1
        %s362 = smul.u32 %s361, 8
      $region32: #{pmaa_conv_block_forward.7} parent=23 // pred_fallthru
        _
      // Predicated region
      $region33: #{pmaa_conv_block_forward.7} parent=23 // pred_check
        %p363 = pneg %p110
      $region34: #{pmaa_conv_block_forward.7} parent=23 // pred_check_branch
        %365 = sbr.rel (%p363) target = $region36
      $region35: #{pmaa_conv_block_forward.7} parent=23 // pred_region
        %s366 = smul.u32 8, %s24
        %s367 = ssub.s32 10, %s366
        %p368 = scmp.lt.s32.totalorder %s367, 8
        %s369 = scalar_select %p368, %s367, 8
        %s370 = smul.u32 4, %s369
        %p371 = scmp.lt.s32.totalorder %s23, 1
        %s372 = scalar_select %p371, %s23, 1
        %p373 = scmp.lt.s32.totalorder %s366, 9
        %s374 = scalar_select %p373, %s366, 9
        %s375 = smul.addr %s372, 10
        %s376 = sadd.s32 %s374, %s375
        %s377 = smul.addr %s376, 4
        %s378 = scalar_lea.vmem %s2, %s377
        %s379 = smul.u32 8, %s24
        %s380 = ssub.s32 10, %s379
        %p381 = scmp.lt.s32.totalorder %s380, 8
        %s382 = scalar_select %p381, %s380, 8
        %s383 = smul.u32 4, %s382
      $region36: #{pmaa_conv_block_forward.7} parent=23 // pred_fallthru
        _
      // Predicated region
      $region37: #{pmaa_conv_block_forward.7} parent=23 // pred_check
        %p384 = pneg %p142
      $region38: #{pmaa_conv_block_forward.7} parent=23 // pred_check_branch
        %386 = sbr.rel (%p384) target = $region40
      $region39: #{pmaa_conv_block_forward.7} parent=23 // pred_region
        %s387 = sadd.s32 %s24, 1
        %s388 = smul.u32 %s387, 8
        %p389 = scmp.lt.s32.totalorder %s23, 1
        %s390 = scalar_select %p389, %s23, 1
        %p391 = scmp.lt.s32.totalorder %s388, 9
        %s392 = scalar_select %p391, %s388, 9
        %s393 = smul.addr %s390, 10
        %s394 = sadd.s32 %s392, %s393
        %s395 = smul.addr %s394, 4
        %s396 = scalar_lea.vmem %s3, %s395
        %s397 = sadd.s32 %s24, 1
        %s398 = smul.u32 %s397, 8
      $region40: #{pmaa_conv_block_forward.7} parent=23 // pred_fallthru
        _
      // Predicated region
      $region41: #{pmaa_conv_block_forward.7} parent=23 // pred_check
        %p399 = pneg %p170
      $region42: #{pmaa_conv_block_forward.7} parent=23 // pred_check_branch
        %401 = sbr.rel (%p399) target = $region44
      $region43: #{pmaa_conv_block_forward.7} parent=23 // pred_region
        %s402 = smul.u32 8, %s24
        %p403 = scmp.lt.s32.totalorder %s23, 1
        %s404 = scalar_select %p403, %s23, 1
        %p405 = scmp.lt.s32.totalorder %s402, 7
        %s406 = scalar_select %p405, %s402, 7
        %s407 = smul.addr %s404, 8
        %s408 = sadd.s32 %s406, %s407
        %s409 = smul.addr %s408, 2
        %s410 = scalar_lea.vmem %s4, %s409
        %s411 = smul.u32 8, %s24
      $region44: #{pmaa_conv_block_forward.7} parent=23 // pred_fallthru
        _
      // Predicated region
      $region45: #{pmaa_conv_block_forward.7} parent=23 // pred_check
        %p412 = pneg %p198
      $region46: #{pmaa_conv_block_forward.7} parent=23 // pred_check_branch
        %414 = sbr.rel (%p412) target = $region48
      $region47: #{pmaa_conv_block_forward.7} parent=23 // pred_region
        %s415 = smul.u32 8, %s24
        %p416 = scmp.lt.s32.totalorder %s23, 1
        %s417 = scalar_select %p416, %s23, 1
        %p418 = scmp.lt.s32.totalorder %s415, 7
        %s419 = scalar_select %p418, %s415, 7
        %s420 = smul.addr %s417, 8
        %s421 = sadd.s32 %s419, %s420
        %s422 = smul.addr %s421, 2
        %s423 = scalar_lea.vmem %s5, %s422
        %s424 = smul.u32 8, %s24
      $region48: #{pmaa_conv_block_forward.7} parent=23 // pred_fallthru
        _
    $region24: #{pmaa_conv_block_forward.7} parent=5 // pred_fallthru
      _
    %p425 = scmp.le.s32.totalorder 1, %s16
    %p426 = scmp.lt.s32.totalorder %s16, 3
    %p427 = pnand %p425, %p426
    %p428 = pneg %p427
    // Predicated region
    $region49: #{pmaa_conv_block_forward.7} parent=5 // pred_check
      _
    $region50: #{pmaa_conv_block_forward.7} parent=5 // pred_check_branch
      %430 = sbr.rel (%p427) target = $region52
    $region51: #{pmaa_conv_block_forward.7} parent=5 // pred_region
      %s431 = ssub.s32 %s16, 1
      %s432 = smul.u32 8, %s26
      %s433 = ssub.s32 10, %s432
      %p434 = scmp.lt.s32.totalorder %s433, 8
      %s435 = scalar_select %p434, %s433, 8
      %s436 = smul.u32 4, %s435
      %p437 = scmp.lt.s32.totalorder %s25, 1
      %s438 = scalar_select %p437, %s25, 1
      %p439 = scmp.lt.s32.totalorder %s432, 9
      %s440 = scalar_select %p439, %s432, 9
      %s441 = smul.addr %s438, 10
      %s442 = sadd.s32 %s440, %s441
      %s443 = smul.addr %s442, 4
      %s444 = scalar_lea.vmem %s0, %s443
      %p445 = pneg %p56
      %p446 = pneg %p53
      %s447 = sadd.s32 %s26, 1
      %s448 = smul.u32 %s447, 8
      %p449 = scmp.lt.s32.totalorder %s25, 1
      %s450 = scalar_select %p449, %s25, 1
      %p451 = scmp.lt.s32.totalorder %s448, 9
      %s452 = scalar_select %p451, %s448, 9
      %s453 = smul.addr %s450, 10
      %s454 = sadd.s32 %s452, %s453
      %s455 = smul.addr %s454, 4
      %s456 = scalar_lea.vmem %s1, %s455
      %p457 = pneg %p88
      %p458 = pneg %p85
      %s459 = smul.u32 8, %s26
      %s460 = ssub.s32 10, %s459
      %p461 = scmp.lt.s32.totalorder %s460, 8
      %s462 = scalar_select %p461, %s460, 8
      %s463 = smul.u32 4, %s462
      %p464 = scmp.lt.s32.totalorder %s25, 1
      %s465 = scalar_select %p464, %s25, 1
      %p466 = scmp.lt.s32.totalorder %s459, 9
      %s467 = scalar_select %p466, %s459, 9
      %s468 = smul.addr %s465, 10
      %s469 = sadd.s32 %s467, %s468
      %s470 = smul.addr %s469, 4
      %s471 = scalar_lea.vmem %s2, %s470
      %p472 = pneg %p116
      %p473 = pneg %p113
      %s474 = sadd.s32 %s26, 1
      %s475 = smul.u32 %s474, 8
      %p476 = scmp.lt.s32.totalorder %s25, 1
      %s477 = scalar_select %p476, %s25, 1
      %p478 = scmp.lt.s32.totalorder %s475, 9
      %s479 = scalar_select %p478, %s475, 9
      %s480 = smul.addr %s477, 10
      %s481 = sadd.s32 %s479, %s480
      %s482 = smul.addr %s481, 4
      %s483 = scalar_lea.vmem %s3, %s482
      %p484 = pneg %p148
      %p485 = pneg %p145
      %s486 = smul.u32 8, %s26
      %p487 = scmp.lt.s32.totalorder %s25, 1
      %s488 = scalar_select %p487, %s25, 1
      %p489 = scmp.lt.s32.totalorder %s486, 7
      %s490 = scalar_select %p489, %s486, 7
      %s491 = smul.addr %s488, 8
      %s492 = sadd.s32 %s490, %s491
      %s493 = smul.addr %s492, 2
      %s494 = scalar_lea.vmem %s4, %s493
      %p495 = pneg %p176
      %p496 = pneg %p173
      %s497 = smul.u32 8, %s26
      %p498 = scmp.lt.s32.totalorder %s25, 1
      %s499 = scalar_select %p498, %s25, 1
      %p500 = scmp.lt.s32.totalorder %s497, 7
      %s501 = scalar_select %p500, %s497, 7
      %s502 = smul.addr %s499, 8
      %s503 = sadd.s32 %s501, %s502
      %s504 = smul.addr %s503, 2
      %s505 = scalar_lea.vmem %s5, %s504
      %p506 = pneg %p204
      %p507 = pneg %p201
      %p508 = pneg %p225
      %p509 = pneg %p222
      %p510 = pneg %p246
      %p511 = pneg %p243
      %p512 = pneg %p274
      %p513 = pneg %p271
      %s514 = smul.u32 4, %s26
      %p515 = scmp.lt.s32.totalorder %s25, 1
      %s516 = scalar_select %p515, %s25, 1
      %p517 = scmp.lt.s32.totalorder %s514, 3
      %s518 = scalar_select %p517, %s514, 3
      %s519 = smul.addr %s516, 4
      %s520 = sadd.s32 %s518, %s519
      %s521 = smul.addr %s520, 2
      %s522 = scalar_lea.vmem %s8, %s521
      %p523 = pneg %p302
      %p524 = pneg %p299
      %s525 = smul.u32 4, %s26
      %p526 = scmp.lt.s32.totalorder %s25, 1
      %s527 = scalar_select %p526, %s25, 1
      %p528 = scmp.lt.s32.totalorder %s525, 3
      %s529 = scalar_select %p528, %s525, 3
      %s530 = smul.addr %s527, 4
      %s531 = sadd.s32 %s529, %s530
      %s532 = smul.addr %s531, 2
      %s533 = scalar_lea.vmem %s9, %s532
      %s534 = smul.u32 8, %s26
      %s535 = ssub.s32 10, %s534
      %p536 = scmp.lt.s32.totalorder %s535, 8
      %s537 = scalar_select %p536, %s535, 8
      %s538 = smul.u32 4, %s537
      %p539 = scmp.lt.s32.totalorder %s25, 1
      %s540 = scalar_select %p539, %s25, 1
      %p541 = scmp.lt.s32.totalorder %s534, 9
      %s542 = scalar_select %p541, %s534, 9
      %s543 = smul.addr %s540, 10
      %s544 = sadd.s32 %s542, %s543
      %s545 = smul.addr %s544, 4
      %s546 = scalar_lea.vmem %s0, %s545
      %s547 = smul.u32 8, %s26
      %s548 = ssub.s32 10, %s547
      %p549 = scmp.lt.s32.totalorder %s548, 8
      %s550 = scalar_select %p549, %s548, 8
      %s551 = smul.u32 4, %s550
      %s552 = sadd.s32 %s26, 1
      %s553 = smul.u32 %s552, 8
      %p554 = scmp.lt.s32.totalorder %s25, 1
      %s555 = scalar_select %p554, %s25, 1
      %p556 = scmp.lt.s32.totalorder %s553, 9
      %s557 = scalar_select %p556, %s553, 9
      %s558 = smul.addr %s555, 10
      %s559 = sadd.s32 %s557, %s558
      %s560 = smul.addr %s559, 4
      %s561 = scalar_lea.vmem %s1, %s560
      %s562 = sadd.s32 %s26, 1
      %s563 = smul.u32 %s562, 8
      %s564 = smul.u32 8, %s26
      %s565 = ssub.s32 10, %s564
      %p566 = scmp.lt.s32.totalorder %s565, 8
      %s567 = scalar_select %p566, %s565, 8
      %s568 = smul.u32 4, %s567
      %p569 = scmp.lt.s32.totalorder %s25, 1
      %s570 = scalar_select %p569, %s25, 1
      %p571 = scmp.lt.s32.totalorder %s564, 9
      %s572 = scalar_select %p571, %s564, 9
      %s573 = smul.addr %s570, 10
      %s574 = sadd.s32 %s572, %s573
      %s575 = smul.addr %s574, 4
      %s576 = scalar_lea.vmem %s2, %s575
      %s577 = smul.u32 8, %s26
      %s578 = ssub.s32 10, %s577
      %p579 = scmp.lt.s32.totalorder %s578, 8
      %s580 = scalar_select %p579, %s578, 8
      %s581 = smul.u32 4, %s580
      %s582 = sadd.s32 %s26, 1
      %s583 = smul.u32 %s582, 8
      %p584 = scmp.lt.s32.totalorder %s25, 1
      %s585 = scalar_select %p584, %s25, 1
      %p586 = scmp.lt.s32.totalorder %s583, 9
      %s587 = scalar_select %p586, %s583, 9
      %s588 = smul.addr %s585, 10
      %s589 = sadd.s32 %s587, %s588
      %s590 = smul.addr %s589, 4
      %s591 = scalar_lea.vmem %s3, %s590
      %s592 = sadd.s32 %s26, 1
      %s593 = smul.u32 %s592, 8
      %s594 = smul.u32 8, %s26
      %p595 = scmp.lt.s32.totalorder %s25, 1
      %s596 = scalar_select %p595, %s25, 1
      %p597 = scmp.lt.s32.totalorder %s594, 7
      %s598 = scalar_select %p597, %s594, 7
      %s599 = smul.addr %s596, 8
      %s600 = sadd.s32 %s598, %s599
      %s601 = smul.addr %s600, 2
      %s602 = scalar_lea.vmem %s4, %s601
      %s603 = smul.u32 8, %s26
      %s604 = smul.u32 8, %s26
      %p605 = scmp.lt.s32.totalorder %s25, 1
      %s606 = scalar_select %p605, %s25, 1
      %p607 = scmp.lt.s32.totalorder %s604, 7
      %s608 = scalar_select %p607, %s604, 7
      %s609 = smul.addr %s606, 8
      %s610 = sadd.s32 %s608, %s609
      %s611 = smul.addr %s610, 2
      %s612 = scalar_lea.vmem %s5, %s611
      %s613 = smul.u32 8, %s26
      %s614 = smul.u32 4, %s26
      %p615 = scmp.lt.s32.totalorder %s25, 1
      %s616 = scalar_select %p615, %s25, 1
      %p617 = scmp.lt.s32.totalorder %s614, 3
      %s618 = scalar_select %p617, %s614, 3
      %s619 = smul.addr %s616, 4
      %s620 = sadd.s32 %s618, %s619
      %s621 = smul.addr %s620, 2
      %s622 = scalar_lea.vmem %s8, %s621
      %s623 = smul.u32 4, %s26
      %s624 = smul.u32 4, %s26
      %p625 = scmp.lt.s32.totalorder %s25, 1
      %s626 = scalar_select %p625, %s25, 1
      %p627 = scmp.lt.s32.totalorder %s624, 3
      %s628 = scalar_select %p627, %s624, 3
      %s629 = smul.addr %s626, 4
      %s630 = sadd.s32 %s628, %s629
      %s631 = smul.addr %s630, 2
      %s632 = scalar_lea.vmem %s9, %s631
      %s633 = smul.u32 4, %s26
      %v635 = vld [vmem:[%s546] sm:$0x7]
      %v636 = vld [vmem:[%s546 + $0x4] sm:$0x7]
      %v637 = vld [vmem:[%s546 + $0x8] sm:$0x7]
      %v638 = vld [vmem:[%s546 + $0xc] sm:$0x7]
      %v639 = vld [vmem:[%s546 + $0x10] sm:$0x7]
      %v640 = vld [vmem:[%s546 + $0x14] sm:$0x7]
      %v641 = vld [vmem:[%s546 + $0x18] sm:$0x7]
      %v642 = vld [vmem:[%s546 + $0x1c] sm:$0x7]
      %v643 = vld [vmem:[%s561] sm:$0x7]
      %v644 = vld [vmem:[%s576] sm:$0x7]
      %v645 = vld [vmem:[%s576 + $0x4] sm:$0x7]
      %v646 = vld [vmem:[%s576 + $0x8] sm:$0x7]
      %v647 = vld [vmem:[%s576 + $0xc] sm:$0x7]
      %v648 = vld [vmem:[%s576 + $0x10] sm:$0x7]
      %v649 = vld [vmem:[%s576 + $0x14] sm:$0x7]
      %v650 = vld [vmem:[%s576 + $0x18] sm:$0x7]
      %v651 = vld [vmem:[%s576 + $0x1c] sm:$0x7]
      %v652 = vld [vmem:[%s591] sm:$0x7]
      %v653 = vld [vmem:[%s6] sm:$0xf]
      %v654 = vld [vmem:[%s6 + $0x4] sm:$0xf]
      %v655 = vld [vmem:[%s6 + $0x8] sm:$0xf]
      %v656 = vld [vmem:[%s6 + $0xc] sm:$0xf]
      %s657 = scalar_lea.vmem %s6, 16
      %v658 = vld [vmem:[%s657] sm:$0xf]
      %v659 = vld [vmem:[%s657 + $0x4] sm:$0xf]
      %v660 = vld [vmem:[%s657 + $0x8] sm:$0xf]
      %v661 = vld [vmem:[%s657 + $0xc] sm:$0xf]
      %663 = vst [vmem:[#allocation1] ss:$4 sm:$0xff] %v644
      %s665 = scalar_lea.vmem [#allocation1], 1
      %666 = vst [vmem:[%s665] ss:$4 sm:$0xff] %v646
      %s668 = scalar_lea.vmem [#allocation1], 2
      %669 = vst [vmem:[%s668] ss:$4 sm:$0xff] %v648
      %s671 = scalar_lea.vmem [#allocation1], 3
      %672 = vst [vmem:[%s671] ss:$4 sm:$0xff] %v650
      %v673 = vld.sshfl [vmem:[#allocation1] sm:$0xff pattern:$0x73625140]
      %v678 = vunpack.c.l.b16 %v658
      %v679 = vunpack.c.l.b16 %v659
      %v680 = vunpack.c.l.b16 %v660
      %v681 = vunpack.c.l.b16 %v661
      %v682 = vpack.c.b16 %v679, %v678
      %v683 = vpack.c.b16 %v681, %v680
      %vm686 = vcmask 261120
      %v687 = vsel %vm686, %v673, 0
      %689 = vmatpush.bf16.msra.mxu0 0
      %690 = vmatpush.bf16.msra.mxu0 0
      %691 = vmatpush.bf16.msra.mxu0 0
      %692 = vmatpush.bf16.msra.mxu0 0
      %693 = vmatpush.bf16.msra.mxu0 0
      %694 = vmatpush.bf16.msra.mxu0 0
      %695 = vmatpush.bf16.msra.mxu0 %v683
      %696 = vmatpush.bf16.msra.mxu0 %v682
      %697 = vmatmul.bf16.gmra.mxu0 %v687
      %v698 = vpop.f32.mrf.mxu0
      %v699 = vadd.f32 0.0, %v698
      %v700 = vpop.f32.mrf.mxu0
      %v701 = vadd.f32 0.0, %v700
      %702 = vdwg.mxu0
      %704 = vst [vmem:[#allocation1] ss:$4 sm:$0xff] %v635
      %s706 = scalar_lea.vmem [#allocation1], 1
      %707 = vst [vmem:[%s706] ss:$4 sm:$0xff] %v637
      %s709 = scalar_lea.vmem [#allocation1], 2
      %710 = vst [vmem:[%s709] ss:$4 sm:$0xff] %v639
      %s712 = scalar_lea.vmem [#allocation1], 3
      %713 = vst [vmem:[%s712] ss:$4 sm:$0xff] %v641
      %v714 = vld.sshfl [vmem:[#allocation1] sm:$0xff pattern:$0x73625140]
      %v719 = vunpack.c.l.b16 %v653
      %v720 = vunpack.c.l.b16 %v654
      %v721 = vunpack.c.l.b16 %v655
      %v722 = vunpack.c.l.b16 %v656
      %v723 = vpack.c.b16 %v720, %v719
      %v724 = vpack.c.b16 %v722, %v721
      %v727 = vsel %vm686, %v714, 0
      %729 = vmatpush.bf16.msra.mxu0 0
      %730 = vmatpush.bf16.msra.mxu0 0
      %731 = vmatpush.bf16.msra.mxu0 0
      %732 = vmatpush.bf16.msra.mxu0 0
      %733 = vmatpush.bf16.msra.mxu0 0
      %734 = vmatpush.bf16.msra.mxu0 0
      %735 = vmatpush.bf16.msra.mxu0 %v724
      %736 = vmatpush.bf16.msra.mxu0 %v723
      %737 = vmatmul.bf16.gmra.mxu0 %v727
      %v738 = vpop.f32.mrf.mxu0
      %v739 = vadd.f32 %v699, %v738
      %v740 = vpop.f32.mrf.mxu0
      %v741 = vadd.f32 %v701, %v740
      %742 = vdwg.mxu0
      %v747 = vrot.slane %v635, 2
      %v748 = vrot.slane %v637, 2
      %v749 = vrot.slane %v639, 2
      %v750 = vrot.slane %v641, 2
      %vm751 = vcmask 1041408
      %v753 = vsel %vm751, %v635, %v747
      %vm754 = vcmask 1043458
      %v755 = vsel %vm754, %v635, %v747
      %v757 = vrot.slane %v755, 2
      %v759 = vsel %vm751, %v637, %v748
      %v760 = vsel %vm754, %v637, %v748
      %v762 = vrot.slane %v760, 2
      %v764 = vsel %vm751, %v639, %v749
      %v765 = vsel %vm754, %v639, %v749
      %v767 = vrot.slane %v765, 2
      %v769 = vsel %vm751, %v641, %v750
      %v770 = vsel %vm754, %v641, %v750
      %v772 = vrot.slane %v770, 2
      %vm773 = vsmask.f32 1280
      %vm774 = vsmask.f32 3336
      %vm775 = vmor %vm773, %vm774
      %vm776 = vsmask.f32 5392
      %vm777 = vmor %vm775, %vm776
      %vm778 = vsmask.f32 7448
      %vm779 = vmor %vm777, %vm778
      %v780 = vshrl.u32 %v753, 16
      %v782 = vrot.slane %v780, 6
      %v783 = vshll.u32 %v753, 16
      %v785 = vrot.slane %v783, 7
      %v786 = vor.u32 %v782, %v785
      %v787 = vrot.slane %v786, 2
      %v789 = vshll.u32 %v757, 16
      %v791 = vrot.slane %v789, 7
      %v792 = vsel %vm779, %v787, %v791
      %v793 = vshrl.u32 %v759, 16
      %v795 = vrot.slane %v793, 6
      %v796 = vshll.u32 %v759, 16
      %v798 = vrot.slane %v796, 7
      %v799 = vor.u32 %v795, %v798
      %v800 = vrot.slane %v799, 2
      %v802 = vshll.u32 %v762, 16
      %v804 = vrot.slane %v802, 7
      %v805 = vsel %vm779, %v800, %v804
      %v806 = vshrl.u32 %v764, 16
      %v808 = vrot.slane %v806, 6
      %v809 = vshll.u32 %v764, 16
      %v811 = vrot.slane %v809, 7
      %v812 = vor.u32 %v808, %v811
      %v813 = vrot.slane %v812, 2
      %v815 = vshll.u32 %v767, 16
      %v817 = vrot.slane %v815, 7
      %v818 = vsel %vm779, %v813, %v817
      %v819 = vshrl.u32 %v769, 16
      %v821 = vrot.slane %v819, 6
      %v822 = vshll.u32 %v769, 16
      %v824 = vrot.slane %v822, 7
      %v825 = vor.u32 %v821, %v824
      %v826 = vrot.slane %v825, 2
      %v828 = vshll.u32 %v772, 16
      %v830 = vrot.slane %v828, 7
      %v831 = vsel %vm779, %v826, %v830
      %s832 = scalar_lea.vmem %s6, 32
      %v833 = vld [vmem:[%s832] sm:$0xf]
      %v834 = vld [vmem:[%s832 + $0x4] sm:$0xf]
      %v835 = vld [vmem:[%s832 + $0x8] sm:$0xf]
      %v836 = vld [vmem:[%s832 + $0xc] sm:$0xf]
      %838 = vst [vmem:[#allocation1] ss:$4 sm:$0xff] %v792
      %s840 = scalar_lea.vmem [#allocation1], 1
      %841 = vst [vmem:[%s840] ss:$4 sm:$0xff] %v805
      %s843 = scalar_lea.vmem [#allocation1], 2
      %844 = vst [vmem:[%s843] ss:$4 sm:$0xff] %v818
      %s846 = scalar_lea.vmem [#allocation1], 3
      %847 = vst [vmem:[%s846] ss:$4 sm:$0xff] %v831
      %v848 = vld.sshfl [vmem:[#allocation1] sm:$0xff pattern:$0x73625140]
      %v853 = vunpack.c.l.b16 %v833
      %v854 = vunpack.c.l.b16 %v834
      %v855 = vunpack.c.l.b16 %v835
      %v856 = vunpack.c.l.b16 %v836
      %v857 = vpack.c.b16 %v854, %v853
      %v858 = vpack.c.b16 %v856, %v855
      %v861 = vsel %vm686, %v848, 0
      %863 = vmatpush.bf16.msra.mxu0 0
      %864 = vmatpush.bf16.msra.mxu0 0
      %865 = vmatpush.bf16.msra.mxu0 0
      %866 = vmatpush.bf16.msra.mxu0 0
      %867 = vmatpush.bf16.msra.mxu0 0
      %868 = vmatpush.bf16.msra.mxu0 0
      %869 = vmatpush.bf16.msra.mxu0 %v858
      %870 = vmatpush.bf16.msra.mxu0 %v857
      %871 = vmatmul.bf16.gmra.mxu0 %v861
      %v872 = vpop.f32.mrf.mxu0
      %v873 = vadd.f32 0.0, %v872
      %v874 = vpop.f32.mrf.mxu0
      %v875 = vadd.f32 0.0, %v874
      %876 = vdwg.mxu0
      %v877 = vadd.f32 %v739, %v873
      %v878 = vadd.f32 %v741, %v875
      %s879 = scalar_lea.vmem %s6, 48
      %v880 = vld [vmem:[%s879] sm:$0xf]
      %v881 = vld [vmem:[%s879 + $0x4] sm:$0xf]
      %v882 = vld [vmem:[%s879 + $0x8] sm:$0xf]
      %v883 = vld [vmem:[%s879 + $0xc] sm:$0xf]
      %885 = vst [vmem:[#allocation1] ss:$4 sm:$0xff] %v636
      %s887 = scalar_lea.vmem [#allocation1], 1
      %888 = vst [vmem:[%s887] ss:$4 sm:$0xff] %v638
      %s890 = scalar_lea.vmem [#allocation1], 2
      %891 = vst [vmem:[%s890] ss:$4 sm:$0xff] %v640
      %s893 = scalar_lea.vmem [#allocation1], 3
      %894 = vst [vmem:[%s893] ss:$4 sm:$0xff] %v642
      %v895 = vld.sshfl [vmem:[#allocation1] sm:$0xff pattern:$0x73625140]
      %v900 = vunpack.c.l.b16 %v880
      %v901 = vunpack.c.l.b16 %v881
      %v902 = vunpack.c.l.b16 %v882
      %v903 = vunpack.c.l.b16 %v883
      %v904 = vpack.c.b16 %v901, %v900
      %v905 = vpack.c.b16 %v903, %v902
      %v908 = vsel %vm686, %v895, 0
      %910 = vmatpush.bf16.msra.mxu0 0
      %911 = vmatpush.bf16.msra.mxu0 0
      %912 = vmatpush.bf16.msra.mxu0 0
      %913 = vmatpush.bf16.msra.mxu0 0
      %914 = vmatpush.bf16.msra.mxu0 0
      %915 = vmatpush.bf16.msra.mxu0 0
      %916 = vmatpush.bf16.msra.mxu0 %v905
      %917 = vmatpush.bf16.msra.mxu0 %v904
      %918 = vmatmul.bf16.gmra.mxu0 %v908
      %v919 = vpop.f32.mrf.mxu0
      %v920 = vadd.f32 0.0, %v919
      %v921 = vpop.f32.mrf.mxu0
      %v922 = vadd.f32 0.0, %v921
      %923 = vdwg.mxu0
      %v924 = vadd.f32 %v877, %v920
      %v925 = vadd.f32 %v878, %v922
      %s926 = scalar_lea.vmem %s6, 64
      %v927 = vld [vmem:[%s926] sm:$0xf]
      %v928 = vld [vmem:[%s926 + $0x4] sm:$0xf]
      %v929 = vld [vmem:[%s926 + $0x8] sm:$0xf]
      %v930 = vld [vmem:[%s926 + $0xc] sm:$0xf]
      %932 = vst [vmem:[#allocation1] ss:$4 sm:$0xff] %v645
      %s934 = scalar_lea.vmem [#allocation1], 1
      %935 = vst [vmem:[%s934] ss:$4 sm:$0xff] %v647
      %s937 = scalar_lea.vmem [#allocation1], 2
      %938 = vst [vmem:[%s937] ss:$4 sm:$0xff] %v649
      %s940 = scalar_lea.vmem [#allocation1], 3
      %941 = vst [vmem:[%s940] ss:$4 sm:$0xff] %v651
      %v942 = vld.sshfl [vmem:[#allocation1] sm:$0xff pattern:$0x73625140]
      %v947 = vunpack.c.l.b16 %v927
      %v948 = vunpack.c.l.b16 %v928
      %v949 = vunpack.c.l.b16 %v929
      %v950 = vunpack.c.l.b16 %v930
      %v951 = vpack.c.b16 %v948, %v947
      %v952 = vpack.c.b16 %v950, %v949
      %v955 = vsel %vm686, %v942, 0
      %957 = vmatpush.bf16.msra.mxu0 0
      %958 = vmatpush.bf16.msra.mxu0 0
      %959 = vmatpush.bf16.msra.mxu0 0
      %960 = vmatpush.bf16.msra.mxu0 0
      %961 = vmatpush.bf16.msra.mxu0 0
      %962 = vmatpush.bf16.msra.mxu0 0
      %963 = vmatpush.bf16.msra.mxu0 %v952
      %964 = vmatpush.bf16.msra.mxu0 %v951
      %965 = vmatmul.bf16.gmra.mxu0 %v955
      %v966 = vpop.f32.mrf.mxu0
      %v967 = vadd.f32 0.0, %v966
      %v968 = vpop.f32.mrf.mxu0
      %v969 = vadd.f32 0.0, %v968
      %970 = vdwg.mxu0
      %v971 = vadd.f32 %v924, %v967
      %v972 = vadd.f32 %v925, %v969
      %v977 = vrot.slane %v636, 2
      %v978 = vrot.slane %v638, 2
      %v979 = vrot.slane %v640, 2
      %v980 = vrot.slane %v642, 2
      %v982 = vsel %vm751, %v636, %v977
      %v983 = vsel %vm754, %v636, %v977
      %v985 = vrot.slane %v983, 2
      %v987 = vsel %vm751, %v638, %v978
      %v988 = vsel %vm754, %v638, %v978
      %v990 = vrot.slane %v988, 2
      %v992 = vsel %vm751, %v640, %v979
      %v993 = vsel %vm754, %v640, %v979
      %v995 = vrot.slane %v993, 2
      %v997 = vsel %vm751, %v642, %v980
      %v998 = vsel %vm754, %v642, %v980
      %v1000 = vrot.slane %v998, 2
      %v1001 = vshrl.u32 %v982, 16
      %v1003 = vrot.slane %v1001, 6
      %v1004 = vshll.u32 %v982, 16
      %v1006 = vrot.slane %v1004, 7
      %v1007 = vor.u32 %v1003, %v1006
      %v1008 = vrot.slane %v1007, 2
      %v1010 = vshll.u32 %v985, 16
      %v1012 = vrot.slane %v1010, 7
      %v1013 = vsel %vm779, %v1008, %v1012
      %v1014 = vshrl.u32 %v987, 16
      %v1016 = vrot.slane %v1014, 6
      %v1017 = vshll.u32 %v987, 16
      %v1019 = vrot.slane %v1017, 7
      %v1020 = vor.u32 %v1016, %v1019
      %v1021 = vrot.slane %v1020, 2
      %v1023 = vshll.u32 %v990, 16
      %v1025 = vrot.slane %v1023, 7
      %v1026 = vsel %vm779, %v1021, %v1025
      %v1027 = vshrl.u32 %v992, 16
      %v1029 = vrot.slane %v1027, 6
      %v1030 = vshll.u32 %v992, 16
      %v1032 = vrot.slane %v1030, 7
      %v1033 = vor.u32 %v1029, %v1032
      %v1034 = vrot.slane %v1033, 2
      %v1036 = vshll.u32 %v995, 16
      %v1038 = vrot.slane %v1036, 7
      %v1039 = vsel %vm779, %v1034, %v1038
      %v1040 = vshrl.u32 %v997, 16
      %v1042 = vrot.slane %v1040, 6
      %v1043 = vshll.u32 %v997, 16
      %v1045 = vrot.slane %v1043, 7
      %v1046 = vor.u32 %v1042, %v1045
      %v1047 = vrot.slane %v1046, 2
      %v1049 = vshll.u32 %v1000, 16
      %v1051 = vrot.slane %v1049, 7
      %v1052 = vsel %vm779, %v1047, %v1051
      %s1053 = scalar_lea.vmem %s6, 80
      %v1054 = vld [vmem:[%s1053] sm:$0xf]
      %v1055 = vld [vmem:[%s1053 + $0x4] sm:$0xf]
      %v1056 = vld [vmem:[%s1053 + $0x8] sm:$0xf]
      %v1057 = vld [vmem:[%s1053 + $0xc] sm:$0xf]
      %1059 = vst [vmem:[#allocation1] ss:$4 sm:$0xff] %v1013
      %s1061 = scalar_lea.vmem [#allocation1], 1
      %1062 = vst [vmem:[%s1061] ss:$4 sm:$0xff] %v1026
      %s1064 = scalar_lea.vmem [#allocation1], 2
      %1065 = vst [vmem:[%s1064] ss:$4 sm:$0xff] %v1039
      %s1067 = scalar_lea.vmem [#allocation1], 3
      %1068 = vst [vmem:[%s1067] ss:$4 sm:$0xff] %v1052
      %v1069 = vld.sshfl [vmem:[#allocation1] sm:$0xff pattern:$0x73625140]
      %v1074 = vunpack.c.l.b16 %v1054
      %v1075 = vunpack.c.l.b16 %v1055
      %v1076 = vunpack.c.l.b16 %v1056
      %v1077 = vunpack.c.l.b16 %v1057
      %v1078 = vpack.c.b16 %v1075, %v1074
      %v1079 = vpack.c.b16 %v1077, %v1076
      %v1082 = vsel %vm686, %v1069, 0
      %1084 = vmatpush.bf16.msra.mxu0 0
      %1085 = vmatpush.bf16.msra.mxu0 0
      %1086 = vmatpush.bf16.msra.mxu0 0
      %1087 = vmatpush.bf16.msra.mxu0 0
      %1088 = vmatpush.bf16.msra.mxu0 0
      %1089 = vmatpush.bf16.msra.mxu0 0
      %1090 = vmatpush.bf16.msra.mxu0 %v1079
      %1091 = vmatpush.bf16.msra.mxu0 %v1078
      %1092 = vmatmul.bf16.gmra.mxu0 %v1082
      %v1093 = vpop.f32.mrf.mxu0
      %v1094 = vadd.f32 0.0, %v1093
      %v1095 = vpop.f32.mrf.mxu0
      %v1096 = vadd.f32 0.0, %v1095
      %1097 = vdwg.mxu0
      %v1098 = vadd.f32 %v971, %v1094
      %v1099 = vadd.f32 %v972, %v1096
      %s1100 = scalar_lea.vmem %s6, 96
      %v1101 = vld [vmem:[%s1100] sm:$0xf]
      %v1102 = vld [vmem:[%s1100 + $0x4] sm:$0xf]
      %v1103 = vld [vmem:[%s1100 + $0x8] sm:$0xf]
      %v1104 = vld [vmem:[%s1100 + $0xc] sm:$0xf]
      %1105 = vst [vmem:[#allocation1] ss:$4 sm:$0xff] %v637
      %s1106 = scalar_lea.vmem [#allocation1], 1
      %1107 = vst [vmem:[%s1106] ss:$4 sm:$0xff] %v639
      %s1108 = scalar_lea.vmem [#allocation1], 2
      %1109 = vst [vmem:[%s1108] ss:$4 sm:$0xff] %v641
      %s1111 = scalar_lea.vmem [#allocation1], 3
      %1112 = vst [vmem:[%s1111] ss:$4 sm:$0xff] %v643
      %v1113 = vld.sshfl [vmem:[#allocation1] sm:$0xff pattern:$0x73625140]
      %v1118 = vunpack.c.l.b16 %v1101
      %v1119 = vunpack.c.l.b16 %v1102
      %v1120 = vunpack.c.l.b16 %v1103
      %v1121 = vunpack.c.l.b16 %v1104
      %v1122 = vpack.c.b16 %v1119, %v1118
      %v1123 = vpack.c.b16 %v1121, %v1120
      %v1126 = vsel %vm686, %v1113, 0
      %1128 = vmatpush.bf16.msra.mxu0 0
      %1129 = vmatpush.bf16.msra.mxu0 0
      %1130 = vmatpush.bf16.msra.mxu0 0
      %1131 = vmatpush.bf16.msra.mxu0 0
      %1132 = vmatpush.bf16.msra.mxu0 0
      %1133 = vmatpush.bf16.msra.mxu0 0
      %1134 = vmatpush.bf16.msra.mxu0 %v1123
      %1135 = vmatpush.bf16.msra.mxu0 %v1122
      %1136 = vmatmul.bf16.gmra.mxu0 %v1126
      %v1137 = vpop.f32.mrf.mxu0
      %v1138 = vadd.f32 0.0, %v1137
      %v1139 = vpop.f32.mrf.mxu0
      %v1140 = vadd.f32 0.0, %v1139
      %1141 = vdwg.mxu0
      %v1142 = vadd.f32 %v1098, %v1138
      %v1143 = vadd.f32 %v1099, %v1140
      %s1144 = scalar_lea.vmem %s6, 112
      %v1145 = vld [vmem:[%s1144] sm:$0xf]
      %v1146 = vld [vmem:[%s1144 + $0x4] sm:$0xf]
      %v1147 = vld [vmem:[%s1144 + $0x8] sm:$0xf]
      %v1148 = vld [vmem:[%s1144 + $0xc] sm:$0xf]
      %1149 = vst [vmem:[#allocation1] ss:$4 sm:$0xff] %v646
      %s1150 = scalar_lea.vmem [#allocation1], 1
      %1151 = vst [vmem:[%s1150] ss:$4 sm:$0xff] %v648
      %s1152 = scalar_lea.vmem [#allocation1], 2
      %1153 = vst [vmem:[%s1152] ss:$4 sm:$0xff] %v650
      %s1155 = scalar_lea.vmem [#allocation1], 3
      %1156 = vst [vmem:[%s1155] ss:$4 sm:$0xff] %v652
      %v1157 = vld.sshfl [vmem:[#allocation1] sm:$0xff pattern:$0x73625140]
      %v1162 = vunpack.c.l.b16 %v1145
      %v1163 = vunpack.c.l.b16 %v1146
      %v1164 = vunpack.c.l.b16 %v1147
      %v1165 = vunpack.c.l.b16 %v1148
      %v1166 = vpack.c.b16 %v1163, %v1162
      %v1167 = vpack.c.b16 %v1165, %v1164
      %v1170 = vsel %vm686, %v1157, 0
      %1172 = vmatpush.bf16.msra.mxu0 0
      %1173 = vmatpush.bf16.msra.mxu0 0
      %1174 = vmatpush.bf16.msra.mxu0 0
      %1175 = vmatpush.bf16.msra.mxu0 0
      %1176 = vmatpush.bf16.msra.mxu0 0
      %1177 = vmatpush.bf16.msra.mxu0 0
      %1178 = vmatpush.bf16.msra.mxu0 %v1167
      %1179 = vmatpush.bf16.msra.mxu0 %v1166
      %1180 = vmatmul.bf16.gmra.mxu0 %v1170
      %v1181 = vpop.f32.mrf.mxu0
      %v1182 = vadd.f32 0.0, %v1181
      %v1183 = vpop.f32.mrf.mxu0
      %v1184 = vadd.f32 0.0, %v1183
      %1185 = vdwg.mxu0
      %v1186 = vadd.f32 %v1142, %v1182
      %v1187 = vadd.f32 %v1143, %v1184
      %v1189 = vrot.slane %v643, 2
      %v1191 = vsel %vm751, %v643, %v1189
      %v1192 = vsel %vm754, %v643, %v1189
      %v1194 = vrot.slane %v1192, 2
      %v1195 = vshrl.u32 %v1191, 16
      %v1197 = vrot.slane %v1195, 6
      %v1198 = vshll.u32 %v1191, 16
      %v1200 = vrot.slane %v1198, 7
      %v1201 = vor.u32 %v1197, %v1200
      %v1202 = vrot.slane %v1201, 2
      %v1204 = vshll.u32 %v1194, 16
      %v1206 = vrot.slane %v1204, 7
      %v1207 = vsel %vm779, %v1202, %v1206
      %s1208 = scalar_lea.vmem %s6, 128
      %v1209 = vld [vmem:[%s1208] sm:$0xf]
      %v1210 = vld [vmem:[%s1208 + $0x4] sm:$0xf]
      %v1211 = vld [vmem:[%s1208 + $0x8] sm:$0xf]
      %v1212 = vld [vmem:[%s1208 + $0xc] sm:$0xf]
      %1213 = vst [vmem:[#allocation1] ss:$4 sm:$0xff] %v805
      %s1214 = scalar_lea.vmem [#allocation1], 1
      %1215 = vst [vmem:[%s1214] ss:$4 sm:$0xff] %v818
      %s1216 = scalar_lea.vmem [#allocation1], 2
      %1217 = vst [vmem:[%s1216] ss:$4 sm:$0xff] %v831
      %s1219 = scalar_lea.vmem [#allocation1], 3
      %1220 = vst [vmem:[%s1219] ss:$4 sm:$0xff] %v1207
      %v1221 = vld.sshfl [vmem:[#allocation1] sm:$0xff pattern:$0x73625140]
      %v1226 = vunpack.c.l.b16 %v1209
      %v1227 = vunpack.c.l.b16 %v1210
      %v1228 = vunpack.c.l.b16 %v1211
      %v1229 = vunpack.c.l.b16 %v1212
      %v1230 = vpack.c.b16 %v1227, %v1226
      %v1231 = vpack.c.b16 %v1229, %v1228
      %v1234 = vsel %vm686, %v1221, 0
      %1236 = vmatpush.bf16.msra.mxu0 0
      %1237 = vmatpush.bf16.msra.mxu0 0
      %1238 = vmatpush.bf16.msra.mxu0 0
      %1239 = vmatpush.bf16.msra.mxu0 0
      %1240 = vmatpush.bf16.msra.mxu0 0
      %1241 = vmatpush.bf16.msra.mxu0 0
      %1242 = vmatpush.bf16.msra.mxu0 %v1231
      %1243 = vmatpush.bf16.msra.mxu0 %v1230
      %1244 = vmatmul.bf16.gmra.mxu0 %v1234
      %v1245 = vpop.f32.mrf.mxu0
      %v1246 = vadd.f32 0.0, %v1245
      %v1247 = vpop.f32.mrf.mxu0
      %v1248 = vadd.f32 0.0, %v1247
      %1249 = vdwg.mxu0
      %v1250 = vadd.f32 %v1186, %v1246
      %v1251 = vadd.f32 %v1187, %v1248
      %v1252 = vmax.f32 %v1250, 0.0
      %v1253 = vmax.f32 %v1251, 0.0
      %v1254 = vpack.c.bf16 %v1253, %v1252
      %v1255 = vld [vmem:[%s7] sm:$0xf]
      %v1256 = vld [vmem:[%s7 + $0x4] sm:$0xf]
      %v1257 = vld [vmem:[%s7 + $0x8] sm:$0xf]
      %v1258 = vld [vmem:[%s7 + $0xc] sm:$0xf]
      %v1263 = vunpack.c.l.b16 %v1255
      %v1264 = vunpack.c.l.b16 %v1256
      %v1265 = vunpack.c.l.b16 %v1257
      %v1266 = vunpack.c.l.b16 %v1258
      %v1267 = vpack.c.b16 %v1264, %v1263
      %v1268 = vpack.c.b16 %v1266, %v1265
      %v1272 = vsel %vm686, %v1254, 0
      %1274 = vmatpush.bf16.msra.mxu0 0
      %1275 = vmatpush.bf16.msra.mxu0 0
      %1276 = vmatpush.bf16.msra.mxu0 0
      %1277 = vmatpush.bf16.msra.mxu0 0
      %1278 = vmatpush.bf16.msra.mxu0 0
      %1279 = vmatpush.bf16.msra.mxu0 0
      %1280 = vmatpush.bf16.msra.mxu0 %v1268
      %1281 = vmatpush.bf16.msra.mxu0 %v1267
      %1282 = vmatmul.bf16.gmra.mxu0 %v1272
      %v1283 = vpop.f32.mrf.mxu0
      %v1284 = vadd.f32 0.0, %v1283
      %v1285 = vpop.f32.mrf.mxu0
      %v1286 = vadd.f32 0.0, %v1285
      %1287 = vdwg.mxu0
      %v1288 = vld [vmem:[%s602] sm:$0x3]
      %v1289 = vld [vmem:[%s602 + $0x2] sm:$0x3]
      %v1290 = vld [vmem:[%s602 + $0x4] sm:$0x3]
      %v1291 = vld [vmem:[%s602 + $0x6] sm:$0x3]
      %v1292 = vld [vmem:[%s602 + $0x8] sm:$0x3]
      %v1293 = vld [vmem:[%s602 + $0xa] sm:$0x3]
      %v1294 = vld [vmem:[%s602 + $0xc] sm:$0x3]
      %v1295 = vld [vmem:[%s602 + $0xe] sm:$0x3]
      %v1296 = vunpack.c.l.bf16 %v1288
      %v1297 = vunpack.c.l.bf16 %v1289
      %v1298 = vunpack.c.l.bf16 %v1290
      %v1299 = vunpack.c.l.bf16 %v1291
      %v1300 = vunpack.c.l.bf16 %v1292
      %v1301 = vunpack.c.l.bf16 %v1293
      %v1302 = vunpack.c.l.bf16 %v1294
      %v1303 = vunpack.c.l.bf16 %v1295
      %v1304 = vld [vmem:[%s612] sm:$0x3]
      %v1305 = vld [vmem:[%s612 + $0x2] sm:$0x3]
      %v1306 = vld [vmem:[%s612 + $0x4] sm:$0x3]
      %v1307 = vld [vmem:[%s612 + $0x6] sm:$0x3]
      %v1308 = vld [vmem:[%s612 + $0x8] sm:$0x3]
      %v1309 = vld [vmem:[%s612 + $0xa] sm:$0x3]
      %v1310 = vld [vmem:[%s612 + $0xc] sm:$0x3]
      %v1311 = vld [vmem:[%s612 + $0xe] sm:$0x3]
      %v1312 = vunpack.c.l.bf16 %v1304
      %v1313 = vunpack.c.l.bf16 %v1305
      %v1314 = vunpack.c.l.bf16 %v1306
      %v1315 = vunpack.c.l.bf16 %v1307
      %v1316 = vunpack.c.l.bf16 %v1308
      %v1317 = vunpack.c.l.bf16 %v1309
      %v1318 = vunpack.c.l.bf16 %v1310
      %v1319 = vunpack.c.l.bf16 %v1311
      %v1320 = vadd.f32 %v1296, %v1297
      %v1321 = vadd.f32 %v1298, %v1299
      %v1322 = vadd.f32 %v1300, %v1301
      %v1323 = vadd.f32 %v1302, %v1303
      %v1324 = vadd.f32 %v1320, %v1312
      %v1325 = vadd.f32 %v1321, %v1314
      %v1326 = vadd.f32 %v1322, %v1316
      %v1327 = vadd.f32 %v1323, %v1318
      %v1328 = vadd.f32 %v1324, %v1313
      %v1329 = vadd.f32 %v1325, %v1315
      %v1330 = vadd.f32 %v1326, %v1317
      %v1331 = vadd.f32 %v1327, %v1319
      %v1332 = vmul.f32 %v1328, 0.25
      %v1333 = vmul.f32 %v1329, 0.25
      %v1334 = vmul.f32 %v1330, 0.25
      %v1335 = vmul.f32 %v1331, 0.25
      %v1338 = vrot.slane %v1284, 4
      %v1339 = vrot.slane %v1286, 4
      %v1342 = vadd.f32 %v1332, %v1284
      %v1343 = vadd.f32 %v1333, %v1338
      %v1344 = vadd.f32 %v1334, %v1286
      %v1345 = vadd.f32 %v1335, %v1339
      %v1346 = vpack.c.bf16 %v1284, %v1284
      %v1347 = vpack.c.bf16 %v1338, %v1338
      %v1348 = vpack.c.bf16 %v1286, %v1286
      %v1349 = vpack.c.bf16 %v1339, %v1339
      %vm1350 = vcmask 254976
      %1351 = vst.msk [vmem:[%s622] sm:$0x3] %vm1350, %v1346
      %1352 = vst.msk [vmem:[%s622 + $0x2] sm:$0x3] %vm1350, %v1347
      %1353 = vst.msk [vmem:[%s622 + $0x4] sm:$0x3] %vm1350, %v1348
      %1354 = vst.msk [vmem:[%s622 + $0x6] sm:$0x3] %vm1350, %v1349
      %v1355 = vpack.c.bf16 %v1342, %v1342
      %v1356 = vpack.c.bf16 %v1343, %v1343
      %v1357 = vpack.c.bf16 %v1344, %v1344
      %v1358 = vpack.c.bf16 %v1345, %v1345
      %1359 = vst.msk [vmem:[%s632] sm:$0x3] %vm1350, %v1355
      %1360 = vst.msk [vmem:[%s632 + $0x2] sm:$0x3] %vm1350, %v1356
      %1361 = vst.msk [vmem:[%s632 + $0x4] sm:$0x3] %vm1350, %v1357
      %1362 = vst.msk [vmem:[%s632 + $0x6] sm:$0x3] %vm1350, %v1358
      %s1363 = smul.u32 4, %s26
      %p1364 = scmp.lt.s32.totalorder %s25, 1
      %s1365 = scalar_select %p1364, %s25, 1
      %p1366 = scmp.lt.s32.totalorder %s1363, 3
      %s1367 = scalar_select %p1366, %s1363, 3
      %s1368 = smul.addr %s1365, 4
      %s1369 = sadd.s32 %s1367, %s1368
      %s1370 = smul.addr %s1369, 2
      %s1371 = scalar_lea.vmem %s8, %s1370
      %s1372 = smul.u32 4, %s26
      %p1373 = scmp.lt.s32.totalorder %s25, 1
      %s1374 = scalar_select %p1373, %s25, 1
      %p1375 = scmp.lt.s32.totalorder %s1372, 3
      %s1376 = scalar_select %p1375, %s1372, 3
      %s1377 = smul.addr %s1374, 4
      %s1378 = sadd.s32 %s1376, %s1377
      %s1379 = smul.addr %s1378, 2
      %s1380 = scalar_lea.vmem %s9, %s1379
      // Predicated region
      $region53: #{pmaa_conv_block_forward.7} parent=51 // pred_check
        %p1381 = pneg %p271
      $region54: #{pmaa_conv_block_forward.7} parent=51 // pred_check_branch
        %1383 = sbr.rel (%p1381) target = $region56
      $region55: #{pmaa_conv_block_forward.7} parent=51 // pred_region
        %s1384 = smul.u32 4, %s26
      $region56: #{pmaa_conv_block_forward.7} parent=51 // pred_fallthru
        _
      // Predicated region
      $region57: #{pmaa_conv_block_forward.7} parent=51 // pred_check
        %p1385 = pneg %p299
      $region58: #{pmaa_conv_block_forward.7} parent=51 // pred_check_branch
        %1387 = sbr.rel (%p1385) target = $region60
      $region59: #{pmaa_conv_block_forward.7} parent=51 // pred_region
        %s1388 = smul.u32 4, %s26
      $region60: #{pmaa_conv_block_forward.7} parent=51 // pred_fallthru
        _
    $region52: #{pmaa_conv_block_forward.7} parent=5 // pred_fallthru
      _
    %p1389 = scmp.le.s32.totalorder 2, %s16
    // Predicated region
    $region61: #{pmaa_conv_block_forward.7} parent=5 // pred_check
      %p1390 = pneg %p1389
    $region62: #{pmaa_conv_block_forward.7} parent=5 // pred_check_branch
      %1392 = sbr.rel (%p1390) target = $region64
    $region63: #{pmaa_conv_block_forward.7} parent=5 // pred_region
      %s1393 = ssub.s32 %s16, 2
      // Predicated region
      $region65: #{pmaa_conv_block_forward.7} parent=63 // pred_check
        %p1394 = pneg %p277
      $region66: #{pmaa_conv_block_forward.7} parent=63 // pred_check_branch
        %1396 = sbr.rel (%p1394) target = $region68
      $region67: #{pmaa_conv_block_forward.7} parent=63 // pred_region
        %s1397 = smul.u32 4, %s28
        %p1398 = scmp.lt.s32.totalorder %s27, 1
        %s1399 = scalar_select %p1398, %s27, 1
        %p1400 = scmp.lt.s32.totalorder %s1397, 3
        %s1401 = scalar_select %p1400, %s1397, 3
        %s1402 = smul.addr %s1399, 4
        %s1403 = sadd.s32 %s1401, %s1402
        %s1404 = smul.addr %s1403, 2
        %s1405 = scalar_lea.vmem %s8, %s1404
      $region68: #{pmaa_conv_block_forward.7} parent=63 // pred_fallthru
        _
      // Predicated region
      $region69: #{pmaa_conv_block_forward.7} parent=63 // pred_check
        %p1406 = pneg %p305
      $region70: #{pmaa_conv_block_forward.7} parent=63 // pred_check_branch
        %1408 = sbr.rel (%p1406) target = $region72
      $region71: #{pmaa_conv_block_forward.7} parent=63 // pred_region
        %s1409 = smul.u32 4, %s28
        %p1410 = scmp.lt.s32.totalorder %s27, 1
        %s1411 = scalar_select %p1410, %s27, 1
        %p1412 = scmp.lt.s32.totalorder %s1409, 3
        %s1413 = scalar_select %p1412, %s1409, 3
        %s1414 = smul.addr %s1411, 4
        %s1415 = sadd.s32 %s1413, %s1414
        %s1416 = smul.addr %s1415, 2
        %s1417 = scalar_lea.vmem %s9, %s1416
      $region72: #{pmaa_conv_block_forward.7} parent=63 // pred_fallthru
        _
    $region64: #{pmaa_conv_block_forward.7} parent=5 // pred_fallthru
      _
  $region6: #{pmaa_conv_block_forward.7} parent=0 // loop_footer
    %s20 = sadd.s32 1, %s16
  $region7: #{pmaa_conv_block_forward.7} parent=0 // loop_footer_branch
    %15 = sbr.rel target = $region3
  $region8: #{pmaa_conv_block_forward.7} parent=0 // loop_exit
    _

// kernel: pmaa_conv_block_forward.8
$region0: #{pmaa_conv_block_forward.8}
  #allocation0 [shape = 'u32[]', space=smem, size = 0x4, offset = 0x4, fixed_abs, tag = 'smem constant byte address 0x4 - core index']
  #allocation1 [shape = 'u32[72,128]{1,0:T(1,128)}', space=vmem, size = 0x9000, scoped, tag = 'internal scratch']
  %s0 = inlined_call_operand.vmem [shape: bf16[2,6,3,32], index: 0, kind: input, shape index: {}, may-alias: {0,1}]
  %s1 = inlined_call_operand.vmem [shape: bf16[2,6,3,32], index: 1, kind: input, shape index: {}, may-alias: {0,1}]
  %s2 = inlined_call_operand.vmem [shape: bf16[2,6,3,32], index: 2, kind: input, shape index: {}, may-alias: {2,3}]
  %s3 = inlined_call_operand.vmem [shape: bf16[2,6,3,32], index: 3, kind: input, shape index: {}, may-alias: {2,3}]
  %s4 = inlined_call_operand.vmem [shape: bf16[2,4,2,32], index: 4, kind: input, shape index: {}]
  %s5 = inlined_call_operand.vmem [shape: bf16[2,4,2,32], index: 5, kind: input, shape index: {}]
  %s6 = inlined_call_operand.vmem [shape: bf16[9,32,32], index: 6, kind: input, shape index: {}]
  %s7 = inlined_call_operand.vmem [shape: bf16[32,32], index: 7, kind: input, shape index: {}]
  %s8 = inlined_call_operand.vmem [shape: bf16[2,2,2,32], index: 8, kind: output, shape index: {0}]
  %s9 = inlined_call_operand.vmem [shape: bf16[2,2,2,32], index: 9, kind: output, shape index: {1}]
  %10 = xla_tuple %s8, %s9
  %s11 = sld [smem:[#allocation0]]
  $region73: #{pmaa_conv_block_forward.8} parent=0
    _
  %s13 = ssub.s32 1, %s11
  %s14 = scalar_select 0, %s13, %s11
  loop: start=0, step=1, limit=4
  $region2: #{pmaa_conv_block_forward.8} parent=0 // loop_pre_header
    _
  $region3: #{pmaa_conv_block_forward.8} parent=0 // loop_header
    %s16 = sphi 0, %s20
    %p17 = scmp.ge.s32.totalorder %s16, 4
    %s23 = sphi 0, %s35
    %s24 = sphi 0, %s31
    %s25 = sphi 0, %s23
    %s26 = sphi 0, %s24
    %s27 = sphi 0, %s25
    %s28 = sphi 0, %s26
    %s40 = sphi 0, %s42
    %s43 = sphi 0, %s40
    %s44 = sphi 0, %s43
    %s60 = sphi 0, %s44
    %s72 = sphi 0, %s74
    %s75 = sphi 0, %s72
    %s76 = sphi 0, %s75
    %s92 = sphi 0, %s76
    %s100 = sphi 0, %s102
    %s103 = sphi 0, %s100
    %s104 = sphi 0, %s103
    %s120 = sphi 0, %s104
    %s132 = sphi 0, %s134
    %s135 = sphi 0, %s132
    %s136 = sphi 0, %s135
    %s152 = sphi 0, %s136
    %s160 = sphi 0, %s162
    %s163 = sphi 0, %s160
    %s164 = sphi 0, %s163
    %s180 = sphi 0, %s164
    %s188 = sphi 0, %s190
    %s191 = sphi 0, %s188
    %s192 = sphi 0, %s191
    %s208 = sphi 0, %s192
    %s212 = sphi 0, %s212
    %s214 = sphi 0, %s212
    %s215 = sphi 0, %s214
    %s229 = sphi 0, %s215
    %s233 = sphi 0, %s233
    %s235 = sphi 0, %s233
    %s236 = sphi 0, %s235
    %s250 = sphi 0, %s236
    %s258 = sphi 0, %s260
    %s261 = sphi 0, %s258
    %s262 = sphi 0, %s261
    %s278 = sphi 0, %s262
    %s286 = sphi 0, %s288
    %s289 = sphi 0, %s286
    %s290 = sphi 0, %s289
    %s306 = sphi 0, %s290
  $region4: #{pmaa_conv_block_forward.8} parent=0 // loop_header_branch
    %19 = sbr.rel (%p17) target = $region8
  $region5: #{pmaa_conv_block_forward.8} parent=0 // loop_body
    %s21 = ssub.s32 %s16, 1
    %s22 = ssub.s32 %s16, 2
    %s29 = sadd.s32 1, %s24
    %p30 = scmp.ge.s32.totalorder %s29, 1
    %s31 = scalar_select %p30, 0, %s29
    %s32 = sadd.s32 1, %s23
    %s33 = scalar_select %p30, %s32, %s23
    %p34 = scmp.ge.s32.totalorder %s33, 2
    %s35 = scalar_select %p34, 0, %s33
    %s36 = ssub.s32 %s23, %s35
    %s37 = ssub.s32 %s24, %s31
    %s38 = sor.u32 %s36, %s37
    %p39 = scmp.eq.s32.totalorder %s38, 0
    %s41 = sadd.s32 %s40, 1
    %s42 = scalar_select %p39, %s40, %s41
    %p45 = pneg %p39
    %p46 = scmp.eq.s32.totalorder %s16, 1
    %p47 = por %p45, %p46
    %p48 = scmp.ne.s32.totalorder %s40, %s43
    %p49 = scmp.eq.s32.totalorder %s16, 0
    %p50 = por %p48, %p49
    %p51 = scmp.ne.s32.totalorder %s40, %s43
    %p52 = scmp.eq.s32.totalorder %s21, 1
    %p53 = por %p51, %p52
    %p54 = scmp.ne.s32.totalorder %s43, %s44
    %p55 = scmp.eq.s32.totalorder %s21, 0
    %p56 = por %p54, %p55
    %p57 = scmp.ne.s32.totalorder %s43, %s44
    %p58 = scmp.eq.s32.totalorder %s22, 1
    %p59 = por %p57, %p58
    %p61 = scmp.ne.s32.totalorder %s44, %s60
    %p62 = scmp.eq.s32.totalorder %s22, 0
    %p63 = por %p61, %p62
    %s64 = sadd.s32 %s24, 1
    %s65 = smul.u32 %s64, 4
    %s66 = sadd.s32 %s31, 1
    %s67 = smul.u32 %s66, 4
    %s68 = ssub.s32 %s23, %s35
    %s69 = ssub.s32 %s65, %s67
    %s70 = sor.u32 %s68, %s69
    %p71 = scmp.eq.s32.totalorder %s70, 0
    %s73 = sadd.s32 %s72, 1
    %s74 = scalar_select %p71, %s72, %s73
    %p77 = pneg %p71
    %p78 = scmp.eq.s32.totalorder %s16, 1
    %p79 = por %p77, %p78
    %p80 = scmp.ne.s32.totalorder %s72, %s75
    %p81 = scmp.eq.s32.totalorder %s16, 0
    %p82 = por %p80, %p81
    %p83 = scmp.ne.s32.totalorder %s72, %s75
    %p84 = scmp.eq.s32.totalorder %s21, 1
    %p85 = por %p83, %p84
    %p86 = scmp.ne.s32.totalorder %s75, %s76
    %p87 = scmp.eq.s32.totalorder %s21, 0
    %p88 = por %p86, %p87
    %p89 = scmp.ne.s32.totalorder %s75, %s76
    %p90 = scmp.eq.s32.totalorder %s22, 1
    %p91 = por %p89, %p90
    %p93 = scmp.ne.s32.totalorder %s76, %s92
    %p94 = scmp.eq.s32.totalorder %s22, 0
    %p95 = por %p93, %p94
    %s96 = ssub.s32 %s23, %s35
    %s97 = ssub.s32 %s24, %s31
    %s98 = sor.u32 %s96, %s97
    %p99 = scmp.eq.s32.totalorder %s98, 0
    %s101 = sadd.s32 %s100, 1
    %s102 = scalar_select %p99, %s100, %s101
    %p105 = pneg %p99
    %p106 = scmp.eq.s32.totalorder %s16, 1
    %p107 = por %p105, %p106
    %p108 = scmp.ne.s32.totalorder %s100, %s103
    %p109 = scmp.eq.s32.totalorder %s16, 0
    %p110 = por %p108, %p109
    %p111 = scmp.ne.s32.totalorder %s100, %s103
    %p112 = scmp.eq.s32.totalorder %s21, 1
    %p113 = por %p111, %p112
    %p114 = scmp.ne.s32.totalorder %s103, %s104
    %p115 = scmp.eq.s32.totalorder %s21, 0
    %p116 = por %p114, %p115
    %p117 = scmp.ne.s32.totalorder %s103, %s104
    %p118 = scmp.eq.s32.totalorder %s22, 1
    %p119 = por %p117, %p118
    %p121 = scmp.ne.s32.totalorder %s104, %s120
    %p122 = scmp.eq.s32.totalorder %s22, 0
    %p123 = por %p121, %p122
    %s124 = sadd.s32 %s24, 1
    %s125 = smul.u32 %s124, 4
    %s126 = sadd.s32 %s31, 1
    %s127 = smul.u32 %s126, 4
    %s128 = ssub.s32 %s23, %s35
    %s129 = ssub.s32 %s125, %s127
    %s130 = sor.u32 %s128, %s129
    %p131 = scmp.eq.s32.totalorder %s130, 0
    %s133 = sadd.s32 %s132, 1
    %s134 = scalar_select %p131, %s132, %s133
    %p137 = pneg %p131
    %p138 = scmp.eq.s32.totalorder %s16, 1
    %p139 = por %p137, %p138
    %p140 = scmp.ne.s32.totalorder %s132, %s135
    %p141 = scmp.eq.s32.totalorder %s16, 0
    %p142 = por %p140, %p141
    %p143 = scmp.ne.s32.totalorder %s132, %s135
    %p144 = scmp.eq.s32.totalorder %s21, 1
    %p145 = por %p143, %p144
    %p146 = scmp.ne.s32.totalorder %s135, %s136
    %p147 = scmp.eq.s32.totalorder %s21, 0
    %p148 = por %p146, %p147
    %p149 = scmp.ne.s32.totalorder %s135, %s136
    %p150 = scmp.eq.s32.totalorder %s22, 1
    %p151 = por %p149, %p150
    %p153 = scmp.ne.s32.totalorder %s136, %s152
    %p154 = scmp.eq.s32.totalorder %s22, 0
    %p155 = por %p153, %p154
    %s156 = ssub.s32 %s23, %s35
    %s157 = ssub.s32 %s24, %s31
    %s158 = sor.u32 %s156, %s157
    %p159 = scmp.eq.s32.totalorder %s158, 0
    %s161 = sadd.s32 %s160, 1
    %s162 = scalar_select %p159, %s160, %s161
    %p165 = pneg %p159
    %p166 = scmp.eq.s32.totalorder %s16, 1
    %p167 = por %p165, %p166
    %p168 = scmp.ne.s32.totalorder %s160, %s163
    %p169 = scmp.eq.s32.totalorder %s16, 0
    %p170 = por %p168, %p169
    %p171 = scmp.ne.s32.totalorder %s160, %s163
    %p172 = scmp.eq.s32.totalorder %s21, 1
    %p173 = por %p171, %p172
    %p174 = scmp.ne.s32.totalorder %s163, %s164
    %p175 = scmp.eq.s32.totalorder %s21, 0
    %p176 = por %p174, %p175
    %p177 = scmp.ne.s32.totalorder %s163, %s164
    %p178 = scmp.eq.s32.totalorder %s22, 1
    %p179 = por %p177, %p178
    %p181 = scmp.ne.s32.totalorder %s164, %s180
    %p182 = scmp.eq.s32.totalorder %s22, 0
    %p183 = por %p181, %p182
    %s184 = ssub.s32 %s23, %s35
    %s185 = ssub.s32 %s24, %s31
    %s186 = sor.u32 %s184, %s185
    %p187 = scmp.eq.s32.totalorder %s186, 0
    %s189 = sadd.s32 %s188, 1
    %s190 = scalar_select %p187, %s188, %s189
    %p193 = pneg %p187
    %p194 = scmp.eq.s32.totalorder %s16, 1
    %p195 = por %p193, %p194
    %p196 = scmp.ne.s32.totalorder %s188, %s191
    %p197 = scmp.eq.s32.totalorder %s16, 0
    %p198 = por %p196, %p197
    %p199 = scmp.ne.s32.totalorder %s188, %s191
    %p200 = scmp.eq.s32.totalorder %s21, 1
    %p201 = por %p199, %p200
    %p202 = scmp.ne.s32.totalorder %s191, %s192
    %p203 = scmp.eq.s32.totalorder %s21, 0
    %p204 = por %p202, %p203
    %p205 = scmp.ne.s32.totalorder %s191, %s192
    %p206 = scmp.eq.s32.totalorder %s22, 1
    %p207 = por %p205, %p206
    %p209 = scmp.ne.s32.totalorder %s192, %s208
    %p210 = scmp.eq.s32.totalorder %s22, 0
    %p211 = por %p209, %p210
    %s213 = sadd.s32 %s212, 1
    %p216 = scmp.eq.s32.totalorder %s16, 1
    %p217 = scmp.ne.s32.totalorder %s212, %s214
    %p218 = scmp.eq.s32.totalorder %s16, 0
    %p219 = por %p217, %p218
    %p220 = scmp.ne.s32.totalorder %s212, %s214
    %p221 = scmp.eq.s32.totalorder %s21, 1
    %p222 = por %p220, %p221
    %p223 = scmp.ne.s32.totalorder %s214, %s215
    %p224 = scmp.eq.s32.totalorder %s21, 0
    %p225 = por %p223, %p224
    %p226 = scmp.ne.s32.totalorder %s214, %s215
    %p227 = scmp.eq.s32.totalorder %s22, 1
    %p228 = por %p226, %p227
    %p230 = scmp.ne.s32.totalorder %s215, %s229
    %p231 = scmp.eq.s32.totalorder %s22, 0
    %p232 = por %p230, %p231
    %s234 = sadd.s32 %s233, 1
    %p237 = scmp.eq.s32.totalorder %s16, 1
    %p238 = scmp.ne.s32.totalorder %s233, %s235
    %p239 = scmp.eq.s32.totalorder %s16, 0
    %p240 = por %p238, %p239
    %p241 = scmp.ne.s32.totalorder %s233, %s235
    %p242 = scmp.eq.s32.totalorder %s21, 1
    %p243 = por %p241, %p242
    %p244 = scmp.ne.s32.totalorder %s235, %s236
    %p245 = scmp.eq.s32.totalorder %s21, 0
    %p246 = por %p244, %p245
    %p247 = scmp.ne.s32.totalorder %s235, %s236
    %p248 = scmp.eq.s32.totalorder %s22, 1
    %p249 = por %p247, %p248
    %p251 = scmp.ne.s32.totalorder %s236, %s250
    %p252 = scmp.eq.s32.totalorder %s22, 0
    %p253 = por %p251, %p252
    %s254 = ssub.s32 %s23, %s35
    %s255 = ssub.s32 %s24, %s31
    %s256 = sor.u32 %s254, %s255
    %p257 = scmp.eq.s32.totalorder %s256, 0
    %s259 = sadd.s32 %s258, 1
    %s260 = scalar_select %p257, %s258, %s259
    %p263 = pneg %p257
    %p264 = scmp.eq.s32.totalorder %s16, 1
    %p265 = por %p263, %p264
    %p266 = scmp.ne.s32.totalorder %s258, %s261
    %p267 = scmp.eq.s32.totalorder %s16, 0
    %p268 = por %p266, %p267
    %p269 = scmp.ne.s32.totalorder %s258, %s261
    %p270 = scmp.eq.s32.totalorder %s21, 1
    %p271 = por %p269, %p270
    %p272 = scmp.ne.s32.totalorder %s261, %s262
    %p273 = scmp.eq.s32.totalorder %s21, 0
    %p274 = por %p272, %p273
    %p275 = scmp.ne.s32.totalorder %s261, %s262
    %p276 = scmp.eq.s32.totalorder %s22, 1
    %p277 = por %p275, %p276
    %p279 = scmp.ne.s32.totalorder %s262, %s278
    %p280 = scmp.eq.s32.totalorder %s22, 0
    %p281 = por %p279, %p280
    %s282 = ssub.s32 %s23, %s35
    %s283 = ssub.s32 %s24, %s31
    %s284 = sor.u32 %s282, %s283
    %p285 = scmp.eq.s32.totalorder %s284, 0
    %s287 = sadd.s32 %s286, 1
    %s288 = scalar_select %p285, %s286, %s287
    %p291 = pneg %p285
    %p292 = scmp.eq.s32.totalorder %s16, 1
    %p293 = por %p291, %p292
    %p294 = scmp.ne.s32.totalorder %s286, %s289
    %p295 = scmp.eq.s32.totalorder %s16, 0
    %p296 = por %p294, %p295
    %p297 = scmp.ne.s32.totalorder %s286, %s289
    %p298 = scmp.eq.s32.totalorder %s21, 1
    %p299 = por %p297, %p298
    %p300 = scmp.ne.s32.totalorder %s289, %s290
    %p301 = scmp.eq.s32.totalorder %s21, 0
    %p302 = por %p300, %p301
    %p303 = scmp.ne.s32.totalorder %s289, %s290
    %p304 = scmp.eq.s32.totalorder %s22, 1
    %p305 = por %p303, %p304
    %p307 = scmp.ne.s32.totalorder %s290, %s306
    %p308 = scmp.eq.s32.totalorder %s22, 0
    %p309 = por %p307, %p308
    %p310 = scmp.le.s32.totalorder 1, %s16
    %p311 = scmp.lt.s32.totalorder %s16, 3
    %p312 = pnand %p310, %p311
    %p313 = pneg %p312
    // Predicated region
    $region9: #{pmaa_conv_block_forward.8} parent=5 // pred_check
      _
    $region10: #{pmaa_conv_block_forward.8} parent=5 // pred_check_branch
      %315 = sbr.rel (%p312) target = $region12
    $region11: #{pmaa_conv_block_forward.8} parent=5 // pred_region
      %s316 = ssub.s32 %s16, 1
      // Predicated region
      $region13: #{pmaa_conv_block_forward.8} parent=11 // pred_check
        %p317 = pneg %p225
      $region14: #{pmaa_conv_block_forward.8} parent=11 // pred_check_branch
        %319 = sbr.rel (%p317) target = $region16
      $region15: #{pmaa_conv_block_forward.8} parent=11 // pred_region
        _
      $region16: #{pmaa_conv_block_forward.8} parent=11 // pred_fallthru
        _
      // Predicated region
      $region17: #{pmaa_conv_block_forward.8} parent=11 // pred_check
        %p320 = pneg %p246
      $region18: #{pmaa_conv_block_forward.8} parent=11 // pred_check_branch
        %322 = sbr.rel (%p320) target = $region20
      $region19: #{pmaa_conv_block_forward.8} parent=11 // pred_region
        _
      $region20: #{pmaa_conv_block_forward.8} parent=11 // pred_fallthru
        _
    $region12: #{pmaa_conv_block_forward.8} parent=5 // pred_fallthru
      _
    %p323 = scmp.lt.s32.totalorder %s16, 2
    // Predicated region
    $region21: #{pmaa_conv_block_forward.8} parent=5 // pred_check
      %p324 = pneg %p323
    $region22: #{pmaa_conv_block_forward.8} parent=5 // pred_check_branch
      %326 = sbr.rel (%p324) target = $region24
    $region23: #{pmaa_conv_block_forward.8} parent=5 // pred_region
      // Predicated region
      $region25: #{pmaa_conv_block_forward.8} parent=23 // pred_check
        %p327 = pneg %p50
      $region26: #{pmaa_conv_block_forward.8} parent=23 // pred_check_branch
        %329 = sbr.rel (%p327) target = $region28
      $region27: #{pmaa_conv_block_forward.8} parent=23 // pred_region
        %s330 = smul.u32 4, %s24
        %s331 = ssub.s32 6, %s330
        %p332 = scmp.lt.s32.totalorder %s331, 4
        %s333 = scalar_select %p332, %s331, 4
        %s334 = smul.u32 2, %s333
        %p335 = scmp.lt.s32.totalorder %s23, 1
        %s336 = scalar_select %p335, %s23, 1
        %p337 = scmp.lt.s32.totalorder %s330, 5
        %s338 = scalar_select %p337, %s330, 5
        %s339 = smul.addr %s336, 6
        %s340 = sadd.s32 %s338, %s339
        %s341 = smul.addr %s340, 2
        %s342 = scalar_lea.vmem %s0, %s341
        %s343 = smul.u32 4, %s24
        %s344 = ssub.s32 6, %s343
        %p345 = scmp.lt.s32.totalorder %s344, 4
        %s346 = scalar_select %p345, %s344, 4
        %s347 = smul.u32 2, %s346
      $region28: #{pmaa_conv_block_forward.8} parent=23 // pred_fallthru
        _
      // Predicated region
      $region29: #{pmaa_conv_block_forward.8} parent=23 // pred_check
        %p348 = pneg %p82
      $region30: #{pmaa_conv_block_forward.8} parent=23 // pred_check_branch
        %350 = sbr.rel (%p348) target = $region32
      $region31: #{pmaa_conv_block_forward.8} parent=23 // pred_region
        %s351 = sadd.s32 %s24, 1
        %s352 = smul.u32 %s351, 4
        %p353 = scmp.lt.s32.totalorder %s23, 1
        %s354 = scalar_select %p353, %s23, 1
        %p355 = scmp.lt.s32.totalorder %s352, 5
        %s356 = scalar_select %p355, %s352, 5
        %s357 = smul.addr %s354, 6
        %s358 = sadd.s32 %s356, %s357
        %s359 = smul.addr %s358, 2
        %s360 = scalar_lea.vmem %s1, %s359
        %s361 = sadd.s32 %s24, 1
        %s362 = smul.u32 %s361, 4
      $region32: #{pmaa_conv_block_forward.8} parent=23 // pred_fallthru
        _
      // Predicated region
      $region33: #{pmaa_conv_block_forward.8} parent=23 // pred_check
        %p363 = pneg %p110
      $region34: #{pmaa_conv_block_forward.8} parent=23 // pred_check_branch
        %365 = sbr.rel (%p363) target = $region36
      $region35: #{pmaa_conv_block_forward.8} parent=23 // pred_region
        %s366 = smul.u32 4, %s24
        %s367 = ssub.s32 6, %s366
        %p368 = scmp.lt.s32.totalorder %s367, 4
        %s369 = scalar_select %p368, %s367, 4
        %s370 = smul.u32 2, %s369
        %p371 = scmp.lt.s32.totalorder %s23, 1
        %s372 = scalar_select %p371, %s23, 1
        %p373 = scmp.lt.s32.totalorder %s366, 5
        %s374 = scalar_select %p373, %s366, 5
        %s375 = smul.addr %s372, 6
        %s376 = sadd.s32 %s374, %s375
        %s377 = smul.addr %s376, 2
        %s378 = scalar_lea.vmem %s2, %s377
        %s379 = smul.u32 4, %s24
        %s380 = ssub.s32 6, %s379
        %p381 = scmp.lt.s32.totalorder %s380, 4
        %s382 = scalar_select %p381, %s380, 4
        %s383 = smul.u32 2, %s382
      $region36: #{pmaa_conv_block_forward.8} parent=23 // pred_fallthru
        _
      // Predicated region
      $region37: #{pmaa_conv_block_forward.8} parent=23 // pred_check
        %p384 = pneg %p142
      $region38: #{pmaa_conv_block_forward.8} parent=23 // pred_check_branch
        %386 = sbr.rel (%p384) target = $region40
      $region39: #{pmaa_conv_block_forward.8} parent=23 // pred_region
        %s387 = sadd.s32 %s24, 1
        %s388 = smul.u32 %s387, 4
        %p389 = scmp.lt.s32.totalorder %s23, 1
        %s390 = scalar_select %p389, %s23, 1
        %p391 = scmp.lt.s32.totalorder %s388, 5
        %s392 = scalar_select %p391, %s388, 5
        %s393 = smul.addr %s390, 6
        %s394 = sadd.s32 %s392, %s393
        %s395 = smul.addr %s394, 2
        %s396 = scalar_lea.vmem %s3, %s395
        %s397 = sadd.s32 %s24, 1
        %s398 = smul.u32 %s397, 4
      $region40: #{pmaa_conv_block_forward.8} parent=23 // pred_fallthru
        _
      // Predicated region
      $region41: #{pmaa_conv_block_forward.8} parent=23 // pred_check
        %p399 = pneg %p170
      $region42: #{pmaa_conv_block_forward.8} parent=23 // pred_check_branch
        %401 = sbr.rel (%p399) target = $region44
      $region43: #{pmaa_conv_block_forward.8} parent=23 // pred_region
        %s402 = smul.u32 4, %s24
        %p403 = scmp.lt.s32.totalorder %s23, 1
        %s404 = scalar_select %p403, %s23, 1
        %p405 = scmp.lt.s32.totalorder %s402, 3
        %s406 = scalar_select %p405, %s402, 3
        %s407 = smul.addr %s404, 4
        %s408 = sadd.s32 %s406, %s407
        %s409 = scalar_lea.vmem %s4, %s408
        %s410 = smul.u32 4, %s24
      $region44: #{pmaa_conv_block_forward.8} parent=23 // pred_fallthru
        _
      // Predicated region
      $region45: #{pmaa_conv_block_forward.8} parent=23 // pred_check
        %p411 = pneg %p198
      $region46: #{pmaa_conv_block_forward.8} parent=23 // pred_check_branch
        %413 = sbr.rel (%p411) target = $region48
      $region47: #{pmaa_conv_block_forward.8} parent=23 // pred_region
        %s414 = smul.u32 4, %s24
        %p415 = scmp.lt.s32.totalorder %s23, 1
        %s416 = scalar_select %p415, %s23, 1
        %p417 = scmp.lt.s32.totalorder %s414, 3
        %s418 = scalar_select %p417, %s414, 3
        %s419 = smul.addr %s416, 4
        %s420 = sadd.s32 %s418, %s419
        %s421 = scalar_lea.vmem %s5, %s420
        %s422 = smul.u32 4, %s24
      $region48: #{pmaa_conv_block_forward.8} parent=23 // pred_fallthru
        _
    $region24: #{pmaa_conv_block_forward.8} parent=5 // pred_fallthru
      _
    %p423 = scmp.le.s32.totalorder 1, %s16
    %p424 = scmp.lt.s32.totalorder %s16, 3
    %p425 = pnand %p423, %p424
    %p426 = pneg %p425
    // Predicated region
    $region49: #{pmaa_conv_block_forward.8} parent=5 // pred_check
      _
    $region50: #{pmaa_conv_block_forward.8} parent=5 // pred_check_branch
      %428 = sbr.rel (%p425) target = $region52
    $region51: #{pmaa_conv_block_forward.8} parent=5 // pred_region
      %s429 = ssub.s32 %s16, 1
      %s430 = smul.u32 4, %s26
      %s431 = ssub.s32 6, %s430
      %p432 = scmp.lt.s32.totalorder %s431, 4
      %s433 = scalar_select %p432, %s431, 4
      %s434 = smul.u32 2, %s433
      %p435 = scmp.lt.s32.totalorder %s25, 1
      %s436 = scalar_select %p435, %s25, 1
      %p437 = scmp.lt.s32.totalorder %s430, 5
      %s438 = scalar_select %p437, %s430, 5
      %s439 = smul.addr %s436, 6
      %s440 = sadd.s32 %s438, %s439
      %s441 = smul.addr %s440, 2
      %s442 = scalar_lea.vmem %s0, %s441
      %p443 = pneg %p56
      %p444 = pneg %p53
      %s445 = sadd.s32 %s26, 1
      %s446 = smul.u32 %s445, 4
      %p447 = scmp.lt.s32.totalorder %s25, 1
      %s448 = scalar_select %p447, %s25, 1
      %p449 = scmp.lt.s32.totalorder %s446, 5
      %s450 = scalar_select %p449, %s446, 5
      %s451 = smul.addr %s448, 6
      %s452 = sadd.s32 %s450, %s451
      %s453 = smul.addr %s452, 2
      %s454 = scalar_lea.vmem %s1, %s453
      %p455 = pneg %p88
      %p456 = pneg %p85
      %s457 = smul.u32 4, %s26
      %s458 = ssub.s32 6, %s457
      %p459 = scmp.lt.s32.totalorder %s458, 4
      %s460 = scalar_select %p459, %s458, 4
      %s461 = smul.u32 2, %s460
      %p462 = scmp.lt.s32.totalorder %s25, 1
      %s463 = scalar_select %p462, %s25, 1
      %p464 = scmp.lt.s32.totalorder %s457, 5
      %s465 = scalar_select %p464, %s457, 5
      %s466 = smul.addr %s463, 6
      %s467 = sadd.s32 %s465, %s466
      %s468 = smul.addr %s467, 2
      %s469 = scalar_lea.vmem %s2, %s468
      %p470 = pneg %p116
      %p471 = pneg %p113
      %s472 = sadd.s32 %s26, 1
      %s473 = smul.u32 %s472, 4
      %p474 = scmp.lt.s32.totalorder %s25, 1
      %s475 = scalar_select %p474, %s25, 1
      %p476 = scmp.lt.s32.totalorder %s473, 5
      %s477 = scalar_select %p476, %s473, 5
      %s478 = smul.addr %s475, 6
      %s479 = sadd.s32 %s477, %s478
      %s480 = smul.addr %s479, 2
      %s481 = scalar_lea.vmem %s3, %s480
      %p482 = pneg %p148
      %p483 = pneg %p145
      %s484 = smul.u32 4, %s26
      %p485 = scmp.lt.s32.totalorder %s25, 1
      %s486 = scalar_select %p485, %s25, 1
      %p487 = scmp.lt.s32.totalorder %s484, 3
      %s488 = scalar_select %p487, %s484, 3
      %s489 = smul.addr %s486, 4
      %s490 = sadd.s32 %s488, %s489
      %s491 = scalar_lea.vmem %s4, %s490
      %p492 = pneg %p176
      %p493 = pneg %p173
      %s494 = smul.u32 4, %s26
      %p495 = scmp.lt.s32.totalorder %s25, 1
      %s496 = scalar_select %p495, %s25, 1
      %p497 = scmp.lt.s32.totalorder %s494, 3
      %s498 = scalar_select %p497, %s494, 3
      %s499 = smul.addr %s496, 4
      %s500 = sadd.s32 %s498, %s499
      %s501 = scalar_lea.vmem %s5, %s500
      %p502 = pneg %p204
      %p503 = pneg %p201
      %p504 = pneg %p225
      %p505 = pneg %p222
      %p506 = pneg %p246
      %p507 = pneg %p243
      %p508 = pneg %p274
      %p509 = pneg %p271
      %s510 = smul.u32 2, %s26
      %p511 = scmp.lt.s32.totalorder %s25, 1
      %s512 = scalar_select %p511, %s25, 1
      %p513 = scmp.lt.s32.totalorder %s510, 1
      %s514 = scalar_select %p513, %s510, 1
      %s515 = smul.addr %s512, 2
      %s516 = sadd.s32 %s514, %s515
      %s517 = scalar_lea.vmem %s8, %s516
      %p518 = pneg %p302
      %p519 = pneg %p299
      %s520 = smul.u32 2, %s26
      %p521 = scmp.lt.s32.totalorder %s25, 1
      %s522 = scalar_select %p521, %s25, 1
      %p523 = scmp.lt.s32.totalorder %s520, 1
      %s524 = scalar_select %p523, %s520, 1
      %s525 = smul.addr %s522, 2
      %s526 = sadd.s32 %s524, %s525
      %s527 = scalar_lea.vmem %s9, %s526
      %s528 = smul.u32 4, %s26
      %s529 = ssub.s32 6, %s528
      %p530 = scmp.lt.s32.totalorder %s529, 4
      %s531 = scalar_select %p530, %s529, 4
      %s532 = smul.u32 2, %s531
      %p533 = scmp.lt.s32.totalorder %s25, 1
      %s534 = scalar_select %p533, %s25, 1
      %p535 = scmp.lt.s32.totalorder %s528, 5
      %s536 = scalar_select %p535, %s528, 5
      %s537 = smul.addr %s534, 6
      %s538 = sadd.s32 %s536, %s537
      %s539 = smul.addr %s538, 2
      %s540 = scalar_lea.vmem %s0, %s539
      %s541 = smul.u32 4, %s26
      %s542 = ssub.s32 6, %s541
      %p543 = scmp.lt.s32.totalorder %s542, 4
      %s544 = scalar_select %p543, %s542, 4
      %s545 = smul.u32 2, %s544
      %s546 = sadd.s32 %s26, 1
      %s547 = smul.u32 %s546, 4
      %p548 = scmp.lt.s32.totalorder %s25, 1
      %s549 = scalar_select %p548, %s25, 1
      %p550 = scmp.lt.s32.totalorder %s547, 5
      %s551 = scalar_select %p550, %s547, 5
      %s552 = smul.addr %s549, 6
      %s553 = sadd.s32 %s551, %s552
      %s554 = smul.addr %s553, 2
      %s555 = scalar_lea.vmem %s1, %s554
      %s556 = sadd.s32 %s26, 1
      %s557 = smul.u32 %s556, 4
      %s558 = smul.u32 4, %s26
      %s559 = ssub.s32 6, %s558
      %p560 = scmp.lt.s32.totalorder %s559, 4
      %s561 = scalar_select %p560, %s559, 4
      %s562 = smul.u32 2, %s561
      %p563 = scmp.lt.s32.totalorder %s25, 1
      %s564 = scalar_select %p563, %s25, 1
      %p565 = scmp.lt.s32.totalorder %s558, 5
      %s566 = scalar_select %p565, %s558, 5
      %s567 = smul.addr %s564, 6
      %s568 = sadd.s32 %s566, %s567
      %s569 = smul.addr %s568, 2
      %s570 = scalar_lea.vmem %s2, %s569
      %s571 = smul.u32 4, %s26
      %s572 = ssub.s32 6, %s571
      %p573 = scmp.lt.s32.totalorder %s572, 4
      %s574 = scalar_select %p573, %s572, 4
      %s575 = smul.u32 2, %s574
      %s576 = sadd.s32 %s26, 1
      %s577 = smul.u32 %s576, 4
      %p578 = scmp.lt.s32.totalorder %s25, 1
      %s579 = scalar_select %p578, %s25, 1
      %p580 = scmp.lt.s32.totalorder %s577, 5
      %s581 = scalar_select %p580, %s577, 5
      %s582 = smul.addr %s579, 6
      %s583 = sadd.s32 %s581, %s582
      %s584 = smul.addr %s583, 2
      %s585 = scalar_lea.vmem %s3, %s584
      %s586 = sadd.s32 %s26, 1
      %s587 = smul.u32 %s586, 4
      %s588 = smul.u32 4, %s26
      %p589 = scmp.lt.s32.totalorder %s25, 1
      %s590 = scalar_select %p589, %s25, 1
      %p591 = scmp.lt.s32.totalorder %s588, 3
      %s592 = scalar_select %p591, %s588, 3
      %s593 = smul.addr %s590, 4
      %s594 = sadd.s32 %s592, %s593
      %s595 = scalar_lea.vmem %s4, %s594
      %s596 = smul.u32 4, %s26
      %s597 = smul.u32 4, %s26
      %p598 = scmp.lt.s32.totalorder %s25, 1
      %s599 = scalar_select %p598, %s25, 1
      %p600 = scmp.lt.s32.totalorder %s597, 3
      %s601 = scalar_select %p600, %s597, 3
      %s602 = smul.addr %s599, 4
      %s603 = sadd.s32 %s601, %s602
      %s604 = scalar_lea.vmem %s5, %s603
      %s605 = smul.u32 4, %s26
      %s606 = smul.u32 2, %s26
      %p607 = scmp.lt.s32.totalorder %s25, 1
      %s608 = scalar_select %p607, %s25, 1
      %p609 = scmp.lt.s32.totalorder %s606, 1
      %s610 = scalar_select %p609, %s606, 1
      %s611 = smul.addr %s608, 2
      %s612 = sadd.s32 %s610, %s611
      %s613 = scalar_lea.vmem %s8, %s612
      %s614 = smul.u32 2, %s26
      %s615 = smul.u32 2, %s26
      %p616 = scmp.lt.s32.totalorder %s25, 1
      %s617 = scalar_select %p616, %s25, 1
      %p618 = scmp.lt.s32.totalorder %s615, 1
      %s619 = scalar_select %p618, %s615, 1
      %s620 = smul.addr %s617, 2
      %s621 = sadd.s32 %s619, %s620
      %s622 = scalar_lea.vmem %s9, %s621
      %s623 = smul.u32 2, %s26
      %v625 = vld [vmem:[%s540] sm:$0x3]
      %v626 = vld [vmem:[%s540 + $0x2] sm:$0x3]
      %v627 = vld [vmem:[%s540 + $0x4] sm:$0x3]
      %v628 = vld [vmem:[%s540 + $0x6] sm:$0x3]
      %v629 = vld [vmem:[%s555] sm:$0x3]
      %v630 = vld [vmem:[%s570] sm:$0x3]
      %v631 = vld [vmem:[%s570 + $0x2] sm:$0x3]
      %v632 = vld [vmem:[%s570 + $0x4] sm:$0x3]
      %v633 = vld [vmem:[%s570 + $0x6] sm:$0x3]
      %v634 = vld [vmem:[%s585] sm:$0x3]
      %v635 = vld [vmem:[%s6] sm:$0xf]
      %v636 = vld [vmem:[%s6 + $0x4] sm:$0xf]
      %v637 = vld [vmem:[%s6 + $0x8] sm:$0xf]
      %v638 = vld [vmem:[%s6 + $0xc] sm:$0xf]
      %s639 = scalar_lea.vmem %s6, 16
      %v640 = vld [vmem:[%s639] sm:$0xf]
      %v641 = vld [vmem:[%s639 + $0x4] sm:$0xf]
      %v642 = vld [vmem:[%s639 + $0x8] sm:$0xf]
      %v643 = vld [vmem:[%s639 + $0xc] sm:$0xf]
      %645 = vst [vmem:[#allocation1] ss:$9 sm:$0xff] %v630
      %s647 = scalar_lea.vmem [#allocation1], 1
      %648 = vst [vmem:[%s647] ss:$9 sm:$0xff] %v632
      %v649 = vld [vmem:[#allocation1] sm:$0xff]
      %v654 = vunpack.c.l.b16 %v640
      %v655 = vunpack.c.l.b16 %v641
      %v656 = vunpack.c.l.b16 %v642
      %v657 = vunpack.c.l.b16 %v643
      %v658 = vpack.c.b16 %v655, %v654
      %v659 = vpack.c.b16 %v657, %v656
      %vm662 = vcmask 261120
      %v663 = vsel %vm662, %v649, 0
      %665 = vmatpush.bf16.msra.mxu0 0
      %666 = vmatpush.bf16.msra.mxu0 0
      %667 = vmatpush.bf16.msra.mxu0 0
      %668 = vmatpush.bf16.msra.mxu0 0
      %669 = vmatpush.bf16.msra.mxu0 0
      %670 = vmatpush.bf16.msra.mxu0 0
      %671 = vmatpush.bf16.msra.mxu0 %v659
      %672 = vmatpush.bf16.msra.mxu0 %v658
      %673 = vmatmul.bf16.gmra.mxu0 %v663
      %v674 = vpop.f32.mrf.mxu0
      %v675 = vadd.f32 0.0, %v674
      %v676 = vpop.f32.mrf.mxu0
      %677 = vdwg.mxu0
      %679 = vst [vmem:[#allocation1] ss:$9 sm:$0xff] %v625
      %s681 = scalar_lea.vmem [#allocation1], 1
      %682 = vst [vmem:[%s681] ss:$9 sm:$0xff] %v627
      %v683 = vld [vmem:[#allocation1] sm:$0xff]
      %v688 = vunpack.c.l.b16 %v635
      %v689 = vunpack.c.l.b16 %v636
      %v690 = vunpack.c.l.b16 %v637
      %v691 = vunpack.c.l.b16 %v638
      %v692 = vpack.c.b16 %v689, %v688
      %v693 = vpack.c.b16 %v691, %v690
      %v696 = vsel %vm662, %v683, 0
      %698 = vmatpush.bf16.msra.mxu0 0
      %699 = vmatpush.bf16.msra.mxu0 0
      %700 = vmatpush.bf16.msra.mxu0 0
      %701 = vmatpush.bf16.msra.mxu0 0
      %702 = vmatpush.bf16.msra.mxu0 0
      %703 = vmatpush.bf16.msra.mxu0 0
      %704 = vmatpush.bf16.msra.mxu0 %v693
      %705 = vmatpush.bf16.msra.mxu0 %v692
      %706 = vmatmul.bf16.gmra.mxu0 %v696
      %v707 = vpop.f32.mrf.mxu0
      %v708 = vadd.f32 %v675, %v707
      %v709 = vpop.f32.mrf.mxu0
      %710 = vdwg.mxu0
      %v713 = vrot.slane %v625, 1
      %v714 = vrot.slane %v625, 2
      %v715 = vrot.slane %v625, 3
      %v716 = vrot.slane %v627, 1
      %v717 = vrot.slane %v627, 2
      %v718 = vrot.slane %v627, 3
      %vm719 = vcmask 1040384
      %v721 = vsel %vm719, %v625, %v713
      %vm722 = vcmask 1042434
      %v725 = vsel %vm722, %v714, %v715
      %vm726 = vcmask 1041408
      %v727 = vsel %vm726, %v721, %v725
      %vm728 = vcmask 1041409
      %v729 = vsel %vm728, %v625, %v713
      %vm730 = vcmask 1043459
      %v731 = vsel %vm730, %v714, %v715
      %vm732 = vcmask 1042433
      %v733 = vsel %vm732, %v729, %v731
      %v735 = vrot.slane %v733, 1
      %v737 = vsel %vm719, %v627, %v716
      %v740 = vsel %vm722, %v717, %v718
      %v741 = vsel %vm726, %v737, %v740
      %v742 = vsel %vm728, %v627, %v716
      %v743 = vsel %vm730, %v717, %v718
      %v744 = vsel %vm732, %v742, %v743
      %v746 = vrot.slane %v744, 1
      %vm747 = vsmask.f32 256
      %vm748 = vsmask.f32 1284
      %vm749 = vmor %vm747, %vm748
      %vm750 = vsmask.f32 2312
      %vm751 = vmor %vm749, %vm750
      %vm752 = vsmask.f32 3340
      %vm753 = vmor %vm751, %vm752
      %vm754 = vsmask.f32 4368
      %vm755 = vmor %vm753, %vm754
      %vm756 = vsmask.f32 5396
      %vm757 = vmor %vm755, %vm756
      %vm758 = vsmask.f32 6424
      %vm759 = vmor %vm757, %vm758
      %vm760 = vsmask.f32 7452
      %vm761 = vmor %vm759, %vm760
      %v762 = vshrl.u32 %v727, 16
      %v764 = vrot.slane %v762, 7
      %v765 = vrot.slane %v764, 1
      %v767 = vshll.u32 %v735, 16
      %v769 = vsel %vm761, %v765, %v767
      %v770 = vshrl.u32 %v741, 16
      %v772 = vrot.slane %v770, 7
      %v773 = vrot.slane %v772, 1
      %v775 = vshll.u32 %v746, 16
      %v777 = vsel %vm761, %v773, %v775
      %s778 = scalar_lea.vmem %s6, 32
      %v779 = vld [vmem:[%s778] sm:$0xf]
      %v780 = vld [vmem:[%s778 + $0x4] sm:$0xf]
      %v781 = vld [vmem:[%s778 + $0x8] sm:$0xf]
      %v782 = vld [vmem:[%s778 + $0xc] sm:$0xf]
      %784 = vst [vmem:[#allocation1] ss:$9 sm:$0xff] %v769
      %s786 = scalar_lea.vmem [#allocation1], 1
      %787 = vst [vmem:[%s786] ss:$9 sm:$0xff] %v777
      %v788 = vld [vmem:[#allocation1] sm:$0xff]
      %v793 = vunpack.c.l.b16 %v779
      %v794 = vunpack.c.l.b16 %v780
      %v795 = vunpack.c.l.b16 %v781
      %v796 = vunpack.c.l.b16 %v782
      %v797 = vpack.c.b16 %v794, %v793
      %v798 = vpack.c.b16 %v796, %v795
      %v801 = vsel %vm662, %v788, 0
      %803 = vmatpush.bf16.msra.mxu0 0
      %804 = vmatpush.bf16.msra.mxu0 0
      %805 = vmatpush.bf16.msra.mxu0 0
      %806 = vmatpush.bf16.msra.mxu0 0
      %807 = vmatpush.bf16.msra.mxu0 0
      %808 = vmatpush.bf16.msra.mxu0 0
      %809 = vmatpush.bf16.msra.mxu0 %v798
      %810 = vmatpush.bf16.msra.mxu0 %v797
      %811 = vmatmul.bf16.gmra.mxu0 %v801
      %v812 = vpop.f32.mrf.mxu0
      %v813 = vadd.f32 0.0, %v812
      %v814 = vpop.f32.mrf.mxu0
      %815 = vdwg.mxu0
      %v816 = vadd.f32 %v708, %v813
      %s817 = scalar_lea.vmem %s6, 48
      %v818 = vld [vmem:[%s817] sm:$0xf]
      %v819 = vld [vmem:[%s817 + $0x4] sm:$0xf]
      %v820 = vld [vmem:[%s817 + $0x8] sm:$0xf]
      %v821 = vld [vmem:[%s817 + $0xc] sm:$0xf]
      %823 = vst [vmem:[#allocation1] ss:$9 sm:$0xff] %v626
      %s825 = scalar_lea.vmem [#allocation1], 1
      %826 = vst [vmem:[%s825] ss:$9 sm:$0xff] %v628
      %v827 = vld [vmem:[#allocation1] sm:$0xff]
      %v832 = vunpack.c.l.b16 %v818
      %v833 = vunpack.c.l.b16 %v819
      %v834 = vunpack.c.l.b16 %v820
      %v835 = vunpack.c.l.b16 %v821
      %v836 = vpack.c.b16 %v833, %v832
      %v837 = vpack.c.b16 %v835, %v834
      %v840 = vsel %vm662, %v827, 0
      %842 = vmatpush.bf16.msra.mxu0 0
      %843 = vmatpush.bf16.msra.mxu0 0
      %844 = vmatpush.bf16.msra.mxu0 0
      %845 = vmatpush.bf16.msra.mxu0 0
      %846 = vmatpush.bf16.msra.mxu0 0
      %847 = vmatpush.bf16.msra.mxu0 0
      %848 = vmatpush.bf16.msra.mxu0 %v837
      %849 = vmatpush.bf16.msra.mxu0 %v836
      %850 = vmatmul.bf16.gmra.mxu0 %v840
      %v851 = vpop.f32.mrf.mxu0
      %v852 = vadd.f32 0.0, %v851
      %v853 = vpop.f32.mrf.mxu0
      %854 = vdwg.mxu0
      %v855 = vadd.f32 %v816, %v852
      %s856 = scalar_lea.vmem %s6, 64
      %v857 = vld [vmem:[%s856] sm:$0xf]
      %v858 = vld [vmem:[%s856 + $0x4] sm:$0xf]
      %v859 = vld [vmem:[%s856 + $0x8] sm:$0xf]
      %v860 = vld [vmem:[%s856 + $0xc] sm:$0xf]
      %862 = vst [vmem:[#allocation1] ss:$9 sm:$0xff] %v631
      %s864 = scalar_lea.vmem [#allocation1], 1
      %865 = vst [vmem:[%s864] ss:$9 sm:$0xff] %v633
      %v866 = vld [vmem:[#allocation1] sm:$0xff]
      %v871 = vunpack.c.l.b16 %v857
      %v872 = vunpack.c.l.b16 %v858
      %v873 = vunpack.c.l.b16 %v859
      %v874 = vunpack.c.l.b16 %v860
      %v875 = vpack.c.b16 %v872, %v871
      %v876 = vpack.c.b16 %v874, %v873
      %v879 = vsel %vm662, %v866, 0
      %881 = vmatpush.bf16.msra.mxu0 0
      %882 = vmatpush.bf16.msra.mxu0 0
      %883 = vmatpush.bf16.msra.mxu0 0
      %884 = vmatpush.bf16.msra.mxu0 0
      %885 = vmatpush.bf16.msra.mxu0 0
      %886 = vmatpush.bf16.msra.mxu0 0
      %887 = vmatpush.bf16.msra.mxu0 %v876
      %888 = vmatpush.bf16.msra.mxu0 %v875
      %889 = vmatmul.bf16.gmra.mxu0 %v879
      %v890 = vpop.f32.mrf.mxu0
      %v891 = vadd.f32 0.0, %v890
      %v892 = vpop.f32.mrf.mxu0
      %893 = vdwg.mxu0
      %v894 = vadd.f32 %v855, %v891
      %v897 = vrot.slane %v626, 1
      %v898 = vrot.slane %v626, 2
      %v899 = vrot.slane %v626, 3
      %v900 = vrot.slane %v628, 1
      %v901 = vrot.slane %v628, 2
      %v902 = vrot.slane %v628, 3
      %v904 = vsel %vm719, %v626, %v897
      %v907 = vsel %vm722, %v898, %v899
      %v908 = vsel %vm726, %v904, %v907
      %v909 = vsel %vm728, %v626, %v897
      %v910 = vsel %vm730, %v898, %v899
      %v911 = vsel %vm732, %v909, %v910
      %v913 = vrot.slane %v911, 1
      %v915 = vsel %vm719, %v628, %v900
      %v918 = vsel %vm722, %v901, %v902
      %v919 = vsel %vm726, %v915, %v918
      %v920 = vsel %vm728, %v628, %v900
      %v921 = vsel %vm730, %v901, %v902
      %v922 = vsel %vm732, %v920, %v921
      %v924 = vrot.slane %v922, 1
      %v925 = vshrl.u32 %v908, 16
      %v927 = vrot.slane %v925, 7
      %v928 = vrot.slane %v927, 1
      %v930 = vshll.u32 %v913, 16
      %v932 = vsel %vm761, %v928, %v930
      %v933 = vshrl.u32 %v919, 16
      %v935 = vrot.slane %v933, 7
      %v936 = vrot.slane %v935, 1
      %v938 = vshll.u32 %v924, 16
      %v940 = vsel %vm761, %v936, %v938
      %s941 = scalar_lea.vmem %s6, 80
      %v942 = vld [vmem:[%s941] sm:$0xf]
      %v943 = vld [vmem:[%s941 + $0x4] sm:$0xf]
      %v944 = vld [vmem:[%s941 + $0x8] sm:$0xf]
      %v945 = vld [vmem:[%s941 + $0xc] sm:$0xf]
      %947 = vst [vmem:[#allocation1] ss:$9 sm:$0xff] %v932
      %s949 = scalar_lea.vmem [#allocation1], 1
      %950 = vst [vmem:[%s949] ss:$9 sm:$0xff] %v940
      %v951 = vld [vmem:[#allocation1] sm:$0xff]
      %v956 = vunpack.c.l.b16 %v942
      %v957 = vunpack.c.l.b16 %v943
      %v958 = vunpack.c.l.b16 %v944
      %v959 = vunpack.c.l.b16 %v945
      %v960 = vpack.c.b16 %v957, %v956
      %v961 = vpack.c.b16 %v959, %v958
      %v964 = vsel %vm662, %v951, 0
      %966 = vmatpush.bf16.msra.mxu0 0
      %967 = vmatpush.bf16.msra.mxu0 0
      %968 = vmatpush.bf16.msra.mxu0 0
      %969 = vmatpush.bf16.msra.mxu0 0
      %970 = vmatpush.bf16.msra.mxu0 0
      %971 = vmatpush.bf16.msra.mxu0 0
      %972 = vmatpush.bf16.msra.mxu0 %v961
      %973 = vmatpush.bf16.msra.mxu0 %v960
      %974 = vmatmul.bf16.gmra.mxu0 %v964
      %v975 = vpop.f32.mrf.mxu0
      %v976 = vadd.f32 0.0, %v975
      %v977 = vpop.f32.mrf.mxu0
      %978 = vdwg.mxu0
      %v979 = vadd.f32 %v894, %v976
      %s980 = scalar_lea.vmem %s6, 96
      %v981 = vld [vmem:[%s980] sm:$0xf]
      %v982 = vld [vmem:[%s980 + $0x4] sm:$0xf]
      %v983 = vld [vmem:[%s980 + $0x8] sm:$0xf]
      %v984 = vld [vmem:[%s980 + $0xc] sm:$0xf]
      %985 = vst [vmem:[#allocation1] ss:$9 sm:$0xff] %v627
      %s987 = scalar_lea.vmem [#allocation1], 1
      %988 = vst [vmem:[%s987] ss:$9 sm:$0xff] %v629
      %v989 = vld [vmem:[#allocation1] sm:$0xff]
      %v994 = vunpack.c.l.b16 %v981
      %v995 = vunpack.c.l.b16 %v982
      %v996 = vunpack.c.l.b16 %v983
      %v997 = vunpack.c.l.b16 %v984
      %v998 = vpack.c.b16 %v995, %v994
      %v999 = vpack.c.b16 %v997, %v996
      %v1002 = vsel %vm662, %v989, 0
      %1004 = vmatpush.bf16.msra.mxu0 0
      %1005 = vmatpush.bf16.msra.mxu0 0
      %1006 = vmatpush.bf16.msra.mxu0 0
      %1007 = vmatpush.bf16.msra.mxu0 0
      %1008 = vmatpush.bf16.msra.mxu0 0
      %1009 = vmatpush.bf16.msra.mxu0 0
      %1010 = vmatpush.bf16.msra.mxu0 %v999
      %1011 = vmatpush.bf16.msra.mxu0 %v998
      %1012 = vmatmul.bf16.gmra.mxu0 %v1002
      %v1013 = vpop.f32.mrf.mxu0
      %v1014 = vadd.f32 0.0, %v1013
      %v1015 = vpop.f32.mrf.mxu0
      %1016 = vdwg.mxu0
      %v1017 = vadd.f32 %v979, %v1014
      %s1018 = scalar_lea.vmem %s6, 112
      %v1019 = vld [vmem:[%s1018] sm:$0xf]
      %v1020 = vld [vmem:[%s1018 + $0x4] sm:$0xf]
      %v1021 = vld [vmem:[%s1018 + $0x8] sm:$0xf]
      %v1022 = vld [vmem:[%s1018 + $0xc] sm:$0xf]
      %1023 = vst [vmem:[#allocation1] ss:$9 sm:$0xff] %v632
      %s1025 = scalar_lea.vmem [#allocation1], 1
      %1026 = vst [vmem:[%s1025] ss:$9 sm:$0xff] %v634
      %v1027 = vld [vmem:[#allocation1] sm:$0xff]
      %v1032 = vunpack.c.l.b16 %v1019
      %v1033 = vunpack.c.l.b16 %v1020
      %v1034 = vunpack.c.l.b16 %v1021
      %v1035 = vunpack.c.l.b16 %v1022
      %v1036 = vpack.c.b16 %v1033, %v1032
      %v1037 = vpack.c.b16 %v1035, %v1034
      %v1040 = vsel %vm662, %v1027, 0
      %1042 = vmatpush.bf16.msra.mxu0 0
      %1043 = vmatpush.bf16.msra.mxu0 0
      %1044 = vmatpush.bf16.msra.mxu0 0
      %1045 = vmatpush.bf16.msra.mxu0 0
      %1046 = vmatpush.bf16.msra.mxu0 0
      %1047 = vmatpush.bf16.msra.mxu0 0
      %1048 = vmatpush.bf16.msra.mxu0 %v1037
      %1049 = vmatpush.bf16.msra.mxu0 %v1036
      %1050 = vmatmul.bf16.gmra.mxu0 %v1040
      %v1051 = vpop.f32.mrf.mxu0
      %v1052 = vadd.f32 0.0, %v1051
      %v1053 = vpop.f32.mrf.mxu0
      %1054 = vdwg.mxu0
      %v1055 = vadd.f32 %v1017, %v1052
      %v1057 = vrot.slane %v629, 1
      %v1058 = vrot.slane %v629, 2
      %v1059 = vrot.slane %v629, 3
      %v1061 = vsel %vm719, %v629, %v1057
      %v1064 = vsel %vm722, %v1058, %v1059
      %v1065 = vsel %vm726, %v1061, %v1064
      %v1066 = vsel %vm728, %v629, %v1057
      %v1067 = vsel %vm730, %v1058, %v1059
      %v1068 = vsel %vm732, %v1066, %v1067
      %v1070 = vrot.slane %v1068, 1
      %v1071 = vshrl.u32 %v1065, 16
      %v1073 = vrot.slane %v1071, 7
      %v1074 = vrot.slane %v1073, 1
      %v1076 = vshll.u32 %v1070, 16
      %v1078 = vsel %vm761, %v1074, %v1076
      %s1079 = scalar_lea.vmem %s6, 128
      %v1080 = vld [vmem:[%s1079] sm:$0xf]
      %v1081 = vld [vmem:[%s1079 + $0x4] sm:$0xf]
      %v1082 = vld [vmem:[%s1079 + $0x8] sm:$0xf]
      %v1083 = vld [vmem:[%s1079 + $0xc] sm:$0xf]
      %1084 = vst [vmem:[#allocation1] ss:$9 sm:$0xff] %v777
      %s1086 = scalar_lea.vmem [#allocation1], 1
      %1087 = vst [vmem:[%s1086] ss:$9 sm:$0xff] %v1078
      %v1088 = vld [vmem:[#allocation1] sm:$0xff]
      %v1093 = vunpack.c.l.b16 %v1080
      %v1094 = vunpack.c.l.b16 %v1081
      %v1095 = vunpack.c.l.b16 %v1082
      %v1096 = vunpack.c.l.b16 %v1083
      %v1097 = vpack.c.b16 %v1094, %v1093
      %v1098 = vpack.c.b16 %v1096, %v1095
      %v1101 = vsel %vm662, %v1088, 0
      %1103 = vmatpush.bf16.msra.mxu0 0
      %1104 = vmatpush.bf16.msra.mxu0 0
      %1105 = vmatpush.bf16.msra.mxu0 0
      %1106 = vmatpush.bf16.msra.mxu0 0
      %1107 = vmatpush.bf16.msra.mxu0 0
      %1108 = vmatpush.bf16.msra.mxu0 0
      %1109 = vmatpush.bf16.msra.mxu0 %v1098
      %1110 = vmatpush.bf16.msra.mxu0 %v1097
      %1111 = vmatmul.bf16.gmra.mxu0 %v1101
      %v1112 = vpop.f32.mrf.mxu0
      %v1113 = vadd.f32 0.0, %v1112
      %v1114 = vpop.f32.mrf.mxu0
      %1115 = vdwg.mxu0
      %v1116 = vadd.f32 %v1055, %v1113
      %v1117 = vmax.f32 %v1116, 0.0
      %v1118 = vpack.c.bf16 %v1117, %v1117
      %v1119 = vld [vmem:[%s7] sm:$0xf]
      %v1120 = vld [vmem:[%s7 + $0x4] sm:$0xf]
      %v1121 = vld [vmem:[%s7 + $0x8] sm:$0xf]
      %v1122 = vld [vmem:[%s7 + $0xc] sm:$0xf]
      %v1127 = vunpack.c.l.b16 %v1119
      %v1128 = vunpack.c.l.b16 %v1120
      %v1129 = vunpack.c.l.b16 %v1121
      %v1130 = vunpack.c.l.b16 %v1122
      %v1131 = vpack.c.b16 %v1128, %v1127
      %v1132 = vpack.c.b16 %v1130, %v1129
      %v1136 = vsel %vm662, %v1118, 0
      %1138 = vmatpush.bf16.msra.mxu0 0
      %1139 = vmatpush.bf16.msra.mxu0 0
      %1140 = vmatpush.bf16.msra.mxu0 0
      %1141 = vmatpush.bf16.msra.mxu0 0
      %1142 = vmatpush.bf16.msra.mxu0 0
      %1143 = vmatpush.bf16.msra.mxu0 0
      %1144 = vmatpush.bf16.msra.mxu0 %v1132
      %1145 = vmatpush.bf16.msra.mxu0 %v1131
      %1146 = vmatmul.bf16.gmra.mxu0 %v1136
      %v1147 = vpop.f32.mrf.mxu0
      %v1148 = vadd.f32 0.0, %v1147
      %v1149 = vpop.f32.mrf.mxu0
      %1150 = vdwg.mxu0
      %v1151 = vld [vmem:[%s595] sm:$0x1]
      %v1152 = vld [vmem:[%s595 + $0x1] sm:$0x1]
      %v1153 = vld [vmem:[%s595 + $0x2] sm:$0x1]
      %v1154 = vld [vmem:[%s595 + $0x3] sm:$0x1]
      %v1155 = vunpack.c.l.bf16 %v1151
      %v1156 = vunpack.c.l.bf16 %v1152
      %v1157 = vunpack.c.l.bf16 %v1153
      %v1158 = vunpack.c.l.bf16 %v1154
      %v1159 = vld [vmem:[%s604] sm:$0x1]
      %v1160 = vld [vmem:[%s604 + $0x1] sm:$0x1]
      %v1161 = vld [vmem:[%s604 + $0x2] sm:$0x1]
      %v1162 = vld [vmem:[%s604 + $0x3] sm:$0x1]
      %v1163 = vunpack.c.l.bf16 %v1159
      %v1164 = vunpack.c.l.bf16 %v1160
      %v1165 = vunpack.c.l.bf16 %v1161
      %v1166 = vunpack.c.l.bf16 %v1162
      %v1167 = vadd.f32 %v1155, %v1156
      %v1168 = vadd.f32 %v1157, %v1158
      %v1169 = vadd.f32 %v1167, %v1163
      %v1170 = vadd.f32 %v1168, %v1165
      %v1171 = vadd.f32 %v1169, %v1164
      %v1172 = vadd.f32 %v1170, %v1166
      %v1173 = vmul.f32 %v1171, 0.25
      %v1174 = vmul.f32 %v1172, 0.25
      %v1176 = vrot.slane %v1148, 2
      %v1178 = vadd.f32 %v1173, %v1148
      %v1179 = vadd.f32 %v1174, %v1176
      %v1180 = vpack.c.bf16 %v1148, %v1148
      %v1181 = vpack.c.bf16 %v1176, %v1176
      %vm1182 = vcmask 253952
      %1183 = vst.msk [vmem:[%s613] sm:$0x1] %vm1182, %v1180
      %1184 = vst.msk [vmem:[%s613 + $0x1] sm:$0x1] %vm1182, %v1181
      %v1185 = vpack.c.bf16 %v1178, %v1178
      %v1186 = vpack.c.bf16 %v1179, %v1179
      %1187 = vst.msk [vmem:[%s622] sm:$0x1] %vm1182, %v1185
      %1188 = vst.msk [vmem:[%s622 + $0x1] sm:$0x1] %vm1182, %v1186
      %s1189 = smul.u32 2, %s26
      %p1190 = scmp.lt.s32.totalorder %s25, 1
      %s1191 = scalar_select %p1190, %s25, 1
      %p1192 = scmp.lt.s32.totalorder %s1189, 1
      %s1193 = scalar_select %p1192, %s1189, 1
      %s1194 = smul.addr %s1191, 2
      %s1195 = sadd.s32 %s1193, %s1194
      %s1196 = scalar_lea.vmem %s8, %s1195
      %s1197 = smul.u32 2, %s26
      %p1198 = scmp.lt.s32.totalorder %s25, 1
      %s1199 = scalar_select %p1198, %s25, 1
      %p1200 = scmp.lt.s32.totalorder %s1197, 1
      %s1201 = scalar_select %p1200, %s1197, 1
      %s1202 = smul.addr %s1199, 2
      %s1203 = sadd.s32 %s1201, %s1202
      %s1204 = scalar_lea.vmem %s9, %s1203
      // Predicated region
      $region53: #{pmaa_conv_block_forward.8} parent=51 // pred_check
        %p1205 = pneg %p271
      $region54: #{pmaa_conv_block_forward.8} parent=51 // pred_check_branch
        %1207 = sbr.rel (%p1205) target = $region56
      $region55: #{pmaa_conv_block_forward.8} parent=51 // pred_region
        %s1208 = smul.u32 2, %s26
      $region56: #{pmaa_conv_block_forward.8} parent=51 // pred_fallthru
        _
      // Predicated region
      $region57: #{pmaa_conv_block_forward.8} parent=51 // pred_check
        %p1209 = pneg %p299
      $region58: #{pmaa_conv_block_forward.8} parent=51 // pred_check_branch
        %1211 = sbr.rel (%p1209) target = $region60
      $region59: #{pmaa_conv_block_forward.8} parent=51 // pred_region
        %s1212 = smul.u32 2, %s26
      $region60: #{pmaa_conv_block_forward.8} parent=51 // pred_fallthru
        _
    $region52: #{pmaa_conv_block_forward.8} parent=5 // pred_fallthru
      _
    %p1213 = scmp.le.s32.totalorder 2, %s16
    // Predicated region
    $region61: #{pmaa_conv_block_forward.8} parent=5 // pred_check
      %p1214 = pneg %p1213
    $region62: #{pmaa_conv_block_forward.8} parent=5 // pred_check_branch
      %1216 = sbr.rel (%p1214) target = $region64
    $region63: #{pmaa_conv_block_forward.8} parent=5 // pred_region
      %s1217 = ssub.s32 %s16, 2
      // Predicated region
      $region65: #{pmaa_conv_block_forward.8} parent=63 // pred_check
        %p1218 = pneg %p277
      $region66: #{pmaa_conv_block_forward.8} parent=63 // pred_check_branch
        %1220 = sbr.rel (%p1218) target = $region68
      $region67: #{pmaa_conv_block_forward.8} parent=63 // pred_region
        %s1221 = smul.u32 2, %s28
        %p1222 = scmp.lt.s32.totalorder %s27, 1
        %s1223 = scalar_select %p1222, %s27, 1
        %p1224 = scmp.lt.s32.totalorder %s1221, 1
        %s1225 = scalar_select %p1224, %s1221, 1
        %s1226 = smul.addr %s1223, 2
        %s1227 = sadd.s32 %s1225, %s1226
        %s1228 = scalar_lea.vmem %s8, %s1227
      $region68: #{pmaa_conv_block_forward.8} parent=63 // pred_fallthru
        _
      // Predicated region
      $region69: #{pmaa_conv_block_forward.8} parent=63 // pred_check
        %p1229 = pneg %p305
      $region70: #{pmaa_conv_block_forward.8} parent=63 // pred_check_branch
        %1231 = sbr.rel (%p1229) target = $region72
      $region71: #{pmaa_conv_block_forward.8} parent=63 // pred_region
        %s1232 = smul.u32 2, %s28
        %p1233 = scmp.lt.s32.totalorder %s27, 1
        %s1234 = scalar_select %p1233, %s27, 1
        %p1235 = scmp.lt.s32.totalorder %s1232, 1
        %s1236 = scalar_select %p1235, %s1232, 1
        %s1237 = smul.addr %s1234, 2
        %s1238 = sadd.s32 %s1236, %s1237
        %s1239 = scalar_lea.vmem %s9, %s1238
      $region72: #{pmaa_conv_block_forward.8} parent=63 // pred_fallthru
        _
    $region64: #{pmaa_conv_block_forward.8} parent=5 // pred_fallthru
      _
  $region6: #{pmaa_conv_block_forward.8} parent=0 // loop_footer
    %s20 = sadd.s32 1, %s16
  $region7: #{pmaa_conv_block_forward.8} parent=0 // loop_footer_branch
    %15 = sbr.rel target = $region3
  $region8: #{pmaa_conv_block_forward.8} parent=0 // loop_exit
    _

// kernel: pmaa_conv_block_forward.5
$region0: #{pmaa_conv_block_forward.5}
  #allocation0 [shape = 'u32[]', space=smem, size = 0x4, offset = 0x4, fixed_abs, tag = 'smem constant byte address 0x4 - core index']
  #allocation1 [shape = 'u32[72,128]{1,0:T(1,128)}', space=vmem, size = 0x9000, scoped, tag = 'internal scratch']
  %s0 = inlined_call_operand.vmem [shape: bf16[2,18,18,32], index: 0, kind: input, shape index: {}, may-alias: {0,1,2}]
  %s1 = inlined_call_operand.vmem [shape: bf16[2,18,18,32], index: 1, kind: input, shape index: {}, may-alias: {0,1,2}]
  %s2 = inlined_call_operand.vmem [shape: bf16[2,18,18,32], index: 2, kind: input, shape index: {}, may-alias: {0,1,2}]
  %s3 = inlined_call_operand.vmem [shape: bf16[9,32,32], index: 3, kind: input, shape index: {}]
  %s4 = inlined_call_operand.vmem [shape: bf16[32,32], index: 4, kind: input, shape index: {}]
  %s5 = inlined_call_operand.vmem [shape: bf16[2,16,16,32], index: 5, kind: output, shape index: {}]
  %s6 = sld [smem:[#allocation0]]
  $region53: #{pmaa_conv_block_forward.5} parent=0
    _
  %s8 = ssub.s32 1, %s6
  %s9 = scalar_select 0, %s8, %s6
  loop: start=0, step=1, limit=4
  $region2: #{pmaa_conv_block_forward.5} parent=0 // loop_pre_header
    _
  $region3: #{pmaa_conv_block_forward.5} parent=0 // loop_header
    %s11 = sphi 0, %s15
    %p12 = scmp.ge.s32.totalorder %s11, 4
    %s18 = sphi 0, %s30
    %s19 = sphi 0, %s26
    %s20 = sphi 0, %s18
    %s21 = sphi 0, %s19
    %s22 = sphi 0, %s20
    %s23 = sphi 0, %s21
    %s35 = sphi 0, %s37
    %s38 = sphi 0, %s35
    %s39 = sphi 0, %s38
    %s55 = sphi 0, %s39
    %s67 = sphi 0, %s69
    %s70 = sphi 0, %s67
    %s71 = sphi 0, %s70
    %s87 = sphi 0, %s71
    %s101 = sphi 0, %s103
    %s104 = sphi 0, %s101
    %s105 = sphi 0, %s104
    %s121 = sphi 0, %s105
    %s125 = sphi 0, %s125
    %s127 = sphi 0, %s125
    %s128 = sphi 0, %s127
    %s142 = sphi 0, %s128
    %s146 = sphi 0, %s146
    %s148 = sphi 0, %s146
    %s149 = sphi 0, %s148
    %s163 = sphi 0, %s149
    %s171 = sphi 0, %s173
    %s174 = sphi 0, %s171
    %s175 = sphi 0, %s174
    %s191 = sphi 0, %s175
  $region4: #{pmaa_conv_block_forward.5} parent=0 // loop_header_branch
    %14 = sbr.rel (%p12) target = $region8
  $region5: #{pmaa_conv_block_forward.5} parent=0 // loop_body
    %s16 = ssub.s32 %s11, 1
    %s17 = ssub.s32 %s11, 2
    %s24 = sadd.s32 1, %s19
    %p25 = scmp.ge.s32.totalorder %s24, 1
    %s26 = scalar_select %p25, 0, %s24
    %s27 = sadd.s32 1, %s18
    %s28 = scalar_select %p25, %s27, %s18
    %p29 = scmp.ge.s32.totalorder %s28, 2
    %s30 = scalar_select %p29, 0, %s28
    %s31 = ssub.s32 %s18, %s30
    %s32 = ssub.s32 %s19, %s26
    %s33 = sor.u32 %s31, %s32
    %p34 = scmp.eq.s32.totalorder %s33, 0
    %s36 = sadd.s32 %s35, 1
    %s37 = scalar_select %p34, %s35, %s36
    %p40 = pneg %p34
    %p41 = scmp.eq.s32.totalorder %s11, 1
    %p42 = por %p40, %p41
    %p43 = scmp.ne.s32.totalorder %s35, %s38
    %p44 = scmp.eq.s32.totalorder %s11, 0
    %p45 = por %p43, %p44
    %p46 = scmp.ne.s32.totalorder %s35, %s38
    %p47 = scmp.eq.s32.totalorder %s16, 1
    %p48 = por %p46, %p47
    %p49 = scmp.ne.s32.totalorder %s38, %s39
    %p50 = scmp.eq.s32.totalorder %s16, 0
    %p51 = por %p49, %p50
    %p52 = scmp.ne.s32.totalorder %s38, %s39
    %p53 = scmp.eq.s32.totalorder %s17, 1
    %p54 = por %p52, %p53
    %p56 = scmp.ne.s32.totalorder %s39, %s55
    %p57 = scmp.eq.s32.totalorder %s17, 0
    %p58 = por %p56, %p57
    %s59 = sadd.s32 %s19, 1
    %s60 = smul.u32 %s59, 16
    %s61 = sadd.s32 %s26, 1
    %s62 = smul.u32 %s61, 16
    %s63 = ssub.s32 %s18, %s30
    %s64 = ssub.s32 %s60, %s62
    %s65 = sor.u32 %s63, %s64
    %p66 = scmp.eq.s32.totalorder %s65, 0
    %s68 = sadd.s32 %s67, 1
    %s69 = scalar_select %p66, %s67, %s68
    %p72 = pneg %p66
    %p73 = scmp.eq.s32.totalorder %s11, 1
    %p74 = por %p72, %p73
    %p75 = scmp.ne.s32.totalorder %s67, %s70
    %p76 = scmp.eq.s32.totalorder %s11, 0
    %p77 = por %p75, %p76
    %p78 = scmp.ne.s32.totalorder %s67, %s70
    %p79 = scmp.eq.s32.totalorder %s16, 1
    %p80 = por %p78, %p79
    %p81 = scmp.ne.s32.totalorder %s70, %s71
    %p82 = scmp.eq.s32.totalorder %s16, 0
    %p83 = por %p81, %p82
    %p84 = scmp.ne.s32.totalorder %s70, %s71
    %p85 = scmp.eq.s32.totalorder %s17, 1
    %p86 = por %p84, %p85
    %p88 = scmp.ne.s32.totalorder %s71, %s87
    %p89 = scmp.eq.s32.totalorder %s17, 0
    %p90 = por %p88, %p89
    %s91 = sadd.s32 %s19, 1
    %s92 = smul.u32 %s91, 16
    %s93 = sadd.s32 %s92, 1
    %s94 = sadd.s32 %s26, 1
    %s95 = smul.u32 %s94, 16
    %s96 = sadd.s32 %s95, 1
    %s97 = ssub.s32 %s18, %s30
    %s98 = ssub.s32 %s93, %s96
    %s99 = sor.u32 %s97, %s98
    %p100 = scmp.eq.s32.totalorder %s99, 0
    %s102 = sadd.s32 %s101, 1
    %s103 = scalar_select %p100, %s101, %s102
    %p106 = pneg %p100
    %p107 = scmp.eq.s32.totalorder %s11, 1
    %p108 = por %p106, %p107
    %p109 = scmp.ne.s32.totalorder %s101, %s104
    %p110 = scmp.eq.s32.totalorder %s11, 0
    %p111 = por %p109, %p110
    %p112 = scmp.ne.s32.totalorder %s101, %s104
    %p113 = scmp.eq.s32.totalorder %s16, 1
    %p114 = por %p112, %p113
    %p115 = scmp.ne.s32.totalorder %s104, %s105
    %p116 = scmp.eq.s32.totalorder %s16, 0
    %p117 = por %p115, %p116
    %p118 = scmp.ne.s32.totalorder %s104, %s105
    %p119 = scmp.eq.s32.totalorder %s17, 1
    %p120 = por %p118, %p119
    %p122 = scmp.ne.s32.totalorder %s105, %s121
    %p123 = scmp.eq.s32.totalorder %s17, 0
    %p124 = por %p122, %p123
    %s126 = sadd.s32 %s125, 1
    %p129 = scmp.eq.s32.totalorder %s11, 1
    %p130 = scmp.ne.s32.totalorder %s125, %s127
    %p131 = scmp.eq.s32.totalorder %s11, 0
    %p132 = por %p130, %p131
    %p133 = scmp.ne.s32.totalorder %s125, %s127
    %p134 = scmp.eq.s32.totalorder %s16, 1
    %p135 = por %p133, %p134
    %p136 = scmp.ne.s32.totalorder %s127, %s128
    %p137 = scmp.eq.s32.totalorder %s16, 0
    %p138 = por %p136, %p137
    %p139 = scmp.ne.s32.totalorder %s127, %s128
    %p140 = scmp.eq.s32.totalorder %s17, 1
    %p141 = por %p139, %p140
    %p143 = scmp.ne.s32.totalorder %s128, %s142
    %p144 = scmp.eq.s32.totalorder %s17, 0
    %p145 = por %p143, %p144
    %s147 = sadd.s32 %s146, 1
    %p150 = scmp.eq.s32.totalorder %s11, 1
    %p151 = scmp.ne.s32.totalorder %s146, %s148
    %p152 = scmp.eq.s32.totalorder %s11, 0
    %p153 = por %p151, %p152
    %p154 = scmp.ne.s32.totalorder %s146, %s148
    %p155 = scmp.eq.s32.totalorder %s16, 1
    %p156 = por %p154, %p155
    %p157 = scmp.ne.s32.totalorder %s148, %s149
    %p158 = scmp.eq.s32.totalorder %s16, 0
    %p159 = por %p157, %p158
    %p160 = scmp.ne.s32.totalorder %s148, %s149
    %p161 = scmp.eq.s32.totalorder %s17, 1
    %p162 = por %p160, %p161
    %p164 = scmp.ne.s32.totalorder %s149, %s163
    %p165 = scmp.eq.s32.totalorder %s17, 0
    %p166 = por %p164, %p165
    %s167 = ssub.s32 %s18, %s30
    %s168 = ssub.s32 %s19, %s26
    %s169 = sor.u32 %s167, %s168
    %p170 = scmp.eq.s32.totalorder %s169, 0
    %s172 = sadd.s32 %s171, 1
    %s173 = scalar_select %p170, %s171, %s172
    %p176 = pneg %p170
    %p177 = scmp.eq.s32.totalorder %s11, 1
    %p178 = por %p176, %p177
    %p179 = scmp.ne.s32.totalorder %s171, %s174
    %p180 = scmp.eq.s32.totalorder %s11, 0
    %p181 = por %p179, %p180
    %p182 = scmp.ne.s32.totalorder %s171, %s174
    %p183 = scmp.eq.s32.totalorder %s16, 1
    %p184 = por %p182, %p183
    %p185 = scmp.ne.s32.totalorder %s174, %s175
    %p186 = scmp.eq.s32.totalorder %s16, 0
    %p187 = por %p185, %p186
    %p188 = scmp.ne.s32.totalorder %s174, %s175
    %p189 = scmp.eq.s32.totalorder %s17, 1
    %p190 = por %p188, %p189
    %p192 = scmp.ne.s32.totalorder %s175, %s191
    %p193 = scmp.eq.s32.totalorder %s17, 0
    %p194 = por %p192, %p193
    %p195 = scmp.le.s32.totalorder 1, %s11
    %p196 = scmp.lt.s32.totalorder %s11, 3
    %p197 = pnand %p195, %p196
    %p198 = pneg %p197
    // Predicated region
    $region9: #{pmaa_conv_block_forward.5} parent=5 // pred_check
      _
    $region10: #{pmaa_conv_block_forward.5} parent=5 // pred_check_branch
      %200 = sbr.rel (%p197) target = $region12
    $region11: #{pmaa_conv_block_forward.5} parent=5 // pred_region
      %s201 = ssub.s32 %s11, 1
      // Predicated region
      $region13: #{pmaa_conv_block_forward.5} parent=11 // pred_check
        %p202 = pneg %p138
      $region14: #{pmaa_conv_block_forward.5} parent=11 // pred_check_branch
        %204 = sbr.rel (%p202) target = $region16
      $region15: #{pmaa_conv_block_forward.5} parent=11 // pred_region
        _
      $region16: #{pmaa_conv_block_forward.5} parent=11 // pred_fallthru
        _
      // Predicated region
      $region17: #{pmaa_conv_block_forward.5} parent=11 // pred_check
        %p205 = pneg %p159
      $region18: #{pmaa_conv_block_forward.5} parent=11 // pred_check_branch
        %207 = sbr.rel (%p205) target = $region20
      $region19: #{pmaa_conv_block_forward.5} parent=11 // pred_region
        _
      $region20: #{pmaa_conv_block_forward.5} parent=11 // pred_fallthru
        _
    $region12: #{pmaa_conv_block_forward.5} parent=5 // pred_fallthru
      _
    %p208 = scmp.lt.s32.totalorder %s11, 2
    // Predicated region
    $region21: #{pmaa_conv_block_forward.5} parent=5 // pred_check
      %p209 = pneg %p208
    $region22: #{pmaa_conv_block_forward.5} parent=5 // pred_check_branch
      %211 = sbr.rel (%p209) target = $region24
    $region23: #{pmaa_conv_block_forward.5} parent=5 // pred_region
      // Predicated region
      $region25: #{pmaa_conv_block_forward.5} parent=23 // pred_check
        %p212 = pneg %p45
      $region26: #{pmaa_conv_block_forward.5} parent=23 // pred_check_branch
        %214 = sbr.rel (%p212) target = $region28
      $region27: #{pmaa_conv_block_forward.5} parent=23 // pred_region
        %s215 = smul.u32 16, %s19
        %s216 = ssub.s32 18, %s215
        %p217 = scmp.lt.s32.totalorder %s216, 16
        %s218 = scalar_select %p217, %s216, 16
        %s219 = smul.u32 4, %s218
        %s220 = smul.u32 %s219, 3
        %p221 = scmp.lt.s32.totalorder %s18, 1
        %s222 = scalar_select %p221, %s18, 1
        %p223 = scmp.lt.s32.totalorder %s215, 17
        %s224 = scalar_select %p223, %s215, 17
        %s225 = smul.addr %s224, 3
        %s226 = smul.addr %s222, 54
        %s227 = sadd.s32 %s225, %s226
        %s228 = smul.addr %s227, 4
        %s229 = scalar_lea.vmem %s0, %s228
        %s230 = smul.u32 16, %s19
        %s231 = ssub.s32 18, %s230
        %p232 = scmp.lt.s32.totalorder %s231, 16
        %s233 = scalar_select %p232, %s231, 16
        %s234 = smul.u32 4, %s233
        %s235 = smul.u32 %s234, 3
      $region28: #{pmaa_conv_block_forward.5} parent=23 // pred_fallthru
        _
      // Predicated region
      $region29: #{pmaa_conv_block_forward.5} parent=23 // pred_check
        %p236 = pneg %p77
      $region30: #{pmaa_conv_block_forward.5} parent=23 // pred_check_branch
        %238 = sbr.rel (%p236) target = $region32
      $region31: #{pmaa_conv_block_forward.5} parent=23 // pred_region
        %s239 = sadd.s32 %s19, 1
        %s240 = smul.u32 %s239, 16
        %p241 = scmp.lt.s32.totalorder %s18, 1
        %s242 = scalar_select %p241, %s18, 1
        %p243 = scmp.lt.s32.totalorder %s240, 17
        %s244 = scalar_select %p243, %s240, 17
        %s245 = smul.addr %s244, 3
        %s246 = smul.addr %s242, 54
        %s247 = sadd.s32 %s245, %s246
        %s248 = smul.addr %s247, 4
        %s249 = scalar_lea.vmem %s1, %s248
        %s250 = sadd.s32 %s19, 1
        %s251 = smul.u32 %s250, 16
      $region32: #{pmaa_conv_block_forward.5} parent=23 // pred_fallthru
        _
      // Predicated region
      $region33: #{pmaa_conv_block_forward.5} parent=23 // pred_check
        %p252 = pneg %p111
      $region34: #{pmaa_conv_block_forward.5} parent=23 // pred_check_branch
        %254 = sbr.rel (%p252) target = $region36
      $region35: #{pmaa_conv_block_forward.5} parent=23 // pred_region
        %s255 = sadd.s32 %s19, 1
        %s256 = smul.u32 %s255, 16
        %s257 = sadd.s32 %s256, 1
        %p258 = scmp.lt.s32.totalorder %s18, 1
        %s259 = scalar_select %p258, %s18, 1
        %p260 = scmp.lt.s32.totalorder %s257, 17
        %s261 = scalar_select %p260, %s257, 17
        %s262 = smul.addr %s261, 3
        %s263 = smul.addr %s259, 54
        %s264 = sadd.s32 %s262, %s263
        %s265 = smul.addr %s264, 4
        %s266 = scalar_lea.vmem %s2, %s265
        %s267 = sadd.s32 %s19, 1
        %s268 = smul.u32 %s267, 16
        %s269 = sadd.s32 %s268, 1
      $region36: #{pmaa_conv_block_forward.5} parent=23 // pred_fallthru
        _
    $region24: #{pmaa_conv_block_forward.5} parent=5 // pred_fallthru
      _
    %p270 = scmp.le.s32.totalorder 1, %s11
    %p271 = scmp.lt.s32.totalorder %s11, 3
    %p272 = pnand %p270, %p271
    %p273 = pneg %p272
    // Predicated region
    $region37: #{pmaa_conv_block_forward.5} parent=5 // pred_check
      _
    $region38: #{pmaa_conv_block_forward.5} parent=5 // pred_check_branch
      %275 = sbr.rel (%p272) target = $region40
    $region39: #{pmaa_conv_block_forward.5} parent=5 // pred_region
      %s276 = ssub.s32 %s11, 1
      %s277 = smul.u32 16, %s21
      %s278 = ssub.s32 18, %s277
      %p279 = scmp.lt.s32.totalorder %s278, 16
      %s280 = scalar_select %p279, %s278, 16
      %s281 = smul.u32 4, %s280
      %s282 = smul.u32 %s281, 3
      %p283 = scmp.lt.s32.totalorder %s20, 1
      %s284 = scalar_select %p283, %s20, 1
      %p285 = scmp.lt.s32.totalorder %s277, 17
      %s286 = scalar_select %p285, %s277, 17
      %s287 = smul.addr %s286, 3
      %s288 = smul.addr %s284, 54
      %s289 = sadd.s32 %s287, %s288
      %s290 = smul.addr %s289, 4
      %s291 = scalar_lea.vmem %s0, %s290
      %p292 = pneg %p51
      %p293 = pneg %p48
      %s294 = sadd.s32 %s21, 1
      %s295 = smul.u32 %s294, 16
      %p296 = scmp.lt.s32.totalorder %s20, 1
      %s297 = scalar_select %p296, %s20, 1
      %p298 = scmp.lt.s32.totalorder %s295, 17
      %s299 = scalar_select %p298, %s295, 17
      %s300 = smul.addr %s299, 3
      %s301 = smul.addr %s297, 54
      %s302 = sadd.s32 %s300, %s301
      %s303 = smul.addr %s302, 4
      %s304 = scalar_lea.vmem %s1, %s303
      %p305 = pneg %p83
      %p306 = pneg %p80
      %s307 = sadd.s32 %s21, 1
      %s308 = smul.u32 %s307, 16
      %s309 = sadd.s32 %s308, 1
      %p310 = scmp.lt.s32.totalorder %s20, 1
      %s311 = scalar_select %p310, %s20, 1
      %p312 = scmp.lt.s32.totalorder %s309, 17
      %s313 = scalar_select %p312, %s309, 17
      %s314 = smul.addr %s313, 3
      %s315 = smul.addr %s311, 54
      %s316 = sadd.s32 %s314, %s315
      %s317 = smul.addr %s316, 4
      %s318 = scalar_lea.vmem %s2, %s317
      %p319 = pneg %p117
      %p320 = pneg %p114
      %p321 = pneg %p138
      %p322 = pneg %p135
      %p323 = pneg %p159
      %p324 = pneg %p156
      %p325 = pneg %p187
      %p326 = pneg %p184
      %s327 = smul.u32 16, %s21
      %p328 = scmp.lt.s32.totalorder %s20, 1
      %s329 = scalar_select %p328, %s20, 1
      %p330 = scmp.lt.s32.totalorder %s327, 15
      %s331 = scalar_select %p330, %s327, 15
      %s332 = smul.addr %s331, 2
      %s333 = smul.addr %s329, 32
      %s334 = sadd.s32 %s332, %s333
      %s335 = smul.addr %s334, 4
      %s336 = scalar_lea.vmem %s5, %s335
      %s337 = smul.u32 16, %s21
      %s338 = ssub.s32 18, %s337
      %p339 = scmp.lt.s32.totalorder %s338, 16
      %s340 = scalar_select %p339, %s338, 16
      %s341 = smul.u32 4, %s340
      %s342 = smul.u32 %s341, 3
      %p343 = scmp.lt.s32.totalorder %s20, 1
      %s344 = scalar_select %p343, %s20, 1
      %p345 = scmp.lt.s32.totalorder %s337, 17
      %s346 = scalar_select %p345, %s337, 17
      %s347 = smul.addr %s346, 3
      %s348 = smul.addr %s344, 54
      %s349 = sadd.s32 %s347, %s348
      %s350 = smul.addr %s349, 4
      %s351 = scalar_lea.vmem %s0, %s350
      %s352 = smul.u32 16, %s21
      %s353 = ssub.s32 18, %s352
      %p354 = scmp.lt.s32.totalorder %s353, 16
      %s355 = scalar_select %p354, %s353, 16
      %s356 = smul.u32 4, %s355
      %s357 = smul.u32 %s356, 3
      %s358 = sadd.s32 %s21, 1
      %s359 = smul.u32 %s358, 16
      %p360 = scmp.lt.s32.totalorder %s20, 1
      %s361 = scalar_select %p360, %s20, 1
      %p362 = scmp.lt.s32.totalorder %s359, 17
      %s363 = scalar_select %p362, %s359, 17
      %s364 = smul.addr %s363, 3
      %s365 = smul.addr %s361, 54
      %s366 = sadd.s32 %s364, %s365
      %s367 = smul.addr %s366, 4
      %s368 = scalar_lea.vmem %s1, %s367
      %s369 = sadd.s32 %s21, 1
      %s370 = smul.u32 %s369, 16
      %s371 = sadd.s32 %s21, 1
      %s372 = smul.u32 %s371, 16
      %s373 = sadd.s32 %s372, 1
      %p374 = scmp.lt.s32.totalorder %s20, 1
      %s375 = scalar_select %p374, %s20, 1
      %p376 = scmp.lt.s32.totalorder %s373, 17
      %s377 = scalar_select %p376, %s373, 17
      %s378 = smul.addr %s377, 3
      %s379 = smul.addr %s375, 54
      %s380 = sadd.s32 %s378, %s379
      %s381 = smul.addr %s380, 4
      %s382 = scalar_lea.vmem %s2, %s381
      %s383 = sadd.s32 %s21, 1
      %s384 = smul.u32 %s383, 16
      %s385 = sadd.s32 %s384, 1
      %s386 = smul.u32 16, %s21
      %p387 = scmp.lt.s32.totalorder %s20, 1
      %s388 = scalar_select %p387, %s20, 1
      %p389 = scmp.lt.s32.totalorder %s386, 15
      %s390 = scalar_select %p389, %s386, 15
      %s391 = smul.addr %s390, 2
      %s392 = smul.addr %s388, 32
      %s393 = sadd.s32 %s391, %s392
      %s394 = smul.addr %s393, 4
      %s395 = scalar_lea.vmem %s5, %s394
      %s396 = smul.u32 16, %s21
      %v398 = vld [vmem:[%s351] sm:$0xf]
      %v399 = vld [vmem:[%s351 + $0x4] sm:$0xf]
      %v400 = vld [vmem:[%s351 + $0x8] sm:$0x1]
      %v401 = vld [vmem:[%s351 + $0xc] sm:$0xf]
      %v402 = vld [vmem:[%s351 + $0x10] sm:$0xf]
      %v403 = vld [vmem:[%s351 + $0x14] sm:$0x1]
      %v404 = vld [vmem:[%s351 + $0x18] sm:$0xf]
      %v405 = vld [vmem:[%s351 + $0x1c] sm:$0xf]
      %v406 = vld [vmem:[%s351 + $0x20] sm:$0x1]
      %v407 = vld [vmem:[%s351 + $0x24] sm:$0xf]
      %v408 = vld [vmem:[%s351 + $0x28] sm:$0xf]
      %v409 = vld [vmem:[%s351 + $0x2c] sm:$0x1]
      %v410 = vld [vmem:[%s351 + $0x30] sm:$0xf]
      %v411 = vld [vmem:[%s351 + $0x34] sm:$0xf]
      %v412 = vld [vmem:[%s351 + $0x38] sm:$0x1]
      %v413 = vld [vmem:[%s351 + $0x3c] sm:$0xf]
      %v414 = vld [vmem:[%s351 + $0x40] sm:$0xf]
      %v415 = vld [vmem:[%s351 + $0x44] sm:$0x1]
      %v416 = vld [vmem:[%s351 + $0x48] sm:$0xf]
      %v417 = vld [vmem:[%s351 + $0x4c] sm:$0xf]
      %v418 = vld [vmem:[%s351 + $0x50] sm:$0x1]
      %v419 = vld [vmem:[%s351 + $0x54] sm:$0xf]
      %v420 = vld [vmem:[%s351 + $0x58] sm:$0xf]
      %v421 = vld [vmem:[%s351 + $0x5c] sm:$0x1]
      %v422 = vld [vmem:[%s351 + $0x60] sm:$0xf]
      %v423 = vld [vmem:[%s351 + $0x64] sm:$0xf]
      %v424 = vld [vmem:[%s351 + $0x68] sm:$0x1]
      %v425 = vld [vmem:[%s351 + $0x6c] sm:$0xf]
      %v426 = vld [vmem:[%s351 + $0x70] sm:$0xf]
      %v427 = vld [vmem:[%s351 + $0x74] sm:$0x1]
      %v428 = vld [vmem:[%s351 + $0x78] sm:$0xf]
      %v429 = vld [vmem:[%s351 + $0x7c] sm:$0xf]
      %v430 = vld [vmem:[%s351 + $0x80] sm:$0x1]
      %v431 = vld [vmem:[%s351 + $0x84] sm:$0xf]
      %v432 = vld [vmem:[%s351 + $0x88] sm:$0xf]
      %v433 = vld [vmem:[%s351 + $0x8c] sm:$0x1]
      %v434 = vld [vmem:[%s351 + $0x90] sm:$0xf]
      %v435 = vld [vmem:[%s351 + $0x94] sm:$0xf]
      %v436 = vld [vmem:[%s351 + $0x98] sm:$0x1]
      %v437 = vld [vmem:[%s351 + $0x9c] sm:$0xf]
      %v438 = vld [vmem:[%s351 + $0xa0] sm:$0xf]
      %v439 = vld [vmem:[%s351 + $0xa4] sm:$0x1]
      %v440 = vld [vmem:[%s351 + $0xa8] sm:$0xf]
      %v441 = vld [vmem:[%s351 + $0xac] sm:$0xf]
      %v442 = vld [vmem:[%s351 + $0xb0] sm:$0x1]
      %v443 = vld [vmem:[%s351 + $0xb4] sm:$0xf]
      %v444 = vld [vmem:[%s351 + $0xb8] sm:$0xf]
      %v445 = vld [vmem:[%s351 + $0xbc] sm:$0x1]
      %v446 = vld [vmem:[%s368] sm:$0xf]
      %v447 = vld [vmem:[%s368 + $0x4] sm:$0xf]
      %v448 = vld [vmem:[%s368 + $0x8] sm:$0x1]
      %v449 = vld [vmem:[%s382] sm:$0xf]
      %v450 = vld [vmem:[%s382 + $0x4] sm:$0xf]
      %v451 = vld [vmem:[%s382 + $0x8] sm:$0x1]
      %v452 = vld [vmem:[%s3] sm:$0xf]
      %v453 = vld [vmem:[%s3 + $0x4] sm:$0xf]
      %v454 = vld [vmem:[%s3 + $0x8] sm:$0xf]
      %v455 = vld [vmem:[%s3 + $0xc] sm:$0xf]
      %vm456 = vsmask.f32 3328
      %vm457 = vsmask.f32 7440
      %vm458 = vmor %vm456, %vm457
      %v460 = vshrl.u32 %v398, 16
      %v462 = vrot.slane %v460, 4
      %v463 = vshll.u32 %v398, 16
      %v465 = vrot.slane %v463, 5
      %v466 = vor.u32 %v462, %v465
      %v467 = vrot.slane %v466, 4
      %v469 = vshll.u32 %v399, 16
      %v471 = vrot.slane %v469, 5
      %v472 = vsel %vm458, %v467, %v471
      %v473 = vshrl.u32 %v399, 16
      %v475 = vrot.slane %v473, 4
      %v476 = vor.u32 %v475, %v471
      %v477 = vrot.slane %v476, 4
      %v479 = vshll.u32 %v400, 16
      %v481 = vrot.slane %v479, 5
      %v482 = vsel %vm458, %v477, %v481
      %v484 = vshrl.u32 %v401, 16
      %v486 = vrot.slane %v484, 4
      %v487 = vshll.u32 %v401, 16
      %v489 = vrot.slane %v487, 5
      %v490 = vor.u32 %v486, %v489
      %v491 = vrot.slane %v490, 4
      %v493 = vshll.u32 %v402, 16
      %v495 = vrot.slane %v493, 5
      %v496 = vsel %vm458, %v491, %v495
      %v497 = vshrl.u32 %v402, 16
      %v499 = vrot.slane %v497, 4
      %v500 = vor.u32 %v499, %v495
      %v501 = vrot.slane %v500, 4
      %v503 = vshll.u32 %v403, 16
      %v505 = vrot.slane %v503, 5
      %v506 = vsel %vm458, %v501, %v505
      %v508 = vshrl.u32 %v404, 16
      %v510 = vrot.slane %v508, 4
      %v511 = vshll.u32 %v404, 16
      %v513 = vrot.slane %v511, 5
      %v514 = vor.u32 %v510, %v513
      %v515 = vrot.slane %v514, 4
      %v517 = vshll.u32 %v405, 16
      %v519 = vrot.slane %v517, 5
      %v520 = vsel %vm458, %v515, %v519
      %v521 = vshrl.u32 %v405, 16
      %v523 = vrot.slane %v521, 4
      %v524 = vor.u32 %v523, %v519
      %v525 = vrot.slane %v524, 4
      %v527 = vshll.u32 %v406, 16
      %v529 = vrot.slane %v527, 5
      %v530 = vsel %vm458, %v525, %v529
      %v532 = vshrl.u32 %v407, 16
      %v534 = vrot.slane %v532, 4
      %v535 = vshll.u32 %v407, 16
      %v537 = vrot.slane %v535, 5
      %v538 = vor.u32 %v534, %v537
      %v539 = vrot.slane %v538, 4
      %v541 = vshll.u32 %v408, 16
      %v543 = vrot.slane %v541, 5
      %v544 = vsel %vm458, %v539, %v543
      %v545 = vshrl.u32 %v408, 16
      %v547 = vrot.slane %v545, 4
      %v548 = vor.u32 %v547, %v543
      %v549 = vrot.slane %v548, 4
      %v551 = vshll.u32 %v409, 16
      %v553 = vrot.slane %v551, 5
      %v554 = vsel %vm458, %v549, %v553
      %v556 = vshrl.u32 %v410, 16
      %v558 = vrot.slane %v556, 4
      %v559 = vshll.u32 %v410, 16
      %v561 = vrot.slane %v559, 5
      %v562 = vor.u32 %v558, %v561
      %v563 = vrot.slane %v562, 4
      %v565 = vshll.u32 %v411, 16
      %v567 = vrot.slane %v565, 5
      %v568 = vsel %vm458, %v563, %v567
      %v569 = vshrl.u32 %v411, 16
      %v571 = vrot.slane %v569, 4
      %v572 = vor.u32 %v571, %v567
      %v573 = vrot.slane %v572, 4
      %v575 = vshll.u32 %v412, 16
      %v577 = vrot.slane %v575, 5
      %v578 = vsel %vm458, %v573, %v577
      %v580 = vshrl.u32 %v413, 16
      %v582 = vrot.slane %v580, 4
      %v583 = vshll.u32 %v413, 16
      %v585 = vrot.slane %v583, 5
      %v586 = vor.u32 %v582, %v585
      %v587 = vrot.slane %v586, 4
      %v589 = vshll.u32 %v414, 16
      %v591 = vrot.slane %v589, 5
      %v592 = vsel %vm458, %v587, %v591
      %v593 = vshrl.u32 %v414, 16
      %v595 = vrot.slane %v593, 4
      %v596 = vor.u32 %v595, %v591
      %v597 = vrot.slane %v596, 4
      %v599 = vshll.u32 %v415, 16
      %v601 = vrot.slane %v599, 5
      %v602 = vsel %vm458, %v597, %v601
      %v604 = vshrl.u32 %v416, 16
      %v606 = vrot.slane %v604, 4
      %v607 = vshll.u32 %v416, 16
      %v609 = vrot.slane %v607, 5
      %v610 = vor.u32 %v606, %v609
      %v611 = vrot.slane %v610, 4
      %v613 = vshll.u32 %v417, 16
      %v615 = vrot.slane %v613, 5
      %v616 = vsel %vm458, %v611, %v615
      %v617 = vshrl.u32 %v417, 16
      %v619 = vrot.slane %v617, 4
      %v620 = vor.u32 %v619, %v615
      %v621 = vrot.slane %v620, 4
      %v623 = vshll.u32 %v418, 16
      %v625 = vrot.slane %v623, 5
      %v626 = vsel %vm458, %v621, %v625
      %v628 = vshrl.u32 %v419, 16
      %v630 = vrot.slane %v628, 4
      %v631 = vshll.u32 %v419, 16
      %v633 = vrot.slane %v631, 5
      %v634 = vor.u32 %v630, %v633
      %v635 = vrot.slane %v634, 4
      %v637 = vshll.u32 %v420, 16
      %v639 = vrot.slane %v637, 5
      %v640 = vsel %vm458, %v635, %v639
      %v641 = vshrl.u32 %v420, 16
      %v643 = vrot.slane %v641, 4
      %v644 = vor.u32 %v643, %v639
      %v645 = vrot.slane %v644, 4
      %v647 = vshll.u32 %v421, 16
      %v649 = vrot.slane %v647, 5
      %v650 = vsel %vm458, %v645, %v649
      %v652 = vshrl.u32 %v422, 16
      %v654 = vrot.slane %v652, 4
      %v655 = vshll.u32 %v422, 16
      %v657 = vrot.slane %v655, 5
      %v658 = vor.u32 %v654, %v657
      %v659 = vrot.slane %v658, 4
      %v661 = vshll.u32 %v423, 16
      %v663 = vrot.slane %v661, 5
      %v664 = vsel %vm458, %v659, %v663
      %v665 = vshrl.u32 %v423, 16
      %v667 = vrot.slane %v665, 4
      %v668 = vor.u32 %v667, %v663
      %v669 = vrot.slane %v668, 4
      %v671 = vshll.u32 %v424, 16
      %v673 = vrot.slane %v671, 5
      %v674 = vsel %vm458, %v669, %v673
      %v676 = vshrl.u32 %v425, 16
      %v678 = vrot.slane %v676, 4
      %v679 = vshll.u32 %v425, 16
      %v681 = vrot.slane %v679, 5
      %v682 = vor.u32 %v678, %v681
      %v683 = vrot.slane %v682, 4
      %v685 = vshll.u32 %v426, 16
      %v687 = vrot.slane %v685, 5
      %v688 = vsel %vm458, %v683, %v687
      %v689 = vshrl.u32 %v426, 16
      %v691 = vrot.slane %v689, 4
      %v692 = vor.u32 %v691, %v687
      %v693 = vrot.slane %v692, 4
      %v695 = vshll.u32 %v427, 16
      %v697 = vrot.slane %v695, 5
      %v698 = vsel %vm458, %v693, %v697
      %v700 = vshrl.u32 %v428, 16
      %v702 = vrot.slane %v700, 4
      %v703 = vshll.u32 %v428, 16
      %v705 = vrot.slane %v703, 5
      %v706 = vor.u32 %v702, %v705
      %v707 = vrot.slane %v706, 4
      %v709 = vshll.u32 %v429, 16
      %v711 = vrot.slane %v709, 5
      %v712 = vsel %vm458, %v707, %v711
      %v713 = vshrl.u32 %v429, 16
      %v715 = vrot.slane %v713, 4
      %v716 = vor.u32 %v715, %v711
      %v717 = vrot.slane %v716, 4
      %v719 = vshll.u32 %v430, 16
      %v721 = vrot.slane %v719, 5
      %v722 = vsel %vm458, %v717, %v721
      %v724 = vshrl.u32 %v431, 16
      %v726 = vrot.slane %v724, 4
      %v727 = vshll.u32 %v431, 16
      %v729 = vrot.slane %v727, 5
      %v730 = vor.u32 %v726, %v729
      %v731 = vrot.slane %v730, 4
      %v733 = vshll.u32 %v432, 16
      %v735 = vrot.slane %v733, 5
      %v736 = vsel %vm458, %v731, %v735
      %v737 = vshrl.u32 %v432, 16
      %v739 = vrot.slane %v737, 4
      %v740 = vor.u32 %v739, %v735
      %v741 = vrot.slane %v740, 4
      %v743 = vshll.u32 %v433, 16
      %v745 = vrot.slane %v743, 5
      %v746 = vsel %vm458, %v741, %v745
      %v748 = vshrl.u32 %v434, 16
      %v750 = vrot.slane %v748, 4
      %v751 = vshll.u32 %v434, 16
      %v753 = vrot.slane %v751, 5
      %v754 = vor.u32 %v750, %v753
      %v755 = vrot.slane %v754, 4
      %v757 = vshll.u32 %v435, 16
      %v759 = vrot.slane %v757, 5
      %v760 = vsel %vm458, %v755, %v759
      %v761 = vshrl.u32 %v435, 16
      %v763 = vrot.slane %v761, 4
      %v764 = vor.u32 %v763, %v759
      %v765 = vrot.slane %v764, 4
      %v767 = vshll.u32 %v436, 16
      %v769 = vrot.slane %v767, 5
      %v770 = vsel %vm458, %v765, %v769
      %v772 = vshrl.u32 %v437, 16
      %v774 = vrot.slane %v772, 4
      %v775 = vshll.u32 %v437, 16
      %v777 = vrot.slane %v775, 5
      %v778 = vor.u32 %v774, %v777
      %v779 = vrot.slane %v778, 4
      %v781 = vshll.u32 %v438, 16
      %v783 = vrot.slane %v781, 5
      %v784 = vsel %vm458, %v779, %v783
      %v785 = vshrl.u32 %v438, 16
      %v787 = vrot.slane %v785, 4
      %v788 = vor.u32 %v787, %v783
      %v789 = vrot.slane %v788, 4
      %v791 = vshll.u32 %v439, 16
      %v793 = vrot.slane %v791, 5
      %v794 = vsel %vm458, %v789, %v793
      %v796 = vshrl.u32 %v440, 16
      %v798 = vrot.slane %v796, 4
      %v799 = vshll.u32 %v440, 16
      %v801 = vrot.slane %v799, 5
      %v802 = vor.u32 %v798, %v801
      %v803 = vrot.slane %v802, 4
      %v805 = vshll.u32 %v441, 16
      %v807 = vrot.slane %v805, 5
      %v808 = vsel %vm458, %v803, %v807
      %v809 = vshrl.u32 %v441, 16
      %v811 = vrot.slane %v809, 4
      %v812 = vor.u32 %v811, %v807
      %v813 = vrot.slane %v812, 4
      %v815 = vshll.u32 %v442, 16
      %v817 = vrot.slane %v815, 5
      %v818 = vsel %vm458, %v813, %v817
      %v820 = vshrl.u32 %v443, 16
      %v822 = vrot.slane %v820, 4
      %v823 = vshll.u32 %v443, 16
      %v825 = vrot.slane %v823, 5
      %v826 = vor.u32 %v822, %v825
      %v827 = vrot.slane %v826, 4
      %v829 = vshll.u32 %v444, 16
      %v831 = vrot.slane %v829, 5
      %v832 = vsel %vm458, %v827, %v831
      %v833 = vshrl.u32 %v444, 16
      %v835 = vrot.slane %v833, 4
      %v836 = vor.u32 %v835, %v831
      %v837 = vrot.slane %v836, 4
      %v839 = vshll.u32 %v445, 16
      %v841 = vrot.slane %v839, 5
      %v842 = vsel %vm458, %v837, %v841
      %s843 = scalar_lea.vmem %s3, 16
      %v844 = vld [vmem:[%s843] sm:$0xf]
      %v845 = vld [vmem:[%s843 + $0x4] sm:$0xf]
      %v846 = vld [vmem:[%s843 + $0x8] sm:$0xf]
      %v847 = vld [vmem:[%s843 + $0xc] sm:$0xf]
      %v848 = vunpack.c.l.b16 %v472
      %v849 = vunpack.c.l.b16 %v482
      %v850 = vunpack.c.l.b16 %v496
      %v851 = vunpack.c.l.b16 %v506
      %v852 = vunpack.c.l.b16 %v520
      %v853 = vunpack.c.l.b16 %v530
      %v854 = vunpack.c.l.b16 %v544
      %v855 = vunpack.c.l.b16 %v554
      %v856 = vunpack.c.l.b16 %v568
      %v857 = vunpack.c.l.b16 %v578
      %v858 = vunpack.c.l.b16 %v592
      %v859 = vunpack.c.l.b16 %v602
      %v860 = vunpack.c.l.b16 %v616
      %v861 = vunpack.c.l.b16 %v626
      %v862 = vunpack.c.l.b16 %v640
      %v863 = vunpack.c.l.b16 %v650
      %v864 = vunpack.c.l.b16 %v664
      %v865 = vunpack.c.l.b16 %v674
      %v866 = vunpack.c.l.b16 %v688
      %v867 = vunpack.c.l.b16 %v698
      %v868 = vunpack.c.l.b16 %v712
      %v869 = vunpack.c.l.b16 %v722
      %v870 = vunpack.c.l.b16 %v736
      %v871 = vunpack.c.l.b16 %v746
      %v872 = vunpack.c.l.b16 %v760
      %v873 = vunpack.c.l.b16 %v770
      %v874 = vunpack.c.l.b16 %v784
      %v875 = vunpack.c.l.b16 %v794
      %v876 = vunpack.c.l.b16 %v808
      %v877 = vunpack.c.l.b16 %v818
      %v878 = vunpack.c.l.b16 %v832
      %v879 = vunpack.c.l.b16 %v842
      %v880 = vpack.c.b16 %v849, %v848
      %v881 = vpack.c.b16 %v851, %v850
      %v882 = vpack.c.b16 %v853, %v852
      %v883 = vpack.c.b16 %v855, %v854
      %v884 = vpack.c.b16 %v857, %v856
      %v885 = vpack.c.b16 %v859, %v858
      %v886 = vpack.c.b16 %v861, %v860
      %v887 = vpack.c.b16 %v863, %v862
      %v888 = vpack.c.b16 %v865, %v864
      %v889 = vpack.c.b16 %v867, %v866
      %v890 = vpack.c.b16 %v869, %v868
      %v891 = vpack.c.b16 %v871, %v870
      %v892 = vpack.c.b16 %v873, %v872
      %v893 = vpack.c.b16 %v875, %v874
      %v894 = vpack.c.b16 %v877, %v876
      %v895 = vpack.c.b16 %v879, %v878
      %v900 = vunpack.c.l.b16 %v844
      %v901 = vunpack.c.l.b16 %v845
      %v902 = vunpack.c.l.b16 %v846
      %v903 = vunpack.c.l.b16 %v847
      %v904 = vpack.c.b16 %v901, %v900
      %v905 = vpack.c.b16 %v903, %v902
      %vm908 = vcmask 261120
      %v910 = vsel %vm908, %v880, 0
      %v913 = vsel %vm908, %v881, 0
      %v916 = vsel %vm908, %v882, 0
      %v919 = vsel %vm908, %v883, 0
      %v922 = vsel %vm908, %v884, 0
      %v925 = vsel %vm908, %v885, 0
      %v928 = vsel %vm908, %v886, 0
      %v931 = vsel %vm908, %v887, 0
      %v934 = vsel %vm908, %v888, 0
      %v937 = vsel %vm908, %v889, 0
      %v940 = vsel %vm908, %v890, 0
      %v943 = vsel %vm908, %v891, 0
      %v946 = vsel %vm908, %v892, 0
      %v949 = vsel %vm908, %v893, 0
      %v952 = vsel %vm908, %v894, 0
      %v955 = vsel %vm908, %v895, 0
      %957 = vmatpush.bf16.msra.mxu0 0
      %958 = vmatpush.bf16.msra.mxu0 0
      %959 = vmatpush.bf16.msra.mxu0 0
      %960 = vmatpush.bf16.msra.mxu0 0
      %961 = vmatpush.bf16.msra.mxu0 0
      %962 = vmatpush.bf16.msra.mxu0 0
      %963 = vmatpush.bf16.msra.mxu0 %v905
      %964 = vmatpush.bf16.msra.mxu0 %v904
      %965 = vmatmul.bf16.gmra.mxu0 %v910
      %v966 = vpop.f32.mrf.mxu0
      %v967 = vadd.f32 0.0, %v966
      %v968 = vpop.f32.mrf.mxu0
      %v969 = vadd.f32 0.0, %v968
      %970 = vmatmul.bf16.gmra.mxu0 %v913
      %v971 = vpop.f32.mrf.mxu0
      %v972 = vadd.f32 0.0, %v971
      %v973 = vpop.f32.mrf.mxu0
      %v974 = vadd.f32 0.0, %v973
      %975 = vmatmul.bf16.gmra.mxu0 %v916
      %v976 = vpop.f32.mrf.mxu0
      %v977 = vadd.f32 0.0, %v976
      %v978 = vpop.f32.mrf.mxu0
      %v979 = vadd.f32 0.0, %v978
      %980 = vmatmul.bf16.gmra.mxu0 %v919
      %v981 = vpop.f32.mrf.mxu0
      %v982 = vadd.f32 0.0, %v981
      %v983 = vpop.f32.mrf.mxu0
      %v984 = vadd.f32 0.0, %v983
      %985 = vmatmul.bf16.gmra.mxu0 %v922
      %v986 = vpop.f32.mrf.mxu0
      %v987 = vadd.f32 0.0, %v986
      %v988 = vpop.f32.mrf.mxu0
      %v989 = vadd.f32 0.0, %v988
      %990 = vmatmul.bf16.gmra.mxu0 %v925
      %v991 = vpop.f32.mrf.mxu0
      %v992 = vadd.f32 0.0, %v991
      %v993 = vpop.f32.mrf.mxu0
      %v994 = vadd.f32 0.0, %v993
      %995 = vmatmul.bf16.gmra.mxu0 %v928
      %v996 = vpop.f32.mrf.mxu0
      %v997 = vadd.f32 0.0, %v996
      %v998 = vpop.f32.mrf.mxu0
      %v999 = vadd.f32 0.0, %v998
      %1000 = vmatmul.bf16.gmra.mxu0 %v931
      %v1001 = vpop.f32.mrf.mxu0
      %v1002 = vadd.f32 0.0, %v1001
      %v1003 = vpop.f32.mrf.mxu0
      %v1004 = vadd.f32 0.0, %v1003
      %1005 = vmatmul.bf16.gmra.mxu0 %v934
      %v1006 = vpop.f32.mrf.mxu0
      %v1007 = vadd.f32 0.0, %v1006
      %v1008 = vpop.f32.mrf.mxu0
      %v1009 = vadd.f32 0.0, %v1008
      %1010 = vmatmul.bf16.gmra.mxu0 %v937
      %v1011 = vpop.f32.mrf.mxu0
      %v1012 = vadd.f32 0.0, %v1011
      %v1013 = vpop.f32.mrf.mxu0
      %v1014 = vadd.f32 0.0, %v1013
      %1015 = vmatmul.bf16.gmra.mxu0 %v940
      %v1016 = vpop.f32.mrf.mxu0
      %v1017 = vadd.f32 0.0, %v1016
      %v1018 = vpop.f32.mrf.mxu0
      %v1019 = vadd.f32 0.0, %v1018
      %1020 = vmatmul.bf16.gmra.mxu0 %v943
      %v1021 = vpop.f32.mrf.mxu0
      %v1022 = vadd.f32 0.0, %v1021
      %v1023 = vpop.f32.mrf.mxu0
      %v1024 = vadd.f32 0.0, %v1023
      %1025 = vmatmul.bf16.gmra.mxu0 %v946
      %v1026 = vpop.f32.mrf.mxu0
      %v1027 = vadd.f32 0.0, %v1026
      %v1028 = vpop.f32.mrf.mxu0
      %v1029 = vadd.f32 0.0, %v1028
      %1030 = vmatmul.bf16.gmra.mxu0 %v949
      %v1031 = vpop.f32.mrf.mxu0
      %v1032 = vadd.f32 0.0, %v1031
      %v1033 = vpop.f32.mrf.mxu0
      %v1034 = vadd.f32 0.0, %v1033
      %1035 = vmatmul.bf16.gmra.mxu0 %v952
      %v1036 = vpop.f32.mrf.mxu0
      %v1037 = vadd.f32 0.0, %v1036
      %v1038 = vpop.f32.mrf.mxu0
      %v1039 = vadd.f32 0.0, %v1038
      %1040 = vmatmul.bf16.gmra.mxu0 %v955
      %v1041 = vpop.f32.mrf.mxu0
      %v1042 = vadd.f32 0.0, %v1041
      %v1043 = vpop.f32.mrf.mxu0
      %v1044 = vadd.f32 0.0, %v1043
      %1045 = vdwg.mxu0
      %v1078 = vunpack.c.l.b16 %v398
      %v1079 = vunpack.c.l.b16 %v399
      %v1080 = vunpack.c.l.b16 %v401
      %v1081 = vunpack.c.l.b16 %v402
      %v1082 = vunpack.c.l.b16 %v404
      %v1083 = vunpack.c.l.b16 %v405
      %v1084 = vunpack.c.l.b16 %v407
      %v1085 = vunpack.c.l.b16 %v408
      %v1086 = vunpack.c.l.b16 %v410
      %v1087 = vunpack.c.l.b16 %v411
      %v1088 = vunpack.c.l.b16 %v413
      %v1089 = vunpack.c.l.b16 %v414
      %v1090 = vunpack.c.l.b16 %v416
      %v1091 = vunpack.c.l.b16 %v417
      %v1092 = vunpack.c.l.b16 %v419
      %v1093 = vunpack.c.l.b16 %v420
      %v1094 = vunpack.c.l.b16 %v422
      %v1095 = vunpack.c.l.b16 %v423
      %v1096 = vunpack.c.l.b16 %v425
      %v1097 = vunpack.c.l.b16 %v426
      %v1098 = vunpack.c.l.b16 %v428
      %v1099 = vunpack.c.l.b16 %v429
      %v1100 = vunpack.c.l.b16 %v431
      %v1101 = vunpack.c.l.b16 %v432
      %v1102 = vunpack.c.l.b16 %v434
      %v1103 = vunpack.c.l.b16 %v435
      %v1104 = vunpack.c.l.b16 %v437
      %v1105 = vunpack.c.l.b16 %v438
      %v1106 = vunpack.c.l.b16 %v440
      %v1107 = vunpack.c.l.b16 %v441
      %v1108 = vunpack.c.l.b16 %v443
      %v1109 = vunpack.c.l.b16 %v444
      %v1110 = vpack.c.b16 %v1079, %v1078
      %v1111 = vpack.c.b16 %v1081, %v1080
      %v1112 = vpack.c.b16 %v1083, %v1082
      %v1113 = vpack.c.b16 %v1085, %v1084
      %v1114 = vpack.c.b16 %v1087, %v1086
      %v1115 = vpack.c.b16 %v1089, %v1088
      %v1116 = vpack.c.b16 %v1091, %v1090
      %v1117 = vpack.c.b16 %v1093, %v1092
      %v1118 = vpack.c.b16 %v1095, %v1094
      %v1119 = vpack.c.b16 %v1097, %v1096
      %v1120 = vpack.c.b16 %v1099, %v1098
      %v1121 = vpack.c.b16 %v1101, %v1100
      %v1122 = vpack.c.b16 %v1103, %v1102
      %v1123 = vpack.c.b16 %v1105, %v1104
      %v1124 = vpack.c.b16 %v1107, %v1106
      %v1125 = vpack.c.b16 %v1109, %v1108
      %v1130 = vunpack.c.l.b16 %v452
      %v1131 = vunpack.c.l.b16 %v453
      %v1132 = vunpack.c.l.b16 %v454
      %v1133 = vunpack.c.l.b16 %v455
      %v1134 = vpack.c.b16 %v1131, %v1130
      %v1135 = vpack.c.b16 %v1133, %v1132
      %v1139 = vsel %vm908, %v1110, 0
      %v1142 = vsel %vm908, %v1111, 0
      %v1145 = vsel %vm908, %v1112, 0
      %v1148 = vsel %vm908, %v1113, 0
      %v1151 = vsel %vm908, %v1114, 0
      %v1154 = vsel %vm908, %v1115, 0
      %v1157 = vsel %vm908, %v1116, 0
      %v1160 = vsel %vm908, %v1117, 0
      %v1163 = vsel %vm908, %v1118, 0
      %v1166 = vsel %vm908, %v1119, 0
      %v1169 = vsel %vm908, %v1120, 0
      %v1172 = vsel %vm908, %v1121, 0
      %v1175 = vsel %vm908, %v1122, 0
      %v1178 = vsel %vm908, %v1123, 0
      %v1181 = vsel %vm908, %v1124, 0
      %v1184 = vsel %vm908, %v1125, 0
      %1186 = vmatpush.bf16.msra.mxu0 0
      %1187 = vmatpush.bf16.msra.mxu0 0
      %1188 = vmatpush.bf16.msra.mxu0 0
      %1189 = vmatpush.bf16.msra.mxu0 0
      %1190 = vmatpush.bf16.msra.mxu0 0
      %1191 = vmatpush.bf16.msra.mxu0 0
      %1192 = vmatpush.bf16.msra.mxu0 %v1135
      %1193 = vmatpush.bf16.msra.mxu0 %v1134
      %1194 = vmatmul.bf16.gmra.mxu0 %v1139
      %v1195 = vpop.f32.mrf.mxu0
      %v1196 = vadd.f32 %v967, %v1195
      %v1197 = vpop.f32.mrf.mxu0
      %v1198 = vadd.f32 %v969, %v1197
      %1199 = vmatmul.bf16.gmra.mxu0 %v1142
      %v1200 = vpop.f32.mrf.mxu0
      %v1201 = vadd.f32 %v972, %v1200
      %v1202 = vpop.f32.mrf.mxu0
      %v1203 = vadd.f32 %v974, %v1202
      %1204 = vmatmul.bf16.gmra.mxu0 %v1145
      %v1205 = vpop.f32.mrf.mxu0
      %v1206 = vadd.f32 %v977, %v1205
      %v1207 = vpop.f32.mrf.mxu0
      %v1208 = vadd.f32 %v979, %v1207
      %1209 = vmatmul.bf16.gmra.mxu0 %v1148
      %v1210 = vpop.f32.mrf.mxu0
      %v1211 = vadd.f32 %v982, %v1210
      %v1212 = vpop.f32.mrf.mxu0
      %v1213 = vadd.f32 %v984, %v1212
      %1214 = vmatmul.bf16.gmra.mxu0 %v1151
      %v1215 = vpop.f32.mrf.mxu0
      %v1216 = vadd.f32 %v987, %v1215
      %v1217 = vpop.f32.mrf.mxu0
      %v1218 = vadd.f32 %v989, %v1217
      %1219 = vmatmul.bf16.gmra.mxu0 %v1154
      %v1220 = vpop.f32.mrf.mxu0
      %v1221 = vadd.f32 %v992, %v1220
      %v1222 = vpop.f32.mrf.mxu0
      %v1223 = vadd.f32 %v994, %v1222
      %1224 = vmatmul.bf16.gmra.mxu0 %v1157
      %v1225 = vpop.f32.mrf.mxu0
      %v1226 = vadd.f32 %v997, %v1225
      %v1227 = vpop.f32.mrf.mxu0
      %v1228 = vadd.f32 %v999, %v1227
      %1229 = vmatmul.bf16.gmra.mxu0 %v1160
      %v1230 = vpop.f32.mrf.mxu0
      %v1231 = vadd.f32 %v1002, %v1230
      %v1232 = vpop.f32.mrf.mxu0
      %v1233 = vadd.f32 %v1004, %v1232
      %1234 = vmatmul.bf16.gmra.mxu0 %v1163
      %v1235 = vpop.f32.mrf.mxu0
      %v1236 = vadd.f32 %v1007, %v1235
      %v1237 = vpop.f32.mrf.mxu0
      %v1238 = vadd.f32 %v1009, %v1237
      %1239 = vmatmul.bf16.gmra.mxu0 %v1166
      %v1240 = vpop.f32.mrf.mxu0
      %v1241 = vadd.f32 %v1012, %v1240
      %v1242 = vpop.f32.mrf.mxu0
      %v1243 = vadd.f32 %v1014, %v1242
      %1244 = vmatmul.bf16.gmra.mxu0 %v1169
      %v1245 = vpop.f32.mrf.mxu0
      %v1246 = vadd.f32 %v1017, %v1245
      %v1247 = vpop.f32.mrf.mxu0
      %v1248 = vadd.f32 %v1019, %v1247
      %1249 = vmatmul.bf16.gmra.mxu0 %v1172
      %v1250 = vpop.f32.mrf.mxu0
      %v1251 = vadd.f32 %v1022, %v1250
      %v1252 = vpop.f32.mrf.mxu0
      %v1253 = vadd.f32 %v1024, %v1252
      %1254 = vmatmul.bf16.gmra.mxu0 %v1175
      %v1255 = vpop.f32.mrf.mxu0
      %v1256 = vadd.f32 %v1027, %v1255
      %v1257 = vpop.f32.mrf.mxu0
      %v1258 = vadd.f32 %v1029, %v1257
      %1259 = vmatmul.bf16.gmra.mxu0 %v1178
      %v1260 = vpop.f32.mrf.mxu0
      %v1261 = vadd.f32 %v1032, %v1260
      %v1262 = vpop.f32.mrf.mxu0
      %v1263 = vadd.f32 %v1034, %v1262
      %1264 = vmatmul.bf16.gmra.mxu0 %v1181
      %v1265 = vpop.f32.mrf.mxu0
      %v1266 = vadd.f32 %v1037, %v1265
      %v1267 = vpop.f32.mrf.mxu0
      %v1268 = vadd.f32 %v1039, %v1267
      %1269 = vmatmul.bf16.gmra.mxu0 %v1184
      %v1270 = vpop.f32.mrf.mxu0
      %v1271 = vadd.f32 %v1042, %v1270
      %v1272 = vpop.f32.mrf.mxu0
      %v1273 = vadd.f32 %v1044, %v1272
      %1274 = vdwg.mxu0
      %vm1291 = vcmask 1042432
      %vm1292 = vcmask 1046532
      %vm1293 = vmor %vm1291, %vm1292
      %v1294 = vrot.slane %v398, 5
      %v1295 = vrot.slane %v1294, 4
      %v1296 = vrot.slane %v399, 5
      %v1297 = vsel %vm1293, %v1295, %v1296
      %v1298 = vrot.slane %v1296, 4
      %v1299 = vrot.slane %v400, 5
      %v1300 = vsel %vm1293, %v1298, %v1299
      %v1301 = vrot.slane %v401, 5
      %v1302 = vrot.slane %v1301, 4
      %v1303 = vrot.slane %v402, 5
      %v1304 = vsel %vm1293, %v1302, %v1303
      %v1305 = vrot.slane %v1303, 4
      %v1306 = vrot.slane %v403, 5
      %v1307 = vsel %vm1293, %v1305, %v1306
      %v1308 = vrot.slane %v404, 5
      %v1309 = vrot.slane %v1308, 4
      %v1310 = vrot.slane %v405, 5
      %v1311 = vsel %vm1293, %v1309, %v1310
      %v1312 = vrot.slane %v1310, 4
      %v1313 = vrot.slane %v406, 5
      %v1314 = vsel %vm1293, %v1312, %v1313
      %v1315 = vrot.slane %v407, 5
      %v1316 = vrot.slane %v1315, 4
      %v1317 = vrot.slane %v408, 5
      %v1318 = vsel %vm1293, %v1316, %v1317
      %v1319 = vrot.slane %v1317, 4
      %v1320 = vrot.slane %v409, 5
      %v1321 = vsel %vm1293, %v1319, %v1320
      %v1322 = vrot.slane %v410, 5
      %v1323 = vrot.slane %v1322, 4
      %v1324 = vrot.slane %v411, 5
      %v1325 = vsel %vm1293, %v1323, %v1324
      %v1326 = vrot.slane %v1324, 4
      %v1327 = vrot.slane %v412, 5
      %v1328 = vsel %vm1293, %v1326, %v1327
      %v1329 = vrot.slane %v413, 5
      %v1330 = vrot.slane %v1329, 4
      %v1331 = vrot.slane %v414, 5
      %v1332 = vsel %vm1293, %v1330, %v1331
      %v1333 = vrot.slane %v1331, 4
      %v1334 = vrot.slane %v415, 5
      %v1335 = vsel %vm1293, %v1333, %v1334
      %v1336 = vrot.slane %v416, 5
      %v1337 = vrot.slane %v1336, 4
      %v1338 = vrot.slane %v417, 5
      %v1339 = vsel %vm1293, %v1337, %v1338
      %v1340 = vrot.slane %v1338, 4
      %v1341 = vrot.slane %v418, 5
      %v1342 = vsel %vm1293, %v1340, %v1341
      %v1343 = vrot.slane %v419, 5
      %v1344 = vrot.slane %v1343, 4
      %v1345 = vrot.slane %v420, 5
      %v1346 = vsel %vm1293, %v1344, %v1345
      %v1347 = vrot.slane %v1345, 4
      %v1348 = vrot.slane %v421, 5
      %v1349 = vsel %vm1293, %v1347, %v1348
      %v1350 = vrot.slane %v422, 5
      %v1351 = vrot.slane %v1350, 4
      %v1352 = vrot.slane %v423, 5
      %v1353 = vsel %vm1293, %v1351, %v1352
      %v1354 = vrot.slane %v1352, 4
      %v1355 = vrot.slane %v424, 5
      %v1356 = vsel %vm1293, %v1354, %v1355
      %v1357 = vrot.slane %v425, 5
      %v1358 = vrot.slane %v1357, 4
      %v1359 = vrot.slane %v426, 5
      %v1360 = vsel %vm1293, %v1358, %v1359
      %v1361 = vrot.slane %v1359, 4
      %v1362 = vrot.slane %v427, 5
      %v1363 = vsel %vm1293, %v1361, %v1362
      %v1364 = vrot.slane %v428, 5
      %v1365 = vrot.slane %v1364, 4
      %v1366 = vrot.slane %v429, 5
      %v1367 = vsel %vm1293, %v1365, %v1366
      %v1368 = vrot.slane %v1366, 4
      %v1369 = vrot.slane %v430, 5
      %v1370 = vsel %vm1293, %v1368, %v1369
      %v1371 = vrot.slane %v431, 5
      %v1372 = vrot.slane %v1371, 4
      %v1373 = vrot.slane %v432, 5
      %v1374 = vsel %vm1293, %v1372, %v1373
      %v1375 = vrot.slane %v1373, 4
      %v1376 = vrot.slane %v433, 5
      %v1377 = vsel %vm1293, %v1375, %v1376
      %v1378 = vrot.slane %v434, 5
      %v1379 = vrot.slane %v1378, 4
      %v1380 = vrot.slane %v435, 5
      %v1381 = vsel %vm1293, %v1379, %v1380
      %v1382 = vrot.slane %v1380, 4
      %v1383 = vrot.slane %v436, 5
      %v1384 = vsel %vm1293, %v1382, %v1383
      %v1385 = vrot.slane %v437, 5
      %v1386 = vrot.slane %v1385, 4
      %v1387 = vrot.slane %v438, 5
      %v1388 = vsel %vm1293, %v1386, %v1387
      %v1389 = vrot.slane %v1387, 4
      %v1390 = vrot.slane %v439, 5
      %v1391 = vsel %vm1293, %v1389, %v1390
      %v1392 = vrot.slane %v440, 5
      %v1393 = vrot.slane %v1392, 4
      %v1394 = vrot.slane %v441, 5
      %v1395 = vsel %vm1293, %v1393, %v1394
      %v1396 = vrot.slane %v1394, 4
      %v1397 = vrot.slane %v442, 5
      %v1398 = vsel %vm1293, %v1396, %v1397
      %v1399 = vrot.slane %v443, 5
      %v1400 = vrot.slane %v1399, 4
      %v1401 = vrot.slane %v444, 5
      %v1402 = vsel %vm1293, %v1400, %v1401
      %v1403 = vrot.slane %v1401, 4
      %v1404 = vrot.slane %v445, 5
      %v1405 = vsel %vm1293, %v1403, %v1404
      %s1406 = scalar_lea.vmem %s3, 32
      %v1407 = vld [vmem:[%s1406] sm:$0xf]
      %v1408 = vld [vmem:[%s1406 + $0x4] sm:$0xf]
      %v1409 = vld [vmem:[%s1406 + $0x8] sm:$0xf]
      %v1410 = vld [vmem:[%s1406 + $0xc] sm:$0xf]
      %v1411 = vunpack.c.l.b16 %v1297
      %v1412 = vunpack.c.l.b16 %v1300
      %v1413 = vunpack.c.l.b16 %v1304
      %v1414 = vunpack.c.l.b16 %v1307
      %v1415 = vunpack.c.l.b16 %v1311
      %v1416 = vunpack.c.l.b16 %v1314
      %v1417 = vunpack.c.l.b16 %v1318
      %v1418 = vunpack.c.l.b16 %v1321
      %v1419 = vunpack.c.l.b16 %v1325
      %v1420 = vunpack.c.l.b16 %v1328
      %v1421 = vunpack.c.l.b16 %v1332
      %v1422 = vunpack.c.l.b16 %v1335
      %v1423 = vunpack.c.l.b16 %v1339
      %v1424 = vunpack.c.l.b16 %v1342
      %v1425 = vunpack.c.l.b16 %v1346
      %v1426 = vunpack.c.l.b16 %v1349
      %v1427 = vunpack.c.l.b16 %v1353
      %v1428 = vunpack.c.l.b16 %v1356
      %v1429 = vunpack.c.l.b16 %v1360
      %v1430 = vunpack.c.l.b16 %v1363
      %v1431 = vunpack.c.l.b16 %v1367
      %v1432 = vunpack.c.l.b16 %v1370
      %v1433 = vunpack.c.l.b16 %v1374
      %v1434 = vunpack.c.l.b16 %v1377
      %v1435 = vunpack.c.l.b16 %v1381
      %v1436 = vunpack.c.l.b16 %v1384
      %v1437 = vunpack.c.l.b16 %v1388
      %v1438 = vunpack.c.l.b16 %v1391
      %v1439 = vunpack.c.l.b16 %v1395
      %v1440 = vunpack.c.l.b16 %v1398
      %v1441 = vunpack.c.l.b16 %v1402
      %v1442 = vunpack.c.l.b16 %v1405
      %v1443 = vpack.c.b16 %v1412, %v1411
      %v1444 = vpack.c.b16 %v1414, %v1413
      %v1445 = vpack.c.b16 %v1416, %v1415
      %v1446 = vpack.c.b16 %v1418, %v1417
      %v1447 = vpack.c.b16 %v1420, %v1419
      %v1448 = vpack.c.b16 %v1422, %v1421
      %v1449 = vpack.c.b16 %v1424, %v1423
      %v1450 = vpack.c.b16 %v1426, %v1425
      %v1451 = vpack.c.b16 %v1428, %v1427
      %v1452 = vpack.c.b16 %v1430, %v1429
      %v1453 = vpack.c.b16 %v1432, %v1431
      %v1454 = vpack.c.b16 %v1434, %v1433
      %v1455 = vpack.c.b16 %v1436, %v1435
      %v1456 = vpack.c.b16 %v1438, %v1437
      %v1457 = vpack.c.b16 %v1440, %v1439
      %v1458 = vpack.c.b16 %v1442, %v1441
      %v1463 = vunpack.c.l.b16 %v1407
      %v1464 = vunpack.c.l.b16 %v1408
      %v1465 = vunpack.c.l.b16 %v1409
      %v1466 = vunpack.c.l.b16 %v1410
      %v1467 = vpack.c.b16 %v1464, %v1463
      %v1468 = vpack.c.b16 %v1466, %v1465
      %v1472 = vsel %vm908, %v1443, 0
      %v1475 = vsel %vm908, %v1444, 0
      %v1478 = vsel %vm908, %v1445, 0
      %v1481 = vsel %vm908, %v1446, 0
      %v1484 = vsel %vm908, %v1447, 0
      %v1487 = vsel %vm908, %v1448, 0
      %v1490 = vsel %vm908, %v1449, 0
      %v1493 = vsel %vm908, %v1450, 0
      %v1496 = vsel %vm908, %v1451, 0
      %v1499 = vsel %vm908, %v1452, 0
      %v1502 = vsel %vm908, %v1453, 0
      %v1505 = vsel %vm908, %v1454, 0
      %v1508 = vsel %vm908, %v1455, 0
      %v1511 = vsel %vm908, %v1456, 0
      %v1514 = vsel %vm908, %v1457, 0
      %v1517 = vsel %vm908, %v1458, 0
      %1519 = vmatpush.bf16.msra.mxu0 0
      %1520 = vmatpush.bf16.msra.mxu0 0
      %1521 = vmatpush.bf16.msra.mxu0 0
      %1522 = vmatpush.bf16.msra.mxu0 0
      %1523 = vmatpush.bf16.msra.mxu0 0
      %1524 = vmatpush.bf16.msra.mxu0 0
      %1525 = vmatpush.bf16.msra.mxu0 %v1468
      %1526 = vmatpush.bf16.msra.mxu0 %v1467
      %1527 = vmatmul.bf16.gmra.mxu0 %v1472
      %v1528 = vpop.f32.mrf.mxu0
      %v1529 = vadd.f32 0.0, %v1528
      %v1530 = vpop.f32.mrf.mxu0
      %v1531 = vadd.f32 0.0, %v1530
      %1532 = vmatmul.bf16.gmra.mxu0 %v1475
      %v1533 = vpop.f32.mrf.mxu0
      %v1534 = vadd.f32 0.0, %v1533
      %v1535 = vpop.f32.mrf.mxu0
      %v1536 = vadd.f32 0.0, %v1535
      %1537 = vmatmul.bf16.gmra.mxu0 %v1478
      %v1538 = vpop.f32.mrf.mxu0
      %v1539 = vadd.f32 0.0, %v1538
      %v1540 = vpop.f32.mrf.mxu0
      %v1541 = vadd.f32 0.0, %v1540
      %1542 = vmatmul.bf16.gmra.mxu0 %v1481
      %v1543 = vpop.f32.mrf.mxu0
      %v1544 = vadd.f32 0.0, %v1543
      %v1545 = vpop.f32.mrf.mxu0
      %v1546 = vadd.f32 0.0, %v1545
      %1547 = vmatmul.bf16.gmra.mxu0 %v1484
      %v1548 = vpop.f32.mrf.mxu0
      %v1549 = vadd.f32 0.0, %v1548
      %v1550 = vpop.f32.mrf.mxu0
      %v1551 = vadd.f32 0.0, %v1550
      %1552 = vmatmul.bf16.gmra.mxu0 %v1487
      %v1553 = vpop.f32.mrf.mxu0
      %v1554 = vadd.f32 0.0, %v1553
      %v1555 = vpop.f32.mrf.mxu0
      %v1556 = vadd.f32 0.0, %v1555
      %1557 = vmatmul.bf16.gmra.mxu0 %v1490
      %v1558 = vpop.f32.mrf.mxu0
      %v1559 = vadd.f32 0.0, %v1558
      %v1560 = vpop.f32.mrf.mxu0
      %v1561 = vadd.f32 0.0, %v1560
      %1562 = vmatmul.bf16.gmra.mxu0 %v1493
      %v1563 = vpop.f32.mrf.mxu0
      %v1564 = vadd.f32 0.0, %v1563
      %v1565 = vpop.f32.mrf.mxu0
      %v1566 = vadd.f32 0.0, %v1565
      %1567 = vmatmul.bf16.gmra.mxu0 %v1496
      %v1568 = vpop.f32.mrf.mxu0
      %v1569 = vadd.f32 0.0, %v1568
      %v1570 = vpop.f32.mrf.mxu0
      %v1571 = vadd.f32 0.0, %v1570
      %1572 = vmatmul.bf16.gmra.mxu0 %v1499
      %v1573 = vpop.f32.mrf.mxu0
      %v1574 = vadd.f32 0.0, %v1573
      %v1575 = vpop.f32.mrf.mxu0
      %v1576 = vadd.f32 0.0, %v1575
      %1577 = vmatmul.bf16.gmra.mxu0 %v1502
      %v1578 = vpop.f32.mrf.mxu0
      %v1579 = vadd.f32 0.0, %v1578
      %v1580 = vpop.f32.mrf.mxu0
      %v1581 = vadd.f32 0.0, %v1580
      %1582 = vmatmul.bf16.gmra.mxu0 %v1505
      %v1583 = vpop.f32.mrf.mxu0
      %v1584 = vadd.f32 0.0, %v1583
      %v1585 = vpop.f32.mrf.mxu0
      %v1586 = vadd.f32 0.0, %v1585
      %1587 = vmatmul.bf16.gmra.mxu0 %v1508
      %v1588 = vpop.f32.mrf.mxu0
      %v1589 = vadd.f32 0.0, %v1588
      %v1590 = vpop.f32.mrf.mxu0
      %v1591 = vadd.f32 0.0, %v1590
      %1592 = vmatmul.bf16.gmra.mxu0 %v1511
      %v1593 = vpop.f32.mrf.mxu0
      %v1594 = vadd.f32 0.0, %v1593
      %v1595 = vpop.f32.mrf.mxu0
      %v1596 = vadd.f32 0.0, %v1595
      %1597 = vmatmul.bf16.gmra.mxu0 %v1514
      %v1598 = vpop.f32.mrf.mxu0
      %v1599 = vadd.f32 0.0, %v1598
      %v1600 = vpop.f32.mrf.mxu0
      %v1601 = vadd.f32 0.0, %v1600
      %1602 = vmatmul.bf16.gmra.mxu0 %v1517
      %v1603 = vpop.f32.mrf.mxu0
      %v1604 = vadd.f32 0.0, %v1603
      %v1605 = vpop.f32.mrf.mxu0
      %v1606 = vadd.f32 0.0, %v1605
      %1607 = vdwg.mxu0
      %v1608 = vadd.f32 %v1196, %v1529
      %v1609 = vadd.f32 %v1198, %v1531
      %v1610 = vadd.f32 %v1201, %v1534
      %v1611 = vadd.f32 %v1203, %v1536
      %v1612 = vadd.f32 %v1206, %v1539
      %v1613 = vadd.f32 %v1208, %v1541
      %v1614 = vadd.f32 %v1211, %v1544
      %v1615 = vadd.f32 %v1213, %v1546
      %v1616 = vadd.f32 %v1216, %v1549
      %v1617 = vadd.f32 %v1218, %v1551
      %v1618 = vadd.f32 %v1221, %v1554
      %v1619 = vadd.f32 %v1223, %v1556
      %v1620 = vadd.f32 %v1226, %v1559
      %v1621 = vadd.f32 %v1228, %v1561
      %v1622 = vadd.f32 %v1231, %v1564
      %v1623 = vadd.f32 %v1233, %v1566
      %v1624 = vadd.f32 %v1236, %v1569
      %v1625 = vadd.f32 %v1238, %v1571
      %v1626 = vadd.f32 %v1241, %v1574
      %v1627 = vadd.f32 %v1243, %v1576
      %v1628 = vadd.f32 %v1246, %v1579
      %v1629 = vadd.f32 %v1248, %v1581
      %v1630 = vadd.f32 %v1251, %v1584
      %v1631 = vadd.f32 %v1253, %v1586
      %v1632 = vadd.f32 %v1256, %v1589
      %v1633 = vadd.f32 %v1258, %v1591
      %v1634 = vadd.f32 %v1261, %v1594
      %v1635 = vadd.f32 %v1263, %v1596
      %v1636 = vadd.f32 %v1266, %v1599
      %v1637 = vadd.f32 %v1268, %v1601
      %v1638 = vadd.f32 %v1271, %v1604
      %v1639 = vadd.f32 %v1273, %v1606
      %s1640 = scalar_lea.vmem %s3, 48
      %v1641 = vld [vmem:[%s1640] sm:$0xf]
      %v1642 = vld [vmem:[%s1640 + $0x4] sm:$0xf]
      %v1643 = vld [vmem:[%s1640 + $0x8] sm:$0xf]
      %v1644 = vld [vmem:[%s1640 + $0xc] sm:$0xf]
      %v1647 = vunpack.c.l.b16 %v446
      %v1648 = vunpack.c.l.b16 %v447
      %v1649 = vpack.c.b16 %v1648, %v1647
      %v1654 = vunpack.c.l.b16 %v1641
      %v1655 = vunpack.c.l.b16 %v1642
      %v1656 = vunpack.c.l.b16 %v1643
      %v1657 = vunpack.c.l.b16 %v1644
      %v1658 = vpack.c.b16 %v1655, %v1654
      %v1659 = vpack.c.b16 %v1657, %v1656
      %v1663 = vsel %vm908, %v1649, 0
      %1665 = vmatpush.bf16.msra.mxu0 0
      %1666 = vmatpush.bf16.msra.mxu0 0
      %1667 = vmatpush.bf16.msra.mxu0 0
      %1668 = vmatpush.bf16.msra.mxu0 0
      %1669 = vmatpush.bf16.msra.mxu0 0
      %1670 = vmatpush.bf16.msra.mxu0 0
      %1671 = vmatpush.bf16.msra.mxu0 %v1659
      %1672 = vmatpush.bf16.msra.mxu0 %v1658
      %1673 = vmatmul.bf16.gmra.mxu0 %v1142
      %v1674 = vpop.f32.mrf.mxu0
      %v1675 = vadd.f32 0.0, %v1674
      %v1676 = vpop.f32.mrf.mxu0
      %v1677 = vadd.f32 0.0, %v1676
      %1678 = vmatmul.bf16.gmra.mxu0 %v1145
      %v1679 = vpop.f32.mrf.mxu0
      %v1680 = vadd.f32 0.0, %v1679
      %v1681 = vpop.f32.mrf.mxu0
      %v1682 = vadd.f32 0.0, %v1681
      %1683 = vmatmul.bf16.gmra.mxu0 %v1148
      %v1684 = vpop.f32.mrf.mxu0
      %v1685 = vadd.f32 0.0, %v1684
      %v1686 = vpop.f32.mrf.mxu0
      %v1687 = vadd.f32 0.0, %v1686
      %1688 = vmatmul.bf16.gmra.mxu0 %v1151
      %v1689 = vpop.f32.mrf.mxu0
      %v1690 = vadd.f32 0.0, %v1689
      %v1691 = vpop.f32.mrf.mxu0
      %v1692 = vadd.f32 0.0, %v1691
      %1693 = vmatmul.bf16.gmra.mxu0 %v1154
      %v1694 = vpop.f32.mrf.mxu0
      %v1695 = vadd.f32 0.0, %v1694
      %v1696 = vpop.f32.mrf.mxu0
      %v1697 = vadd.f32 0.0, %v1696
      %1698 = vmatmul.bf16.gmra.mxu0 %v1157
      %v1699 = vpop.f32.mrf.mxu0
      %v1700 = vadd.f32 0.0, %v1699
      %v1701 = vpop.f32.mrf.mxu0
      %v1702 = vadd.f32 0.0, %v1701
      %1703 = vmatmul.bf16.gmra.mxu0 %v1160
      %v1704 = vpop.f32.mrf.mxu0
      %v1705 = vadd.f32 0.0, %v1704
      %v1706 = vpop.f32.mrf.mxu0
      %v1707 = vadd.f32 0.0, %v1706
      %1708 = vmatmul.bf16.gmra.mxu0 %v1163
      %v1709 = vpop.f32.mrf.mxu0
      %v1710 = vadd.f32 0.0, %v1709
      %v1711 = vpop.f32.mrf.mxu0
      %v1712 = vadd.f32 0.0, %v1711
      %1713 = vmatmul.bf16.gmra.mxu0 %v1166
      %v1714 = vpop.f32.mrf.mxu0
      %v1715 = vadd.f32 0.0, %v1714
      %v1716 = vpop.f32.mrf.mxu0
      %v1717 = vadd.f32 0.0, %v1716
      %1718 = vmatmul.bf16.gmra.mxu0 %v1169
      %v1719 = vpop.f32.mrf.mxu0
      %v1720 = vadd.f32 0.0, %v1719
      %v1721 = vpop.f32.mrf.mxu0
      %v1722 = vadd.f32 0.0, %v1721
      %1723 = vmatmul.bf16.gmra.mxu0 %v1172
      %v1724 = vpop.f32.mrf.mxu0
      %v1725 = vadd.f32 0.0, %v1724
      %v1726 = vpop.f32.mrf.mxu0
      %v1727 = vadd.f32 0.0, %v1726
      %1728 = vmatmul.bf16.gmra.mxu0 %v1175
      %v1729 = vpop.f32.mrf.mxu0
      %v1730 = vadd.f32 0.0, %v1729
      %v1731 = vpop.f32.mrf.mxu0
      %v1732 = vadd.f32 0.0, %v1731
      %1733 = vmatmul.bf16.gmra.mxu0 %v1178
      %v1734 = vpop.f32.mrf.mxu0
      %v1735 = vadd.f32 0.0, %v1734
      %v1736 = vpop.f32.mrf.mxu0
      %v1737 = vadd.f32 0.0, %v1736
      %1738 = vmatmul.bf16.gmra.mxu0 %v1181
      %v1739 = vpop.f32.mrf.mxu0
      %v1740 = vadd.f32 0.0, %v1739
      %v1741 = vpop.f32.mrf.mxu0
      %v1742 = vadd.f32 0.0, %v1741
      %1743 = vmatmul.bf16.gmra.mxu0 %v1184
      %v1744 = vpop.f32.mrf.mxu0
      %v1745 = vadd.f32 0.0, %v1744
      %v1746 = vpop.f32.mrf.mxu0
      %v1747 = vadd.f32 0.0, %v1746
      %1748 = vmatmul.bf16.gmra.mxu0 %v1663
      %v1749 = vpop.f32.mrf.mxu0
      %v1750 = vadd.f32 0.0, %v1749
      %v1751 = vpop.f32.mrf.mxu0
      %v1752 = vadd.f32 0.0, %v1751
      %1753 = vdwg.mxu0
      %v1754 = vadd.f32 %v1608, %v1675
      %v1755 = vadd.f32 %v1609, %v1677
      %v1756 = vadd.f32 %v1610, %v1680
      %v1757 = vadd.f32 %v1611, %v1682
      %v1758 = vadd.f32 %v1612, %v1685
      %v1759 = vadd.f32 %v1613, %v1687
      %v1760 = vadd.f32 %v1614, %v1690
      %v1761 = vadd.f32 %v1615, %v1692
      %v1762 = vadd.f32 %v1616, %v1695
      %v1763 = vadd.f32 %v1617, %v1697
      %v1764 = vadd.f32 %v1618, %v1700
      %v1765 = vadd.f32 %v1619, %v1702
      %v1766 = vadd.f32 %v1620, %v1705
      %v1767 = vadd.f32 %v1621, %v1707
      %v1768 = vadd.f32 %v1622, %v1710
      %v1769 = vadd.f32 %v1623, %v1712
      %v1770 = vadd.f32 %v1624, %v1715
      %v1771 = vadd.f32 %v1625, %v1717
      %v1772 = vadd.f32 %v1626, %v1720
      %v1773 = vadd.f32 %v1627, %v1722
      %v1774 = vadd.f32 %v1628, %v1725
      %v1775 = vadd.f32 %v1629, %v1727
      %v1776 = vadd.f32 %v1630, %v1730
      %v1777 = vadd.f32 %v1631, %v1732
      %v1778 = vadd.f32 %v1632, %v1735
      %v1779 = vadd.f32 %v1633, %v1737
      %v1780 = vadd.f32 %v1634, %v1740
      %v1781 = vadd.f32 %v1635, %v1742
      %v1782 = vadd.f32 %v1636, %v1745
      %v1783 = vadd.f32 %v1637, %v1747
      %v1784 = vadd.f32 %v1638, %v1750
      %v1785 = vadd.f32 %v1639, %v1752
      %v1787 = vshrl.u32 %v446, 16
      %v1789 = vrot.slane %v1787, 4
      %v1790 = vshll.u32 %v446, 16
      %v1792 = vrot.slane %v1790, 5
      %v1793 = vor.u32 %v1789, %v1792
      %v1794 = vrot.slane %v1793, 4
      %v1796 = vshll.u32 %v447, 16
      %v1798 = vrot.slane %v1796, 5
      %v1799 = vsel %vm458, %v1794, %v1798
      %v1800 = vshrl.u32 %v447, 16
      %v1802 = vrot.slane %v1800, 4
      %v1803 = vor.u32 %v1802, %v1798
      %v1804 = vrot.slane %v1803, 4
      %v1806 = vshll.u32 %v448, 16
      %v1808 = vrot.slane %v1806, 5
      %v1809 = vsel %vm458, %v1804, %v1808
      %s1810 = scalar_lea.vmem %s3, 64
      %v1811 = vld [vmem:[%s1810] sm:$0xf]
      %v1812 = vld [vmem:[%s1810 + $0x4] sm:$0xf]
      %v1813 = vld [vmem:[%s1810 + $0x8] sm:$0xf]
      %v1814 = vld [vmem:[%s1810 + $0xc] sm:$0xf]
      %v1815 = vunpack.c.l.b16 %v1799
      %v1816 = vunpack.c.l.b16 %v1809
      %v1817 = vpack.c.b16 %v1816, %v1815
      %v1822 = vunpack.c.l.b16 %v1811
      %v1823 = vunpack.c.l.b16 %v1812
      %v1824 = vunpack.c.l.b16 %v1813
      %v1825 = vunpack.c.l.b16 %v1814
      %v1826 = vpack.c.b16 %v1823, %v1822
      %v1827 = vpack.c.b16 %v1825, %v1824
      %v1831 = vsel %vm908, %v1817, 0
      %1833 = vmatpush.bf16.msra.mxu0 0
      %1834 = vmatpush.bf16.msra.mxu0 0
      %1835 = vmatpush.bf16.msra.mxu0 0
      %1836 = vmatpush.bf16.msra.mxu0 0
      %1837 = vmatpush.bf16.msra.mxu0 0
      %1838 = vmatpush.bf16.msra.mxu0 0
      %1839 = vmatpush.bf16.msra.mxu0 %v1827
      %1840 = vmatpush.bf16.msra.mxu0 %v1826
      %1841 = vmatmul.bf16.gmra.mxu0 %v913
      %v1842 = vpop.f32.mrf.mxu0
      %v1843 = vadd.f32 0.0, %v1842
      %v1844 = vpop.f32.mrf.mxu0
      %v1845 = vadd.f32 0.0, %v1844
      %1846 = vmatmul.bf16.gmra.mxu0 %v916
      %v1847 = vpop.f32.mrf.mxu0
      %v1848 = vadd.f32 0.0, %v1847
      %v1849 = vpop.f32.mrf.mxu0
      %v1850 = vadd.f32 0.0, %v1849
      %1851 = vmatmul.bf16.gmra.mxu0 %v919
      %v1852 = vpop.f32.mrf.mxu0
      %v1853 = vadd.f32 0.0, %v1852
      %v1854 = vpop.f32.mrf.mxu0
      %v1855 = vadd.f32 0.0, %v1854
      %1856 = vmatmul.bf16.gmra.mxu0 %v922
      %v1857 = vpop.f32.mrf.mxu0
      %v1858 = vadd.f32 0.0, %v1857
      %v1859 = vpop.f32.mrf.mxu0
      %v1860 = vadd.f32 0.0, %v1859
      %1861 = vmatmul.bf16.gmra.mxu0 %v925
      %v1862 = vpop.f32.mrf.mxu0
      %v1863 = vadd.f32 0.0, %v1862
      %v1864 = vpop.f32.mrf.mxu0
      %v1865 = vadd.f32 0.0, %v1864
      %1866 = vmatmul.bf16.gmra.mxu0 %v928
      %v1867 = vpop.f32.mrf.mxu0
      %v1868 = vadd.f32 0.0, %v1867
      %v1869 = vpop.f32.mrf.mxu0
      %v1870 = vadd.f32 0.0, %v1869
      %1871 = vmatmul.bf16.gmra.mxu0 %v931
      %v1872 = vpop.f32.mrf.mxu0
      %v1873 = vadd.f32 0.0, %v1872
      %v1874 = vpop.f32.mrf.mxu0
      %v1875 = vadd.f32 0.0, %v1874
      %1876 = vmatmul.bf16.gmra.mxu0 %v934
      %v1877 = vpop.f32.mrf.mxu0
      %v1878 = vadd.f32 0.0, %v1877
      %v1879 = vpop.f32.mrf.mxu0
      %v1880 = vadd.f32 0.0, %v1879
      %1881 = vmatmul.bf16.gmra.mxu0 %v937
      %v1882 = vpop.f32.mrf.mxu0
      %v1883 = vadd.f32 0.0, %v1882
      %v1884 = vpop.f32.mrf.mxu0
      %v1885 = vadd.f32 0.0, %v1884
      %1886 = vmatmul.bf16.gmra.mxu0 %v940
      %v1887 = vpop.f32.mrf.mxu0
      %v1888 = vadd.f32 0.0, %v1887
      %v1889 = vpop.f32.mrf.mxu0
      %v1890 = vadd.f32 0.0, %v1889
      %1891 = vmatmul.bf16.gmra.mxu0 %v943
      %v1892 = vpop.f32.mrf.mxu0
      %v1893 = vadd.f32 0.0, %v1892
      %v1894 = vpop.f32.mrf.mxu0
      %v1895 = vadd.f32 0.0, %v1894
      %1896 = vmatmul.bf16.gmra.mxu0 %v946
      %v1897 = vpop.f32.mrf.mxu0
      %v1898 = vadd.f32 0.0, %v1897
      %v1899 = vpop.f32.mrf.mxu0
      %v1900 = vadd.f32 0.0, %v1899
      %1901 = vmatmul.bf16.gmra.mxu0 %v949
      %v1902 = vpop.f32.mrf.mxu0
      %v1903 = vadd.f32 0.0, %v1902
      %v1904 = vpop.f32.mrf.mxu0
      %v1905 = vadd.f32 0.0, %v1904
      %1906 = vmatmul.bf16.gmra.mxu0 %v952
      %v1907 = vpop.f32.mrf.mxu0
      %v1908 = vadd.f32 0.0, %v1907
      %v1909 = vpop.f32.mrf.mxu0
      %v1910 = vadd.f32 0.0, %v1909
      %1911 = vmatmul.bf16.gmra.mxu0 %v955
      %v1912 = vpop.f32.mrf.mxu0
      %v1913 = vadd.f32 0.0, %v1912
      %v1914 = vpop.f32.mrf.mxu0
      %v1915 = vadd.f32 0.0, %v1914
      %1916 = vmatmul.bf16.gmra.mxu0 %v1831
      %v1917 = vpop.f32.mrf.mxu0
      %v1918 = vadd.f32 0.0, %v1917
      %v1919 = vpop.f32.mrf.mxu0
      %v1920 = vadd.f32 0.0, %v1919
      %1921 = vdwg.mxu0
      %v1922 = vadd.f32 %v1754, %v1843
      %v1923 = vadd.f32 %v1755, %v1845
      %v1924 = vadd.f32 %v1756, %v1848
      %v1925 = vadd.f32 %v1757, %v1850
      %v1926 = vadd.f32 %v1758, %v1853
      %v1927 = vadd.f32 %v1759, %v1855
      %v1928 = vadd.f32 %v1760, %v1858
      %v1929 = vadd.f32 %v1761, %v1860
      %v1930 = vadd.f32 %v1762, %v1863
      %v1931 = vadd.f32 %v1763, %v1865
      %v1932 = vadd.f32 %v1764, %v1868
      %v1933 = vadd.f32 %v1765, %v1870
      %v1934 = vadd.f32 %v1766, %v1873
      %v1935 = vadd.f32 %v1767, %v1875
      %v1936 = vadd.f32 %v1768, %v1878
      %v1937 = vadd.f32 %v1769, %v1880
      %v1938 = vadd.f32 %v1770, %v1883
      %v1939 = vadd.f32 %v1771, %v1885
      %v1940 = vadd.f32 %v1772, %v1888
      %v1941 = vadd.f32 %v1773, %v1890
      %v1942 = vadd.f32 %v1774, %v1893
      %v1943 = vadd.f32 %v1775, %v1895
      %v1944 = vadd.f32 %v1776, %v1898
      %v1945 = vadd.f32 %v1777, %v1900
      %v1946 = vadd.f32 %v1778, %v1903
      %v1947 = vadd.f32 %v1779, %v1905
      %v1948 = vadd.f32 %v1780, %v1908
      %v1949 = vadd.f32 %v1781, %v1910
      %v1950 = vadd.f32 %v1782, %v1913
      %v1951 = vadd.f32 %v1783, %v1915
      %v1952 = vadd.f32 %v1784, %v1918
      %v1953 = vadd.f32 %v1785, %v1920
      %v1955 = vrot.slane %v446, 5
      %v1956 = vrot.slane %v1955, 4
      %v1957 = vrot.slane %v447, 5
      %v1958 = vsel %vm1293, %v1956, %v1957
      %v1959 = vrot.slane %v1957, 4
      %v1960 = vrot.slane %v448, 5
      %v1961 = vsel %vm1293, %v1959, %v1960
      %s1962 = scalar_lea.vmem %s3, 80
      %v1963 = vld [vmem:[%s1962] sm:$0xf]
      %v1964 = vld [vmem:[%s1962 + $0x4] sm:$0xf]
      %v1965 = vld [vmem:[%s1962 + $0x8] sm:$0xf]
      %v1966 = vld [vmem:[%s1962 + $0xc] sm:$0xf]
      %v1967 = vunpack.c.l.b16 %v1958
      %v1968 = vunpack.c.l.b16 %v1961
      %v1969 = vpack.c.b16 %v1968, %v1967
      %v1974 = vunpack.c.l.b16 %v1963
      %v1975 = vunpack.c.l.b16 %v1964
      %v1976 = vunpack.c.l.b16 %v1965
      %v1977 = vunpack.c.l.b16 %v1966
      %v1978 = vpack.c.b16 %v1975, %v1974
      %v1979 = vpack.c.b16 %v1977, %v1976
      %v1983 = vsel %vm908, %v1969, 0
      %1985 = vmatpush.bf16.msra.mxu0 0
      %1986 = vmatpush.bf16.msra.mxu0 0
      %1987 = vmatpush.bf16.msra.mxu0 0
      %1988 = vmatpush.bf16.msra.mxu0 0
      %1989 = vmatpush.bf16.msra.mxu0 0
      %1990 = vmatpush.bf16.msra.mxu0 0
      %1991 = vmatpush.bf16.msra.mxu0 %v1979
      %1992 = vmatpush.bf16.msra.mxu0 %v1978
      %1993 = vmatmul.bf16.gmra.mxu0 %v1475
      %v1994 = vpop.f32.mrf.mxu0
      %v1995 = vadd.f32 0.0, %v1994
      %v1996 = vpop.f32.mrf.mxu0
      %v1997 = vadd.f32 0.0, %v1996
      %1998 = vmatmul.bf16.gmra.mxu0 %v1478
      %v1999 = vpop.f32.mrf.mxu0
      %v2000 = vadd.f32 0.0, %v1999
      %v2001 = vpop.f32.mrf.mxu0
      %v2002 = vadd.f32 0.0, %v2001
      %2003 = vmatmul.bf16.gmra.mxu0 %v1481
      %v2004 = vpop.f32.mrf.mxu0
      %v2005 = vadd.f32 0.0, %v2004
      %v2006 = vpop.f32.mrf.mxu0
      %v2007 = vadd.f32 0.0, %v2006
      %2008 = vmatmul.bf16.gmra.mxu0 %v1484
      %v2009 = vpop.f32.mrf.mxu0
      %v2010 = vadd.f32 0.0, %v2009
      %v2011 = vpop.f32.mrf.mxu0
      %v2012 = vadd.f32 0.0, %v2011
      %2013 = vmatmul.bf16.gmra.mxu0 %v1487
      %v2014 = vpop.f32.mrf.mxu0
      %v2015 = vadd.f32 0.0, %v2014
      %v2016 = vpop.f32.mrf.mxu0
      %v2017 = vadd.f32 0.0, %v2016
      %2018 = vmatmul.bf16.gmra.mxu0 %v1490
      %v2019 = vpop.f32.mrf.mxu0
      %v2020 = vadd.f32 0.0, %v2019
      %v2021 = vpop.f32.mrf.mxu0
      %v2022 = vadd.f32 0.0, %v2021
      %2023 = vmatmul.bf16.gmra.mxu0 %v1493
      %v2024 = vpop.f32.mrf.mxu0
      %v2025 = vadd.f32 0.0, %v2024
      %v2026 = vpop.f32.mrf.mxu0
      %v2027 = vadd.f32 0.0, %v2026
      %2028 = vmatmul.bf16.gmra.mxu0 %v1496
      %v2029 = vpop.f32.mrf.mxu0
      %v2030 = vadd.f32 0.0, %v2029
      %v2031 = vpop.f32.mrf.mxu0
      %v2032 = vadd.f32 0.0, %v2031
      %2033 = vmatmul.bf16.gmra.mxu0 %v1499
      %v2034 = vpop.f32.mrf.mxu0
      %v2035 = vadd.f32 0.0, %v2034
      %v2036 = vpop.f32.mrf.mxu0
      %v2037 = vadd.f32 0.0, %v2036
      %2038 = vmatmul.bf16.gmra.mxu0 %v1502
      %v2039 = vpop.f32.mrf.mxu0
      %v2040 = vadd.f32 0.0, %v2039
      %v2041 = vpop.f32.mrf.mxu0
      %v2042 = vadd.f32 0.0, %v2041
      %2043 = vmatmul.bf16.gmra.mxu0 %v1505
      %v2044 = vpop.f32.mrf.mxu0
      %v2045 = vadd.f32 0.0, %v2044
      %v2046 = vpop.f32.mrf.mxu0
      %v2047 = vadd.f32 0.0, %v2046
      %2048 = vmatmul.bf16.gmra.mxu0 %v1508
      %v2049 = vpop.f32.mrf.mxu0
      %v2050 = vadd.f32 0.0, %v2049
      %v2051 = vpop.f32.mrf.mxu0
      %v2052 = vadd.f32 0.0, %v2051
      %2053 = vmatmul.bf16.gmra.mxu0 %v1511
      %v2054 = vpop.f32.mrf.mxu0
      %v2055 = vadd.f32 0.0, %v2054
      %v2056 = vpop.f32.mrf.mxu0
      %v2057 = vadd.f32 0.0, %v2056
      %2058 = vmatmul.bf16.gmra.mxu0 %v1514
      %v2059 = vpop.f32.mrf.mxu0
      %v2060 = vadd.f32 0.0, %v2059
      %v2061 = vpop.f32.mrf.mxu0
      %v2062 = vadd.f32 0.0, %v2061
      %2063 = vmatmul.bf16.gmra.mxu0 %v1517
      %v2064 = vpop.f32.mrf.mxu0
      %v2065 = vadd.f32 0.0, %v2064
      %v2066 = vpop.f32.mrf.mxu0
      %v2067 = vadd.f32 0.0, %v2066
      %2068 = vmatmul.bf16.gmra.mxu0 %v1983
      %v2069 = vpop.f32.mrf.mxu0
      %v2070 = vadd.f32 0.0, %v2069
      %v2071 = vpop.f32.mrf.mxu0
      %v2072 = vadd.f32 0.0, %v2071
      %2073 = vdwg.mxu0
      %v2074 = vadd.f32 %v1922, %v1995
      %v2075 = vadd.f32 %v1923, %v1997
      %v2076 = vadd.f32 %v1924, %v2000
      %v2077 = vadd.f32 %v1925, %v2002
      %v2078 = vadd.f32 %v1926, %v2005
      %v2079 = vadd.f32 %v1927, %v2007
      %v2080 = vadd.f32 %v1928, %v2010
      %v2081 = vadd.f32 %v1929, %v2012
      %v2082 = vadd.f32 %v1930, %v2015
      %v2083 = vadd.f32 %v1931, %v2017
      %v2084 = vadd.f32 %v1932, %v2020
      %v2085 = vadd.f32 %v1933, %v2022
      %v2086 = vadd.f32 %v1934, %v2025
      %v2087 = vadd.f32 %v1935, %v2027
      %v2088 = vadd.f32 %v1936, %v2030
      %v2089 = vadd.f32 %v1937, %v2032
      %v2090 = vadd.f32 %v1938, %v2035
      %v2091 = vadd.f32 %v1939, %v2037
      %v2092 = vadd.f32 %v1940, %v2040
      %v2093 = vadd.f32 %v1941, %v2042
      %v2094 = vadd.f32 %v1942, %v2045
      %v2095 = vadd.f32 %v1943, %v2047
      %v2096 = vadd.f32 %v1944, %v2050
      %v2097 = vadd.f32 %v1945, %v2052
      %v2098 = vadd.f32 %v1946, %v2055
      %v2099 = vadd.f32 %v1947, %v2057
      %v2100 = vadd.f32 %v1948, %v2060
      %v2101 = vadd.f32 %v1949, %v2062
      %v2102 = vadd.f32 %v1950, %v2065
      %v2103 = vadd.f32 %v1951, %v2067
      %v2104 = vadd.f32 %v1952, %v2070
      %v2105 = vadd.f32 %v1953, %v2072
      %s2106 = scalar_lea.vmem %s3, 96
      %v2107 = vld [vmem:[%s2106] sm:$0xf]
      %v2108 = vld [vmem:[%s2106 + $0x4] sm:$0xf]
      %v2109 = vld [vmem:[%s2106 + $0x8] sm:$0xf]
      %v2110 = vld [vmem:[%s2106 + $0xc] sm:$0xf]
      %v2113 = vunpack.c.l.b16 %v449
      %v2114 = vunpack.c.l.b16 %v450
      %v2115 = vpack.c.b16 %v2114, %v2113
      %v2120 = vunpack.c.l.b16 %v2107
      %v2121 = vunpack.c.l.b16 %v2108
      %v2122 = vunpack.c.l.b16 %v2109
      %v2123 = vunpack.c.l.b16 %v2110
      %v2124 = vpack.c.b16 %v2121, %v2120
      %v2125 = vpack.c.b16 %v2123, %v2122
      %v2129 = vsel %vm908, %v2115, 0
      %2131 = vmatpush.bf16.msra.mxu0 0
      %2132 = vmatpush.bf16.msra.mxu0 0
      %2133 = vmatpush.bf16.msra.mxu0 0
      %2134 = vmatpush.bf16.msra.mxu0 0
      %2135 = vmatpush.bf16.msra.mxu0 0
      %2136 = vmatpush.bf16.msra.mxu0 0
      %2137 = vmatpush.bf16.msra.mxu0 %v2125
      %2138 = vmatpush.bf16.msra.mxu0 %v2124
      %2139 = vmatmul.bf16.gmra.mxu0 %v1145
      %v2140 = vpop.f32.mrf.mxu0
      %v2141 = vadd.f32 0.0, %v2140
      %v2142 = vpop.f32.mrf.mxu0
      %v2143 = vadd.f32 0.0, %v2142
      %2144 = vmatmul.bf16.gmra.mxu0 %v1148
      %v2145 = vpop.f32.mrf.mxu0
      %v2146 = vadd.f32 0.0, %v2145
      %v2147 = vpop.f32.mrf.mxu0
      %v2148 = vadd.f32 0.0, %v2147
      %2149 = vmatmul.bf16.gmra.mxu0 %v1151
      %v2150 = vpop.f32.mrf.mxu0
      %v2151 = vadd.f32 0.0, %v2150
      %v2152 = vpop.f32.mrf.mxu0
      %v2153 = vadd.f32 0.0, %v2152
      %2154 = vmatmul.bf16.gmra.mxu0 %v1154
      %v2155 = vpop.f32.mrf.mxu0
      %v2156 = vadd.f32 0.0, %v2155
      %v2157 = vpop.f32.mrf.mxu0
      %v2158 = vadd.f32 0.0, %v2157
      %2159 = vmatmul.bf16.gmra.mxu0 %v1157
      %v2160 = vpop.f32.mrf.mxu0
      %v2161 = vadd.f32 0.0, %v2160
      %v2162 = vpop.f32.mrf.mxu0
      %v2163 = vadd.f32 0.0, %v2162
      %2164 = vmatmul.bf16.gmra.mxu0 %v1160
      %v2165 = vpop.f32.mrf.mxu0
      %v2166 = vadd.f32 0.0, %v2165
      %v2167 = vpop.f32.mrf.mxu0
      %v2168 = vadd.f32 0.0, %v2167
      %2169 = vmatmul.bf16.gmra.mxu0 %v1163
      %v2170 = vpop.f32.mrf.mxu0
      %v2171 = vadd.f32 0.0, %v2170
      %v2172 = vpop.f32.mrf.mxu0
      %v2173 = vadd.f32 0.0, %v2172
      %2174 = vmatmul.bf16.gmra.mxu0 %v1166
      %v2175 = vpop.f32.mrf.mxu0
      %v2176 = vadd.f32 0.0, %v2175
      %v2177 = vpop.f32.mrf.mxu0
      %v2178 = vadd.f32 0.0, %v2177
      %2179 = vmatmul.bf16.gmra.mxu0 %v1169
      %v2180 = vpop.f32.mrf.mxu0
      %v2181 = vadd.f32 0.0, %v2180
      %v2182 = vpop.f32.mrf.mxu0
      %v2183 = vadd.f32 0.0, %v2182
      %2184 = vmatmul.bf16.gmra.mxu0 %v1172
      %v2185 = vpop.f32.mrf.mxu0
      %v2186 = vadd.f32 0.0, %v2185
      %v2187 = vpop.f32.mrf.mxu0
      %v2188 = vadd.f32 0.0, %v2187
      %2189 = vmatmul.bf16.gmra.mxu0 %v1175
      %v2190 = vpop.f32.mrf.mxu0
      %v2191 = vadd.f32 0.0, %v2190
      %v2192 = vpop.f32.mrf.mxu0
      %v2193 = vadd.f32 0.0, %v2192
      %2194 = vmatmul.bf16.gmra.mxu0 %v1178
      %v2195 = vpop.f32.mrf.mxu0
      %v2196 = vadd.f32 0.0, %v2195
      %v2197 = vpop.f32.mrf.mxu0
      %v2198 = vadd.f32 0.0, %v2197
      %2199 = vmatmul.bf16.gmra.mxu0 %v1181
      %v2200 = vpop.f32.mrf.mxu0
      %v2201 = vadd.f32 0.0, %v2200
      %v2202 = vpop.f32.mrf.mxu0
      %v2203 = vadd.f32 0.0, %v2202
      %2204 = vmatmul.bf16.gmra.mxu0 %v1184
      %v2205 = vpop.f32.mrf.mxu0
      %v2206 = vadd.f32 0.0, %v2205
      %v2207 = vpop.f32.mrf.mxu0
      %v2208 = vadd.f32 0.0, %v2207
      %2209 = vmatmul.bf16.gmra.mxu0 %v1663
      %v2210 = vpop.f32.mrf.mxu0
      %v2211 = vadd.f32 0.0, %v2210
      %v2212 = vpop.f32.mrf.mxu0
      %v2213 = vadd.f32 0.0, %v2212
      %2214 = vmatmul.bf16.gmra.mxu0 %v2129
      %v2215 = vpop.f32.mrf.mxu0
      %v2216 = vadd.f32 0.0, %v2215
      %v2217 = vpop.f32.mrf.mxu0
      %v2218 = vadd.f32 0.0, %v2217
      %2219 = vdwg.mxu0
      %v2220 = vadd.f32 %v2074, %v2141
      %v2221 = vadd.f32 %v2075, %v2143
      %v2222 = vadd.f32 %v2076, %v2146
      %v2223 = vadd.f32 %v2077, %v2148
      %v2224 = vadd.f32 %v2078, %v2151
      %v2225 = vadd.f32 %v2079, %v2153
      %v2226 = vadd.f32 %v2080, %v2156
      %v2227 = vadd.f32 %v2081, %v2158
      %v2228 = vadd.f32 %v2082, %v2161
      %v2229 = vadd.f32 %v2083, %v2163
      %v2230 = vadd.f32 %v2084, %v2166
      %v2231 = vadd.f32 %v2085, %v2168
      %v2232 = vadd.f32 %v2086, %v2171
      %v2233 = vadd.f32 %v2087, %v2173
      %v2234 = vadd.f32 %v2088, %v2176
      %v2235 = vadd.f32 %v2089, %v2178
      %v2236 = vadd.f32 %v2090, %v2181
      %v2237 = vadd.f32 %v2091, %v2183
      %v2238 = vadd.f32 %v2092, %v2186
      %v2239 = vadd.f32 %v2093, %v2188
      %v2240 = vadd.f32 %v2094, %v2191
      %v2241 = vadd.f32 %v2095, %v2193
      %v2242 = vadd.f32 %v2096, %v2196
      %v2243 = vadd.f32 %v2097, %v2198
      %v2244 = vadd.f32 %v2098, %v2201
      %v2245 = vadd.f32 %v2099, %v2203
      %v2246 = vadd.f32 %v2100, %v2206
      %v2247 = vadd.f32 %v2101, %v2208
      %v2248 = vadd.f32 %v2102, %v2211
      %v2249 = vadd.f32 %v2103, %v2213
      %v2250 = vadd.f32 %v2104, %v2216
      %v2251 = vadd.f32 %v2105, %v2218
      %v2253 = vshrl.u32 %v449, 16
      %v2255 = vrot.slane %v2253, 4
      %v2256 = vshll.u32 %v449, 16
      %v2258 = vrot.slane %v2256, 5
      %v2259 = vor.u32 %v2255, %v2258
      %v2260 = vrot.slane %v2259, 4
      %v2262 = vshll.u32 %v450, 16
      %v2264 = vrot.slane %v2262, 5
      %v2265 = vsel %vm458, %v2260, %v2264
      %v2266 = vshrl.u32 %v450, 16
      %v2268 = vrot.slane %v2266, 4
      %v2269 = vor.u32 %v2268, %v2264
      %v2270 = vrot.slane %v2269, 4
      %v2272 = vshll.u32 %v451, 16
      %v2274 = vrot.slane %v2272, 5
      %v2275 = vsel %vm458, %v2270, %v2274
      %s2276 = scalar_lea.vmem %s3, 112
      %v2277 = vld [vmem:[%s2276] sm:$0xf]
      %v2278 = vld [vmem:[%s2276 + $0x4] sm:$0xf]
      %v2279 = vld [vmem:[%s2276 + $0x8] sm:$0xf]
      %v2280 = vld [vmem:[%s2276 + $0xc] sm:$0xf]
      %v2281 = vunpack.c.l.b16 %v2265
      %v2282 = vunpack.c.l.b16 %v2275
      %v2283 = vpack.c.b16 %v2282, %v2281
      %v2288 = vunpack.c.l.b16 %v2277
      %v2289 = vunpack.c.l.b16 %v2278
      %v2290 = vunpack.c.l.b16 %v2279
      %v2291 = vunpack.c.l.b16 %v2280
      %v2292 = vpack.c.b16 %v2289, %v2288
      %v2293 = vpack.c.b16 %v2291, %v2290
      %v2297 = vsel %vm908, %v2283, 0
      %2299 = vmatpush.bf16.msra.mxu0 0
      %2300 = vmatpush.bf16.msra.mxu0 0
      %2301 = vmatpush.bf16.msra.mxu0 0
      %2302 = vmatpush.bf16.msra.mxu0 0
      %2303 = vmatpush.bf16.msra.mxu0 0
      %2304 = vmatpush.bf16.msra.mxu0 0
      %2305 = vmatpush.bf16.msra.mxu0 %v2293
      %2306 = vmatpush.bf16.msra.mxu0 %v2292
      %2307 = vmatmul.bf16.gmra.mxu0 %v916
      %v2308 = vpop.f32.mrf.mxu0
      %v2309 = vadd.f32 0.0, %v2308
      %v2310 = vpop.f32.mrf.mxu0
      %v2311 = vadd.f32 0.0, %v2310
      %2312 = vmatmul.bf16.gmra.mxu0 %v919
      %v2313 = vpop.f32.mrf.mxu0
      %v2314 = vadd.f32 0.0, %v2313
      %v2315 = vpop.f32.mrf.mxu0
      %v2316 = vadd.f32 0.0, %v2315
      %2317 = vmatmul.bf16.gmra.mxu0 %v922
      %v2318 = vpop.f32.mrf.mxu0
      %v2319 = vadd.f32 0.0, %v2318
      %v2320 = vpop.f32.mrf.mxu0
      %v2321 = vadd.f32 0.0, %v2320
      %2322 = vmatmul.bf16.gmra.mxu0 %v925
      %v2323 = vpop.f32.mrf.mxu0
      %v2324 = vadd.f32 0.0, %v2323
      %v2325 = vpop.f32.mrf.mxu0
      %v2326 = vadd.f32 0.0, %v2325
      %2327 = vmatmul.bf16.gmra.mxu0 %v928
      %v2328 = vpop.f32.mrf.mxu0
      %v2329 = vadd.f32 0.0, %v2328
      %v2330 = vpop.f32.mrf.mxu0
      %v2331 = vadd.f32 0.0, %v2330
      %2332 = vmatmul.bf16.gmra.mxu0 %v931
      %v2333 = vpop.f32.mrf.mxu0
      %v2334 = vadd.f32 0.0, %v2333
      %v2335 = vpop.f32.mrf.mxu0
      %v2336 = vadd.f32 0.0, %v2335
      %2337 = vmatmul.bf16.gmra.mxu0 %v934
      %v2338 = vpop.f32.mrf.mxu0
      %v2339 = vadd.f32 0.0, %v2338
      %v2340 = vpop.f32.mrf.mxu0
      %v2341 = vadd.f32 0.0, %v2340
      %2342 = vmatmul.bf16.gmra.mxu0 %v937
      %v2343 = vpop.f32.mrf.mxu0
      %v2344 = vadd.f32 0.0, %v2343
      %v2345 = vpop.f32.mrf.mxu0
      %v2346 = vadd.f32 0.0, %v2345
      %2347 = vmatmul.bf16.gmra.mxu0 %v940
      %v2348 = vpop.f32.mrf.mxu0
      %v2349 = vadd.f32 0.0, %v2348
      %v2350 = vpop.f32.mrf.mxu0
      %v2351 = vadd.f32 0.0, %v2350
      %2352 = vmatmul.bf16.gmra.mxu0 %v943
      %v2353 = vpop.f32.mrf.mxu0
      %v2354 = vadd.f32 0.0, %v2353
      %v2355 = vpop.f32.mrf.mxu0
      %v2356 = vadd.f32 0.0, %v2355
      %2357 = vmatmul.bf16.gmra.mxu0 %v946
      %v2358 = vpop.f32.mrf.mxu0
      %v2359 = vadd.f32 0.0, %v2358
      %v2360 = vpop.f32.mrf.mxu0
      %v2361 = vadd.f32 0.0, %v2360
      %2362 = vmatmul.bf16.gmra.mxu0 %v949
      %v2363 = vpop.f32.mrf.mxu0
      %v2364 = vadd.f32 0.0, %v2363
      %v2365 = vpop.f32.mrf.mxu0
      %v2366 = vadd.f32 0.0, %v2365
      %2367 = vmatmul.bf16.gmra.mxu0 %v952
      %v2368 = vpop.f32.mrf.mxu0
      %v2369 = vadd.f32 0.0, %v2368
      %v2370 = vpop.f32.mrf.mxu0
      %v2371 = vadd.f32 0.0, %v2370
      %2372 = vmatmul.bf16.gmra.mxu0 %v955
      %v2373 = vpop.f32.mrf.mxu0
      %v2374 = vadd.f32 0.0, %v2373
      %v2375 = vpop.f32.mrf.mxu0
      %v2376 = vadd.f32 0.0, %v2375
      %2377 = vmatmul.bf16.gmra.mxu0 %v1831
      %v2378 = vpop.f32.mrf.mxu0
      %v2379 = vadd.f32 0.0, %v2378
      %v2380 = vpop.f32.mrf.mxu0
      %v2381 = vadd.f32 0.0, %v2380
      %2382 = vmatmul.bf16.gmra.mxu0 %v2297
      %v2383 = vpop.f32.mrf.mxu0
      %v2384 = vadd.f32 0.0, %v2383
      %v2385 = vpop.f32.mrf.mxu0
      %v2386 = vadd.f32 0.0, %v2385
      %2387 = vdwg.mxu0
      %v2388 = vadd.f32 %v2220, %v2309
      %v2389 = vadd.f32 %v2221, %v2311
      %v2390 = vadd.f32 %v2222, %v2314
      %v2391 = vadd.f32 %v2223, %v2316
      %v2392 = vadd.f32 %v2224, %v2319
      %v2393 = vadd.f32 %v2225, %v2321
      %v2394 = vadd.f32 %v2226, %v2324
      %v2395 = vadd.f32 %v2227, %v2326
      %v2396 = vadd.f32 %v2228, %v2329
      %v2397 = vadd.f32 %v2229, %v2331
      %v2398 = vadd.f32 %v2230, %v2334
      %v2399 = vadd.f32 %v2231, %v2336
      %v2400 = vadd.f32 %v2232, %v2339
      %v2401 = vadd.f32 %v2233, %v2341
      %v2402 = vadd.f32 %v2234, %v2344
      %v2403 = vadd.f32 %v2235, %v2346
      %v2404 = vadd.f32 %v2236, %v2349
      %v2405 = vadd.f32 %v2237, %v2351
      %v2406 = vadd.f32 %v2238, %v2354
      %v2407 = vadd.f32 %v2239, %v2356
      %v2408 = vadd.f32 %v2240, %v2359
      %v2409 = vadd.f32 %v2241, %v2361
      %v2410 = vadd.f32 %v2242, %v2364
      %v2411 = vadd.f32 %v2243, %v2366
      %v2412 = vadd.f32 %v2244, %v2369
      %v2413 = vadd.f32 %v2245, %v2371
      %v2414 = vadd.f32 %v2246, %v2374
      %v2415 = vadd.f32 %v2247, %v2376
      %v2416 = vadd.f32 %v2248, %v2379
      %v2417 = vadd.f32 %v2249, %v2381
      %v2418 = vadd.f32 %v2250, %v2384
      %v2419 = vadd.f32 %v2251, %v2386
      %v2421 = vrot.slane %v449, 5
      %v2422 = vrot.slane %v2421, 4
      %v2423 = vrot.slane %v450, 5
      %v2424 = vsel %vm1293, %v2422, %v2423
      %v2425 = vrot.slane %v2423, 4
      %v2426 = vrot.slane %v451, 5
      %v2427 = vsel %vm1293, %v2425, %v2426
      %s2428 = scalar_lea.vmem %s3, 128
      %v2429 = vld [vmem:[%s2428] sm:$0xf]
      %v2430 = vld [vmem:[%s2428 + $0x4] sm:$0xf]
      %v2431 = vld [vmem:[%s2428 + $0x8] sm:$0xf]
      %v2432 = vld [vmem:[%s2428 + $0xc] sm:$0xf]
      %v2433 = vunpack.c.l.b16 %v2424
      %v2434 = vunpack.c.l.b16 %v2427
      %v2435 = vpack.c.b16 %v2434, %v2433
      %v2440 = vunpack.c.l.b16 %v2429
      %v2441 = vunpack.c.l.b16 %v2430
      %v2442 = vunpack.c.l.b16 %v2431
      %v2443 = vunpack.c.l.b16 %v2432
      %v2444 = vpack.c.b16 %v2441, %v2440
      %v2445 = vpack.c.b16 %v2443, %v2442
      %v2449 = vsel %vm908, %v2435, 0
      %2451 = vmatpush.bf16.msra.mxu0 0
      %2452 = vmatpush.bf16.msra.mxu0 0
      %2453 = vmatpush.bf16.msra.mxu0 0
      %2454 = vmatpush.bf16.msra.mxu0 0
      %2455 = vmatpush.bf16.msra.mxu0 0
      %2456 = vmatpush.bf16.msra.mxu0 0
      %2457 = vmatpush.bf16.msra.mxu0 %v2445
      %2458 = vmatpush.bf16.msra.mxu0 %v2444
      %2459 = vmatmul.bf16.gmra.mxu0 %v1478
      %v2460 = vpop.f32.mrf.mxu0
      %v2461 = vadd.f32 0.0, %v2460
      %v2462 = vpop.f32.mrf.mxu0
      %v2463 = vadd.f32 0.0, %v2462
      %2464 = vmatmul.bf16.gmra.mxu0 %v1481
      %v2465 = vpop.f32.mrf.mxu0
      %v2466 = vadd.f32 0.0, %v2465
      %v2467 = vpop.f32.mrf.mxu0
      %v2468 = vadd.f32 0.0, %v2467
      %2469 = vmatmul.bf16.gmra.mxu0 %v1484
      %v2470 = vpop.f32.mrf.mxu0
      %v2471 = vadd.f32 0.0, %v2470
      %v2472 = vpop.f32.mrf.mxu0
      %v2473 = vadd.f32 0.0, %v2472
      %2474 = vmatmul.bf16.gmra.mxu0 %v1487
      %v2475 = vpop.f32.mrf.mxu0
      %v2476 = vadd.f32 0.0, %v2475
      %v2477 = vpop.f32.mrf.mxu0
      %v2478 = vadd.f32 0.0, %v2477
      %2479 = vmatmul.bf16.gmra.mxu0 %v1490
      %v2480 = vpop.f32.mrf.mxu0
      %v2481 = vadd.f32 0.0, %v2480
      %v2482 = vpop.f32.mrf.mxu0
      %v2483 = vadd.f32 0.0, %v2482
      %2484 = vmatmul.bf16.gmra.mxu0 %v1493
      %v2485 = vpop.f32.mrf.mxu0
      %v2486 = vadd.f32 0.0, %v2485
      %v2487 = vpop.f32.mrf.mxu0
      %v2488 = vadd.f32 0.0, %v2487
      %2489 = vmatmul.bf16.gmra.mxu0 %v1496
      %v2490 = vpop.f32.mrf.mxu0
      %v2491 = vadd.f32 0.0, %v2490
      %v2492 = vpop.f32.mrf.mxu0
      %v2493 = vadd.f32 0.0, %v2492
      %2494 = vmatmul.bf16.gmra.mxu0 %v1499
      %v2495 = vpop.f32.mrf.mxu0
      %v2496 = vadd.f32 0.0, %v2495
      %v2497 = vpop.f32.mrf.mxu0
      %v2498 = vadd.f32 0.0, %v2497
      %2499 = vmatmul.bf16.gmra.mxu0 %v1502
      %v2500 = vpop.f32.mrf.mxu0
      %v2501 = vadd.f32 0.0, %v2500
      %v2502 = vpop.f32.mrf.mxu0
      %v2503 = vadd.f32 0.0, %v2502
      %2504 = vmatmul.bf16.gmra.mxu0 %v1505
      %v2505 = vpop.f32.mrf.mxu0
      %v2506 = vadd.f32 0.0, %v2505
      %v2507 = vpop.f32.mrf.mxu0
      %v2508 = vadd.f32 0.0, %v2507
      %2509 = vmatmul.bf16.gmra.mxu0 %v1508
      %v2510 = vpop.f32.mrf.mxu0
      %v2511 = vadd.f32 0.0, %v2510
      %v2512 = vpop.f32.mrf.mxu0
      %v2513 = vadd.f32 0.0, %v2512
      %2514 = vmatmul.bf16.gmra.mxu0 %v1511
      %v2515 = vpop.f32.mrf.mxu0
      %v2516 = vadd.f32 0.0, %v2515
      %v2517 = vpop.f32.mrf.mxu0
      %v2518 = vadd.f32 0.0, %v2517
      %2519 = vmatmul.bf16.gmra.mxu0 %v1514
      %v2520 = vpop.f32.mrf.mxu0
      %v2521 = vadd.f32 0.0, %v2520
      %v2522 = vpop.f32.mrf.mxu0
      %v2523 = vadd.f32 0.0, %v2522
      %2524 = vmatmul.bf16.gmra.mxu0 %v1517
      %v2525 = vpop.f32.mrf.mxu0
      %v2526 = vadd.f32 0.0, %v2525
      %v2527 = vpop.f32.mrf.mxu0
      %v2528 = vadd.f32 0.0, %v2527
      %2529 = vmatmul.bf16.gmra.mxu0 %v1983
      %v2530 = vpop.f32.mrf.mxu0
      %v2531 = vadd.f32 0.0, %v2530
      %v2532 = vpop.f32.mrf.mxu0
      %v2533 = vadd.f32 0.0, %v2532
      %2534 = vmatmul.bf16.gmra.mxu0 %v2449
      %v2535 = vpop.f32.mrf.mxu0
      %v2536 = vadd.f32 0.0, %v2535
      %v2537 = vpop.f32.mrf.mxu0
      %v2538 = vadd.f32 0.0, %v2537
      %2539 = vdwg.mxu0
      %v2540 = vadd.f32 %v2388, %v2461
      %v2541 = vadd.f32 %v2389, %v2463
      %v2542 = vadd.f32 %v2390, %v2466
      %v2543 = vadd.f32 %v2391, %v2468
      %v2544 = vadd.f32 %v2392, %v2471
      %v2545 = vadd.f32 %v2393, %v2473
      %v2546 = vadd.f32 %v2394, %v2476
      %v2547 = vadd.f32 %v2395, %v2478
      %v2548 = vadd.f32 %v2396, %v2481
      %v2549 = vadd.f32 %v2397, %v2483
      %v2550 = vadd.f32 %v2398, %v2486
      %v2551 = vadd.f32 %v2399, %v2488
      %v2552 = vadd.f32 %v2400, %v2491
      %v2553 = vadd.f32 %v2401, %v2493
      %v2554 = vadd.f32 %v2402, %v2496
      %v2555 = vadd.f32 %v2403, %v2498
      %v2556 = vadd.f32 %v2404, %v2501
      %v2557 = vadd.f32 %v2405, %v2503
      %v2558 = vadd.f32 %v2406, %v2506
      %v2559 = vadd.f32 %v2407, %v2508
      %v2560 = vadd.f32 %v2408, %v2511
      %v2561 = vadd.f32 %v2409, %v2513
      %v2562 = vadd.f32 %v2410, %v2516
      %v2563 = vadd.f32 %v2411, %v2518
      %v2564 = vadd.f32 %v2412, %v2521
      %v2565 = vadd.f32 %v2413, %v2523
      %v2566 = vadd.f32 %v2414, %v2526
      %v2567 = vadd.f32 %v2415, %v2528
      %v2568 = vadd.f32 %v2416, %v2531
      %v2569 = vadd.f32 %v2417, %v2533
      %v2570 = vadd.f32 %v2418, %v2536
      %v2571 = vadd.f32 %v2419, %v2538
      %v2572 = vmax.f32 %v2540, 0.0
      %v2573 = vmax.f32 %v2541, 0.0
      %v2574 = vmax.f32 %v2542, 0.0
      %v2575 = vmax.f32 %v2543, 0.0
      %v2576 = vmax.f32 %v2544, 0.0
      %v2577 = vmax.f32 %v2545, 0.0
      %v2578 = vmax.f32 %v2546, 0.0
      %v2579 = vmax.f32 %v2547, 0.0
      %v2580 = vmax.f32 %v2548, 0.0
      %v2581 = vmax.f32 %v2549, 0.0
      %v2582 = vmax.f32 %v2550, 0.0
      %v2583 = vmax.f32 %v2551, 0.0
      %v2584 = vmax.f32 %v2552, 0.0
      %v2585 = vmax.f32 %v2553, 0.0
      %v2586 = vmax.f32 %v2554, 0.0
      %v2587 = vmax.f32 %v2555, 0.0
      %v2588 = vmax.f32 %v2556, 0.0
      %v2589 = vmax.f32 %v2557, 0.0
      %v2590 = vmax.f32 %v2558, 0.0
      %v2591 = vmax.f32 %v2559, 0.0
      %v2592 = vmax.f32 %v2560, 0.0
      %v2593 = vmax.f32 %v2561, 0.0
      %v2594 = vmax.f32 %v2562, 0.0
      %v2595 = vmax.f32 %v2563, 0.0
      %v2596 = vmax.f32 %v2564, 0.0
      %v2597 = vmax.f32 %v2565, 0.0
      %v2598 = vmax.f32 %v2566, 0.0
      %v2599 = vmax.f32 %v2567, 0.0
      %v2600 = vmax.f32 %v2568, 0.0
      %v2601 = vmax.f32 %v2569, 0.0
      %v2602 = vmax.f32 %v2570, 0.0
      %v2603 = vmax.f32 %v2571, 0.0
      %v2604 = vpack.c.bf16 %v2573, %v2572
      %v2605 = vpack.c.bf16 %v2575, %v2574
      %v2606 = vpack.c.bf16 %v2577, %v2576
      %v2607 = vpack.c.bf16 %v2579, %v2578
      %v2608 = vpack.c.bf16 %v2581, %v2580
      %v2609 = vpack.c.bf16 %v2583, %v2582
      %v2610 = vpack.c.bf16 %v2585, %v2584
      %v2611 = vpack.c.bf16 %v2587, %v2586
      %v2612 = vpack.c.bf16 %v2589, %v2588
      %v2613 = vpack.c.bf16 %v2591, %v2590
      %v2614 = vpack.c.bf16 %v2593, %v2592
      %v2615 = vpack.c.bf16 %v2595, %v2594
      %v2616 = vpack.c.bf16 %v2597, %v2596
      %v2617 = vpack.c.bf16 %v2599, %v2598
      %v2618 = vpack.c.bf16 %v2601, %v2600
      %v2619 = vpack.c.bf16 %v2603, %v2602
      %v2620 = vld [vmem:[%s4] sm:$0xf]
      %v2621 = vld [vmem:[%s4 + $0x4] sm:$0xf]
      %v2622 = vld [vmem:[%s4 + $0x8] sm:$0xf]
      %v2623 = vld [vmem:[%s4 + $0xc] sm:$0xf]
      %v2624 = vunpack.c.l.bf16 %v401
      %v2625 = vunpack.c.l.bf16 %v402
      %v2626 = vunpack.c.l.bf16 %v403
      %v2627 = vunpack.c.l.bf16 %v404
      %v2628 = vunpack.c.l.bf16 %v405
      %v2629 = vunpack.c.l.bf16 %v406
      %v2630 = vunpack.c.l.bf16 %v407
      %v2631 = vunpack.c.l.bf16 %v408
      %v2632 = vunpack.c.l.bf16 %v409
      %v2633 = vunpack.c.l.bf16 %v410
      %v2634 = vunpack.c.l.bf16 %v411
      %v2635 = vunpack.c.l.bf16 %v412
      %v2636 = vunpack.c.l.bf16 %v413
      %v2637 = vunpack.c.l.bf16 %v414
      %v2638 = vunpack.c.l.bf16 %v415
      %v2639 = vunpack.c.l.bf16 %v416
      %v2640 = vunpack.c.l.bf16 %v417
      %v2641 = vunpack.c.l.bf16 %v418
      %v2642 = vunpack.c.l.bf16 %v419
      %v2643 = vunpack.c.l.bf16 %v420
      %v2644 = vunpack.c.l.bf16 %v421
      %v2645 = vunpack.c.l.bf16 %v422
      %v2646 = vunpack.c.l.bf16 %v423
      %v2647 = vunpack.c.l.bf16 %v424
      %v2648 = vunpack.c.l.bf16 %v425
      %v2649 = vunpack.c.l.bf16 %v426
      %v2650 = vunpack.c.l.bf16 %v427
      %v2651 = vunpack.c.l.bf16 %v428
      %v2652 = vunpack.c.l.bf16 %v429
      %v2653 = vunpack.c.l.bf16 %v430
      %v2654 = vunpack.c.l.bf16 %v431
      %v2655 = vunpack.c.l.bf16 %v432
      %v2656 = vunpack.c.l.bf16 %v433
      %v2657 = vunpack.c.l.bf16 %v434
      %v2658 = vunpack.c.l.bf16 %v435
      %v2659 = vunpack.c.l.bf16 %v436
      %v2660 = vunpack.c.l.bf16 %v437
      %v2661 = vunpack.c.l.bf16 %v438
      %v2662 = vunpack.c.l.bf16 %v439
      %v2663 = vunpack.c.l.bf16 %v440
      %v2664 = vunpack.c.l.bf16 %v441
      %v2665 = vunpack.c.l.bf16 %v442
      %v2666 = vunpack.c.l.bf16 %v443
      %v2667 = vunpack.c.l.bf16 %v444
      %v2668 = vunpack.c.l.bf16 %v445
      %v2669 = vunpack.c.l.bf16 %v446
      %v2670 = vunpack.c.l.bf16 %v447
      %v2671 = vunpack.c.l.bf16 %v448
      %vm2720 = vcmask 1046528
      %v2721 = vrot.slane %v2624, 1
      %v2722 = vrot.slane %v2625, 1
      %v2723 = vsel %vm2720, %v2721, %v2722
      %v2724 = vrot.slane %v2626, 1
      %v2725 = vsel %vm2720, %v2722, %v2724
      %v2726 = vrot.slane %v2627, 1
      %v2727 = vrot.slane %v2628, 1
      %v2728 = vsel %vm2720, %v2726, %v2727
      %v2729 = vrot.slane %v2629, 1
      %v2730 = vsel %vm2720, %v2727, %v2729
      %v2731 = vrot.slane %v2630, 1
      %v2732 = vrot.slane %v2631, 1
      %v2733 = vsel %vm2720, %v2731, %v2732
      %v2734 = vrot.slane %v2632, 1
      %v2735 = vsel %vm2720, %v2732, %v2734
      %v2736 = vrot.slane %v2633, 1
      %v2737 = vrot.slane %v2634, 1
      %v2738 = vsel %vm2720, %v2736, %v2737
      %v2739 = vrot.slane %v2635, 1
      %v2740 = vsel %vm2720, %v2737, %v2739
      %v2741 = vrot.slane %v2636, 1
      %v2742 = vrot.slane %v2637, 1
      %v2743 = vsel %vm2720, %v2741, %v2742
      %v2744 = vrot.slane %v2638, 1
      %v2745 = vsel %vm2720, %v2742, %v2744
      %v2746 = vrot.slane %v2639, 1
      %v2747 = vrot.slane %v2640, 1
      %v2748 = vsel %vm2720, %v2746, %v2747
      %v2749 = vrot.slane %v2641, 1
      %v2750 = vsel %vm2720, %v2747, %v2749
      %v2751 = vrot.slane %v2642, 1
      %v2752 = vrot.slane %v2643, 1
      %v2753 = vsel %vm2720, %v2751, %v2752
      %v2754 = vrot.slane %v2644, 1
      %v2755 = vsel %vm2720, %v2752, %v2754
      %v2756 = vrot.slane %v2645, 1
      %v2757 = vrot.slane %v2646, 1
      %v2758 = vsel %vm2720, %v2756, %v2757
      %v2759 = vrot.slane %v2647, 1
      %v2760 = vsel %vm2720, %v2757, %v2759
      %v2761 = vrot.slane %v2648, 1
      %v2762 = vrot.slane %v2649, 1
      %v2763 = vsel %vm2720, %v2761, %v2762
      %v2764 = vrot.slane %v2650, 1
      %v2765 = vsel %vm2720, %v2762, %v2764
      %v2766 = vrot.slane %v2651, 1
      %v2767 = vrot.slane %v2652, 1
      %v2768 = vsel %vm2720, %v2766, %v2767
      %v2769 = vrot.slane %v2653, 1
      %v2770 = vsel %vm2720, %v2767, %v2769
      %v2771 = vrot.slane %v2654, 1
      %v2772 = vrot.slane %v2655, 1
      %v2773 = vsel %vm2720, %v2771, %v2772
      %v2774 = vrot.slane %v2656, 1
      %v2775 = vsel %vm2720, %v2772, %v2774
      %v2776 = vrot.slane %v2657, 1
      %v2777 = vrot.slane %v2658, 1
      %v2778 = vsel %vm2720, %v2776, %v2777
      %v2779 = vrot.slane %v2659, 1
      %v2780 = vsel %vm2720, %v2777, %v2779
      %v2781 = vrot.slane %v2660, 1
      %v2782 = vrot.slane %v2661, 1
      %v2783 = vsel %vm2720, %v2781, %v2782
      %v2784 = vrot.slane %v2662, 1
      %v2785 = vsel %vm2720, %v2782, %v2784
      %v2786 = vrot.slane %v2663, 1
      %v2787 = vrot.slane %v2664, 1
      %v2788 = vsel %vm2720, %v2786, %v2787
      %v2789 = vrot.slane %v2665, 1
      %v2790 = vsel %vm2720, %v2787, %v2789
      %v2791 = vrot.slane %v2666, 1
      %v2792 = vrot.slane %v2667, 1
      %v2793 = vsel %vm2720, %v2791, %v2792
      %v2794 = vrot.slane %v2668, 1
      %v2795 = vsel %vm2720, %v2792, %v2794
      %v2796 = vrot.slane %v2669, 1
      %v2797 = vrot.slane %v2670, 1
      %v2798 = vsel %vm2720, %v2796, %v2797
      %v2799 = vrot.slane %v2671, 1
      %v2800 = vsel %vm2720, %v2797, %v2799
      %v2837 = vunpack.c.l.b16 %v2620
      %v2838 = vunpack.c.l.b16 %v2621
      %v2839 = vunpack.c.l.b16 %v2622
      %v2840 = vunpack.c.l.b16 %v2623
      %v2841 = vpack.c.b16 %v2838, %v2837
      %v2842 = vpack.c.b16 %v2840, %v2839
      %v2846 = vsel %vm908, %v2604, 0
      %v2849 = vsel %vm908, %v2605, 0
      %v2852 = vsel %vm908, %v2606, 0
      %v2855 = vsel %vm908, %v2607, 0
      %v2858 = vsel %vm908, %v2608, 0
      %v2861 = vsel %vm908, %v2609, 0
      %v2864 = vsel %vm908, %v2610, 0
      %v2867 = vsel %vm908, %v2611, 0
      %v2870 = vsel %vm908, %v2612, 0
      %v2873 = vsel %vm908, %v2613, 0
      %v2876 = vsel %vm908, %v2614, 0
      %v2879 = vsel %vm908, %v2615, 0
      %v2882 = vsel %vm908, %v2616, 0
      %v2885 = vsel %vm908, %v2617, 0
      %v2888 = vsel %vm908, %v2618, 0
      %v2891 = vsel %vm908, %v2619, 0
      %2893 = vmatpush.bf16.msra.mxu0 0
      %2894 = vmatpush.bf16.msra.mxu0 0
      %2895 = vmatpush.bf16.msra.mxu0 0
      %2896 = vmatpush.bf16.msra.mxu0 0
      %2897 = vmatpush.bf16.msra.mxu0 0
      %2898 = vmatpush.bf16.msra.mxu0 0
      %2899 = vmatpush.bf16.msra.mxu0 %v2842
      %2900 = vmatpush.bf16.msra.mxu0 %v2841
      %2901 = vmatmul.bf16.gmra.mxu0 %v2846
      %v2902 = vpop.f32.mrf.mxu0
      %v2903 = vadd.f32 %v2723, %v2902
      %v2904 = vpop.f32.mrf.mxu0
      %v2905 = vadd.f32 %v2725, %v2904
      %2906 = vmatmul.bf16.gmra.mxu0 %v2849
      %v2907 = vpop.f32.mrf.mxu0
      %v2908 = vadd.f32 %v2728, %v2907
      %v2909 = vpop.f32.mrf.mxu0
      %v2910 = vadd.f32 %v2730, %v2909
      %2911 = vmatmul.bf16.gmra.mxu0 %v2852
      %v2912 = vpop.f32.mrf.mxu0
      %v2913 = vadd.f32 %v2733, %v2912
      %v2914 = vpop.f32.mrf.mxu0
      %v2915 = vadd.f32 %v2735, %v2914
      %2916 = vmatmul.bf16.gmra.mxu0 %v2855
      %v2917 = vpop.f32.mrf.mxu0
      %v2918 = vadd.f32 %v2738, %v2917
      %v2919 = vpop.f32.mrf.mxu0
      %v2920 = vadd.f32 %v2740, %v2919
      %2921 = vmatmul.bf16.gmra.mxu0 %v2858
      %v2922 = vpop.f32.mrf.mxu0
      %v2923 = vadd.f32 %v2743, %v2922
      %v2924 = vpop.f32.mrf.mxu0
      %v2925 = vadd.f32 %v2745, %v2924
      %2926 = vmatmul.bf16.gmra.mxu0 %v2861
      %v2927 = vpop.f32.mrf.mxu0
      %v2928 = vadd.f32 %v2748, %v2927
      %v2929 = vpop.f32.mrf.mxu0
      %v2930 = vadd.f32 %v2750, %v2929
      %2931 = vmatmul.bf16.gmra.mxu0 %v2864
      %v2932 = vpop.f32.mrf.mxu0
      %v2933 = vadd.f32 %v2753, %v2932
      %v2934 = vpop.f32.mrf.mxu0
      %v2935 = vadd.f32 %v2755, %v2934
      %2936 = vmatmul.bf16.gmra.mxu0 %v2867
      %v2937 = vpop.f32.mrf.mxu0
      %v2938 = vadd.f32 %v2758, %v2937
      %v2939 = vpop.f32.mrf.mxu0
      %v2940 = vadd.f32 %v2760, %v2939
      %2941 = vmatmul.bf16.gmra.mxu0 %v2870
      %v2942 = vpop.f32.mrf.mxu0
      %v2943 = vadd.f32 %v2763, %v2942
      %v2944 = vpop.f32.mrf.mxu0
      %v2945 = vadd.f32 %v2765, %v2944
      %2946 = vmatmul.bf16.gmra.mxu0 %v2873
      %v2947 = vpop.f32.mrf.mxu0
      %v2948 = vadd.f32 %v2768, %v2947
      %v2949 = vpop.f32.mrf.mxu0
      %v2950 = vadd.f32 %v2770, %v2949
      %2951 = vmatmul.bf16.gmra.mxu0 %v2876
      %v2952 = vpop.f32.mrf.mxu0
      %v2953 = vadd.f32 %v2773, %v2952
      %v2954 = vpop.f32.mrf.mxu0
      %v2955 = vadd.f32 %v2775, %v2954
      %2956 = vmatmul.bf16.gmra.mxu0 %v2879
      %v2957 = vpop.f32.mrf.mxu0
      %v2958 = vadd.f32 %v2778, %v2957
      %v2959 = vpop.f32.mrf.mxu0
      %v2960 = vadd.f32 %v2780, %v2959
      %2961 = vmatmul.bf16.gmra.mxu0 %v2882
      %v2962 = vpop.f32.mrf.mxu0
      %v2963 = vadd.f32 %v2783, %v2962
      %v2964 = vpop.f32.mrf.mxu0
      %v2965 = vadd.f32 %v2785, %v2964
      %2966 = vmatmul.bf16.gmra.mxu0 %v2885
      %v2967 = vpop.f32.mrf.mxu0
      %v2968 = vadd.f32 %v2788, %v2967
      %v2969 = vpop.f32.mrf.mxu0
      %v2970 = vadd.f32 %v2790, %v2969
      %2971 = vmatmul.bf16.gmra.mxu0 %v2888
      %v2972 = vpop.f32.mrf.mxu0
      %v2973 = vadd.f32 %v2793, %v2972
      %v2974 = vpop.f32.mrf.mxu0
      %v2975 = vadd.f32 %v2795, %v2974
      %2976 = vmatmul.bf16.gmra.mxu0 %v2891
      %v2977 = vpop.f32.mrf.mxu0
      %v2978 = vadd.f32 %v2798, %v2977
      %v2979 = vpop.f32.mrf.mxu0
      %v2980 = vadd.f32 %v2800, %v2979
      %2981 = vdwg.mxu0
      %v2982 = vpack.c.bf16 %v2903, %v2903
      %v2983 = vpack.c.bf16 %v2905, %v2905
      %v2984 = vpack.c.bf16 %v2908, %v2908
      %v2985 = vpack.c.bf16 %v2910, %v2910
      %v2986 = vpack.c.bf16 %v2913, %v2913
      %v2987 = vpack.c.bf16 %v2915, %v2915
      %v2988 = vpack.c.bf16 %v2918, %v2918
      %v2989 = vpack.c.bf16 %v2920, %v2920
      %v2990 = vpack.c.bf16 %v2923, %v2923
      %v2991 = vpack.c.bf16 %v2925, %v2925
      %v2992 = vpack.c.bf16 %v2928, %v2928
      %v2993 = vpack.c.bf16 %v2930, %v2930
      %v2994 = vpack.c.bf16 %v2933, %v2933
      %v2995 = vpack.c.bf16 %v2935, %v2935
      %v2996 = vpack.c.bf16 %v2938, %v2938
      %v2997 = vpack.c.bf16 %v2940, %v2940
      %v2998 = vpack.c.bf16 %v2943, %v2943
      %v2999 = vpack.c.bf16 %v2945, %v2945
      %v3000 = vpack.c.bf16 %v2948, %v2948
      %v3001 = vpack.c.bf16 %v2950, %v2950
      %v3002 = vpack.c.bf16 %v2953, %v2953
      %v3003 = vpack.c.bf16 %v2955, %v2955
      %v3004 = vpack.c.bf16 %v2958, %v2958
      %v3005 = vpack.c.bf16 %v2960, %v2960
      %v3006 = vpack.c.bf16 %v2963, %v2963
      %v3007 = vpack.c.bf16 %v2965, %v2965
      %v3008 = vpack.c.bf16 %v2968, %v2968
      %v3009 = vpack.c.bf16 %v2970, %v2970
      %v3010 = vpack.c.bf16 %v2973, %v2973
      %v3011 = vpack.c.bf16 %v2975, %v2975
      %v3012 = vpack.c.bf16 %v2978, %v2978
      %v3013 = vpack.c.bf16 %v2980, %v2980
      %vm3014 = vcmask 257024
      %3015 = vst.msk [vmem:[%s395] sm:$0xf] %vm3014, %v2982
      %3016 = vst.msk [vmem:[%s395 + $0x4] sm:$0xf] %vm3014, %v2983
      %3017 = vst.msk [vmem:[%s395 + $0x8] sm:$0xf] %vm3014, %v2984
      %3018 = vst.msk [vmem:[%s395 + $0xc] sm:$0xf] %vm3014, %v2985
      %3019 = vst.msk [vmem:[%s395 + $0x10] sm:$0xf] %vm3014, %v2986
      %3020 = vst.msk [vmem:[%s395 + $0x14] sm:$0xf] %vm3014, %v2987
      %3021 = vst.msk [vmem:[%s395 + $0x18] sm:$0xf] %vm3014, %v2988
      %3022 = vst.msk [vmem:[%s395 + $0x1c] sm:$0xf] %vm3014, %v2989
      %3023 = vst.msk [vmem:[%s395 + $0x20] sm:$0xf] %vm3014, %v2990
      %3024 = vst.msk [vmem:[%s395 + $0x24] sm:$0xf] %vm3014, %v2991
      %3025 = vst.msk [vmem:[%s395 + $0x28] sm:$0xf] %vm3014, %v2992
      %3026 = vst.msk [vmem:[%s395 + $0x2c] sm:$0xf] %vm3014, %v2993
      %3027 = vst.msk [vmem:[%s395 + $0x30] sm:$0xf] %vm3014, %v2994
      %3028 = vst.msk [vmem:[%s395 + $0x34] sm:$0xf] %vm3014, %v2995
      %3029 = vst.msk [vmem:[%s395 + $0x38] sm:$0xf] %vm3014, %v2996
      %3030 = vst.msk [vmem:[%s395 + $0x3c] sm:$0xf] %vm3014, %v2997
      %3031 = vst.msk [vmem:[%s395 + $0x40] sm:$0xf] %vm3014, %v2998
      %3032 = vst.msk [vmem:[%s395 + $0x44] sm:$0xf] %vm3014, %v2999
      %3033 = vst.msk [vmem:[%s395 + $0x48] sm:$0xf] %vm3014, %v3000
      %3034 = vst.msk [vmem:[%s395 + $0x4c] sm:$0xf] %vm3014, %v3001
      %3035 = vst.msk [vmem:[%s395 + $0x50] sm:$0xf] %vm3014, %v3002
      %3036 = vst.msk [vmem:[%s395 + $0x54] sm:$0xf] %vm3014, %v3003
      %3037 = vst.msk [vmem:[%s395 + $0x58] sm:$0xf] %vm3014, %v3004
      %3038 = vst.msk [vmem:[%s395 + $0x5c] sm:$0xf] %vm3014, %v3005
      %3039 = vst.msk [vmem:[%s395 + $0x60] sm:$0xf] %vm3014, %v3006
      %3040 = vst.msk [vmem:[%s395 + $0x64] sm:$0xf] %vm3014, %v3007
      %3041 = vst.msk [vmem:[%s395 + $0x68] sm:$0xf] %vm3014, %v3008
      %3042 = vst.msk [vmem:[%s395 + $0x6c] sm:$0xf] %vm3014, %v3009
      %3043 = vst.msk [vmem:[%s395 + $0x70] sm:$0xf] %vm3014, %v3010
      %3044 = vst.msk [vmem:[%s395 + $0x74] sm:$0xf] %vm3014, %v3011
      %3045 = vst.msk [vmem:[%s395 + $0x78] sm:$0xf] %vm3014, %v3012
      %3046 = vst.msk [vmem:[%s395 + $0x7c] sm:$0xf] %vm3014, %v3013
      %s3047 = smul.u32 16, %s21
      %p3048 = scmp.lt.s32.totalorder %s20, 1
      %s3049 = scalar_select %p3048, %s20, 1
      %p3050 = scmp.lt.s32.totalorder %s3047, 15
      %s3051 = scalar_select %p3050, %s3047, 15
      %s3052 = smul.addr %s3051, 2
      %s3053 = smul.addr %s3049, 32
      %s3054 = sadd.s32 %s3052, %s3053
      %s3055 = smul.addr %s3054, 4
      %s3056 = scalar_lea.vmem %s5, %s3055
      // Predicated region
      $region41: #{pmaa_conv_block_forward.5} parent=39 // pred_check
        %p3057 = pneg %p184
      $region42: #{pmaa_conv_block_forward.5} parent=39 // pred_check_branch
        %3059 = sbr.rel (%p3057) target = $region44
      $region43: #{pmaa_conv_block_forward.5} parent=39 // pred_region
        %s3060 = smul.u32 16, %s21
      $region44: #{pmaa_conv_block_forward.5} parent=39 // pred_fallthru
        _
    $region40: #{pmaa_conv_block_forward.5} parent=5 // pred_fallthru
      _
    %p3061 = scmp.le.s32.totalorder 2, %s11
    // Predicated region
    $region45: #{pmaa_conv_block_forward.5} parent=5 // pred_check
      %p3062 = pneg %p3061
    $region46: #{pmaa_conv_block_forward.5} parent=5 // pred_check_branch
      %3064 = sbr.rel (%p3062) target = $region48
    $region47: #{pmaa_conv_block_forward.5} parent=5 // pred_region
      %s3065 = ssub.s32 %s11, 2
      // Predicated region
      $region49: #{pmaa_conv_block_forward.5} parent=47 // pred_check
        %p3066 = pneg %p190
      $region50: #{pmaa_conv_block_forward.5} parent=47 // pred_check_branch
        %3068 = sbr.rel (%p3066) target = $region52
      $region51: #{pmaa_conv_block_forward.5} parent=47 // pred_region
        %s3069 = smul.u32 16, %s23
        %p3070 = scmp.lt.s32.totalorder %s22, 1
        %s3071 = scalar_select %p3070, %s22, 1
        %p3072 = scmp.lt.s32.totalorder %s3069, 15
        %s3073 = scalar_select %p3072, %s3069, 15
        %s3074 = smul.addr %s3073, 2
        %s3075 = smul.addr %s3071, 32
        %s3076 = sadd.s32 %s3074, %s3075
        %s3077 = smul.addr %s3076, 4
        %s3078 = scalar_lea.vmem %s5, %s3077
      $region52: #{pmaa_conv_block_forward.5} parent=47 // pred_fallthru
        _
    $region48: #{pmaa_conv_block_forward.5} parent=5 // pred_fallthru
      _
  $region6: #{pmaa_conv_block_forward.5} parent=0 // loop_footer
    %s15 = sadd.s32 1, %s11
  $region7: #{pmaa_conv_block_forward.5} parent=0 // loop_footer_branch
    %10 = sbr.rel target = $region3
  $region8: #{pmaa_conv_block_forward.5} parent=0 // loop_exit
    _

// kernel: pmaa_conv_block_forward.9
$region0: #{pmaa_conv_block_forward.9}
  #allocation0 [shape = 'u32[]', space=smem, size = 0x4, offset = 0x4, fixed_abs, tag = 'smem constant byte address 0x4 - core index']
  #allocation1 [shape = 'u32[72,128]{1,0:T(1,128)}', space=vmem, size = 0x9000, scoped, tag = 'internal scratch']
  %s0 = inlined_call_operand.vmem [shape: bf16[2,4,2,32], index: 0, kind: input, shape index: {}, may-alias: {0,1}]
  %s1 = inlined_call_operand.vmem [shape: bf16[2,4,2,32], index: 1, kind: input, shape index: {}, may-alias: {0,1}]
  %s2 = inlined_call_operand.vmem [shape: bf16[2,4,2,32], index: 2, kind: input, shape index: {}, may-alias: {2,3}]
  %s3 = inlined_call_operand.vmem [shape: bf16[2,4,2,32], index: 3, kind: input, shape index: {}, may-alias: {2,3}]
  %s4 = inlined_call_operand.vmem [shape: bf16[2,2,1,32], index: 4, kind: input, shape index: {}]
  %s5 = inlined_call_operand.vmem [shape: bf16[2,2,1,32], index: 5, kind: input, shape index: {}]
  %s6 = inlined_call_operand.vmem [shape: bf16[9,32,32], index: 6, kind: input, shape index: {}]
  %s7 = inlined_call_operand.vmem [shape: bf16[32,32], index: 7, kind: input, shape index: {}]
  %s8 = inlined_call_operand.hbm [shape: bf16[2,1,1,32], index: 8, kind: output, shape index: {0}]
  %s9 = inlined_call_operand.hbm [shape: f32[2,1,1,32], index: 9, kind: output, shape index: {1}]
  %10 = xla_tuple %s8, %s9
  %s11 = sld [smem:[#allocation0]]
  $region73: #{pmaa_conv_block_forward.9} parent=0
    _
  %s13 = ssub.s32 1, %s11
  %s14 = scalar_select 0, %s13, %s11
  $region1: #{pmaa_conv_block_forward.9} parent=0
    #allocation2 [shape = 'u8[1024]{0}', space=vmem, size = 0x400, scoped, tag = 'output window, operand 0']
    #allocation3 [shape = 's32[2]{0}', space=sflag, size = 0x8, scoped, tag = 'scoped memory for pmaa_conv_block_forward.9']
    #allocation4 [shape = 'u8[1024]{0}', space=vmem, size = 0x400, scoped, tag = 'output window, operand 1']
    #allocation5 [shape = 's32[2]{0}', space=sflag, size = 0x8, scoped, tag = 'scoped memory for pmaa_conv_block_forward.9']
    %15 = vsyncpa [#allocation3], 0
    %s16 = scalar_lea.sflag [#allocation3], 1
    %17 = vsyncpa %s16, 0
    %18 = vsyncpa [#allocation5], 0
    %s19 = scalar_lea.sflag [#allocation5], 1
    %20 = vsyncpa %s19, 0
    loop: start=0, step=1, limit=4
    $region2: #{pmaa_conv_block_forward.9} parent=1 // loop_pre_header
      _
    $region3: #{pmaa_conv_block_forward.9} parent=1 // loop_header
      %s22 = sphi 0, %s26
      %p23 = scmp.ge.s32.totalorder %s22, 4
      %s29 = sphi 0, %s41
      %s30 = sphi 0, %s37
      %s31 = sphi 0, %s29
      %s32 = sphi 0, %s30
      %s33 = sphi 0, %s31
      %s34 = sphi 0, %s32
      %s46 = sphi 0, %s48
      %s49 = sphi 0, %s46
      %s50 = sphi 0, %s49
      %s66 = sphi 0, %s50
      %s78 = sphi 0, %s80
      %s81 = sphi 0, %s78
      %s82 = sphi 0, %s81
      %s98 = sphi 0, %s82
      %s106 = sphi 0, %s108
      %s109 = sphi 0, %s106
      %s110 = sphi 0, %s109
      %s126 = sphi 0, %s110
      %s138 = sphi 0, %s140
      %s141 = sphi 0, %s138
      %s142 = sphi 0, %s141
      %s158 = sphi 0, %s142
      %s166 = sphi 0, %s168
      %s169 = sphi 0, %s166
      %s170 = sphi 0, %s169
      %s186 = sphi 0, %s170
      %s194 = sphi 0, %s196
      %s197 = sphi 0, %s194
      %s198 = sphi 0, %s197
      %s214 = sphi 0, %s198
      %s218 = sphi 0, %s218
      %s220 = sphi 0, %s218
      %s221 = sphi 0, %s220
      %s235 = sphi 0, %s221
      %s239 = sphi 0, %s239
      %s241 = sphi 0, %s239
      %s242 = sphi 0, %s241
      %s256 = sphi 0, %s242
      %s264 = sphi 0, %s266
      %s267 = sphi 0, %s264
      %s268 = sphi 0, %s267
      %s284 = sphi 0, %s268
      %s292 = sphi 0, %s294
      %s295 = sphi 0, %s292
      %s296 = sphi 0, %s295
      %s312 = sphi 0, %s296
    $region4: #{pmaa_conv_block_forward.9} parent=1 // loop_header_branch
      %25 = sbr.rel (%p23) target = $region8
    $region5: #{pmaa_conv_block_forward.9} parent=1 // loop_body
      %s27 = ssub.s32 %s22, 1
      %s28 = ssub.s32 %s22, 2
      %s35 = sadd.s32 1, %s30
      %p36 = scmp.ge.s32.totalorder %s35, 1
      %s37 = scalar_select %p36, 0, %s35
      %s38 = sadd.s32 1, %s29
      %s39 = scalar_select %p36, %s38, %s29
      %p40 = scmp.ge.s32.totalorder %s39, 2
      %s41 = scalar_select %p40, 0, %s39
      %s42 = ssub.s32 %s29, %s41
      %s43 = ssub.s32 %s30, %s37
      %s44 = sor.u32 %s42, %s43
      %p45 = scmp.eq.s32.totalorder %s44, 0
      %s47 = sadd.s32 %s46, 1
      %s48 = scalar_select %p45, %s46, %s47
      %p51 = pneg %p45
      %p52 = scmp.eq.s32.totalorder %s22, 1
      %p53 = por %p51, %p52
      %p54 = scmp.ne.s32.totalorder %s46, %s49
      %p55 = scmp.eq.s32.totalorder %s22, 0
      %p56 = por %p54, %p55
      %p57 = scmp.ne.s32.totalorder %s46, %s49
      %p58 = scmp.eq.s32.totalorder %s27, 1
      %p59 = por %p57, %p58
      %p60 = scmp.ne.s32.totalorder %s49, %s50
      %p61 = scmp.eq.s32.totalorder %s27, 0
      %p62 = por %p60, %p61
      %p63 = scmp.ne.s32.totalorder %s49, %s50
      %p64 = scmp.eq.s32.totalorder %s28, 1
      %p65 = por %p63, %p64
      %p67 = scmp.ne.s32.totalorder %s50, %s66
      %p68 = scmp.eq.s32.totalorder %s28, 0
      %p69 = por %p67, %p68
      %s70 = sadd.s32 %s30, 1
      %s71 = smul.u32 %s70, 2
      %s72 = sadd.s32 %s37, 1
      %s73 = smul.u32 %s72, 2
      %s74 = ssub.s32 %s29, %s41
      %s75 = ssub.s32 %s71, %s73
      %s76 = sor.u32 %s74, %s75
      %p77 = scmp.eq.s32.totalorder %s76, 0
      %s79 = sadd.s32 %s78, 1
      %s80 = scalar_select %p77, %s78, %s79
      %p83 = pneg %p77
      %p84 = scmp.eq.s32.totalorder %s22, 1
      %p85 = por %p83, %p84
      %p86 = scmp.ne.s32.totalorder %s78, %s81
      %p87 = scmp.eq.s32.totalorder %s22, 0
      %p88 = por %p86, %p87
      %p89 = scmp.ne.s32.totalorder %s78, %s81
      %p90 = scmp.eq.s32.totalorder %s27, 1
      %p91 = por %p89, %p90
      %p92 = scmp.ne.s32.totalorder %s81, %s82
      %p93 = scmp.eq.s32.totalorder %s27, 0
      %p94 = por %p92, %p93
      %p95 = scmp.ne.s32.totalorder %s81, %s82
      %p96 = scmp.eq.s32.totalorder %s28, 1
      %p97 = por %p95, %p96
      %p99 = scmp.ne.s32.totalorder %s82, %s98
      %p100 = scmp.eq.s32.totalorder %s28, 0
      %p101 = por %p99, %p100
      %s102 = ssub.s32 %s29, %s41
      %s103 = ssub.s32 %s30, %s37
      %s104 = sor.u32 %s102, %s103
      %p105 = scmp.eq.s32.totalorder %s104, 0
      %s107 = sadd.s32 %s106, 1
      %s108 = scalar_select %p105, %s106, %s107
      %p111 = pneg %p105
      %p112 = scmp.eq.s32.totalorder %s22, 1
      %p113 = por %p111, %p112
      %p114 = scmp.ne.s32.totalorder %s106, %s109
      %p115 = scmp.eq.s32.totalorder %s22, 0
      %p116 = por %p114, %p115
      %p117 = scmp.ne.s32.totalorder %s106, %s109
      %p118 = scmp.eq.s32.totalorder %s27, 1
      %p119 = por %p117, %p118
      %p120 = scmp.ne.s32.totalorder %s109, %s110
      %p121 = scmp.eq.s32.totalorder %s27, 0
      %p122 = por %p120, %p121
      %p123 = scmp.ne.s32.totalorder %s109, %s110
      %p124 = scmp.eq.s32.totalorder %s28, 1
      %p125 = por %p123, %p124
      %p127 = scmp.ne.s32.totalorder %s110, %s126
      %p128 = scmp.eq.s32.totalorder %s28, 0
      %p129 = por %p127, %p128
      %s130 = sadd.s32 %s30, 1
      %s131 = smul.u32 %s130, 2
      %s132 = sadd.s32 %s37, 1
      %s133 = smul.u32 %s132, 2
      %s134 = ssub.s32 %s29, %s41
      %s135 = ssub.s32 %s131, %s133
      %s136 = sor.u32 %s134, %s135
      %p137 = scmp.eq.s32.totalorder %s136, 0
      %s139 = sadd.s32 %s138, 1
      %s140 = scalar_select %p137, %s138, %s139
      %p143 = pneg %p137
      %p144 = scmp.eq.s32.totalorder %s22, 1
      %p145 = por %p143, %p144
      %p146 = scmp.ne.s32.totalorder %s138, %s141
      %p147 = scmp.eq.s32.totalorder %s22, 0
      %p148 = por %p146, %p147
      %p149 = scmp.ne.s32.totalorder %s138, %s141
      %p150 = scmp.eq.s32.totalorder %s27, 1
      %p151 = por %p149, %p150
      %p152 = scmp.ne.s32.totalorder %s141, %s142
      %p153 = scmp.eq.s32.totalorder %s27, 0
      %p154 = por %p152, %p153
      %p155 = scmp.ne.s32.totalorder %s141, %s142
      %p156 = scmp.eq.s32.totalorder %s28, 1
      %p157 = por %p155, %p156
      %p159 = scmp.ne.s32.totalorder %s142, %s158
      %p160 = scmp.eq.s32.totalorder %s28, 0
      %p161 = por %p159, %p160
      %s162 = ssub.s32 %s29, %s41
      %s163 = ssub.s32 %s30, %s37
      %s164 = sor.u32 %s162, %s163
      %p165 = scmp.eq.s32.totalorder %s164, 0
      %s167 = sadd.s32 %s166, 1
      %s168 = scalar_select %p165, %s166, %s167
      %p171 = pneg %p165
      %p172 = scmp.eq.s32.totalorder %s22, 1
      %p173 = por %p171, %p172
      %p174 = scmp.ne.s32.totalorder %s166, %s169
      %p175 = scmp.eq.s32.totalorder %s22, 0
      %p176 = por %p174, %p175
      %p177 = scmp.ne.s32.totalorder %s166, %s169
      %p178 = scmp.eq.s32.totalorder %s27, 1
      %p179 = por %p177, %p178
      %p180 = scmp.ne.s32.totalorder %s169, %s170
      %p181 = scmp.eq.s32.totalorder %s27, 0
      %p182 = por %p180, %p181
      %p183 = scmp.ne.s32.totalorder %s169, %s170
      %p184 = scmp.eq.s32.totalorder %s28, 1
      %p185 = por %p183, %p184
      %p187 = scmp.ne.s32.totalorder %s170, %s186
      %p188 = scmp.eq.s32.totalorder %s28, 0
      %p189 = por %p187, %p188
      %s190 = ssub.s32 %s29, %s41
      %s191 = ssub.s32 %s30, %s37
      %s192 = sor.u32 %s190, %s191
      %p193 = scmp.eq.s32.totalorder %s192, 0
      %s195 = sadd.s32 %s194, 1
      %s196 = scalar_select %p193, %s194, %s195
      %p199 = pneg %p193
      %p200 = scmp.eq.s32.totalorder %s22, 1
      %p201 = por %p199, %p200
      %p202 = scmp.ne.s32.totalorder %s194, %s197
      %p203 = scmp.eq.s32.totalorder %s22, 0
      %p204 = por %p202, %p203
      %p205 = scmp.ne.s32.totalorder %s194, %s197
      %p206 = scmp.eq.s32.totalorder %s27, 1
      %p207 = por %p205, %p206
      %p208 = scmp.ne.s32.totalorder %s197, %s198
      %p209 = scmp.eq.s32.totalorder %s27, 0
      %p210 = por %p208, %p209
      %p211 = scmp.ne.s32.totalorder %s197, %s198
      %p212 = scmp.eq.s32.totalorder %s28, 1
      %p213 = por %p211, %p212
      %p215 = scmp.ne.s32.totalorder %s198, %s214
      %p216 = scmp.eq.s32.totalorder %s28, 0
      %p217 = por %p215, %p216
      %s219 = sadd.s32 %s218, 1
      %p222 = scmp.eq.s32.totalorder %s22, 1
      %p223 = scmp.ne.s32.totalorder %s218, %s220
      %p224 = scmp.eq.s32.totalorder %s22, 0
      %p225 = por %p223, %p224
      %p226 = scmp.ne.s32.totalorder %s218, %s220
      %p227 = scmp.eq.s32.totalorder %s27, 1
      %p228 = por %p226, %p227
      %p229 = scmp.ne.s32.totalorder %s220, %s221
      %p230 = scmp.eq.s32.totalorder %s27, 0
      %p231 = por %p229, %p230
      %p232 = scmp.ne.s32.totalorder %s220, %s221
      %p233 = scmp.eq.s32.totalorder %s28, 1
      %p234 = por %p232, %p233
      %p236 = scmp.ne.s32.totalorder %s221, %s235
      %p237 = scmp.eq.s32.totalorder %s28, 0
      %p238 = por %p236, %p237
      %s240 = sadd.s32 %s239, 1
      %p243 = scmp.eq.s32.totalorder %s22, 1
      %p244 = scmp.ne.s32.totalorder %s239, %s241
      %p245 = scmp.eq.s32.totalorder %s22, 0
      %p246 = por %p244, %p245
      %p247 = scmp.ne.s32.totalorder %s239, %s241
      %p248 = scmp.eq.s32.totalorder %s27, 1
      %p249 = por %p247, %p248
      %p250 = scmp.ne.s32.totalorder %s241, %s242
      %p251 = scmp.eq.s32.totalorder %s27, 0
      %p252 = por %p250, %p251
      %p253 = scmp.ne.s32.totalorder %s241, %s242
      %p254 = scmp.eq.s32.totalorder %s28, 1
      %p255 = por %p253, %p254
      %p257 = scmp.ne.s32.totalorder %s242, %s256
      %p258 = scmp.eq.s32.totalorder %s28, 0
      %p259 = por %p257, %p258
      %s260 = ssub.s32 %s29, %s41
      %s261 = ssub.s32 %s30, %s37
      %s262 = sor.u32 %s260, %s261
      %p263 = scmp.eq.s32.totalorder %s262, 0
      %s265 = sadd.s32 %s264, 1
      %s266 = scalar_select %p263, %s264, %s265
      %p269 = pneg %p263
      %p270 = scmp.eq.s32.totalorder %s22, 1
      %p271 = por %p269, %p270
      %p272 = scmp.ne.s32.totalorder %s264, %s267
      %p273 = scmp.eq.s32.totalorder %s22, 0
      %p274 = por %p272, %p273
      %p275 = scmp.ne.s32.totalorder %s264, %s267
      %p276 = scmp.eq.s32.totalorder %s27, 1
      %p277 = por %p275, %p276
      %p278 = scmp.ne.s32.totalorder %s267, %s268
      %p279 = scmp.eq.s32.totalorder %s27, 0
      %p280 = por %p278, %p279
      %p281 = scmp.ne.s32.totalorder %s267, %s268
      %p282 = scmp.eq.s32.totalorder %s28, 1
      %p283 = por %p281, %p282
      %p285 = scmp.ne.s32.totalorder %s268, %s284
      %p286 = scmp.eq.s32.totalorder %s28, 0
      %p287 = por %p285, %p286
      %s288 = ssub.s32 %s29, %s41
      %s289 = ssub.s32 %s30, %s37
      %s290 = sor.u32 %s288, %s289
      %p291 = scmp.eq.s32.totalorder %s290, 0
      %s293 = sadd.s32 %s292, 1
      %s294 = scalar_select %p291, %s292, %s293
      %p297 = pneg %p291
      %p298 = scmp.eq.s32.totalorder %s22, 1
      %p299 = por %p297, %p298
      %p300 = scmp.ne.s32.totalorder %s292, %s295
      %p301 = scmp.eq.s32.totalorder %s22, 0
      %p302 = por %p300, %p301
      %p303 = scmp.ne.s32.totalorder %s292, %s295
      %p304 = scmp.eq.s32.totalorder %s27, 1
      %p305 = por %p303, %p304
      %p306 = scmp.ne.s32.totalorder %s295, %s296
      %p307 = scmp.eq.s32.totalorder %s27, 0
      %p308 = por %p306, %p307
      %p309 = scmp.ne.s32.totalorder %s295, %s296
      %p310 = scmp.eq.s32.totalorder %s28, 1
      %p311 = por %p309, %p310
      %p313 = scmp.ne.s32.totalorder %s296, %s312
      %p314 = scmp.eq.s32.totalorder %s28, 0
      %p315 = por %p313, %p314
      %p316 = scmp.le.s32.totalorder 1, %s22
      %p317 = scmp.lt.s32.totalorder %s22, 3
      %p318 = pnand %p316, %p317
      %p319 = pneg %p318
      // Predicated region
      $region9: #{pmaa_conv_block_forward.9} parent=5 // pred_check
        _
      $region10: #{pmaa_conv_block_forward.9} parent=5 // pred_check_branch
        %321 = sbr.rel (%p318) target = $region12
      $region11: #{pmaa_conv_block_forward.9} parent=5 // pred_region
        %s322 = ssub.s32 %s22, 1
        // Predicated region
        $region13: #{pmaa_conv_block_forward.9} parent=11 // pred_check
          %p323 = pneg %p231
        $region14: #{pmaa_conv_block_forward.9} parent=11 // pred_check_branch
          %325 = sbr.rel (%p323) target = $region16
        $region15: #{pmaa_conv_block_forward.9} parent=11 // pred_region
          _
        $region16: #{pmaa_conv_block_forward.9} parent=11 // pred_fallthru
          _
        // Predicated region
        $region17: #{pmaa_conv_block_forward.9} parent=11 // pred_check
          %p326 = pneg %p252
        $region18: #{pmaa_conv_block_forward.9} parent=11 // pred_check_branch
          %328 = sbr.rel (%p326) target = $region20
        $region19: #{pmaa_conv_block_forward.9} parent=11 // pred_region
          _
        $region20: #{pmaa_conv_block_forward.9} parent=11 // pred_fallthru
          _
      $region12: #{pmaa_conv_block_forward.9} parent=5 // pred_fallthru
        _
      %p329 = scmp.lt.s32.totalorder %s22, 2
      // Predicated region
      $region21: #{pmaa_conv_block_forward.9} parent=5 // pred_check
        %p330 = pneg %p329
      $region22: #{pmaa_conv_block_forward.9} parent=5 // pred_check_branch
        %332 = sbr.rel (%p330) target = $region24
      $region23: #{pmaa_conv_block_forward.9} parent=5 // pred_region
        // Predicated region
        $region25: #{pmaa_conv_block_forward.9} parent=23 // pred_check
          %p333 = pneg %p56
        $region26: #{pmaa_conv_block_forward.9} parent=23 // pred_check_branch
          %335 = sbr.rel (%p333) target = $region28
        $region27: #{pmaa_conv_block_forward.9} parent=23 // pred_region
          %s336 = smul.u32 2, %s30
          %p337 = scmp.lt.s32.totalorder %s29, 1
          %s338 = scalar_select %p337, %s29, 1
          %p339 = scmp.lt.s32.totalorder %s336, 3
          %s340 = scalar_select %p339, %s336, 3
          %s341 = smul.addr %s338, 4
          %s342 = sadd.s32 %s340, %s341
          %s343 = scalar_lea.vmem %s0, %s342
          %s344 = smul.u32 2, %s30
        $region28: #{pmaa_conv_block_forward.9} parent=23 // pred_fallthru
          _
        // Predicated region
        $region29: #{pmaa_conv_block_forward.9} parent=23 // pred_check
          %p345 = pneg %p88
        $region30: #{pmaa_conv_block_forward.9} parent=23 // pred_check_branch
          %347 = sbr.rel (%p345) target = $region32
        $region31: #{pmaa_conv_block_forward.9} parent=23 // pred_region
          %s348 = sadd.s32 %s30, 1
          %s349 = smul.u32 %s348, 2
          %p350 = scmp.lt.s32.totalorder %s29, 1
          %s351 = scalar_select %p350, %s29, 1
          %p352 = scmp.lt.s32.totalorder %s349, 3
          %s353 = scalar_select %p352, %s349, 3
          %s354 = smul.addr %s351, 4
          %s355 = sadd.s32 %s353, %s354
          %s356 = scalar_lea.vmem %s1, %s355
          %s357 = sadd.s32 %s30, 1
          %s358 = smul.u32 %s357, 2
        $region32: #{pmaa_conv_block_forward.9} parent=23 // pred_fallthru
          _
        // Predicated region
        $region33: #{pmaa_conv_block_forward.9} parent=23 // pred_check
          %p359 = pneg %p116
        $region34: #{pmaa_conv_block_forward.9} parent=23 // pred_check_branch
          %361 = sbr.rel (%p359) target = $region36
        $region35: #{pmaa_conv_block_forward.9} parent=23 // pred_region
          %s362 = smul.u32 2, %s30
          %p363 = scmp.lt.s32.totalorder %s29, 1
          %s364 = scalar_select %p363, %s29, 1
          %p365 = scmp.lt.s32.totalorder %s362, 3
          %s366 = scalar_select %p365, %s362, 3
          %s367 = smul.addr %s364, 4
          %s368 = sadd.s32 %s366, %s367
          %s369 = scalar_lea.vmem %s2, %s368
          %s370 = smul.u32 2, %s30
        $region36: #{pmaa_conv_block_forward.9} parent=23 // pred_fallthru
          _
        // Predicated region
        $region37: #{pmaa_conv_block_forward.9} parent=23 // pred_check
          %p371 = pneg %p148
        $region38: #{pmaa_conv_block_forward.9} parent=23 // pred_check_branch
          %373 = sbr.rel (%p371) target = $region40
        $region39: #{pmaa_conv_block_forward.9} parent=23 // pred_region
          %s374 = sadd.s32 %s30, 1
          %s375 = smul.u32 %s374, 2
          %p376 = scmp.lt.s32.totalorder %s29, 1
          %s377 = scalar_select %p376, %s29, 1
          %p378 = scmp.lt.s32.totalorder %s375, 3
          %s379 = scalar_select %p378, %s375, 3
          %s380 = smul.addr %s377, 4
          %s381 = sadd.s32 %s379, %s380
          %s382 = scalar_lea.vmem %s3, %s381
          %s383 = sadd.s32 %s30, 1
          %s384 = smul.u32 %s383, 2
        $region40: #{pmaa_conv_block_forward.9} parent=23 // pred_fallthru
          _
        // Predicated region
        $region41: #{pmaa_conv_block_forward.9} parent=23 // pred_check
          %p385 = pneg %p176
        $region42: #{pmaa_conv_block_forward.9} parent=23 // pred_check_branch
          %387 = sbr.rel (%p385) target = $region44
        $region43: #{pmaa_conv_block_forward.9} parent=23 // pred_region
          %s388 = smul.u32 2, %s30
          %p389 = scmp.lt.s32.totalorder %s29, 1
          %s390 = scalar_select %p389, %s29, 1
          %p391 = scmp.lt.s32.totalorder %s388, 1
          %s392 = scalar_select %p391, %s388, 1
          %s393 = smul.addr %s390, 2
          %s394 = sadd.s32 %s392, %s393
          %s395 = scalar_lea.vmem %s4, %s394
          %s396 = smul.u32 2, %s30
        $region44: #{pmaa_conv_block_forward.9} parent=23 // pred_fallthru
          _
        // Predicated region
        $region45: #{pmaa_conv_block_forward.9} parent=23 // pred_check
          %p397 = pneg %p204
        $region46: #{pmaa_conv_block_forward.9} parent=23 // pred_check_branch
          %399 = sbr.rel (%p397) target = $region48
        $region47: #{pmaa_conv_block_forward.9} parent=23 // pred_region
          %s400 = smul.u32 2, %s30
          %p401 = scmp.lt.s32.totalorder %s29, 1
          %s402 = scalar_select %p401, %s29, 1
          %p403 = scmp.lt.s32.totalorder %s400, 1
          %s404 = scalar_select %p403, %s400, 1
          %s405 = smul.addr %s402, 2
          %s406 = sadd.s32 %s404, %s405
          %s407 = scalar_lea.vmem %s5, %s406
          %s408 = smul.u32 2, %s30
        $region48: #{pmaa_conv_block_forward.9} parent=23 // pred_fallthru
          _
      $region24: #{pmaa_conv_block_forward.9} parent=5 // pred_fallthru
        _
      %p409 = scmp.le.s32.totalorder 1, %s22
      %p410 = scmp.lt.s32.totalorder %s22, 3
      %p411 = pnand %p409, %p410
      %p412 = pneg %p411
      // Predicated region
      $region49: #{pmaa_conv_block_forward.9} parent=5 // pred_check
        _
      $region50: #{pmaa_conv_block_forward.9} parent=5 // pred_check_branch
        %414 = sbr.rel (%p411) target = $region52
      $region51: #{pmaa_conv_block_forward.9} parent=5 // pred_region
        %s415 = ssub.s32 %s22, 1
        %s416 = smul.u32 2, %s32
        %p417 = scmp.lt.s32.totalorder %s31, 1
        %s418 = scalar_select %p417, %s31, 1
        %p419 = scmp.lt.s32.totalorder %s416, 3
        %s420 = scalar_select %p419, %s416, 3
        %s421 = smul.addr %s418, 4
        %s422 = sadd.s32 %s420, %s421
        %s423 = scalar_lea.vmem %s0, %s422
        %p424 = pneg %p62
        %p425 = pneg %p59
        %s426 = sadd.s32 %s32, 1
        %s427 = smul.u32 %s426, 2
        %p428 = scmp.lt.s32.totalorder %s31, 1
        %s429 = scalar_select %p428, %s31, 1
        %p430 = scmp.lt.s32.totalorder %s427, 3
        %s431 = scalar_select %p430, %s427, 3
        %s432 = smul.addr %s429, 4
        %s433 = sadd.s32 %s431, %s432
        %s434 = scalar_lea.vmem %s1, %s433
        %p435 = pneg %p94
        %p436 = pneg %p91
        %s437 = smul.u32 2, %s32
        %p438 = scmp.lt.s32.totalorder %s31, 1
        %s439 = scalar_select %p438, %s31, 1
        %p440 = scmp.lt.s32.totalorder %s437, 3
        %s441 = scalar_select %p440, %s437, 3
        %s442 = smul.addr %s439, 4
        %s443 = sadd.s32 %s441, %s442
        %s444 = scalar_lea.vmem %s2, %s443
        %p445 = pneg %p122
        %p446 = pneg %p119
        %s447 = sadd.s32 %s32, 1
        %s448 = smul.u32 %s447, 2
        %p449 = scmp.lt.s32.totalorder %s31, 1
        %s450 = scalar_select %p449, %s31, 1
        %p451 = scmp.lt.s32.totalorder %s448, 3
        %s452 = scalar_select %p451, %s448, 3
        %s453 = smul.addr %s450, 4
        %s454 = sadd.s32 %s452, %s453
        %s455 = scalar_lea.vmem %s3, %s454
        %p456 = pneg %p154
        %p457 = pneg %p151
        %s458 = smul.u32 2, %s32
        %p459 = scmp.lt.s32.totalorder %s31, 1
        %s460 = scalar_select %p459, %s31, 1
        %p461 = scmp.lt.s32.totalorder %s458, 1
        %s462 = scalar_select %p461, %s458, 1
        %s463 = smul.addr %s460, 2
        %s464 = sadd.s32 %s462, %s463
        %s465 = scalar_lea.vmem %s4, %s464
        %p466 = pneg %p182
        %p467 = pneg %p179
        %s468 = smul.u32 2, %s32
        %p469 = scmp.lt.s32.totalorder %s31, 1
        %s470 = scalar_select %p469, %s31, 1
        %p471 = scmp.lt.s32.totalorder %s468, 1
        %s472 = scalar_select %p471, %s468, 1
        %s473 = smul.addr %s470, 2
        %s474 = sadd.s32 %s472, %s473
        %s475 = scalar_lea.vmem %s5, %s474
        %p476 = pneg %p210
        %p477 = pneg %p207
        %p478 = pneg %p231
        %p479 = pneg %p228
        %p480 = pneg %p252
        %p481 = pneg %p249
        %p482 = pneg %p280
        %p483 = pneg %p277
        %s484 = sand.u32 %s267, 1
        %s485 = scalar_lea.sflag [#allocation3], %s484
        %s486 = sand.u32 %s267, 1
        %s487 = scalar_lea.vmem [#allocation2], %s486
        %p488 = pneg %p308
        %p489 = pneg %p305
        %s490 = sand.u32 %s295, 1
        %s491 = scalar_lea.sflag [#allocation5], %s490
        %s492 = sand.u32 %s295, 1
        %s493 = scalar_lea.vmem [#allocation4], %s492
        %s494 = smul.u32 2, %s32
        %p495 = scmp.lt.s32.totalorder %s31, 1
        %s496 = scalar_select %p495, %s31, 1
        %p497 = scmp.lt.s32.totalorder %s494, 3
        %s498 = scalar_select %p497, %s494, 3
        %s499 = smul.addr %s496, 4
        %s500 = sadd.s32 %s498, %s499
        %s501 = scalar_lea.vmem %s0, %s500
        %s502 = smul.u32 2, %s32
        %s503 = sadd.s32 %s32, 1
        %s504 = smul.u32 %s503, 2
        %p505 = scmp.lt.s32.totalorder %s31, 1
        %s506 = scalar_select %p505, %s31, 1
        %p507 = scmp.lt.s32.totalorder %s504, 3
        %s508 = scalar_select %p507, %s504, 3
        %s509 = smul.addr %s506, 4
        %s510 = sadd.s32 %s508, %s509
        %s511 = scalar_lea.vmem %s1, %s510
        %s512 = sadd.s32 %s32, 1
        %s513 = smul.u32 %s512, 2
        %s514 = smul.u32 2, %s32
        %p515 = scmp.lt.s32.totalorder %s31, 1
        %s516 = scalar_select %p515, %s31, 1
        %p517 = scmp.lt.s32.totalorder %s514, 3
        %s518 = scalar_select %p517, %s514, 3
        %s519 = smul.addr %s516, 4
        %s520 = sadd.s32 %s518, %s519
        %s521 = scalar_lea.vmem %s2, %s520
        %s522 = smul.u32 2, %s32
        %s523 = sadd.s32 %s32, 1
        %s524 = smul.u32 %s523, 2
        %p525 = scmp.lt.s32.totalorder %s31, 1
        %s526 = scalar_select %p525, %s31, 1
        %p527 = scmp.lt.s32.totalorder %s524, 3
        %s528 = scalar_select %p527, %s524, 3
        %s529 = smul.addr %s526, 4
        %s530 = sadd.s32 %s528, %s529
        %s531 = scalar_lea.vmem %s3, %s530
        %s532 = sadd.s32 %s32, 1
        %s533 = smul.u32 %s532, 2
        %s534 = smul.u32 2, %s32
        %p535 = scmp.lt.s32.totalorder %s31, 1
        %s536 = scalar_select %p535, %s31, 1
        %p537 = scmp.lt.s32.totalorder %s534, 1
        %s538 = scalar_select %p537, %s534, 1
        %s539 = smul.addr %s536, 2
        %s540 = sadd.s32 %s538, %s539
        %s541 = scalar_lea.vmem %s4, %s540
        %s542 = smul.u32 2, %s32
        %s543 = smul.u32 2, %s32
        %p544 = scmp.lt.s32.totalorder %s31, 1
        %s545 = scalar_select %p544, %s31, 1
        %p546 = scmp.lt.s32.totalorder %s543, 1
        %s547 = scalar_select %p546, %s543, 1
        %s548 = smul.addr %s545, 2
        %s549 = sadd.s32 %s547, %s548
        %s550 = scalar_lea.vmem %s5, %s549
        %s551 = smul.u32 2, %s32
        %v553 = vld [vmem:[%s501] sm:$0x1]
        %v554 = vld [vmem:[%s501 + $0x1] sm:$0x1]
        %v555 = vld [vmem:[%s511] sm:$0x1]
        %v556 = vld [vmem:[%s521] sm:$0x1]
        %v557 = vld [vmem:[%s521 + $0x1] sm:$0x1]
        %v558 = vld [vmem:[%s531] sm:$0x1]
        %v559 = vld [vmem:[%s6] sm:$0xf]
        %v560 = vld [vmem:[%s6 + $0x4] sm:$0xf]
        %v561 = vld [vmem:[%s6 + $0x8] sm:$0xf]
        %v562 = vld [vmem:[%s6 + $0xc] sm:$0xf]
        %s563 = scalar_lea.vmem %s6, 16
        %v564 = vld [vmem:[%s563] sm:$0xf]
        %v565 = vld [vmem:[%s563 + $0x4] sm:$0xf]
        %v566 = vld [vmem:[%s563 + $0x8] sm:$0xf]
        %v567 = vld [vmem:[%s563 + $0xc] sm:$0xf]
        %v572 = vunpack.c.l.b16 %v564
        %v573 = vunpack.c.l.b16 %v565
        %v574 = vunpack.c.l.b16 %v566
        %v575 = vunpack.c.l.b16 %v567
        %v576 = vpack.c.b16 %v573, %v572
        %v577 = vpack.c.b16 %v575, %v574
        %vm580 = vcmask 261120
        %v582 = vsel %vm580, %v556, 0
        %584 = vmatpush.bf16.msra.mxu0 0
        %585 = vmatpush.bf16.msra.mxu0 0
        %586 = vmatpush.bf16.msra.mxu0 0
        %587 = vmatpush.bf16.msra.mxu0 0
        %588 = vmatpush.bf16.msra.mxu0 0
        %589 = vmatpush.bf16.msra.mxu0 0
        %590 = vmatpush.bf16.msra.mxu0 %v577
        %591 = vmatpush.bf16.msra.mxu0 %v576
        %592 = vmatmul.bf16.gmra.mxu0 %v582
        %v593 = vpop.f32.mrf.mxu0
        %v594 = vadd.f32 0.0, %v593
        %v595 = vpop.f32.mrf.mxu0
        %596 = vdwg.mxu0
        %v601 = vunpack.c.l.b16 %v559
        %v602 = vunpack.c.l.b16 %v560
        %v603 = vunpack.c.l.b16 %v561
        %v604 = vunpack.c.l.b16 %v562
        %v605 = vpack.c.b16 %v602, %v601
        %v606 = vpack.c.b16 %v604, %v603
        %v610 = vsel %vm580, %v553, 0
        %612 = vmatpush.bf16.msra.mxu0 0
        %613 = vmatpush.bf16.msra.mxu0 0
        %614 = vmatpush.bf16.msra.mxu0 0
        %615 = vmatpush.bf16.msra.mxu0 0
        %616 = vmatpush.bf16.msra.mxu0 0
        %617 = vmatpush.bf16.msra.mxu0 0
        %618 = vmatpush.bf16.msra.mxu0 %v606
        %619 = vmatpush.bf16.msra.mxu0 %v605
        %620 = vmatmul.bf16.gmra.mxu0 %v610
        %v621 = vpop.f32.mrf.mxu0
        %v622 = vadd.f32 %v594, %v621
        %v623 = vpop.f32.mrf.mxu0
        %624 = vdwg.mxu0
        %s625 = scalar_lea.vmem %s6, 32
        %v626 = vld [vmem:[%s625] sm:$0xf]
        %v627 = vld [vmem:[%s625 + $0x4] sm:$0xf]
        %v628 = vld [vmem:[%s625 + $0x8] sm:$0xf]
        %v629 = vld [vmem:[%s625 + $0xc] sm:$0xf]
        %630 = vst [vmem:[#allocation1] ss:$9 sm:$0xff] %v553
        %v631 = vld [vmem:[#allocation1] sm:$0xff]
        %v632 = vshrl.u32 %v631, 16
        %v638 = vunpack.c.l.b16 %v626
        %v639 = vunpack.c.l.b16 %v627
        %v640 = vunpack.c.l.b16 %v628
        %v641 = vunpack.c.l.b16 %v629
        %v642 = vpack.c.b16 %v639, %v638
        %v643 = vpack.c.b16 %v641, %v640
        %v647 = vsel %vm580, %v632, 0
        %649 = vmatpush.bf16.msra.mxu0 0
        %650 = vmatpush.bf16.msra.mxu0 0
        %651 = vmatpush.bf16.msra.mxu0 0
        %652 = vmatpush.bf16.msra.mxu0 0
        %653 = vmatpush.bf16.msra.mxu0 0
        %654 = vmatpush.bf16.msra.mxu0 0
        %655 = vmatpush.bf16.msra.mxu0 %v643
        %656 = vmatpush.bf16.msra.mxu0 %v642
        %657 = vmatmul.bf16.gmra.mxu0 %v647
        %v658 = vpop.f32.mrf.mxu0
        %v659 = vadd.f32 0.0, %v658
        %v660 = vpop.f32.mrf.mxu0
        %661 = vdwg.mxu0
        %v662 = vadd.f32 %v622, %v659
        %s663 = scalar_lea.vmem %s6, 48
        %v664 = vld [vmem:[%s663] sm:$0xf]
        %v665 = vld [vmem:[%s663 + $0x4] sm:$0xf]
        %v666 = vld [vmem:[%s663 + $0x8] sm:$0xf]
        %v667 = vld [vmem:[%s663 + $0xc] sm:$0xf]
        %v672 = vunpack.c.l.b16 %v664
        %v673 = vunpack.c.l.b16 %v665
        %v674 = vunpack.c.l.b16 %v666
        %v675 = vunpack.c.l.b16 %v667
        %v676 = vpack.c.b16 %v673, %v672
        %v677 = vpack.c.b16 %v675, %v674
        %v681 = vsel %vm580, %v554, 0
        %683 = vmatpush.bf16.msra.mxu0 0
        %684 = vmatpush.bf16.msra.mxu0 0
        %685 = vmatpush.bf16.msra.mxu0 0
        %686 = vmatpush.bf16.msra.mxu0 0
        %687 = vmatpush.bf16.msra.mxu0 0
        %688 = vmatpush.bf16.msra.mxu0 0
        %689 = vmatpush.bf16.msra.mxu0 %v677
        %690 = vmatpush.bf16.msra.mxu0 %v676
        %691 = vmatmul.bf16.gmra.mxu0 %v681
        %v692 = vpop.f32.mrf.mxu0
        %v693 = vadd.f32 0.0, %v692
        %v694 = vpop.f32.mrf.mxu0
        %695 = vdwg.mxu0
        %v696 = vadd.f32 %v662, %v693
        %s697 = scalar_lea.vmem %s6, 64
        %v698 = vld [vmem:[%s697] sm:$0xf]
        %v699 = vld [vmem:[%s697 + $0x4] sm:$0xf]
        %v700 = vld [vmem:[%s697 + $0x8] sm:$0xf]
        %v701 = vld [vmem:[%s697 + $0xc] sm:$0xf]
        %v706 = vunpack.c.l.b16 %v698
        %v707 = vunpack.c.l.b16 %v699
        %v708 = vunpack.c.l.b16 %v700
        %v709 = vunpack.c.l.b16 %v701
        %v710 = vpack.c.b16 %v707, %v706
        %v711 = vpack.c.b16 %v709, %v708
        %v715 = vsel %vm580, %v557, 0
        %717 = vmatpush.bf16.msra.mxu0 0
        %718 = vmatpush.bf16.msra.mxu0 0
        %719 = vmatpush.bf16.msra.mxu0 0
        %720 = vmatpush.bf16.msra.mxu0 0
        %721 = vmatpush.bf16.msra.mxu0 0
        %722 = vmatpush.bf16.msra.mxu0 0
        %723 = vmatpush.bf16.msra.mxu0 %v711
        %724 = vmatpush.bf16.msra.mxu0 %v710
        %725 = vmatmul.bf16.gmra.mxu0 %v715
        %v726 = vpop.f32.mrf.mxu0
        %v727 = vadd.f32 0.0, %v726
        %v728 = vpop.f32.mrf.mxu0
        %729 = vdwg.mxu0
        %v730 = vadd.f32 %v696, %v727
        %s731 = scalar_lea.vmem %s6, 80
        %v732 = vld [vmem:[%s731] sm:$0xf]
        %v733 = vld [vmem:[%s731 + $0x4] sm:$0xf]
        %v734 = vld [vmem:[%s731 + $0x8] sm:$0xf]
        %v735 = vld [vmem:[%s731 + $0xc] sm:$0xf]
        %736 = vst [vmem:[#allocation1] ss:$9 sm:$0xff] %v554
        %v737 = vld [vmem:[#allocation1] sm:$0xff]
        %v738 = vshrl.u32 %v737, 16
        %v744 = vunpack.c.l.b16 %v732
        %v745 = vunpack.c.l.b16 %v733
        %v746 = vunpack.c.l.b16 %v734
        %v747 = vunpack.c.l.b16 %v735
        %v748 = vpack.c.b16 %v745, %v744
        %v749 = vpack.c.b16 %v747, %v746
        %v753 = vsel %vm580, %v738, 0
        %755 = vmatpush.bf16.msra.mxu0 0
        %756 = vmatpush.bf16.msra.mxu0 0
        %757 = vmatpush.bf16.msra.mxu0 0
        %758 = vmatpush.bf16.msra.mxu0 0
        %759 = vmatpush.bf16.msra.mxu0 0
        %760 = vmatpush.bf16.msra.mxu0 0
        %761 = vmatpush.bf16.msra.mxu0 %v749
        %762 = vmatpush.bf16.msra.mxu0 %v748
        %763 = vmatmul.bf16.gmra.mxu0 %v753
        %v764 = vpop.f32.mrf.mxu0
        %v765 = vadd.f32 0.0, %v764
        %v766 = vpop.f32.mrf.mxu0
        %767 = vdwg.mxu0
        %v768 = vadd.f32 %v730, %v765
        %s769 = scalar_lea.vmem %s6, 96
        %v770 = vld [vmem:[%s769] sm:$0xf]
        %v771 = vld [vmem:[%s769 + $0x4] sm:$0xf]
        %v772 = vld [vmem:[%s769 + $0x8] sm:$0xf]
        %v773 = vld [vmem:[%s769 + $0xc] sm:$0xf]
        %v778 = vunpack.c.l.b16 %v770
        %v779 = vunpack.c.l.b16 %v771
        %v780 = vunpack.c.l.b16 %v772
        %v781 = vunpack.c.l.b16 %v773
        %v782 = vpack.c.b16 %v779, %v778
        %v783 = vpack.c.b16 %v781, %v780
        %v787 = vsel %vm580, %v555, 0
        %789 = vmatpush.bf16.msra.mxu0 0
        %790 = vmatpush.bf16.msra.mxu0 0
        %791 = vmatpush.bf16.msra.mxu0 0
        %792 = vmatpush.bf16.msra.mxu0 0
        %793 = vmatpush.bf16.msra.mxu0 0
        %794 = vmatpush.bf16.msra.mxu0 0
        %795 = vmatpush.bf16.msra.mxu0 %v783
        %796 = vmatpush.bf16.msra.mxu0 %v782
        %797 = vmatmul.bf16.gmra.mxu0 %v787
        %v798 = vpop.f32.mrf.mxu0
        %v799 = vadd.f32 0.0, %v798
        %v800 = vpop.f32.mrf.mxu0
        %801 = vdwg.mxu0
        %v802 = vadd.f32 %v768, %v799
        %s803 = scalar_lea.vmem %s6, 112
        %v804 = vld [vmem:[%s803] sm:$0xf]
        %v805 = vld [vmem:[%s803 + $0x4] sm:$0xf]
        %v806 = vld [vmem:[%s803 + $0x8] sm:$0xf]
        %v807 = vld [vmem:[%s803 + $0xc] sm:$0xf]
        %v812 = vunpack.c.l.b16 %v804
        %v813 = vunpack.c.l.b16 %v805
        %v814 = vunpack.c.l.b16 %v806
        %v815 = vunpack.c.l.b16 %v807
        %v816 = vpack.c.b16 %v813, %v812
        %v817 = vpack.c.b16 %v815, %v814
        %v821 = vsel %vm580, %v558, 0
        %823 = vmatpush.bf16.msra.mxu0 0
        %824 = vmatpush.bf16.msra.mxu0 0
        %825 = vmatpush.bf16.msra.mxu0 0
        %826 = vmatpush.bf16.msra.mxu0 0
        %827 = vmatpush.bf16.msra.mxu0 0
        %828 = vmatpush.bf16.msra.mxu0 0
        %829 = vmatpush.bf16.msra.mxu0 %v817
        %830 = vmatpush.bf16.msra.mxu0 %v816
        %831 = vmatmul.bf16.gmra.mxu0 %v821
        %v832 = vpop.f32.mrf.mxu0
        %v833 = vadd.f32 0.0, %v832
        %v834 = vpop.f32.mrf.mxu0
        %835 = vdwg.mxu0
        %v836 = vadd.f32 %v802, %v833
        %s837 = scalar_lea.vmem %s6, 128
        %v838 = vld [vmem:[%s837] sm:$0xf]
        %v839 = vld [vmem:[%s837 + $0x4] sm:$0xf]
        %v840 = vld [vmem:[%s837 + $0x8] sm:$0xf]
        %v841 = vld [vmem:[%s837 + $0xc] sm:$0xf]
        %842 = vst [vmem:[#allocation1] ss:$9 sm:$0xff] %v555
        %v843 = vld [vmem:[#allocation1] sm:$0xff]
        %v844 = vshrl.u32 %v843, 16
        %v850 = vunpack.c.l.b16 %v838
        %v851 = vunpack.c.l.b16 %v839
        %v852 = vunpack.c.l.b16 %v840
        %v853 = vunpack.c.l.b16 %v841
        %v854 = vpack.c.b16 %v851, %v850
        %v855 = vpack.c.b16 %v853, %v852
        %v859 = vsel %vm580, %v844, 0
        %861 = vmatpush.bf16.msra.mxu0 0
        %862 = vmatpush.bf16.msra.mxu0 0
        %863 = vmatpush.bf16.msra.mxu0 0
        %864 = vmatpush.bf16.msra.mxu0 0
        %865 = vmatpush.bf16.msra.mxu0 0
        %866 = vmatpush.bf16.msra.mxu0 0
        %867 = vmatpush.bf16.msra.mxu0 %v855
        %868 = vmatpush.bf16.msra.mxu0 %v854
        %869 = vmatmul.bf16.gmra.mxu0 %v859
        %v870 = vpop.f32.mrf.mxu0
        %v871 = vadd.f32 0.0, %v870
        %v872 = vpop.f32.mrf.mxu0
        %873 = vdwg.mxu0
        %v874 = vadd.f32 %v836, %v871
        %v875 = vmax.f32 %v874, 0.0
        %v876 = vpack.c.bf16 %v875, %v875
        %v877 = vld [vmem:[%s7] sm:$0xf]
        %v878 = vld [vmem:[%s7 + $0x4] sm:$0xf]
        %v879 = vld [vmem:[%s7 + $0x8] sm:$0xf]
        %v880 = vld [vmem:[%s7 + $0xc] sm:$0xf]
        %v885 = vunpack.c.l.b16 %v877
        %v886 = vunpack.c.l.b16 %v878
        %v887 = vunpack.c.l.b16 %v879
        %v888 = vunpack.c.l.b16 %v880
        %v889 = vpack.c.b16 %v886, %v885
        %v890 = vpack.c.b16 %v888, %v887
        %v894 = vsel %vm580, %v876, 0
        %896 = vmatpush.bf16.msra.mxu0 0
        %897 = vmatpush.bf16.msra.mxu0 0
        %898 = vmatpush.bf16.msra.mxu0 0
        %899 = vmatpush.bf16.msra.mxu0 0
        %900 = vmatpush.bf16.msra.mxu0 0
        %901 = vmatpush.bf16.msra.mxu0 0
        %902 = vmatpush.bf16.msra.mxu0 %v890
        %903 = vmatpush.bf16.msra.mxu0 %v889
        %904 = vmatmul.bf16.gmra.mxu0 %v894
        %v905 = vpop.f32.mrf.mxu0
        %v906 = vadd.f32 0.0, %v905
        %v907 = vpop.f32.mrf.mxu0
        %908 = vdwg.mxu0
        %v909 = vld [vmem:[%s541] sm:$0x1]
        %v910 = vld [vmem:[%s541 + $0x1] sm:$0x1]
        %v911 = vunpack.c.l.bf16 %v909
        %v912 = vunpack.c.l.bf16 %v910
        %v913 = vld [vmem:[%s550] sm:$0x1]
        %v914 = vld [vmem:[%s550 + $0x1] sm:$0x1]
        %v915 = vunpack.c.l.bf16 %v913
        %v916 = vunpack.c.l.bf16 %v914
        %v917 = vadd.f32 %v911, %v912
        %v918 = vadd.f32 %v917, %v915
        %v919 = vadd.f32 %v918, %v916
        %v920 = vmul.f32 %v919, 0.25
        %v921 = vadd.f32 %v920, %v906
        %v922 = vpack.c.bf16 %v906, %v906
        %vm923 = vcmask 253952
        %vm924 = vsmask.f32 256
        %vm925 = vmand %vm923, %vm924
        %v926 = vld [vmem:[%s487] sm:$0x1]
        %v927 = vsel %vm925, %v922, %v926
        %928 = vst [vmem:[%s487] sm:$0x1] %v927
        %vm929 = vcmask 253952
        %930 = vst.msk [vmem:[%s493] sm:$0x1] %vm929, %v921
        %s931 = sand.u32 %s267, 1
        %s932 = scalar_lea.sflag [#allocation3], %s931
        %s933 = sand.u32 %s267, 1
        %s934 = scalar_lea.vmem [#allocation2], %s933
        %s935 = sand.u32 %s295, 1
        %s936 = scalar_lea.sflag [#allocation5], %s935
        %s937 = sand.u32 %s295, 1
        %s938 = scalar_lea.vmem [#allocation4], %s937
        // Predicated region
        $region53: #{pmaa_conv_block_forward.9} parent=51 // pred_check
          %p939 = pneg %p277
        $region54: #{pmaa_conv_block_forward.9} parent=51 // pred_check_branch
          %941 = sbr.rel (%p939) target = $region56
        $region55: #{pmaa_conv_block_forward.9} parent=51 // pred_region
          %943 = vsyncadd %s932, 0
          %s944 = sadd.s32 %s32, %s31
          %s945 = scalar_lea.hbm %s8, %s944
          %s947 = sshll.u32 %s934, 4
          %s948 = int_to_ptr.vmem [resolvable:$true] %s947
          %s949 = sshll.u32 %s945, 4
          %s950 = int_to_ptr.hbm [resolvable:$true] %s949
          %952 = dma.vmem_to_hbm [thread:$0]  %s948, 16, %s950, %s932
        $region56: #{pmaa_conv_block_forward.9} parent=51 // pred_fallthru
          _
        // Predicated region
        $region57: #{pmaa_conv_block_forward.9} parent=51 // pred_check
          %p953 = pneg %p305
        $region58: #{pmaa_conv_block_forward.9} parent=51 // pred_check_branch
          %955 = sbr.rel (%p953) target = $region60
        $region59: #{pmaa_conv_block_forward.9} parent=51 // pred_region
          %957 = vsyncadd %s936, 0
          %s958 = sadd.s32 %s32, %s31
          %s959 = scalar_lea.hbm %s9, %s958
          %s961 = sshll.u32 %s938, 4
          %s962 = int_to_ptr.vmem [resolvable:$true] %s961
          %s963 = sshll.u32 %s959, 4
          %s964 = int_to_ptr.hbm [resolvable:$true] %s963
          %966 = dma.vmem_to_hbm [thread:$0]  %s962, 16, %s964, %s936
        $region60: #{pmaa_conv_block_forward.9} parent=51 // pred_fallthru
          _
      $region52: #{pmaa_conv_block_forward.9} parent=5 // pred_fallthru
        _
      %p967 = scmp.le.s32.totalorder 2, %s22
      // Predicated region
      $region61: #{pmaa_conv_block_forward.9} parent=5 // pred_check
        %p968 = pneg %p967
      $region62: #{pmaa_conv_block_forward.9} parent=5 // pred_check_branch
        %970 = sbr.rel (%p968) target = $region64
      $region63: #{pmaa_conv_block_forward.9} parent=5 // pred_region
        %s971 = ssub.s32 %s22, 2
        // Predicated region
        $region65: #{pmaa_conv_block_forward.9} parent=63 // pred_check
          %p972 = pneg %p283
        $region66: #{pmaa_conv_block_forward.9} parent=63 // pred_check_branch
          %974 = sbr.rel (%p972) target = $region68
        $region67: #{pmaa_conv_block_forward.9} parent=63 // pred_region
          %s975 = sand.u32 %s268, 1
          %s976 = scalar_lea.sflag [#allocation3], %s975
          %s977 = sand.u32 %s268, 1
          %s978 = scalar_lea.vmem [#allocation2], %s977
          %980 = dma.done %s976, 16
        $region68: #{pmaa_conv_block_forward.9} parent=63 // pred_fallthru
          _
        // Predicated region
        $region69: #{pmaa_conv_block_forward.9} parent=63 // pred_check
          %p981 = pneg %p311
        $region70: #{pmaa_conv_block_forward.9} parent=63 // pred_check_branch
          %983 = sbr.rel (%p981) target = $region72
        $region71: #{pmaa_conv_block_forward.9} parent=63 // pred_region
          %s984 = sand.u32 %s296, 1
          %s985 = scalar_lea.sflag [#allocation5], %s984
          %s986 = sand.u32 %s296, 1
          %s987 = scalar_lea.vmem [#allocation4], %s986
          %989 = dma.done %s985, 16
        $region72: #{pmaa_conv_block_forward.9} parent=63 // pred_fallthru
          _
      $region64: #{pmaa_conv_block_forward.9} parent=5 // pred_fallthru
        _
    $region6: #{pmaa_conv_block_forward.9} parent=1 // loop_footer
      %s26 = sadd.s32 1, %s22
    $region7: #{pmaa_conv_block_forward.9} parent=1 // loop_footer_branch
      %21 = sbr.rel target = $region3
    $region8: #{pmaa_conv_block_forward.9} parent=1 // loop_exit
      _
    %990 = vsyncpa [#allocation3], 1
    %s991 = scalar_lea.sflag [#allocation3], 1
    %992 = vsyncpa %s991, 1
    %993 = vsyncpa [#allocation5], 1
    %s994 = scalar_lea.sflag [#allocation5], 1
    %995 = vsyncpa %s994, 1

</llo_original>
